<compile_context>
chip_gen: v7x
topology: tpu7x:2x2x1
jax: 0.10.0
libtpu: 0.0.40
codegen_flags: <defaults>
</compile_context>

<pallas_src>
import functools

import jax
import jax.numpy as jnp
from jax import lax
from jax.experimental import pallas as pl
from jax.experimental.pallas import tpu as pltpu

F32 = jnp.float32


# ---------------------------------------------------------------------------
# In-kernel helpers (pure jnp, traced inside the kernel bodies)
# ---------------------------------------------------------------------------
def _dot(a, b):
    return jnp.dot(a, b, preferred_element_type=F32)


def _shift_mats(t):
    """Constant (t,t) shift matrices.  s_prev @ x -> x[i-1] (row0=0),
    s_next @ x -> x[i+1] (last row=0)."""
    row = lax.broadcasted_iota(jnp.int32, (t, t), 0)
    col = lax.broadcasted_iota(jnp.int32, (t, t), 1)
    s_prev = (row == col + 1).astype(F32)
    s_next = (row + 1 == col).astype(F32)
    return s_prev, s_next


def _conv3(x, w0, w1, w2, b, s_prev, s_next):
    """K=3, stride 1, pad 1 conv in matmul form.  x:(T,Cin), wk:(Cin,Cout)."""
    return (_dot(_dot(s_prev, x), w0) + _dot(x, w1)
            + _dot(_dot(s_next, x), w2) + b)


def _res_block(h, w0, w1, w2, b3, w1x1, b1x1, s_prev, s_next):
    """jukebox ResConv1DBlock: h + conv1x1(relu(conv3(relu(h))))."""
    t = _conv3(jnp.maximum(h, 0.0), w0, w1, w2, b3, s_prev, s_next)
    return _dot(jnp.maximum(t, 0.0), w1x1) + b1x1 + h


def _sum2(x):
    return jnp.sum(jnp.sum(x, axis=0, keepdims=True), axis=1, keepdims=True)


# ---------------------------------------------------------------------------
# Kernel 1: fused encoder block + VQ bottleneck
# ---------------------------------------------------------------------------
def _encoder_vq_kernel(xe_ref, xo_ref, wd_ref, bd_ref, wr1_ref, br1_ref,
                       wr2_ref, br2_ref, wp_ref, bp_ref, cb_ref, ksq_ref,
                       xq_ref, commit_ref, z_scr, *, batch, t_half):
    s_prev, s_next = _shift_mats(t_half)
    bd = bd_ref[...]
    for b in range(batch):                          # unrolled, no grid overhead
        e = xe_ref[b]                               # (t_half+1, Cin) even phase
        o = xo_ref[b]                               # (t_half+1, Cin) odd phase
        # Strided down-conv (K=4, stride 2, pad 1) == 4 phase matmuls.
        h = (_dot(e[:t_half], wd_ref[0]) + _dot(o[:t_half], wd_ref[1])
             + _dot(e[1:t_half + 1], wd_ref[2])
             + _dot(o[1:t_half + 1], wd_ref[3]) + bd)
        h = _res_block(h, wr1_ref[0], wr1_ref[1], wr1_ref[2], br1_ref[...],
                       wr2_ref[...], br2_ref[...], s_prev, s_next)
        z_b = _conv3(h, wp_ref[0], wp_ref[1], wp_ref[2], bp_ref[...],
                     s_prev, s_next)                # (t_half, E)
        z_scr[b * t_half:(b + 1) * t_half, :] = z_b

    # ---- VQ bottleneck over the flattened (B*t_half, E) block ----
    z = z_scr[...]                                   # (N, E)
    k = cb_ref[...]                                  # (L, E)
    n, e_dim = z.shape
    l_bins = k.shape[0]
    x_sq = jnp.sum(z * z, axis=-1, keepdims=True)                     # (N, 1)
    dots = lax.dot_general(z, k, (((1,), (1,)), ((), ())),
                           preferred_element_type=F32)                # (N, L)
    dist = x_sq - 2.0 * dots + ksq_ref[...]          # (1,L) k-norms precomputed
    min_d = jnp.min(dist, axis=-1, keepdims=True)
    iota = lax.broadcasted_iota(jnp.int32, dist.shape, 1)
    idx = jnp.min(jnp.where(dist <= min_d, iota, l_bins), axis=-1,
                  keepdims=True)                                       # (N, 1)
    onehot = (iota == idx).astype(F32)
    xq = _dot(onehot, k)                                               # (N, E)
    xq_ref[...] = xq
    diff = xq - z
    commit_ref[...] = _sum2(diff * diff) / float(n * e_dim)


# ---------------------------------------------------------------------------
# Kernel 2: both decoders ('dec' + 'decr') fused, ConvTranspose in phase form
# ---------------------------------------------------------------------------
def _dual_decoder_kernel(xq_ref, win_ref, bin_ref, wr1_ref, br1_ref, wr2_ref,
                         br2_ref, wup_ref, bup_ref, wout_ref, bout_ref,
                         ye_ref, yo_ref, *, batch, t_half):
    s_prev, s_next = _shift_mats(t_half)
    xq_all = xq_ref[...]                             # (batch*t_half, E)
    for d in range(2):                               # 0 = full pose, 1 = root
        for b in range(batch):
            xq = xq_all[b * t_half:(b + 1) * t_half]
            h = _conv3(xq, win_ref[d, 0], win_ref[d, 1], win_ref[d, 2],
                       bin_ref[d], s_prev, s_next)
            h = _res_block(h, wr1_ref[d, 0], wr1_ref[d, 1], wr1_ref[d, 2],
                           br1_ref[d], wr2_ref[d], br2_ref[d], s_prev, s_next)
            # ConvTranspose1d(K=4, stride 2, pad 1), sub-pixel decomposition:
            #   u[2m]   = h[m] @ W1 + h[m-1] @ W3
            #   u[2m+1] = h[m] @ W2 + h[m+1] @ W0
            bup = bup_ref[d]
            even_u = (_dot(h, wup_ref[d, 1])
                      + _dot(_dot(s_prev, h), wup_ref[d, 3]) + bup)
            odd_u = (_dot(h, wup_ref[d, 2])
                     + _dot(_dot(s_next, h), wup_ref[d, 0]) + bup)
            # Out conv (K=3, pad 1) applied directly in phase form:
            #   y[2m]   = u[2m-1]@O0 + u[2m]@O1 + u[2m+1]@O2
            #   y[2m+1] = u[2m]@O0   + u[2m+1]@O1 + u[2m+2]@O2
            bo = bout_ref[d]
            y_even = (_dot(_dot(s_prev, odd_u), wout_ref[d, 0])
                      + _dot(even_u, wout_ref[d, 1])
                      + _dot(odd_u, wout_ref[d, 2]) + bo)
            y_odd = (_dot(even_u, wout_ref[d, 0])
                     + _dot(odd_u, wout_ref[d, 1])
                     + _dot(_dot(s_next, even_u), wout_ref[d, 2]) + bo)
            ye_ref[d, b] = y_even
            yo_ref[d, b] = y_odd


# ---------------------------------------------------------------------------
# Kernel 3: fused recons / velocity / acceleration L1 losses
# ---------------------------------------------------------------------------
def _loss_kernel(tgt_ref, pred_ref, rec_ref, vel_ref, acc_ref, *, batch):
    t_len = tgt_ref.shape[1]
    c = tgt_ref.shape[2]
    rec_s = jnp.zeros((1, 1), F32)
    vel_s = jnp.zeros((1, 1), F32)
    acc_s = jnp.zeros((1, 1), F32)
    for b in range(batch):
        tg = tgt_ref[b]                              # (T, C)
        pr = pred_ref[b]
        rec_s = rec_s + _sum2(jnp.abs(pr - tg))
        vel_s = vel_s + _sum2(jnp.abs((pr[1:] - pr[:-1]) - (tg[1:] - tg[:-1])))
        acc_s = acc_s + _sum2(
            jnp.abs((pr[2:] + pr[:-2] - 2.0 * pr[1:-1])
                    - (tg[2:] + tg[:-2] - 2.0 * tg[1:-1])))
    rec_ref[...] = rec_s / float(batch * t_len * c)
    vel_ref[...] = vel_s / float(batch * (t_len - 1) * c)
    acc_ref[...] = acc_s / float(batch * (t_len - 2) * c)


# ---------------------------------------------------------------------------
# Wrapper-side weight packing (torch layout -> per-tap matmul matrices)
# ---------------------------------------------------------------------------
def _pack_conv(w):            # Conv1d (Cout, Cin, K) -> (K, Cin, Cout)
    return jnp.transpose(w, (2, 1, 0)).astype(F32)


def _pack_conv1x1(w):         # Conv1d (Cout, Cin, 1) -> (Cin, Cout)
    return jnp.transpose(w[:, :, 0], (1, 0)).astype(F32)


def _pack_convT(w):           # ConvTranspose1d (Cin, Cout, K) -> (K, Cin, Cout)
    return jnp.transpose(w, (2, 0, 1)).astype(F32)


def _row(b):
    return b.reshape(1, -1).astype(F32)


def _pack_decoders(params, out_dim):
    """Stack 'dec' and 'decr' weights on a leading axis of 2; the root decoder's
    3-channel out-conv is zero-padded to out_dim so both share one output slab."""
    packs = {k: [] for k in ('win', 'bin', 'wr1', 'br1', 'wr2', 'br2',
                             'wup', 'bup', 'wout', 'bout')}
    for prefix in ('dec', 'decr'):
        packs['win'].append(_pack_conv(params[f'{prefix}_in_w']))
        packs['bin'].append(_row(params[f'{prefix}_in_b']))
        packs['wr1'].append(_pack_conv(params[f'{prefix}_res_w1']))
        packs['br1'].append(_row(params[f'{prefix}_res_b1']))
        packs['wr2'].append(_pack_conv1x1(params[f'{prefix}_res_w2']))
        packs['br2'].append(_row(params[f'{prefix}_res_b2']))
        packs['wup'].append(_pack_convT(params[f'{prefix}_up_w']))
        packs['bup'].append(_row(params[f'{prefix}_up_b']))
        wo = _pack_conv(params[f'{prefix}_out_w'])           # (3, E, cout)
        bo = _row(params[f'{prefix}_out_b'])
        pad = out_dim - wo.shape[-1]
        if pad:
            wo = jnp.pad(wo, ((0, 0), (0, 0), (0, pad)))
            bo = jnp.pad(bo, ((0, 0), (0, pad)))
        packs['wout'].append(wo)
        packs['bout'].append(bo)
    order = ('win', 'bin', 'wr1', 'br1', 'wr2', 'br2', 'wup', 'bup',
             'wout', 'bout')
    return tuple(jnp.stack(packs[k], axis=0) for k in order)


# ---------------------------------------------------------------------------
# Full forward (phase = 'motion vqvae')
# ---------------------------------------------------------------------------
def vqvae_root_forward(x, params, hps):
    jc = hps['joint_channel']
    x = x.astype(F32)
    B, T, C = x.shape
    assert T % 2 == 0
    Th = T // 2
    codebook = params['codebook'].astype(F32)
    L, E = codebook.shape
    W = params['enc_down_w'].shape[0]

    x_zero = x.at[:, :, :jc].set(0.0)                 # preprocess == identity

    # 2-phase split of the (pad=1) input for the stride-2 down-conv:
    # no K-fold im2col materialization, same total bytes as the padded input.
    x_pad = jnp.pad(x_zero, ((0, 0), (1, 1), (0, 0)))
    x_even = x_pad[:, 0::2, :]                        # (B, Th+1, C)
    x_odd = x_pad[:, 1::2, :]

    wd = _pack_conv(params['enc_down_w'])
    bd = _row(params['enc_down_b'])
    wr1 = _pack_conv(params['enc_res_w1'])
    br1 = _row(params['enc_res_b1'])
    wr2 = _pack_conv1x1(params['enc_res_w2'])
    br2 = _row(params['enc_res_b2'])
    wp = _pack_conv(params['enc_proj_w'])
    bp = _row(params['enc_proj_b'])
    ksq = jnp.sum(codebook * codebook, axis=-1)[None, :]   # (1, L), VPU-side

    N = B * Th
    flops1 = 2 * N * (4 * C * W + 4 * W * W + 3 * W * E + 2 * E * L)
    cost1 = pl.CostEstimate(
        flops=int(flops1), transcendentals=0,
        bytes_accessed=4 * int(x_even.size + x_odd.size + wd.size + wr1.size
                               + wr2.size + wp.size + codebook.size + N * E))

    xq_flat, commit = pl.pallas_call(
        functools.partial(_encoder_vq_kernel, batch=B, t_half=Th),
        out_shape=(jax.ShapeDtypeStruct((N, E), F32),
                   jax.ShapeDtypeStruct((1, 1), F32)),
        scratch_shapes=[pltpu.VMEM((N, E), F32)],
        cost_estimate=cost1,
    )(x_even, x_odd, wd, bd, wr1, br1, wr2, br2, wp, bp, codebook, ksq)

    dec_pack = _pack_decoders(params, C)
    flops2 = 2 * 2 * N * (3 * E * W + 4 * W * W + 4 * W * E + 6 * E * C)
    cost2 = pl.CostEstimate(
        flops=int(flops2), transcendentals=0,
        bytes_accessed=4 * int(xq_flat.size
                               + sum(int(a.size) for a in dec_pack)
                               + 2 * 2 * B * Th * C))

    y_even, y_odd = pl.pallas_call(
        functools.partial(_dual_decoder_kernel, batch=B, t_half=Th),
        out_shape=(jax.ShapeDtypeStruct((2, B, Th, C), F32),
                   jax.ShapeDtypeStruct((2, B, Th, C), F32)),
        cost_estimate=cost2,
    )(xq_flat, *dec_pack)

    def interleave(even, odd):                        # (B,Th,C)x2 -> (B,2Th,C)
        return jnp.stack([even, odd], axis=2).reshape(
            even.shape[0], 2 * even.shape[1], even.shape[2])

    x_out_zero = interleave(y_even[0], y_odd[0])      # (B, T, C) full decoder
    x_out_vel = interleave(y_even[1], y_odd[1])[:, :, :jc]
    x_out = jnp.concatenate([x_out_vel, x_out_zero[:, :, jc:]], axis=-1)

    recons, velocity, acceleration = pl.pallas_call(
        functools.partial(_loss_kernel, batch=B),
        out_shape=(jax.ShapeDtypeStruct((1, 1), F32),) * 3,
    )(x_zero, x_out_zero)

    recons_loss = recons[0, 0]
    velocity_loss = velocity[0, 0]
    acceleration_loss = acceleration[0, 0]
    commit_loss = commit[0, 0]

    loss = (recons_loss + commit_loss * hps['commit']
            + hps['vel'] * velocity_loss + hps['acc'] * acceleration_loss)
    l1_loss = recons_loss
    metrics = {
        'recons_loss_l1': recons_loss,
        'recons_loss': recons_loss,
        'l1_loss': l1_loss,
        'velocity_loss': l1_loss,        # reference stores l1_loss here (quirk)
        'acceleration_loss': acceleration_loss,
    }
    return x_out, loss, metrics


# ---------------------------------------------------------------------------
# Deterministic synthetic parameters (shapes follow the torch module layers)
# ---------------------------------------------------------------------------
def init_params(key, *, input_dim, joint_channel, width, emb_width, l_bins):
    def p(k, shape, scale=0.1):
        return scale * jax.random.normal(k, shape, dtype=F32)

    keys = iter(jax.random.split(key, 32))
    params = {
        # Encoder level 0: Conv1d(in,32,4,2,1) / ResConv1DBlock / Conv1d(32,emb,3,1,1)
        'enc_down_w': p(next(keys), (width, input_dim, 4)),
        'enc_down_b': p(next(keys), (width,)),
        'enc_res_w1': p(next(keys), (width, width, 3)),
        'enc_res_b1': p(next(keys), (width,)),
        'enc_res_w2': p(next(keys), (width, width, 1)),
        'enc_res_b2': p(next(keys), (width,)),
        'enc_proj_w': p(next(keys), (emb_width, width, 3)),
        'enc_proj_b': p(next(keys), (emb_width,)),
        # Bottleneck codebook (l_bins, emb_width)
        'codebook': p(next(keys), (l_bins, emb_width), scale=1.0),
    }
    # Decoder (full pose) and decoder_root (joint_channel only)
    for prefix, cout in (('dec', input_dim), ('decr', joint_channel)):
        params.update({
            f'{prefix}_in_w': p(next(keys), (width, emb_width, 3)),
            f'{prefix}_in_b': p(next(keys), (width,)),
            f'{prefix}_res_w1': p(next(keys), (width, width, 3)),
            f'{prefix}_res_b1': p(next(keys), (width,)),
            f'{prefix}_res_w2': p(next(keys), (width, width, 1)),
            f'{prefix}_res_b2': p(next(keys), (width,)),
            f'{prefix}_up_w': p(next(keys), (width, emb_width, 4)),  # ConvTranspose (Cin,Cout,K)
            f'{prefix}_up_b': p(next(keys), (emb_width,)),
            f'{prefix}_out_w': p(next(keys), (cout, emb_width, 3)),
            f'{prefix}_out_b': p(next(keys), (cout,)),
        })
    return params


# TODO(synk): training-time codebook bookkeeping (k-means init / EMA restart in
# Bottleneck, update_k) and eval()/no_grad mode toggling have no kernel-side
# equivalent and are omitted; only inference-value semantics are reproduced.

if __name__ == "__main__":
    hps = dict(sample_length=16, levels=1, emb_width=16, l_bins=32,
               width=32, depth=1, joint_channel=3,
               commit=0.02, vel=1.0, acc=1.0)
    input_dim = 24

    key = jax.random.PRNGKey(0)
    kx, kp = jax.random.split(key)
    x = jax.random.normal(kx, (2, hps['sample_length'], input_dim),
                          dtype=jnp.float32)
    params = init_params(kp, input_dim=input_dim,
                         joint_channel=hps['joint_channel'],
                         width=hps['width'], emb_width=hps['emb_width'],
                         l_bins=hps['l_bins'])

    fwd = jax.jit(lambda xx, pp: vqvae_root_forward(xx, pp, hps))
    x_out, loss, metrics = fwd(x, params)
    jax.block_until_ready((x_out, loss, metrics))
    assert x_out.shape == (2, hps['sample_length'], input_dim)
    print("KERNEL_OK")
</pallas_src>

<mosaic_0001>
module attributes {stable_mosaic.version = 11 : i64} {
  func.func @_encoder_vq_kernel(%arg0: memref<2x9x24xf32, #tpu.memory_space<vmem>>, %arg1: memref<2x9x24xf32, #tpu.memory_space<vmem>>, %arg2: memref<4x24x32xf32, #tpu.memory_space<vmem>>, %arg3: memref<1x32xf32, #tpu.memory_space<vmem>>, %arg4: memref<3x32x32xf32, #tpu.memory_space<vmem>>, %arg5: memref<1x32xf32, #tpu.memory_space<vmem>>, %arg6: memref<32x32xf32, #tpu.memory_space<vmem>>, %arg7: memref<1x32xf32, #tpu.memory_space<vmem>>, %arg8: memref<3x32x16xf32, #tpu.memory_space<vmem>>, %arg9: memref<1x16xf32, #tpu.memory_space<vmem>>, %arg10: memref<32x16xf32, #tpu.memory_space<vmem>>, %arg11: memref<1x32xf32, #tpu.memory_space<vmem>>, %arg12: memref<16x16xf32, #tpu.memory_space<vmem>>, %arg13: memref<1x1xf32, #tpu.memory_space<vmem>>, %arg14: memref<16x16xf32, #tpu.memory_space<vmem>>) attributes {dimension_semantics = [], scalar_prefetch = 0 : i64, scratch_operands = 1 : i64, tpu.core_type = #tpu.core_type<tc>} {
    %0 = tpu.iota {dimensions = array<i32: 0>} : vector<8x8xi32>
    %1 = tpu.iota {dimensions = array<i32: 1>} : vector<8x8xi32>
    %c1_i32 = arith.constant 1 : i32
    %2 = vector.broadcast %c1_i32 : i32 to vector<8x8xi32>
    %3 = arith.addi %1, %2 : vector<8x8xi32>
    %4 = arith.cmpi eq, %0, %3 : vector<8x8xi32>
    %5 = arith.extui %4 : vector<8x8xi1> to vector<8x8xi32>
    %6 = arith.sitofp %5 : vector<8x8xi32> to vector<8x8xf32>
    %c1_i32_0 = arith.constant 1 : i32
    %7 = vector.broadcast %c1_i32_0 : i32 to vector<8x8xi32>
    %8 = arith.addi %0, %7 : vector<8x8xi32>
    %9 = arith.cmpi eq, %8, %1 : vector<8x8xi32>
    %10 = arith.extui %9 : vector<8x8xi1> to vector<8x8xi32>
    %11 = arith.sitofp %10 : vector<8x8xi32> to vector<8x8xf32>
    %c0 = arith.constant 0 : index
    %c0_1 = arith.constant 0 : index
    %12 = vector.load %arg3[%c0, %c0_1] : memref<1x32xf32, #tpu.memory_space<vmem>>, vector<1x32xf32>
    %c0_2 = arith.constant 0 : index
    %c0_3 = arith.constant 0 : index
    %c0_4 = arith.constant 0 : index
    %13 = vector.load %arg0[%c0_2, %c0_3, %c0_4] : memref<2x9x24xf32, #tpu.memory_space<vmem>>, vector<1x9x24xf32>
    %14 = vector.shape_cast %13 : vector<1x9x24xf32> to vector<9x24xf32>
    %c0_5 = arith.constant 0 : index
    %c0_6 = arith.constant 0 : index
    %c0_7 = arith.constant 0 : index
    %15 = vector.load %arg1[%c0_5, %c0_6, %c0_7] : memref<2x9x24xf32, #tpu.memory_space<vmem>>, vector<1x9x24xf32>
    %16 = vector.shape_cast %15 : vector<1x9x24xf32> to vector<9x24xf32>
    %17 = vector.extract_strided_slice %14 {offsets = [0, 0], sizes = [8, 24], strides = [1, 1]} : vector<9x24xf32> to vector<8x24xf32>
    %c0_8 = arith.constant 0 : index
    %c0_9 = arith.constant 0 : index
    %c0_10 = arith.constant 0 : index
    %18 = vector.load %arg2[%c0_8, %c0_9, %c0_10] : memref<4x24x32xf32, #tpu.memory_space<vmem>>, vector<1x24x32xf32>
    %19 = vector.shape_cast %18 : vector<1x24x32xf32> to vector<24x32xf32>
    %cst = arith.constant dense<0.000000e+00> : vector<8x32xf32>
    %20 = tpu.matmul %17, %19, %cst {dimension_numbers = #tpu.dot_dimension_numbers<[1], [0], [0], [1], [0, 0, 1, 1], [], []>} : vector<8x24xf32>, vector<24x32xf32>, vector<8x32xf32> -> vector<8x32xf32>
    %21 = vector.extract_strided_slice %16 {offsets = [0, 0], sizes = [8, 24], strides = [1, 1]} : vector<9x24xf32> to vector<8x24xf32>
    %c1 = arith.constant 1 : index
    %c0_11 = arith.constant 0 : index
    %c0_12 = arith.constant 0 : index
    %22 = vector.load %arg2[%c1, %c0_11, %c0_12] : memref<4x24x32xf32, #tpu.memory_space<vmem>>, vector<1x24x32xf32>
    %23 = vector.shape_cast %22 : vector<1x24x32xf32> to vector<24x32xf32>
    %cst_13 = arith.constant dense<0.000000e+00> : vector<8x32xf32>
    %24 = tpu.matmul %21, %23, %cst_13 {dimension_numbers = #tpu.dot_dimension_numbers<[1], [0], [0], [1], [0, 0, 1, 1], [], []>} : vector<8x24xf32>, vector<24x32xf32>, vector<8x32xf32> -> vector<8x32xf32>
    %25 = arith.addf %20, %24 : vector<8x32xf32>
    %26 = vector.extract_strided_slice %14 {offsets = [1, 0], sizes = [8, 24], strides = [1, 1]} : vector<9x24xf32> to vector<8x24xf32>
    %c2 = arith.constant 2 : index
    %c0_14 = arith.constant 0 : index
    %c0_15 = arith.constant 0 : index
    %27 = vector.load %arg2[%c2, %c0_14, %c0_15] : memref<4x24x32xf32, #tpu.memory_space<vmem>>, vector<1x24x32xf32>
    %28 = vector.shape_cast %27 : vector<1x24x32xf32> to vector<24x32xf32>
    %cst_16 = arith.constant dense<0.000000e+00> : vector<8x32xf32>
    %29 = tpu.matmul %26, %28, %cst_16 {dimension_numbers = #tpu.dot_dimension_numbers<[1], [0], [0], [1], [0, 0, 1, 1], [], []>} : vector<8x24xf32>, vector<24x32xf32>, vector<8x32xf32> -> vector<8x32xf32>
    %30 = arith.addf %25, %29 : vector<8x32xf32>
    %31 = vector.extract_strided_slice %16 {offsets = [1, 0], sizes = [8, 24], strides = [1, 1]} : vector<9x24xf32> to vector<8x24xf32>
    %c3 = arith.constant 3 : index
    %c0_17 = arith.constant 0 : index
    %c0_18 = arith.constant 0 : index
    %32 = vector.load %arg2[%c3, %c0_17, %c0_18] : memref<4x24x32xf32, #tpu.memory_space<vmem>>, vector<1x24x32xf32>
    %33 = vector.shape_cast %32 : vector<1x24x32xf32> to vector<24x32xf32>
    %cst_19 = arith.constant dense<0.000000e+00> : vector<8x32xf32>
    %34 = tpu.matmul %31, %33, %cst_19 {dimension_numbers = #tpu.dot_dimension_numbers<[1], [0], [0], [1], [0, 0, 1, 1], [], []>} : vector<8x24xf32>, vector<24x32xf32>, vector<8x32xf32> -> vector<8x32xf32>
    %35 = arith.addf %30, %34 : vector<8x32xf32>
    %36 = vector.broadcast %12 : vector<1x32xf32> to vector<8x32xf32>
    %37 = arith.addf %35, %36 : vector<8x32xf32>
    %c0_20 = arith.constant 0 : index
    %c0_21 = arith.constant 0 : index
    %c0_22 = arith.constant 0 : index
    %38 = vector.load %arg4[%c0_20, %c0_21, %c0_22] : memref<3x32x32xf32, #tpu.memory_space<vmem>>, vector<1x32x32xf32>
    %39 = vector.shape_cast %38 : vector<1x32x32xf32> to vector<32x32xf32>
    %c1_23 = arith.constant 1 : index
    %c0_24 = arith.constant 0 : index
    %c0_25 = arith.constant 0 : index
    %40 = vector.load %arg4[%c1_23, %c0_24, %c0_25] : memref<3x32x32xf32, #tpu.memory_space<vmem>>, vector<1x32x32xf32>
    %41 = vector.shape_cast %40 : vector<1x32x32xf32> to vector<32x32xf32>
    %c2_26 = arith.constant 2 : index
    %c0_27 = arith.constant 0 : index
    %c0_28 = arith.constant 0 : index
    %42 = vector.load %arg4[%c2_26, %c0_27, %c0_28] : memref<3x32x32xf32, #tpu.memory_space<vmem>>, vector<1x32x32xf32>
    %43 = vector.shape_cast %42 : vector<1x32x32xf32> to vector<32x32xf32>
    %c0_29 = arith.constant 0 : index
    %c0_30 = arith.constant 0 : index
    %44 = vector.load %arg5[%c0_29, %c0_30] : memref<1x32xf32, #tpu.memory_space<vmem>>, vector<1x32xf32>
    %c0_31 = arith.constant 0 : index
    %c0_32 = arith.constant 0 : index
    %45 = vector.load %arg6[%c0_31, %c0_32] : memref<32x32xf32, #tpu.memory_space<vmem>>, vector<32x32xf32>
    %c0_33 = arith.constant 0 : index
    %c0_34 = arith.constant 0 : index
    %46 = vector.load %arg7[%c0_33, %c0_34] : memref<1x32xf32, #tpu.memory_space<vmem>>, vector<1x32xf32>
    %cst_35 = arith.constant 0.000000e+00 : f32
    %47 = vector.broadcast %cst_35 : f32 to vector<8x32xf32>
    %48 = arith.maximumf %37, %47 : vector<8x32xf32>
    %cst_36 = arith.constant dense<0.000000e+00> : vector<8x32xf32>
    %49 = tpu.matmul %6, %48, %cst_36 {dimension_numbers = #tpu.dot_dimension_numbers<[1], [0], [0], [1], [0, 0, 1, 1], [], []>} : vector<8x8xf32>, vector<8x32xf32>, vector<8x32xf32> -> vector<8x32xf32>
    %cst_37 = arith.constant dense<0.000000e+00> : vector<8x32xf32>
    %50 = tpu.matmul %49, %39, %cst_37 {dimension_numbers = #tpu.dot_dimension_numbers<[1], [0], [0], [1], [0, 0, 1, 1], [], []>} : vector<8x32xf32>, vector<32x32xf32>, vector<8x32xf32> -> vector<8x32xf32>
    %cst_38 = arith.constant dense<0.000000e+00> : vector<8x32xf32>
    %51 = tpu.matmul %48, %41, %cst_38 {dimension_numbers = #tpu.dot_dimension_numbers<[1], [0], [0], [1], [0, 0, 1, 1], [], []>} : vector<8x32xf32>, vector<32x32xf32>, vector<8x32xf32> -> vector<8x32xf32>
    %52 = arith.addf %50, %51 : vector<8x32xf32>
    %cst_39 = arith.constant dense<0.000000e+00> : vector<8x32xf32>
    %53 = tpu.matmul %11, %48, %cst_39 {dimension_numbers = #tpu.dot_dimension_numbers<[1], [0], [0], [1], [0, 0, 1, 1], [], []>} : vector<8x8xf32>, vector<8x32xf32>, vector<8x32xf32> -> vector<8x32xf32>
    %cst_40 = arith.constant dense<0.000000e+00> : vector<8x32xf32>
    %54 = tpu.matmul %53, %43, %cst_40 {dimension_numbers = #tpu.dot_dimension_numbers<[1], [0], [0], [1], [0, 0, 1, 1], [], []>} : vector<8x32xf32>, vector<32x32xf32>, vector<8x32xf32> -> vector<8x32xf32>
    %55 = arith.addf %52, %54 : vector<8x32xf32>
    %56 = vector.broadcast %44 : vector<1x32xf32> to vector<8x32xf32>
    %57 = arith.addf %55, %56 : vector<8x32xf32>
    %cst_41 = arith.constant 0.000000e+00 : f32
    %58 = vector.broadcast %cst_41 : f32 to vector<8x32xf32>
    %59 = arith.maximumf %57, %58 : vector<8x32xf32>
    %cst_42 = arith.constant dense<0.000000e+00> : vector<8x32xf32>
    %60 = tpu.matmul %59, %45, %cst_42 {dimension_numbers = #tpu.dot_dimension_numbers<[1], [0], [0], [1], [0, 0, 1, 1], [], []>} : vector<8x32xf32>, vector<32x32xf32>, vector<8x32xf32> -> vector<8x32xf32>
    %61 = vector.broadcast %46 : vector<1x32xf32> to vector<8x32xf32>
    %62 = arith.addf %60, %61 : vector<8x32xf32>
    %63 = arith.addf %62, %37 : vector<8x32xf32>
    %c0_43 = arith.constant 0 : index
    %c0_44 = arith.constant 0 : index
    %c0_45 = arith.constant 0 : index
    %64 = vector.load %arg8[%c0_43, %c0_44, %c0_45] : memref<3x32x16xf32, #tpu.memory_space<vmem>>, vector<1x32x16xf32>
    %65 = vector.shape_cast %64 : vector<1x32x16xf32> to vector<32x16xf32>
    %c1_46 = arith.constant 1 : index
    %c0_47 = arith.constant 0 : index
    %c0_48 = arith.constant 0 : index
    %66 = vector.load %arg8[%c1_46, %c0_47, %c0_48] : memref<3x32x16xf32, #tpu.memory_space<vmem>>, vector<1x32x16xf32>
    %67 = vector.shape_cast %66 : vector<1x32x16xf32> to vector<32x16xf32>
    %c2_49 = arith.constant 2 : index
    %c0_50 = arith.constant 0 : index
    %c0_51 = arith.constant 0 : index
    %68 = vector.load %arg8[%c2_49, %c0_50, %c0_51] : memref<3x32x16xf32, #tpu.memory_space<vmem>>, vector<1x32x16xf32>
    %69 = vector.shape_cast %68 : vector<1x32x16xf32> to vector<32x16xf32>
    %c0_52 = arith.constant 0 : index
    %c0_53 = arith.constant 0 : index
    %70 = vector.load %arg9[%c0_52, %c0_53] : memref<1x16xf32, #tpu.memory_space<vmem>>, vector<1x16xf32>
    %cst_54 = arith.constant dense<0.000000e+00> : vector<8x32xf32>
    %71 = tpu.matmul %6, %63, %cst_54 {dimension_numbers = #tpu.dot_dimension_numbers<[1], [0], [0], [1], [0, 0, 1, 1], [], []>} : vector<8x8xf32>, vector<8x32xf32>, vector<8x32xf32> -> vector<8x32xf32>
    %cst_55 = arith.constant dense<0.000000e+00> : vector<8x16xf32>
    %72 = tpu.matmul %71, %65, %cst_55 {dimension_numbers = #tpu.dot_dimension_numbers<[1], [0], [0], [1], [0, 0, 1, 1], [], []>} : vector<8x32xf32>, vector<32x16xf32>, vector<8x16xf32> -> vector<8x16xf32>
    %cst_56 = arith.constant dense<0.000000e+00> : vector<8x16xf32>
    %73 = tpu.matmul %63, %67, %cst_56 {dimension_numbers = #tpu.dot_dimension_numbers<[1], [0], [0], [1], [0, 0, 1, 1], [], []>} : vector<8x32xf32>, vector<32x16xf32>, vector<8x16xf32> -> vector<8x16xf32>
    %74 = arith.addf %72, %73 : vector<8x16xf32>
    %cst_57 = arith.constant dense<0.000000e+00> : vector<8x32xf32>
    %75 = tpu.matmul %11, %63, %cst_57 {dimension_numbers = #tpu.dot_dimension_numbers<[1], [0], [0], [1], [0, 0, 1, 1], [], []>} : vector<8x8xf32>, vector<8x32xf32>, vector<8x32xf32> -> vector<8x32xf32>
    %cst_58 = arith.constant dense<0.000000e+00> : vector<8x16xf32>
    %76 = tpu.matmul %75, %69, %cst_58 {dimension_numbers = #tpu.dot_dimension_numbers<[1], [0], [0], [1], [0, 0, 1, 1], [], []>} : vector<8x32xf32>, vector<32x16xf32>, vector<8x16xf32> -> vector<8x16xf32>
    %77 = arith.addf %74, %76 : vector<8x16xf32>
    %78 = vector.broadcast %70 : vector<1x16xf32> to vector<8x16xf32>
    %79 = arith.addf %77, %78 : vector<8x16xf32>
    %c0_59 = arith.constant 0 : index
    %c0_60 = arith.constant 0 : index
    %80 = vector.load %arg14[%c0_59, %c0_60] : memref<16x16xf32, #tpu.memory_space<vmem>>, vector<8x16xf32>
    tpu.vector_store %arg14[%c0_59, %c0_60], %79 {strides = array<i32>} : memref<16x16xf32, #tpu.memory_space<vmem>>, vector<8x16xf32>,
    %c1_61 = arith.constant 1 : index
    %c0_62 = arith.constant 0 : index
    %c0_63 = arith.constant 0 : index
    %81 = vector.load %arg0[%c1_61, %c0_62, %c0_63] : memref<2x9x24xf32, #tpu.memory_space<vmem>>, vector<1x9x24xf32>
    %82 = vector.shape_cast %81 : vector<1x9x24xf32> to vector<9x24xf32>
    %c1_64 = arith.constant 1 : index
    %c0_65 = arith.constant 0 : index
    %c0_66 = arith.constant 0 : index
    %83 = vector.load %arg1[%c1_64, %c0_65, %c0_66] : memref<2x9x24xf32, #tpu.memory_space<vmem>>, vector<1x9x24xf32>
    %84 = vector.shape_cast %83 : vector<1x9x24xf32> to vector<9x24xf32>
    %85 = vector.extract_strided_slice %82 {offsets = [0, 0], sizes = [8, 24], strides = [1, 1]} : vector<9x24xf32> to vector<8x24xf32>
    %c0_67 = arith.constant 0 : index
    %c0_68 = arith.constant 0 : index
    %c0_69 = arith.constant 0 : index
    %86 = vector.load %arg2[%c0_67, %c0_68, %c0_69] : memref<4x24x32xf32, #tpu.memory_space<vmem>>, vector<1x24x32xf32>
    %87 = vector.shape_cast %86 : vector<1x24x32xf32> to vector<24x32xf32>
    %cst_70 = arith.constant dense<0.000000e+00> : vector<8x32xf32>
    %88 = tpu.matmul %85, %87, %cst_70 {dimension_numbers = #tpu.dot_dimension_numbers<[1], [0], [0], [1], [0, 0, 1, 1], [], []>} : vector<8x24xf32>, vector<24x32xf32>, vector<8x32xf32> -> vector<8x32xf32>
    %89 = vector.extract_strided_slice %84 {offsets = [0, 0], sizes = [8, 24], strides = [1, 1]} : vector<9x24xf32> to vector<8x24xf32>
    %c1_71 = arith.constant 1 : index
    %c0_72 = arith.constant 0 : index
    %c0_73 = arith.constant 0 : index
    %90 = vector.load %arg2[%c1_71, %c0_72, %c0_73] : memref<4x24x32xf32, #tpu.memory_space<vmem>>, vector<1x24x32xf32>
    %91 = vector.shape_cast %90 : vector<1x24x32xf32> to vector<24x32xf32>
    %cst_74 = arith.constant dense<0.000000e+00> : vector<8x32xf32>
    %92 = tpu.matmul %89, %91, %cst_74 {dimension_numbers = #tpu.dot_dimension_numbers<[1], [0], [0], [1], [0, 0, 1, 1], [], []>} : vector<8x24xf32>, vector<24x32xf32>, vector<8x32xf32> -> vector<8x32xf32>
    %93 = arith.addf %88, %92 : vector<8x32xf32>
    %94 = vector.extract_strided_slice %82 {offsets = [1, 0], sizes = [8, 24], strides = [1, 1]} : vector<9x24xf32> to vector<8x24xf32>
    %c2_75 = arith.constant 2 : index
    %c0_76 = arith.constant 0 : index
    %c0_77 = arith.constant 0 : index
    %95 = vector.load %arg2[%c2_75, %c0_76, %c0_77] : memref<4x24x32xf32, #tpu.memory_space<vmem>>, vector<1x24x32xf32>
    %96 = vector.shape_cast %95 : vector<1x24x32xf32> to vector<24x32xf32>
    %cst_78 = arith.constant dense<0.000000e+00> : vector<8x32xf32>
    %97 = tpu.matmul %94, %96, %cst_78 {dimension_numbers = #tpu.dot_dimension_numbers<[1], [0], [0], [1], [0, 0, 1, 1], [], []>} : vector<8x24xf32>, vector<24x32xf32>, vector<8x32xf32> -> vector<8x32xf32>
    %98 = arith.addf %93, %97 : vector<8x32xf32>
    %99 = vector.extract_strided_slice %84 {offsets = [1, 0], sizes = [8, 24], strides = [1, 1]} : vector<9x24xf32> to vector<8x24xf32>
    %c3_79 = arith.constant 3 : index
    %c0_80 = arith.constant 0 : index
    %c0_81 = arith.constant 0 : index
    %100 = vector.load %arg2[%c3_79, %c0_80, %c0_81] : memref<4x24x32xf32, #tpu.memory_space<vmem>>, vector<1x24x32xf32>
    %101 = vector.shape_cast %100 : vector<1x24x32xf32> to vector<24x32xf32>
    %cst_82 = arith.constant dense<0.000000e+00> : vector<8x32xf32>
    %102 = tpu.matmul %99, %101, %cst_82 {dimension_numbers = #tpu.dot_dimension_numbers<[1], [0], [0], [1], [0, 0, 1, 1], [], []>} : vector<8x24xf32>, vector<24x32xf32>, vector<8x32xf32> -> vector<8x32xf32>
    %103 = arith.addf %98, %102 : vector<8x32xf32>
    %104 = vector.broadcast %12 : vector<1x32xf32> to vector<8x32xf32>
    %105 = arith.addf %103, %104 : vector<8x32xf32>
    %c0_83 = arith.constant 0 : index
    %c0_84 = arith.constant 0 : index
    %c0_85 = arith.constant 0 : index
    %106 = vector.load %arg4[%c0_83, %c0_84, %c0_85] : memref<3x32x32xf32, #tpu.memory_space<vmem>>, vector<1x32x32xf32>
    %107 = vector.shape_cast %106 : vector<1x32x32xf32> to vector<32x32xf32>
    %c1_86 = arith.constant 1 : index
    %c0_87 = arith.constant 0 : index
    %c0_88 = arith.constant 0 : index
    %108 = vector.load %arg4[%c1_86, %c0_87, %c0_88] : memref<3x32x32xf32, #tpu.memory_space<vmem>>, vector<1x32x32xf32>
    %109 = vector.shape_cast %108 : vector<1x32x32xf32> to vector<32x32xf32>
    %c2_89 = arith.constant 2 : index
    %c0_90 = arith.constant 0 : index
    %c0_91 = arith.constant 0 : index
    %110 = vector.load %arg4[%c2_89, %c0_90, %c0_91] : memref<3x32x32xf32, #tpu.memory_space<vmem>>, vector<1x32x32xf32>
    %111 = vector.shape_cast %110 : vector<1x32x32xf32> to vector<32x32xf32>
    %c0_92 = arith.constant 0 : index
    %c0_93 = arith.constant 0 : index
    %112 = vector.load %arg5[%c0_92, %c0_93] : memref<1x32xf32, #tpu.memory_space<vmem>>, vector<1x32xf32>
    %c0_94 = arith.constant 0 : index
    %c0_95 = arith.constant 0 : index
    %113 = vector.load %arg6[%c0_94, %c0_95] : memref<32x32xf32, #tpu.memory_space<vmem>>, vector<32x32xf32>
    %c0_96 = arith.constant 0 : index
    %c0_97 = arith.constant 0 : index
    %114 = vector.load %arg7[%c0_96, %c0_97] : memref<1x32xf32, #tpu.memory_space<vmem>>, vector<1x32xf32>
    %cst_98 = arith.constant 0.000000e+00 : f32
    %115 = vector.broadcast %cst_98 : f32 to vector<8x32xf32>
    %116 = arith.maximumf %105, %115 : vector<8x32xf32>
    %cst_99 = arith.constant dense<0.000000e+00> : vector<8x32xf32>
    %117 = tpu.matmul %6, %116, %cst_99 {dimension_numbers = #tpu.dot_dimension_numbers<[1], [0], [0], [1], [0, 0, 1, 1], [], []>} : vector<8x8xf32>, vector<8x32xf32>, vector<8x32xf32> -> vector<8x32xf32>
    %cst_100 = arith.constant dense<0.000000e+00> : vector<8x32xf32>
    %118 = tpu.matmul %117, %107, %cst_100 {dimension_numbers = #tpu.dot_dimension_numbers<[1], [0], [0], [1], [0, 0, 1, 1], [], []>} : vector<8x32xf32>, vector<32x32xf32>, vector<8x32xf32> -> vector<8x32xf32>
    %cst_101 = arith.constant dense<0.000000e+00> : vector<8x32xf32>
    %119 = tpu.matmul %116, %109, %cst_101 {dimension_numbers = #tpu.dot_dimension_numbers<[1], [0], [0], [1], [0, 0, 1, 1], [], []>} : vector<8x32xf32>, vector<32x32xf32>, vector<8x32xf32> -> vector<8x32xf32>
    %120 = arith.addf %118, %119 : vector<8x32xf32>
    %cst_102 = arith.constant dense<0.000000e+00> : vector<8x32xf32>
    %121 = tpu.matmul %11, %116, %cst_102 {dimension_numbers = #tpu.dot_dimension_numbers<[1], [0], [0], [1], [0, 0, 1, 1], [], []>} : vector<8x8xf32>, vector<8x32xf32>, vector<8x32xf32> -> vector<8x32xf32>
    %cst_103 = arith.constant dense<0.000000e+00> : vector<8x32xf32>
    %122 = tpu.matmul %121, %111, %cst_103 {dimension_numbers = #tpu.dot_dimension_numbers<[1], [0], [0], [1], [0, 0, 1, 1], [], []>} : vector<8x32xf32>, vector<32x32xf32>, vector<8x32xf32> -> vector<8x32xf32>
    %123 = arith.addf %120, %122 : vector<8x32xf32>
    %124 = vector.broadcast %112 : vector<1x32xf32> to vector<8x32xf32>
    %125 = arith.addf %123, %124 : vector<8x32xf32>
    %cst_104 = arith.constant 0.000000e+00 : f32
    %126 = vector.broadcast %cst_104 : f32 to vector<8x32xf32>
    %127 = arith.maximumf %125, %126 : vector<8x32xf32>
    %cst_105 = arith.constant dense<0.000000e+00> : vector<8x32xf32>
    %128 = tpu.matmul %127, %113, %cst_105 {dimension_numbers = #tpu.dot_dimension_numbers<[1], [0], [0], [1], [0, 0, 1, 1], [], []>} : vector<8x32xf32>, vector<32x32xf32>, vector<8x32xf32> -> vector<8x32xf32>
    %129 = vector.broadcast %114 : vector<1x32xf32> to vector<8x32xf32>
    %130 = arith.addf %128, %129 : vector<8x32xf32>
    %131 = arith.addf %130, %105 : vector<8x32xf32>
    %c0_106 = arith.constant 0 : index
    %c0_107 = arith.constant 0 : index
    %c0_108 = arith.constant 0 : index
    %132 = vector.load %arg8[%c0_106, %c0_107, %c0_108] : memref<3x32x16xf32, #tpu.memory_space<vmem>>, vector<1x32x16xf32>
    %133 = vector.shape_cast %132 : vector<1x32x16xf32> to vector<32x16xf32>
    %c1_109 = arith.constant 1 : index
    %c0_110 = arith.constant 0 : index
    %c0_111 = arith.constant 0 : index
    %134 = vector.load %arg8[%c1_109, %c0_110, %c0_111] : memref<3x32x16xf32, #tpu.memory_space<vmem>>, vector<1x32x16xf32>
    %135 = vector.shape_cast %134 : vector<1x32x16xf32> to vector<32x16xf32>
    %c2_112 = arith.constant 2 : index
    %c0_113 = arith.constant 0 : index
    %c0_114 = arith.constant 0 : index
    %136 = vector.load %arg8[%c2_112, %c0_113, %c0_114] : memref<3x32x16xf32, #tpu.memory_space<vmem>>, vector<1x32x16xf32>
    %137 = vector.shape_cast %136 : vector<1x32x16xf32> to vector<32x16xf32>
    %c0_115 = arith.constant 0 : index
    %c0_116 = arith.constant 0 : index
    %138 = vector.load %arg9[%c0_115, %c0_116] : memref<1x16xf32, #tpu.memory_space<vmem>>, vector<1x16xf32>
    %cst_117 = arith.constant dense<0.000000e+00> : vector<8x32xf32>
    %139 = tpu.matmul %6, %131, %cst_117 {dimension_numbers = #tpu.dot_dimension_numbers<[1], [0], [0], [1], [0, 0, 1, 1], [], []>} : vector<8x8xf32>, vector<8x32xf32>, vector<8x32xf32> -> vector<8x32xf32>
    %cst_118 = arith.constant dense<0.000000e+00> : vector<8x16xf32>
    %140 = tpu.matmul %139, %133, %cst_118 {dimension_numbers = #tpu.dot_dimension_numbers<[1], [0], [0], [1], [0, 0, 1, 1], [], []>} : vector<8x32xf32>, vector<32x16xf32>, vector<8x16xf32> -> vector<8x16xf32>
    %cst_119 = arith.constant dense<0.000000e+00> : vector<8x16xf32>
    %141 = tpu.matmul %131, %135, %cst_119 {dimension_numbers = #tpu.dot_dimension_numbers<[1], [0], [0], [1], [0, 0, 1, 1], [], []>} : vector<8x32xf32>, vector<32x16xf32>, vector<8x16xf32> -> vector<8x16xf32>
    %142 = arith.addf %140, %141 : vector<8x16xf32>
    %cst_120 = arith.constant dense<0.000000e+00> : vector<8x32xf32>
    %143 = tpu.matmul %11, %131, %cst_120 {dimension_numbers = #tpu.dot_dimension_numbers<[1], [0], [0], [1], [0, 0, 1, 1], [], []>} : vector<8x8xf32>, vector<8x32xf32>, vector<8x32xf32> -> vector<8x32xf32>
    %cst_121 = arith.constant dense<0.000000e+00> : vector<8x16xf32>
    %144 = tpu.matmul %143, %137, %cst_121 {dimension_numbers = #tpu.dot_dimension_numbers<[1], [0], [0], [1], [0, 0, 1, 1], [], []>} : vector<8x32xf32>, vector<32x16xf32>, vector<8x16xf32> -> vector<8x16xf32>
    %145 = arith.addf %142, %144 : vector<8x16xf32>
    %146 = vector.broadcast %138 : vector<1x16xf32> to vector<8x16xf32>
    %147 = arith.addf %145, %146 : vector<8x16xf32>
    %c8 = arith.constant 8 : index
    %c0_122 = arith.constant 0 : index
    %148 = vector.load %arg14[%c8, %c0_122] : memref<16x16xf32, #tpu.memory_space<vmem>>, vector<8x16xf32>
    tpu.vector_store %arg14[%c8, %c0_122], %147 {strides = array<i32>} : memref<16x16xf32, #tpu.memory_space<vmem>>, vector<8x16xf32>,
    %c0_123 = arith.constant 0 : index
    %c0_124 = arith.constant 0 : index
    %149 = vector.load %arg14[%c0_123, %c0_124] : memref<16x16xf32, #tpu.memory_space<vmem>>, vector<16x16xf32>
    %c0_125 = arith.constant 0 : index
    %c0_126 = arith.constant 0 : index
    %150 = vector.load %arg10[%c0_125, %c0_126] : memref<32x16xf32, #tpu.memory_space<vmem>>, vector<32x16xf32>
    %151 = arith.mulf %149, %149 : vector<16x16xf32>
    %cst_127 = arith.constant dense<0.000000e+00> : vector<16xf32>
    %152 = vector.multi_reduction <add>, %151, %cst_127 [1] : vector<16x16xf32> to vector<16xf32>
    %153 = vector.shape_cast %152 : vector<16xf32> to vector<16x1xf32>
    %cst_128 = arith.constant dense<0.000000e+00> : vector<16x32xf32>
    %154 = tpu.matmul %149, %150, %cst_128 {dimension_numbers = #tpu.dot_dimension_numbers<[1], [1], [0], [0], [0, 0, 1, 0], [], []>} : vector<16x16xf32>, vector<32x16xf32>, vector<16x32xf32> -> vector<16x32xf32>
    %cst_129 = arith.constant 2.000000e+00 : f32
    %155 = vector.broadcast %cst_129 : f32 to vector<16x32xf32>
    %156 = arith.mulf %155, %154 : vector<16x32xf32>
    %157 = vector.broadcast %153 : vector<16x1xf32> to vector<16x32xf32>
    %158 = arith.subf %157, %156 : vector<16x32xf32>
    %c0_130 = arith.constant 0 : index
    %c0_131 = arith.constant 0 : index
    %159 = vector.load %arg11[%c0_130, %c0_131] : memref<1x32xf32, #tpu.memory_space<vmem>>, vector<1x32xf32>
    %160 = vector.broadcast %159 : vector<1x32xf32> to vector<16x32xf32>
    %161 = arith.addf %158, %160 : vector<16x32xf32>
    %cst_132 = arith.constant dense<0x7F800000> : vector<16xf32>
    %162 = vector.multi_reduction <minimumf>, %161, %cst_132 [1] : vector<16x32xf32> to vector<16xf32>
    %163 = vector.shape_cast %162 : vector<16xf32> to vector<16x1xf32>
    %164 = tpu.iota {dimensions = array<i32: 1>} : vector<16x32xi32>
    %165 = vector.broadcast %163 : vector<16x1xf32> to vector<16x32xf32>
    %166 = arith.cmpf ole, %161, %165 : vector<16x32xf32>
    %c32_i32 = arith.constant 32 : i32
    %167 = vector.broadcast %c32_i32 : i32 to vector<16x32xi32>
    %168 = arith.select %166, %164, %167 : vector<16x32xi1>, vector<16x32xi32>
    %cst_133 = arith.constant dense<2147483647> : vector<16xi32>
    %169 = vector.multi_reduction <minsi>, %168, %cst_133 [1] : vector<16x32xi32> to vector<16xi32>
    %170 = vector.shape_cast %169 : vector<16xi32> to vector<16x1xi32>
    %171 = vector.broadcast %170 : vector<16x1xi32> to vector<16x32xi32>
    %172 = arith.cmpi eq, %164, %171 : vector<16x32xi32>
    %173 = arith.extui %172 : vector<16x32xi1> to vector<16x32xi32>
    %174 = arith.sitofp %173 : vector<16x32xi32> to vector<16x32xf32>
    %cst_134 = arith.constant dense<0.000000e+00> : vector<16x16xf32>
    %175 = tpu.matmul %174, %150, %cst_134 {dimension_numbers = #tpu.dot_dimension_numbers<[1], [0], [0], [1], [0, 0, 1, 1], [], []>} : vector<16x32xf32>, vector<32x16xf32>, vector<16x16xf32> -> vector<16x16xf32>
    %c0_135 = arith.constant 0 : index
    %c0_136 = arith.constant 0 : index
    %176 = vector.load %arg12[%c0_135, %c0_136] : memref<16x16xf32, #tpu.memory_space<vmem>>, vector<16x16xf32>
    tpu.vector_store %arg12[%c0_135, %c0_136], %175 {strides = array<i32>} : memref<16x16xf32, #tpu.memory_space<vmem>>, vector<16x16xf32>,
    %177 = arith.subf %175, %149 : vector<16x16xf32>
    %178 = arith.mulf %177, %177 : vector<16x16xf32>
    %cst_137 = arith.constant dense<0.000000e+00> : vector<16xf32>
    %179 = vector.multi_reduction <add>, %178, %cst_137 [0] : vector<16x16xf32> to vector<16xf32>
    %180 = vector.shape_cast %179 : vector<16xf32> to vector<1x16xf32>
    %cst_138 = arith.constant dense<0.000000e+00> : vector<1xf32>
    %181 = vector.multi_reduction <add>, %180, %cst_138 [1] : vector<1x16xf32> to vector<1xf32>
    %182 = vector.shape_cast %181 : vector<1xf32> to vector<1x1xf32>
    %cst_139 = arith.constant 2.560000e+02 : f32
    %183 = vector.broadcast %cst_139 : f32 to vector<1x1xf32>
    %184 = arith.divf %182, %183 : vector<1x1xf32>
    %c0_140 = arith.constant 0 : index
    %c0_141 = arith.constant 0 : index
    %185 = vector.load %arg13[%c0_140, %c0_141] : memref<1x1xf32, #tpu.memory_space<vmem>>, vector<1x1xf32>
    tpu.vector_store %arg13[%c0_140, %c0_141], %184 {strides = array<i32>} : memref<1x1xf32, #tpu.memory_space<vmem>>, vector<1x1xf32>,
    return
  }
}

module attributes {stable_mosaic.version = 11 : i64} {
  func.func @_loss_kernel(%arg0: memref<2x16x24xf32, #tpu.memory_space<vmem>>, %arg1: memref<2x16x24xf32, #tpu.memory_space<vmem>>, %arg2: memref<1x1xf32, #tpu.memory_space<vmem>>, %arg3: memref<1x1xf32, #tpu.memory_space<vmem>>, %arg4: memref<1x1xf32, #tpu.memory_space<vmem>>) attributes {dimension_semantics = [], scalar_prefetch = 0 : i64, scratch_operands = 0 : i64, tpu.core_type = #tpu.core_type<tc>} {
    %cst = arith.constant 0.000000e+00 : f32
    %0 = vector.broadcast %cst : f32 to vector<1x1xf32>
    %cst_0 = arith.constant 0.000000e+00 : f32
    %1 = vector.broadcast %cst_0 : f32 to vector<1x1xf32>
    %cst_1 = arith.constant 0.000000e+00 : f32
    %2 = vector.broadcast %cst_1 : f32 to vector<1x1xf32>
    %c0 = arith.constant 0 : index
    %c0_2 = arith.constant 0 : index
    %c0_3 = arith.constant 0 : index
    %3 = vector.load %arg0[%c0, %c0_2, %c0_3] : memref<2x16x24xf32, #tpu.memory_space<vmem>>, vector<1x16x24xf32>
    %4 = vector.shape_cast %3 : vector<1x16x24xf32> to vector<16x24xf32>
    %c0_4 = arith.constant 0 : index
    %c0_5 = arith.constant 0 : index
    %c0_6 = arith.constant 0 : index
    %5 = vector.load %arg1[%c0_4, %c0_5, %c0_6] : memref<2x16x24xf32, #tpu.memory_space<vmem>>, vector<1x16x24xf32>
    %6 = vector.shape_cast %5 : vector<1x16x24xf32> to vector<16x24xf32>
    %7 = arith.subf %6, %4 : vector<16x24xf32>
    %8 = math.absf %7 : vector<16x24xf32>
    %cst_7 = arith.constant dense<0.000000e+00> : vector<24xf32>
    %9 = vector.multi_reduction <add>, %8, %cst_7 [0] : vector<16x24xf32> to vector<24xf32>
    %10 = vector.shape_cast %9 : vector<24xf32> to vector<1x24xf32>
    %cst_8 = arith.constant dense<0.000000e+00> : vector<1xf32>
    %11 = vector.multi_reduction <add>, %10, %cst_8 [1] : vector<1x24xf32> to vector<1xf32>
    %12 = vector.shape_cast %11 : vector<1xf32> to vector<1x1xf32>
    %13 = arith.addf %0, %12 : vector<1x1xf32>
    %14 = vector.extract_strided_slice %6 {offsets = [1, 0], sizes = [15, 24], strides = [1, 1]} : vector<16x24xf32> to vector<15x24xf32>
    %15 = vector.extract_strided_slice %6 {offsets = [0, 0], sizes = [15, 24], strides = [1, 1]} : vector<16x24xf32> to vector<15x24xf32>
    %16 = arith.subf %14, %15 : vector<15x24xf32>
    %17 = vector.extract_strided_slice %4 {offsets = [1, 0], sizes = [15, 24], strides = [1, 1]} : vector<16x24xf32> to vector<15x24xf32>
    %18 = vector.extract_strided_slice %4 {offsets = [0, 0], sizes = [15, 24], strides = [1, 1]} : vector<16x24xf32> to vector<15x24xf32>
    %19 = arith.subf %17, %18 : vector<15x24xf32>
    %20 = arith.subf %16, %19 : vector<15x24xf32>
    %21 = math.absf %20 : vector<15x24xf32>
    %cst_9 = arith.constant dense<0.000000e+00> : vector<24xf32>
    %22 = vector.multi_reduction <add>, %21, %cst_9 [0] : vector<15x24xf32> to vector<24xf32>
    %23 = vector.shape_cast %22 : vector<24xf32> to vector<1x24xf32>
    %cst_10 = arith.constant dense<0.000000e+00> : vector<1xf32>
    %24 = vector.multi_reduction <add>, %23, %cst_10 [1] : vector<1x24xf32> to vector<1xf32>
    %25 = vector.shape_cast %24 : vector<1xf32> to vector<1x1xf32>
    %26 = arith.addf %1, %25 : vector<1x1xf32>
    %27 = vector.extract_strided_slice %6 {offsets = [2, 0], sizes = [14, 24], strides = [1, 1]} : vector<16x24xf32> to vector<14x24xf32>
    %28 = vector.extract_strided_slice %6 {offsets = [0, 0], sizes = [14, 24], strides = [1, 1]} : vector<16x24xf32> to vector<14x24xf32>
    %29 = arith.addf %27, %28 : vector<14x24xf32>
    %30 = vector.extract_strided_slice %6 {offsets = [1, 0], sizes = [14, 24], strides = [1, 1]} : vector<16x24xf32> to vector<14x24xf32>
    %cst_11 = arith.constant 2.000000e+00 : f32
    %31 = vector.broadcast %cst_11 : f32 to vector<14x24xf32>
    %32 = arith.mulf %31, %30 : vector<14x24xf32>
    %33 = arith.subf %29, %32 : vector<14x24xf32>
    %34 = vector.extract_strided_slice %4 {offsets = [2, 0], sizes = [14, 24], strides = [1, 1]} : vector<16x24xf32> to vector<14x24xf32>
    %35 = vector.extract_strided_slice %4 {offsets = [0, 0], sizes = [14, 24], strides = [1, 1]} : vector<16x24xf32> to vector<14x24xf32>
    %36 = arith.addf %34, %35 : vector<14x24xf32>
    %37 = vector.extract_strided_slice %4 {offsets = [1, 0], sizes = [14, 24], strides = [1, 1]} : vector<16x24xf32> to vector<14x24xf32>
    %cst_12 = arith.constant 2.000000e+00 : f32
    %38 = vector.broadcast %cst_12 : f32 to vector<14x24xf32>
    %39 = arith.mulf %38, %37 : vector<14x24xf32>
    %40 = arith.subf %36, %39 : vector<14x24xf32>
    %41 = arith.subf %33, %40 : vector<14x24xf32>
    %42 = math.absf %41 : vector<14x24xf32>
    %cst_13 = arith.constant dense<0.000000e+00> : vector<24xf32>
    %43 = vector.multi_reduction <add>, %42, %cst_13 [0] : vector<14x24xf32> to vector<24xf32>
    %44 = vector.shape_cast %43 : vector<24xf32> to vector<1x24xf32>
    %cst_14 = arith.constant dense<0.000000e+00> : vector<1xf32>
    %45 = vector.multi_reduction <add>, %44, %cst_14 [1] : vector<1x24xf32> to vector<1xf32>
    %46 = vector.shape_cast %45 : vector<1xf32> to vector<1x1xf32>
    %47 = arith.addf %2, %46 : vector<1x1xf32>
    %c1 = arith.constant 1 : index
    %c0_15 = arith.constant 0 : index
    %c0_16 = arith.constant 0 : index
    %48 = vector.load %arg0[%c1, %c0_15, %c0_16] : memref<2x16x24xf32, #tpu.memory_space<vmem>>, vector<1x16x24xf32>
    %49 = vector.shape_cast %48 : vector<1x16x24xf32> to vector<16x24xf32>
    %c1_17 = arith.constant 1 : index
    %c0_18 = arith.constant 0 : index
    %c0_19 = arith.constant 0 : index
    %50 = vector.load %arg1[%c1_17, %c0_18, %c0_19] : memref<2x16x24xf32, #tpu.memory_space<vmem>>, vector<1x16x24xf32>
    %51 = vector.shape_cast %50 : vector<1x16x24xf32> to vector<16x24xf32>
    %52 = arith.subf %51, %49 : vector<16x24xf32>
    %53 = math.absf %52 : vector<16x24xf32>
    %cst_20 = arith.constant dense<0.000000e+00> : vector<24xf32>
    %54 = vector.multi_reduction <add>, %53, %cst_20 [0] : vector<16x24xf32> to vector<24xf32>
    %55 = vector.shape_cast %54 : vector<24xf32> to vector<1x24xf32>
    %cst_21 = arith.constant dense<0.000000e+00> : vector<1xf32>
    %56 = vector.multi_reduction <add>, %55, %cst_21 [1] : vector<1x24xf32> to vector<1xf32>
    %57 = vector.shape_cast %56 : vector<1xf32> to vector<1x1xf32>
    %58 = arith.addf %13, %57 : vector<1x1xf32>
    %59 = vector.extract_strided_slice %51 {offsets = [1, 0], sizes = [15, 24], strides = [1, 1]} : vector<16x24xf32> to vector<15x24xf32>
    %60 = vector.extract_strided_slice %51 {offsets = [0, 0], sizes = [15, 24], strides = [1, 1]} : vector<16x24xf32> to vector<15x24xf32>
    %61 = arith.subf %59, %60 : vector<15x24xf32>
    %62 = vector.extract_strided_slice %49 {offsets = [1, 0], sizes = [15, 24], strides = [1, 1]} : vector<16x24xf32> to vector<15x24xf32>
    %63 = vector.extract_strided_slice %49 {offsets = [0, 0], sizes = [15, 24], strides = [1, 1]} : vector<16x24xf32> to vector<15x24xf32>
    %64 = arith.subf %62, %63 : vector<15x24xf32>
    %65 = arith.subf %61, %64 : vector<15x24xf32>
    %66 = math.absf %65 : vector<15x24xf32>
    %cst_22 = arith.constant dense<0.000000e+00> : vector<24xf32>
    %67 = vector.multi_reduction <add>, %66, %cst_22 [0] : vector<15x24xf32> to vector<24xf32>
    %68 = vector.shape_cast %67 : vector<24xf32> to vector<1x24xf32>
    %cst_23 = arith.constant dense<0.000000e+00> : vector<1xf32>
    %69 = vector.multi_reduction <add>, %68, %cst_23 [1] : vector<1x24xf32> to vector<1xf32>
    %70 = vector.shape_cast %69 : vector<1xf32> to vector<1x1xf32>
    %71 = arith.addf %26, %70 : vector<1x1xf32>
    %72 = vector.extract_strided_slice %51 {offsets = [2, 0], sizes = [14, 24], strides = [1, 1]} : vector<16x24xf32> to vector<14x24xf32>
    %73 = vector.extract_strided_slice %51 {offsets = [0, 0], sizes = [14, 24], strides = [1, 1]} : vector<16x24xf32> to vector<14x24xf32>
    %74 = arith.addf %72, %73 : vector<14x24xf32>
    %75 = vector.extract_strided_slice %51 {offsets = [1, 0], sizes = [14, 24], strides = [1, 1]} : vector<16x24xf32> to vector<14x24xf32>
    %cst_24 = arith.constant 2.000000e+00 : f32
    %76 = vector.broadcast %cst_24 : f32 to vector<14x24xf32>
    %77 = arith.mulf %76, %75 : vector<14x24xf32>
    %78 = arith.subf %74, %77 : vector<14x24xf32>
    %79 = vector.extract_strided_slice %49 {offsets = [2, 0], sizes = [14, 24], strides = [1, 1]} : vector<16x24xf32> to vector<14x24xf32>
    %80 = vector.extract_strided_slice %49 {offsets = [0, 0], sizes = [14, 24], strides = [1, 1]} : vector<16x24xf32> to vector<14x24xf32>
    %81 = arith.addf %79, %80 : vector<14x24xf32>
    %82 = vector.extract_strided_slice %49 {offsets = [1, 0], sizes = [14, 24], strides = [1, 1]} : vector<16x24xf32> to vector<14x24xf32>
    %cst_25 = arith.constant 2.000000e+00 : f32
    %83 = vector.broadcast %cst_25 : f32 to vector<14x24xf32>
    %84 = arith.mulf %83, %82 : vector<14x24xf32>
    %85 = arith.subf %81, %84 : vector<14x24xf32>
    %86 = arith.subf %78, %85 : vector<14x24xf32>
    %87 = math.absf %86 : vector<14x24xf32>
    %cst_26 = arith.constant dense<0.000000e+00> : vector<24xf32>
    %88 = vector.multi_reduction <add>, %87, %cst_26 [0] : vector<14x24xf32> to vector<24xf32>
    %89 = vector.shape_cast %88 : vector<24xf32> to vector<1x24xf32>
    %cst_27 = arith.constant dense<0.000000e+00> : vector<1xf32>
    %90 = vector.multi_reduction <add>, %89, %cst_27 [1] : vector<1x24xf32> to vector<1xf32>
    %91 = vector.shape_cast %90 : vector<1xf32> to vector<1x1xf32>
    %92 = arith.addf %47, %91 : vector<1x1xf32>
    %cst_28 = arith.constant 7.680000e+02 : f32
    %93 = vector.broadcast %cst_28 : f32 to vector<1x1xf32>
    %94 = arith.divf %58, %93 : vector<1x1xf32>
    %c0_29 = arith.constant 0 : index
    %c0_30 = arith.constant 0 : index
    %95 = vector.load %arg2[%c0_29, %c0_30] : memref<1x1xf32, #tpu.memory_space<vmem>>, vector<1x1xf32>
    tpu.vector_store %arg2[%c0_29, %c0_30], %94 {strides = array<i32>} : memref<1x1xf32, #tpu.memory_space<vmem>>, vector<1x1xf32>,
    %cst_31 = arith.constant 7.200000e+02 : f32
    %96 = vector.broadcast %cst_31 : f32 to vector<1x1xf32>
    %97 = arith.divf %71, %96 : vector<1x1xf32>
    %c0_32 = arith.constant 0 : index
    %c0_33 = arith.constant 0 : index
    %98 = vector.load %arg3[%c0_32, %c0_33] : memref<1x1xf32, #tpu.memory_space<vmem>>, vector<1x1xf32>
    tpu.vector_store %arg3[%c0_32, %c0_33], %97 {strides = array<i32>} : memref<1x1xf32, #tpu.memory_space<vmem>>, vector<1x1xf32>,
    %cst_34 = arith.constant 6.720000e+02 : f32
    %99 = vector.broadcast %cst_34 : f32 to vector<1x1xf32>
    %100 = arith.divf %92, %99 : vector<1x1xf32>
    %c0_35 = arith.constant 0 : index
    %c0_36 = arith.constant 0 : index
    %101 = vector.load %arg4[%c0_35, %c0_36] : memref<1x1xf32, #tpu.memory_space<vmem>>, vector<1x1xf32>
    tpu.vector_store %arg4[%c0_35, %c0_36], %100 {strides = array<i32>} : memref<1x1xf32, #tpu.memory_space<vmem>>, vector<1x1xf32>,
    return
  }
}

module attributes {stable_mosaic.version = 11 : i64} {
  func.func @_dual_decoder_kernel(%arg0: memref<16x16xf32, #tpu.memory_space<vmem>>, %arg1: memref<2x3x16x32xf32, #tpu.memory_space<vmem>>, %arg2: memref<2x1x32xf32, #tpu.memory_space<vmem>>, %arg3: memref<2x3x32x32xf32, #tpu.memory_space<vmem>>, %arg4: memref<2x1x32xf32, #tpu.memory_space<vmem>>, %arg5: memref<2x32x32xf32, #tpu.memory_space<vmem>>, %arg6: memref<2x1x32xf32, #tpu.memory_space<vmem>>, %arg7: memref<2x4x32x16xf32, #tpu.memory_space<vmem>>, %arg8: memref<2x1x16xf32, #tpu.memory_space<vmem>>, %arg9: memref<2x3x16x24xf32, #tpu.memory_space<vmem>>, %arg10: memref<2x1x24xf32, #tpu.memory_space<vmem>>, %arg11: memref<2x2x8x24xf32, #tpu.memory_space<vmem>>, %arg12: memref<2x2x8x24xf32, #tpu.memory_space<vmem>>) attributes {dimension_semantics = [], scalar_prefetch = 0 : i64, scratch_operands = 0 : i64, tpu.core_type = #tpu.core_type<tc>} {
    %0 = tpu.iota {dimensions = array<i32: 0>} : vector<8x8xi32>
    %1 = tpu.iota {dimensions = array<i32: 1>} : vector<8x8xi32>
    %c1_i32 = arith.constant 1 : i32
    %2 = vector.broadcast %c1_i32 : i32 to vector<8x8xi32>
    %3 = arith.addi %1, %2 : vector<8x8xi32>
    %4 = arith.cmpi eq, %0, %3 : vector<8x8xi32>
    %5 = arith.extui %4 : vector<8x8xi1> to vector<8x8xi32>
    %6 = arith.sitofp %5 : vector<8x8xi32> to vector<8x8xf32>
    %c1_i32_0 = arith.constant 1 : i32
    %7 = vector.broadcast %c1_i32_0 : i32 to vector<8x8xi32>
    %8 = arith.addi %0, %7 : vector<8x8xi32>
    %9 = arith.cmpi eq, %8, %1 : vector<8x8xi32>
    %10 = arith.extui %9 : vector<8x8xi1> to vector<8x8xi32>
    %11 = arith.sitofp %10 : vector<8x8xi32> to vector<8x8xf32>
    %c0 = arith.constant 0 : index
    %c0_1 = arith.constant 0 : index
    %12 = vector.load %arg0[%c0, %c0_1] : memref<16x16xf32, #tpu.memory_space<vmem>>, vector<16x16xf32>
    %13 = vector.extract_strided_slice %12 {offsets = [0, 0], sizes = [8, 16], strides = [1, 1]} : vector<16x16xf32> to vector<8x16xf32>
    %c0_2 = arith.constant 0 : index
    %c0_3 = arith.constant 0 : index
    %c0_4 = arith.constant 0 : index
    %c0_5 = arith.constant 0 : index
    %14 = vector.load %arg1[%c0_2, %c0_3, %c0_4, %c0_5] : memref<2x3x16x32xf32, #tpu.memory_space<vmem>>, vector<1x1x16x32xf32>
    %15 = vector.shape_cast %14 : vector<1x1x16x32xf32> to vector<16x32xf32>
    %c0_6 = arith.constant 0 : index
    %c1 = arith.constant 1 : index
    %c0_7 = arith.constant 0 : index
    %c0_8 = arith.constant 0 : index
    %16 = vector.load %arg1[%c0_6, %c1, %c0_7, %c0_8] : memref<2x3x16x32xf32, #tpu.memory_space<vmem>>, vector<1x1x16x32xf32>
    %17 = vector.shape_cast %16 : vector<1x1x16x32xf32> to vector<16x32xf32>
    %c0_9 = arith.constant 0 : index
    %c2 = arith.constant 2 : index
    %c0_10 = arith.constant 0 : index
    %c0_11 = arith.constant 0 : index
    %18 = vector.load %arg1[%c0_9, %c2, %c0_10, %c0_11] : memref<2x3x16x32xf32, #tpu.memory_space<vmem>>, vector<1x1x16x32xf32>
    %19 = vector.shape_cast %18 : vector<1x1x16x32xf32> to vector<16x32xf32>
    %c0_12 = arith.constant 0 : index
    %c0_13 = arith.constant 0 : index
    %c0_14 = arith.constant 0 : index
    %20 = vector.load %arg2[%c0_12, %c0_13, %c0_14] : memref<2x1x32xf32, #tpu.memory_space<vmem>>, vector<1x1x32xf32>
    %21 = vector.shape_cast %20 : vector<1x1x32xf32> to vector<1x32xf32>
    %cst = arith.constant dense<0.000000e+00> : vector<8x16xf32>
    %22 = tpu.matmul %6, %13, %cst {dimension_numbers = #tpu.dot_dimension_numbers<[1], [0], [0], [1], [0, 0, 1, 1], [], []>} : vector<8x8xf32>, vector<8x16xf32>, vector<8x16xf32> -> vector<8x16xf32>
    %cst_15 = arith.constant dense<0.000000e+00> : vector<8x32xf32>
    %23 = tpu.matmul %22, %15, %cst_15 {dimension_numbers = #tpu.dot_dimension_numbers<[1], [0], [0], [1], [0, 0, 1, 1], [], []>} : vector<8x16xf32>, vector<16x32xf32>, vector<8x32xf32> -> vector<8x32xf32>
    %cst_16 = arith.constant dense<0.000000e+00> : vector<8x32xf32>
    %24 = tpu.matmul %13, %17, %cst_16 {dimension_numbers = #tpu.dot_dimension_numbers<[1], [0], [0], [1], [0, 0, 1, 1], [], []>} : vector<8x16xf32>, vector<16x32xf32>, vector<8x32xf32> -> vector<8x32xf32>
    %25 = arith.addf %23, %24 : vector<8x32xf32>
    %cst_17 = arith.constant dense<0.000000e+00> : vector<8x16xf32>
    %26 = tpu.matmul %11, %13, %cst_17 {dimension_numbers = #tpu.dot_dimension_numbers<[1], [0], [0], [1], [0, 0, 1, 1], [], []>} : vector<8x8xf32>, vector<8x16xf32>, vector<8x16xf32> -> vector<8x16xf32>
    %cst_18 = arith.constant dense<0.000000e+00> : vector<8x32xf32>
    %27 = tpu.matmul %26, %19, %cst_18 {dimension_numbers = #tpu.dot_dimension_numbers<[1], [0], [0], [1], [0, 0, 1, 1], [], []>} : vector<8x16xf32>, vector<16x32xf32>, vector<8x32xf32> -> vector<8x32xf32>
    %28 = arith.addf %25, %27 : vector<8x32xf32>
    %29 = vector.broadcast %21 : vector<1x32xf32> to vector<8x32xf32>
    %30 = arith.addf %28, %29 : vector<8x32xf32>
    %c0_19 = arith.constant 0 : index
    %c0_20 = arith.constant 0 : index
    %c0_21 = arith.constant 0 : index
    %c0_22 = arith.constant 0 : index
    %31 = vector.load %arg3[%c0_19, %c0_20, %c0_21, %c0_22] : memref<2x3x32x32xf32, #tpu.memory_space<vmem>>, vector<1x1x32x32xf32>
    %32 = vector.shape_cast %31 : vector<1x1x32x32xf32> to vector<32x32xf32>
    %c0_23 = arith.constant 0 : index
    %c1_24 = arith.constant 1 : index
    %c0_25 = arith.constant 0 : index
    %c0_26 = arith.constant 0 : index
    %33 = vector.load %arg3[%c0_23, %c1_24, %c0_25, %c0_26] : memref<2x3x32x32xf32, #tpu.memory_space<vmem>>, vector<1x1x32x32xf32>
    %34 = vector.shape_cast %33 : vector<1x1x32x32xf32> to vector<32x32xf32>
    %c0_27 = arith.constant 0 : index
    %c2_28 = arith.constant 2 : index
    %c0_29 = arith.constant 0 : index
    %c0_30 = arith.constant 0 : index
    %35 = vector.load %arg3[%c0_27, %c2_28, %c0_29, %c0_30] : memref<2x3x32x32xf32, #tpu.memory_space<vmem>>, vector<1x1x32x32xf32>
    %36 = vector.shape_cast %35 : vector<1x1x32x32xf32> to vector<32x32xf32>
    %c0_31 = arith.constant 0 : index
    %c0_32 = arith.constant 0 : index
    %c0_33 = arith.constant 0 : index
    %37 = vector.load %arg4[%c0_31, %c0_32, %c0_33] : memref<2x1x32xf32, #tpu.memory_space<vmem>>, vector<1x1x32xf32>
    %38 = vector.shape_cast %37 : vector<1x1x32xf32> to vector<1x32xf32>
    %c0_34 = arith.constant 0 : index
    %c0_35 = arith.constant 0 : index
    %c0_36 = arith.constant 0 : index
    %39 = vector.load %arg5[%c0_34, %c0_35, %c0_36] : memref<2x32x32xf32, #tpu.memory_space<vmem>>, vector<1x32x32xf32>
    %40 = vector.shape_cast %39 : vector<1x32x32xf32> to vector<32x32xf32>
    %c0_37 = arith.constant 0 : index
    %c0_38 = arith.constant 0 : index
    %c0_39 = arith.constant 0 : index
    %41 = vector.load %arg6[%c0_37, %c0_38, %c0_39] : memref<2x1x32xf32, #tpu.memory_space<vmem>>, vector<1x1x32xf32>
    %42 = vector.shape_cast %41 : vector<1x1x32xf32> to vector<1x32xf32>
    %cst_40 = arith.constant 0.000000e+00 : f32
    %43 = vector.broadcast %cst_40 : f32 to vector<8x32xf32>
    %44 = arith.maximumf %30, %43 : vector<8x32xf32>
    %cst_41 = arith.constant dense<0.000000e+00> : vector<8x32xf32>
    %45 = tpu.matmul %6, %44, %cst_41 {dimension_numbers = #tpu.dot_dimension_numbers<[1], [0], [0], [1], [0, 0, 1, 1], [], []>} : vector<8x8xf32>, vector<8x32xf32>, vector<8x32xf32> -> vector<8x32xf32>
    %cst_42 = arith.constant dense<0.000000e+00> : vector<8x32xf32>
    %46 = tpu.matmul %45, %32, %cst_42 {dimension_numbers = #tpu.dot_dimension_numbers<[1], [0], [0], [1], [0, 0, 1, 1], [], []>} : vector<8x32xf32>, vector<32x32xf32>, vector<8x32xf32> -> vector<8x32xf32>
    %cst_43 = arith.constant dense<0.000000e+00> : vector<8x32xf32>
    %47 = tpu.matmul %44, %34, %cst_43 {dimension_numbers = #tpu.dot_dimension_numbers<[1], [0], [0], [1], [0, 0, 1, 1], [], []>} : vector<8x32xf32>, vector<32x32xf32>, vector<8x32xf32> -> vector<8x32xf32>
    %48 = arith.addf %46, %47 : vector<8x32xf32>
    %cst_44 = arith.constant dense<0.000000e+00> : vector<8x32xf32>
    %49 = tpu.matmul %11, %44, %cst_44 {dimension_numbers = #tpu.dot_dimension_numbers<[1], [0], [0], [1], [0, 0, 1, 1], [], []>} : vector<8x8xf32>, vector<8x32xf32>, vector<8x32xf32> -> vector<8x32xf32>
    %cst_45 = arith.constant dense<0.000000e+00> : vector<8x32xf32>
    %50 = tpu.matmul %49, %36, %cst_45 {dimension_numbers = #tpu.dot_dimension_numbers<[1], [0], [0], [1], [0, 0, 1, 1], [], []>} : vector<8x32xf32>, vector<32x32xf32>, vector<8x32xf32> -> vector<8x32xf32>
    %51 = arith.addf %48, %50 : vector<8x32xf32>
    %52 = vector.broadcast %38 : vector<1x32xf32> to vector<8x32xf32>
    %53 = arith.addf %51, %52 : vector<8x32xf32>
    %cst_46 = arith.constant 0.000000e+00 : f32
    %54 = vector.broadcast %cst_46 : f32 to vector<8x32xf32>
    %55 = arith.maximumf %53, %54 : vector<8x32xf32>
    %cst_47 = arith.constant dense<0.000000e+00> : vector<8x32xf32>
    %56 = tpu.matmul %55, %40, %cst_47 {dimension_numbers = #tpu.dot_dimension_numbers<[1], [0], [0], [1], [0, 0, 1, 1], [], []>} : vector<8x32xf32>, vector<32x32xf32>, vector<8x32xf32> -> vector<8x32xf32>
    %57 = vector.broadcast %42 : vector<1x32xf32> to vector<8x32xf32>
    %58 = arith.addf %56, %57 : vector<8x32xf32>
    %59 = arith.addf %58, %30 : vector<8x32xf32>
    %c0_48 = arith.constant 0 : index
    %c0_49 = arith.constant 0 : index
    %c0_50 = arith.constant 0 : index
    %60 = vector.load %arg8[%c0_48, %c0_49, %c0_50] : memref<2x1x16xf32, #tpu.memory_space<vmem>>, vector<1x1x16xf32>
    %61 = vector.shape_cast %60 : vector<1x1x16xf32> to vector<1x16xf32>
    %c0_51 = arith.constant 0 : index
    %c1_52 = arith.constant 1 : index
    %c0_53 = arith.constant 0 : index
    %c0_54 = arith.constant 0 : index
    %62 = vector.load %arg7[%c0_51, %c1_52, %c0_53, %c0_54] : memref<2x4x32x16xf32, #tpu.memory_space<vmem>>, vector<1x1x32x16xf32>
    %63 = vector.shape_cast %62 : vector<1x1x32x16xf32> to vector<32x16xf32>
    %cst_55 = arith.constant dense<0.000000e+00> : vector<8x16xf32>
    %64 = tpu.matmul %59, %63, %cst_55 {dimension_numbers = #tpu.dot_dimension_numbers<[1], [0], [0], [1], [0, 0, 1, 1], [], []>} : vector<8x32xf32>, vector<32x16xf32>, vector<8x16xf32> -> vector<8x16xf32>
    %cst_56 = arith.constant dense<0.000000e+00> : vector<8x32xf32>
    %65 = tpu.matmul %6, %59, %cst_56 {dimension_numbers = #tpu.dot_dimension_numbers<[1], [0], [0], [1], [0, 0, 1, 1], [], []>} : vector<8x8xf32>, vector<8x32xf32>, vector<8x32xf32> -> vector<8x32xf32>
    %c0_57 = arith.constant 0 : index
    %c3 = arith.constant 3 : index
    %c0_58 = arith.constant 0 : index
    %c0_59 = arith.constant 0 : index
    %66 = vector.load %arg7[%c0_57, %c3, %c0_58, %c0_59] : memref<2x4x32x16xf32, #tpu.memory_space<vmem>>, vector<1x1x32x16xf32>
    %67 = vector.shape_cast %66 : vector<1x1x32x16xf32> to vector<32x16xf32>
    %cst_60 = arith.constant dense<0.000000e+00> : vector<8x16xf32>
    %68 = tpu.matmul %65, %67, %cst_60 {dimension_numbers = #tpu.dot_dimension_numbers<[1], [0], [0], [1], [0, 0, 1, 1], [], []>} : vector<8x32xf32>, vector<32x16xf32>, vector<8x16xf32> -> vector<8x16xf32>
    %69 = arith.addf %64, %68 : vector<8x16xf32>
    %70 = vector.broadcast %61 : vector<1x16xf32> to vector<8x16xf32>
    %71 = arith.addf %69, %70 : vector<8x16xf32>
    %c0_61 = arith.constant 0 : index
    %c2_62 = arith.constant 2 : index
    %c0_63 = arith.constant 0 : index
    %c0_64 = arith.constant 0 : index
    %72 = vector.load %arg7[%c0_61, %c2_62, %c0_63, %c0_64] : memref<2x4x32x16xf32, #tpu.memory_space<vmem>>, vector<1x1x32x16xf32>
    %73 = vector.shape_cast %72 : vector<1x1x32x16xf32> to vector<32x16xf32>
    %cst_65 = arith.constant dense<0.000000e+00> : vector<8x16xf32>
    %74 = tpu.matmul %59, %73, %cst_65 {dimension_numbers = #tpu.dot_dimension_numbers<[1], [0], [0], [1], [0, 0, 1, 1], [], []>} : vector<8x32xf32>, vector<32x16xf32>, vector<8x16xf32> -> vector<8x16xf32>
    %cst_66 = arith.constant dense<0.000000e+00> : vector<8x32xf32>
    %75 = tpu.matmul %11, %59, %cst_66 {dimension_numbers = #tpu.dot_dimension_numbers<[1], [0], [0], [1], [0, 0, 1, 1], [], []>} : vector<8x8xf32>, vector<8x32xf32>, vector<8x32xf32> -> vector<8x32xf32>
    %c0_67 = arith.constant 0 : index
    %c0_68 = arith.constant 0 : index
    %c0_69 = arith.constant 0 : index
    %c0_70 = arith.constant 0 : index
    %76 = vector.load %arg7[%c0_67, %c0_68, %c0_69, %c0_70] : memref<2x4x32x16xf32, #tpu.memory_space<vmem>>, vector<1x1x32x16xf32>
    %77 = vector.shape_cast %76 : vector<1x1x32x16xf32> to vector<32x16xf32>
    %cst_71 = arith.constant dense<0.000000e+00> : vector<8x16xf32>
    %78 = tpu.matmul %75, %77, %cst_71 {dimension_numbers = #tpu.dot_dimension_numbers<[1], [0], [0], [1], [0, 0, 1, 1], [], []>} : vector<8x32xf32>, vector<32x16xf32>, vector<8x16xf32> -> vector<8x16xf32>
    %79 = arith.addf %74, %78 : vector<8x16xf32>
    %80 = vector.broadcast %61 : vector<1x16xf32> to vector<8x16xf32>
    %81 = arith.addf %79, %80 : vector<8x16xf32>
    %c0_72 = arith.constant 0 : index
    %c0_73 = arith.constant 0 : index
    %c0_74 = arith.constant 0 : index
    %82 = vector.load %arg10[%c0_72, %c0_73, %c0_74] : memref<2x1x24xf32, #tpu.memory_space<vmem>>, vector<1x1x24xf32>
    %83 = vector.shape_cast %82 : vector<1x1x24xf32> to vector<1x24xf32>
    %cst_75 = arith.constant dense<0.000000e+00> : vector<8x16xf32>
    %84 = tpu.matmul %6, %81, %cst_75 {dimension_numbers = #tpu.dot_dimension_numbers<[1], [0], [0], [1], [0, 0, 1, 1], [], []>} : vector<8x8xf32>, vector<8x16xf32>, vector<8x16xf32> -> vector<8x16xf32>
    %c0_76 = arith.constant 0 : index
    %c0_77 = arith.constant 0 : index
    %c0_78 = arith.constant 0 : index
    %c0_79 = arith.constant 0 : index
    %85 = vector.load %arg9[%c0_76, %c0_77, %c0_78, %c0_79] : memref<2x3x16x24xf32, #tpu.memory_space<vmem>>, vector<1x1x16x24xf32>
    %86 = vector.shape_cast %85 : vector<1x1x16x24xf32> to vector<16x24xf32>
    %cst_80 = arith.constant dense<0.000000e+00> : vector<8x24xf32>
    %87 = tpu.matmul %84, %86, %cst_80 {dimension_numbers = #tpu.dot_dimension_numbers<[1], [0], [0], [1], [0, 0, 1, 1], [], []>} : vector<8x16xf32>, vector<16x24xf32>, vector<8x24xf32> -> vector<8x24xf32>
    %c0_81 = arith.constant 0 : index
    %c1_82 = arith.constant 1 : index
    %c0_83 = arith.constant 0 : index
    %c0_84 = arith.constant 0 : index
    %88 = vector.load %arg9[%c0_81, %c1_82, %c0_83, %c0_84] : memref<2x3x16x24xf32, #tpu.memory_space<vmem>>, vector<1x1x16x24xf32>
    %89 = vector.shape_cast %88 : vector<1x1x16x24xf32> to vector<16x24xf32>
    %cst_85 = arith.constant dense<0.000000e+00> : vector<8x24xf32>
    %90 = tpu.matmul %71, %89, %cst_85 {dimension_numbers = #tpu.dot_dimension_numbers<[1], [0], [0], [1], [0, 0, 1, 1], [], []>} : vector<8x16xf32>, vector<16x24xf32>, vector<8x24xf32> -> vector<8x24xf32>
    %91 = arith.addf %87, %90 : vector<8x24xf32>
    %c0_86 = arith.constant 0 : index
    %c2_87 = arith.constant 2 : index
    %c0_88 = arith.constant 0 : index
    %c0_89 = arith.constant 0 : index
    %92 = vector.load %arg9[%c0_86, %c2_87, %c0_88, %c0_89] : memref<2x3x16x24xf32, #tpu.memory_space<vmem>>, vector<1x1x16x24xf32>
    %93 = vector.shape_cast %92 : vector<1x1x16x24xf32> to vector<16x24xf32>
    %cst_90 = arith.constant dense<0.000000e+00> : vector<8x24xf32>
    %94 = tpu.matmul %81, %93, %cst_90 {dimension_numbers = #tpu.dot_dimension_numbers<[1], [0], [0], [1], [0, 0, 1, 1], [], []>} : vector<8x16xf32>, vector<16x24xf32>, vector<8x24xf32> -> vector<8x24xf32>
    %95 = arith.addf %91, %94 : vector<8x24xf32>
    %96 = vector.broadcast %83 : vector<1x24xf32> to vector<8x24xf32>
    %97 = arith.addf %95, %96 : vector<8x24xf32>
    %c0_91 = arith.constant 0 : index
    %c0_92 = arith.constant 0 : index
    %c0_93 = arith.constant 0 : index
    %c0_94 = arith.constant 0 : index
    %98 = vector.load %arg9[%c0_91, %c0_92, %c0_93, %c0_94] : memref<2x3x16x24xf32, #tpu.memory_space<vmem>>, vector<1x1x16x24xf32>
    %99 = vector.shape_cast %98 : vector<1x1x16x24xf32> to vector<16x24xf32>
    %cst_95 = arith.constant dense<0.000000e+00> : vector<8x24xf32>
    %100 = tpu.matmul %71, %99, %cst_95 {dimension_numbers = #tpu.dot_dimension_numbers<[1], [0], [0], [1], [0, 0, 1, 1], [], []>} : vector<8x16xf32>, vector<16x24xf32>, vector<8x24xf32> -> vector<8x24xf32>
    %c0_96 = arith.constant 0 : index
    %c1_97 = arith.constant 1 : index
    %c0_98 = arith.constant 0 : index
    %c0_99 = arith.constant 0 : index
    %101 = vector.load %arg9[%c0_96, %c1_97, %c0_98, %c0_99] : memref<2x3x16x24xf32, #tpu.memory_space<vmem>>, vector<1x1x16x24xf32>
    %102 = vector.shape_cast %101 : vector<1x1x16x24xf32> to vector<16x24xf32>
    %cst_100 = arith.constant dense<0.000000e+00> : vector<8x24xf32>
    %103 = tpu.matmul %81, %102, %cst_100 {dimension_numbers = #tpu.dot_dimension_numbers<[1], [0], [0], [1], [0, 0, 1, 1], [], []>} : vector<8x16xf32>, vector<16x24xf32>, vector<8x24xf32> -> vector<8x24xf32>
    %104 = arith.addf %100, %103 : vector<8x24xf32>
    %cst_101 = arith.constant dense<0.000000e+00> : vector<8x16xf32>
    %105 = tpu.matmul %11, %71, %cst_101 {dimension_numbers = #tpu.dot_dimension_numbers<[1], [0], [0], [1], [0, 0, 1, 1], [], []>} : vector<8x8xf32>, vector<8x16xf32>, vector<8x16xf32> -> vector<8x16xf32>
    %c0_102 = arith.constant 0 : index
    %c2_103 = arith.constant 2 : index
    %c0_104 = arith.constant 0 : index
    %c0_105 = arith.constant 0 : index
    %106 = vector.load %arg9[%c0_102, %c2_103, %c0_104, %c0_105] : memref<2x3x16x24xf32, #tpu.memory_space<vmem>>, vector<1x1x16x24xf32>
    %107 = vector.shape_cast %106 : vector<1x1x16x24xf32> to vector<16x24xf32>
    %cst_106 = arith.constant dense<0.000000e+00> : vector<8x24xf32>
    %108 = tpu.matmul %105, %107, %cst_106 {dimension_numbers = #tpu.dot_dimension_numbers<[1], [0], [0], [1], [0, 0, 1, 1], [], []>} : vector<8x16xf32>, vector<16x24xf32>, vector<8x24xf32> -> vector<8x24xf32>
    %109 = arith.addf %104, %108 : vector<8x24xf32>
    %110 = vector.broadcast %83 : vector<1x24xf32> to vector<8x24xf32>
    %111 = arith.addf %109, %110 : vector<8x24xf32>
    %c0_107 = arith.constant 0 : index
    %c0_108 = arith.constant 0 : index
    %c0_109 = arith.constant 0 : index
    %c0_110 = arith.constant 0 : index
    %112 = vector.load %arg11[%c0_107, %c0_108, %c0_109, %c0_110] : memref<2x2x8x24xf32, #tpu.memory_space<vmem>>, vector<1x1x8x24xf32>
    %113 = vector.shape_cast %112 : vector<1x1x8x24xf32> to vector<8x24xf32>
    %114 = vector.shape_cast %97 : vector<8x24xf32> to vector<1x1x8x24xf32>
    tpu.vector_store %arg11[%c0_107, %c0_108, %c0_109, %c0_110], %114 {strides = array<i32>} : memref<2x2x8x24xf32, #tpu.memory_space<vmem>>, vector<1x1x8x24xf32>,
    %c0_111 = arith.constant 0 : index
    %c0_112 = arith.constant 0 : index
    %c0_113 = arith.constant 0 : index
    %c0_114 = arith.constant 0 : index
    %115 = vector.load %arg12[%c0_111, %c0_112, %c0_113, %c0_114] : memref<2x2x8x24xf32, #tpu.memory_space<vmem>>, vector<1x1x8x24xf32>
    %116 = vector.shape_cast %115 : vector<1x1x8x24xf32> to vector<8x24xf32>
    %117 = vector.shape_cast %111 : vector<8x24xf32> to vector<1x1x8x24xf32>
    tpu.vector_store %arg12[%c0_111, %c0_112, %c0_113, %c0_114], %117 {strides = array<i32>} : memref<2x2x8x24xf32, #tpu.memory_space<vmem>>, vector<1x1x8x24xf32>,
    %118 = vector.extract_strided_slice %12 {offsets = [8, 0], sizes = [8, 16], strides = [1, 1]} : vector<16x16xf32> to vector<8x16xf32>
    %c0_115 = arith.constant 0 : index
    %c0_116 = arith.constant 0 : index
    %c0_117 = arith.constant 0 : index
    %c0_118 = arith.constant 0 : index
    %119 = vector.load %arg1[%c0_115, %c0_116, %c0_117, %c0_118] : memref<2x3x16x32xf32, #tpu.memory_space<vmem>>, vector<1x1x16x32xf32>
    %120 = vector.shape_cast %119 : vector<1x1x16x32xf32> to vector<16x32xf32>
    %c0_119 = arith.constant 0 : index
    %c1_120 = arith.constant 1 : index
    %c0_121 = arith.constant 0 : index
    %c0_122 = arith.constant 0 : index
    %121 = vector.load %arg1[%c0_119, %c1_120, %c0_121, %c0_122] : memref<2x3x16x32xf32, #tpu.memory_space<vmem>>, vector<1x1x16x32xf32>
    %122 = vector.shape_cast %121 : vector<1x1x16x32xf32> to vector<16x32xf32>
    %c0_123 = arith.constant 0 : index
    %c2_124 = arith.constant 2 : index
    %c0_125 = arith.constant 0 : index
    %c0_126 = arith.constant 0 : index
    %123 = vector.load %arg1[%c0_123, %c2_124, %c0_125, %c0_126] : memref<2x3x16x32xf32, #tpu.memory_space<vmem>>, vector<1x1x16x32xf32>
    %124 = vector.shape_cast %123 : vector<1x1x16x32xf32> to vector<16x32xf32>
    %c0_127 = arith.constant 0 : index
    %c0_128 = arith.constant 0 : index
    %c0_129 = arith.constant 0 : index
    %125 = vector.load %arg2[%c0_127, %c0_128, %c0_129] : memref<2x1x32xf32, #tpu.memory_space<vmem>>, vector<1x1x32xf32>
    %126 = vector.shape_cast %125 : vector<1x1x32xf32> to vector<1x32xf32>
    %cst_130 = arith.constant dense<0.000000e+00> : vector<8x16xf32>
    %127 = tpu.matmul %6, %118, %cst_130 {dimension_numbers = #tpu.dot_dimension_numbers<[1], [0], [0], [1], [0, 0, 1, 1], [], []>} : vector<8x8xf32>, vector<8x16xf32>, vector<8x16xf32> -> vector<8x16xf32>
    %cst_131 = arith.constant dense<0.000000e+00> : vector<8x32xf32>
    %128 = tpu.matmul %127, %120, %cst_131 {dimension_numbers = #tpu.dot_dimension_numbers<[1], [0], [0], [1], [0, 0, 1, 1], [], []>} : vector<8x16xf32>, vector<16x32xf32>, vector<8x32xf32> -> vector<8x32xf32>
    %cst_132 = arith.constant dense<0.000000e+00> : vector<8x32xf32>
    %129 = tpu.matmul %118, %122, %cst_132 {dimension_numbers = #tpu.dot_dimension_numbers<[1], [0], [0], [1], [0, 0, 1, 1], [], []>} : vector<8x16xf32>, vector<16x32xf32>, vector<8x32xf32> -> vector<8x32xf32>
    %130 = arith.addf %128, %129 : vector<8x32xf32>
    %cst_133 = arith.constant dense<0.000000e+00> : vector<8x16xf32>
    %131 = tpu.matmul %11, %118, %cst_133 {dimension_numbers = #tpu.dot_dimension_numbers<[1], [0], [0], [1], [0, 0, 1, 1], [], []>} : vector<8x8xf32>, vector<8x16xf32>, vector<8x16xf32> -> vector<8x16xf32>
    %cst_134 = arith.constant dense<0.000000e+00> : vector<8x32xf32>
    %132 = tpu.matmul %131, %124, %cst_134 {dimension_numbers = #tpu.dot_dimension_numbers<[1], [0], [0], [1], [0, 0, 1, 1], [], []>} : vector<8x16xf32>, vector<16x32xf32>, vector<8x32xf32> -> vector<8x32xf32>
    %133 = arith.addf %130, %132 : vector<8x32xf32>
    %134 = vector.broadcast %126 : vector<1x32xf32> to vector<8x32xf32>
    %135 = arith.addf %133, %134 : vector<8x32xf32>
    %c0_135 = arith.constant 0 : index
    %c0_136 = arith.constant 0 : index
    %c0_137 = arith.constant 0 : index
    %c0_138 = arith.constant 0 : index
    %136 = vector.load %arg3[%c0_135, %c0_136, %c0_137, %c0_138] : memref<2x3x32x32xf32, #tpu.memory_space<vmem>>, vector<1x1x32x32xf32>
    %137 = vector.shape_cast %136 : vector<1x1x32x32xf32> to vector<32x32xf32>
    %c0_139 = arith.constant 0 : index
    %c1_140 = arith.constant 1 : index
    %c0_141 = arith.constant 0 : index
    %c0_142 = arith.constant 0 : index
    %138 = vector.load %arg3[%c0_139, %c1_140, %c0_141, %c0_142] : memref<2x3x32x32xf32, #tpu.memory_space<vmem>>, vector<1x1x32x32xf32>
    %139 = vector.shape_cast %138 : vector<1x1x32x32xf32> to vector<32x32xf32>
    %c0_143 = arith.constant 0 : index
    %c2_144 = arith.constant 2 : index
    %c0_145 = arith.constant 0 : index
    %c0_146 = arith.constant 0 : index
    %140 = vector.load %arg3[%c0_143, %c2_144, %c0_145, %c0_146] : memref<2x3x32x32xf32, #tpu.memory_space<vmem>>, vector<1x1x32x32xf32>
    %141 = vector.shape_cast %140 : vector<1x1x32x32xf32> to vector<32x32xf32>
    %c0_147 = arith.constant 0 : index
    %c0_148 = arith.constant 0 : index
    %c0_149 = arith.constant 0 : index
    %142 = vector.load %arg4[%c0_147, %c0_148, %c0_149] : memref<2x1x32xf32, #tpu.memory_space<vmem>>, vector<1x1x32xf32>
    %143 = vector.shape_cast %142 : vector<1x1x32xf32> to vector<1x32xf32>
    %c0_150 = arith.constant 0 : index
    %c0_151 = arith.constant 0 : index
    %c0_152 = arith.constant 0 : index
    %144 = vector.load %arg5[%c0_150, %c0_151, %c0_152] : memref<2x32x32xf32, #tpu.memory_space<vmem>>, vector<1x32x32xf32>
    %145 = vector.shape_cast %144 : vector<1x32x32xf32> to vector<32x32xf32>
    %c0_153 = arith.constant 0 : index
    %c0_154 = arith.constant 0 : index
    %c0_155 = arith.constant 0 : index
    %146 = vector.load %arg6[%c0_153, %c0_154, %c0_155] : memref<2x1x32xf32, #tpu.memory_space<vmem>>, vector<1x1x32xf32>
    %147 = vector.shape_cast %146 : vector<1x1x32xf32> to vector<1x32xf32>
    %cst_156 = arith.constant 0.000000e+00 : f32
    %148 = vector.broadcast %cst_156 : f32 to vector<8x32xf32>
    %149 = arith.maximumf %135, %148 : vector<8x32xf32>
    %cst_157 = arith.constant dense<0.000000e+00> : vector<8x32xf32>
    %150 = tpu.matmul %6, %149, %cst_157 {dimension_numbers = #tpu.dot_dimension_numbers<[1], [0], [0], [1], [0, 0, 1, 1], [], []>} : vector<8x8xf32>, vector<8x32xf32>, vector<8x32xf32> -> vector<8x32xf32>
    %cst_158 = arith.constant dense<0.000000e+00> : vector<8x32xf32>
    %151 = tpu.matmul %150, %137, %cst_158 {dimension_numbers = #tpu.dot_dimension_numbers<[1], [0], [0], [1], [0, 0, 1, 1], [], []>} : vector<8x32xf32>, vector<32x32xf32>, vector<8x32xf32> -> vector<8x32xf32>
    %cst_159 = arith.constant dense<0.000000e+00> : vector<8x32xf32>
    %152 = tpu.matmul %149, %139, %cst_159 {dimension_numbers = #tpu.dot_dimension_numbers<[1], [0], [0], [1], [0, 0, 1, 1], [], []>} : vector<8x32xf32>, vector<32x32xf32>, vector<8x32xf32> -> vector<8x32xf32>
    %153 = arith.addf %151, %152 : vector<8x32xf32>
    %cst_160 = arith.constant dense<0.000000e+00> : vector<8x32xf32>
    %154 = tpu.matmul %11, %149, %cst_160 {dimension_numbers = #tpu.dot_dimension_numbers<[1], [0], [0], [1], [0, 0, 1, 1], [], []>} : vector<8x8xf32>, vector<8x32xf32>, vector<8x32xf32> -> vector<8x32xf32>
    %cst_161 = arith.constant dense<0.000000e+00> : vector<8x32xf32>
    %155 = tpu.matmul %154, %141, %cst_161 {dimension_numbers = #tpu.dot_dimension_numbers<[1], [0], [0], [1], [0, 0, 1, 1], [], []>} : vector<8x32xf32>, vector<32x32xf32>, vector<8x32xf32> -> vector<8x32xf32>
    %156 = arith.addf %153, %155 : vector<8x32xf32>
    %157 = vector.broadcast %143 : vector<1x32xf32> to vector<8x32xf32>
    %158 = arith.addf %156, %157 : vector<8x32xf32>
    %cst_162 = arith.constant 0.000000e+00 : f32
    %159 = vector.broadcast %cst_162 : f32 to vector<8x32xf32>
    %160 = arith.maximumf %158, %159 : vector<8x32xf32>
    %cst_163 = arith.constant dense<0.000000e+00> : vector<8x32xf32>
    %161 = tpu.matmul %160, %145, %cst_163 {dimension_numbers = #tpu.dot_dimension_numbers<[1], [0], [0], [1], [0, 0, 1, 1], [], []>} : vector<8x32xf32>, vector<32x32xf32>, vector<8x32xf32> -> vector<8x32xf32>
    %162 = vector.broadcast %147 : vector<1x32xf32> to vector<8x32xf32>
    %163 = arith.addf %161, %162 : vector<8x32xf32>
    %164 = arith.addf %163, %135 : vector<8x32xf32>
    %c0_164 = arith.constant 0 : index
    %c0_165 = arith.constant 0 : index
    %c0_166 = arith.constant 0 : index
    %165 = vector.load %arg8[%c0_164, %c0_165, %c0_166] : memref<2x1x16xf32, #tpu.memory_space<vmem>>, vector<1x1x16xf32>
    %166 = vector.shape_cast %165 : vector<1x1x16xf32> to vector<1x16xf32>
    %c0_167 = arith.constant 0 : index
    %c1_168 = arith.constant 1 : index
    %c0_169 = arith.constant 0 : index
    %c0_170 = arith.constant 0 : index
    %167 = vector.load %arg7[%c0_167, %c1_168, %c0_169, %c0_170] : memref<2x4x32x16xf32, #tpu.memory_space<vmem>>, vector<1x1x32x16xf32>
    %168 = vector.shape_cast %167 : vector<1x1x32x16xf32> to vector<32x16xf32>
    %cst_171 = arith.constant dense<0.000000e+00> : vector<8x16xf32>
    %169 = tpu.matmul %164, %168, %cst_171 {dimension_numbers = #tpu.dot_dimension_numbers<[1], [0], [0], [1], [0, 0, 1, 1], [], []>} : vector<8x32xf32>, vector<32x16xf32>, vector<8x16xf32> -> vector<8x16xf32>
    %cst_172 = arith.constant dense<0.000000e+00> : vector<8x32xf32>
    %170 = tpu.matmul %6, %164, %cst_172 {dimension_numbers = #tpu.dot_dimension_numbers<[1], [0], [0], [1], [0, 0, 1, 1], [], []>} : vector<8x8xf32>, vector<8x32xf32>, vector<8x32xf32> -> vector<8x32xf32>
    %c0_173 = arith.constant 0 : index
    %c3_174 = arith.constant 3 : index
    %c0_175 = arith.constant 0 : index
    %c0_176 = arith.constant 0 : index
    %171 = vector.load %arg7[%c0_173, %c3_174, %c0_175, %c0_176] : memref<2x4x32x16xf32, #tpu.memory_space<vmem>>, vector<1x1x32x16xf32>
    %172 = vector.shape_cast %171 : vector<1x1x32x16xf32> to vector<32x16xf32>
    %cst_177 = arith.constant dense<0.000000e+00> : vector<8x16xf32>
    %173 = tpu.matmul %170, %172, %cst_177 {dimension_numbers = #tpu.dot_dimension_numbers<[1], [0], [0], [1], [0, 0, 1, 1], [], []>} : vector<8x32xf32>, vector<32x16xf32>, vector<8x16xf32> -> vector<8x16xf32>
    %174 = arith.addf %169, %173 : vector<8x16xf32>
    %175 = vector.broadcast %166 : vector<1x16xf32> to vector<8x16xf32>
    %176 = arith.addf %174, %175 : vector<8x16xf32>
    %c0_178 = arith.constant 0 : index
    %c2_179 = arith.constant 2 : index
    %c0_180 = arith.constant 0 : index
    %c0_181 = arith.constant 0 : index
    %177 = vector.load %arg7[%c0_178, %c2_179, %c0_180, %c0_181] : memref<2x4x32x16xf32, #tpu.memory_space<vmem>>, vector<1x1x32x16xf32>
    %178 = vector.shape_cast %177 : vector<1x1x32x16xf32> to vector<32x16xf32>
    %cst_182 = arith.constant dense<0.000000e+00> : vector<8x16xf32>
    %179 = tpu.matmul %164, %178, %cst_182 {dimension_numbers = #tpu.dot_dimension_numbers<[1], [0], [0], [1], [0, 0, 1, 1], [], []>} : vector<8x32xf32>, vector<32x16xf32>, vector<8x16xf32> -> vector<8x16xf32>
    %cst_183 = arith.constant dense<0.000000e+00> : vector<8x32xf32>
    %180 = tpu.matmul %11, %164, %cst_183 {dimension_numbers = #tpu.dot_dimension_numbers<[1], [0], [0], [1], [0, 0, 1, 1], [], []>} : vector<8x8xf32>, vector<8x32xf32>, vector<8x32xf32> -> vector<8x32xf32>
    %c0_184 = arith.constant 0 : index
    %c0_185 = arith.constant 0 : index
    %c0_186 = arith.constant 0 : index
    %c0_187 = arith.constant 0 : index
    %181 = vector.load %arg7[%c0_184, %c0_185, %c0_186, %c0_187] : memref<2x4x32x16xf32, #tpu.memory_space<vmem>>, vector<1x1x32x16xf32>
    %182 = vector.shape_cast %181 : vector<1x1x32x16xf32> to vector<32x16xf32>
    %cst_188 = arith.constant dense<0.000000e+00> : vector<8x16xf32>
    %183 = tpu.matmul %180, %182, %cst_188 {dimension_numbers = #tpu.dot_dimension_numbers<[1], [0], [0], [1], [0, 0, 1, 1], [], []>} : vector<8x32xf32>, vector<32x16xf32>, vector<8x16xf32> -> vector<8x16xf32>
    %184 = arith.addf %179, %183 : vector<8x16xf32>
    %185 = vector.broadcast %166 : vector<1x16xf32> to vector<8x16xf32>
    %186 = arith.addf %184, %185 : vector<8x16xf32>
    %c0_189 = arith.constant 0 : index
    %c0_190 = arith.constant 0 : index
    %c0_191 = arith.constant 0 : index
    %187 = vector.load %arg10[%c0_189, %c0_190, %c0_191] : memref<2x1x24xf32, #tpu.memory_space<vmem>>, vector<1x1x24xf32>
    %188 = vector.shape_cast %187 : vector<1x1x24xf32> to vector<1x24xf32>
    %cst_192 = arith.constant dense<0.000000e+00> : vector<8x16xf32>
    %189 = tpu.matmul %6, %186, %cst_192 {dimension_numbers = #tpu.dot_dimension_numbers<[1], [0], [0], [1], [0, 0, 1, 1], [], []>} : vector<8x8xf32>, vector<8x16xf32>, vector<8x16xf32> -> vector<8x16xf32>
    %c0_193 = arith.constant 0 : index
    %c0_194 = arith.constant 0 : index
    %c0_195 = arith.constant 0 : index
    %c0_196 = arith.constant 0 : index
    %190 = vector.load %arg9[%c0_193, %c0_194, %c0_195, %c0_196] : memref<2x3x16x24xf32, #tpu.memory_space<vmem>>, vector<1x1x16x24xf32>
    %191 = vector.shape_cast %190 : vector<1x1x16x24xf32> to vector<16x24xf32>
    %cst_197 = arith.constant dense<0.000000e+00> : vector<8x24xf32>
    %192 = tpu.matmul %189, %191, %cst_197 {dimension_numbers = #tpu.dot_dimension_numbers<[1], [0], [0], [1], [0, 0, 1, 1], [], []>} : vector<8x16xf32>, vector<16x24xf32>, vector<8x24xf32> -> vector<8x24xf32>
    %c0_198 = arith.constant 0 : index
    %c1_199 = arith.constant 1 : index
    %c0_200 = arith.constant 0 : index
    %c0_201 = arith.constant 0 : index
    %193 = vector.load %arg9[%c0_198, %c1_199, %c0_200, %c0_201] : memref<2x3x16x24xf32, #tpu.memory_space<vmem>>, vector<1x1x16x24xf32>
    %194 = vector.shape_cast %193 : vector<1x1x16x24xf32> to vector<16x24xf32>
    %cst_202 = arith.constant dense<0.000000e+00> : vector<8x24xf32>
    %195 = tpu.matmul %176, %194, %cst_202 {dimension_numbers = #tpu.dot_dimension_numbers<[1], [0], [0], [1], [0, 0, 1, 1], [], []>} : vector<8x16xf32>, vector<16x24xf32>, vector<8x24xf32> -> vector<8x24xf32>
    %196 = arith.addf %192, %195 : vector<8x24xf32>
    %c0_203 = arith.constant 0 : index
    %c2_204 = arith.constant 2 : index
    %c0_205 = arith.constant 0 : index
    %c0_206 = arith.constant 0 : index
    %197 = vector.load %arg9[%c0_203, %c2_204, %c0_205, %c0_206] : memref<2x3x16x24xf32, #tpu.memory_space<vmem>>, vector<1x1x16x24xf32>
    %198 = vector.shape_cast %197 : vector<1x1x16x24xf32> to vector<16x24xf32>
    %cst_207 = arith.constant dense<0.000000e+00> : vector<8x24xf32>
    %199 = tpu.matmul %186, %198, %cst_207 {dimension_numbers = #tpu.dot_dimension_numbers<[1], [0], [0], [1], [0, 0, 1, 1], [], []>} : vector<8x16xf32>, vector<16x24xf32>, vector<8x24xf32> -> vector<8x24xf32>
    %200 = arith.addf %196, %199 : vector<8x24xf32>
    %201 = vector.broadcast %188 : vector<1x24xf32> to vector<8x24xf32>
    %202 = arith.addf %200, %201 : vector<8x24xf32>
    %c0_208 = arith.constant 0 : index
    %c0_209 = arith.constant 0 : index
    %c0_210 = arith.constant 0 : index
    %c0_211 = arith.constant 0 : index
    %203 = vector.load %arg9[%c0_208, %c0_209, %c0_210, %c0_211] : memref<2x3x16x24xf32, #tpu.memory_space<vmem>>, vector<1x1x16x24xf32>
    %204 = vector.shape_cast %203 : vector<1x1x16x24xf32> to vector<16x24xf32>
    %cst_212 = arith.constant dense<0.000000e+00> : vector<8x24xf32>
    %205 = tpu.matmul %176, %204, %cst_212 {dimension_numbers = #tpu.dot_dimension_numbers<[1], [0], [0], [1], [0, 0, 1, 1], [], []>} : vector<8x16xf32>, vector<16x24xf32>, vector<8x24xf32> -> vector<8x24xf32>
    %c0_213 = arith.constant 0 : index
    %c1_214 = arith.constant 1 : index
    %c0_215 = arith.constant 0 : index
    %c0_216 = arith.constant 0 : index
    %206 = vector.load %arg9[%c0_213, %c1_214, %c0_215, %c0_216] : memref<2x3x16x24xf32, #tpu.memory_space<vmem>>, vector<1x1x16x24xf32>
    %207 = vector.shape_cast %206 : vector<1x1x16x24xf32> to vector<16x24xf32>
    %cst_217 = arith.constant dense<0.000000e+00> : vector<8x24xf32>
    %208 = tpu.matmul %186, %207, %cst_217 {dimension_numbers = #tpu.dot_dimension_numbers<[1], [0], [0], [1], [0, 0, 1, 1], [], []>} : vector<8x16xf32>, vector<16x24xf32>, vector<8x24xf32> -> vector<8x24xf32>
    %209 = arith.addf %205, %208 : vector<8x24xf32>
    %cst_218 = arith.constant dense<0.000000e+00> : vector<8x16xf32>
    %210 = tpu.matmul %11, %176, %cst_218 {dimension_numbers = #tpu.dot_dimension_numbers<[1], [0], [0], [1], [0, 0, 1, 1], [], []>} : vector<8x8xf32>, vector<8x16xf32>, vector<8x16xf32> -> vector<8x16xf32>
    %c0_219 = arith.constant 0 : index
    %c2_220 = arith.constant 2 : index
    %c0_221 = arith.constant 0 : index
    %c0_222 = arith.constant 0 : index
    %211 = vector.load %arg9[%c0_219, %c2_220, %c0_221, %c0_222] : memref<2x3x16x24xf32, #tpu.memory_space<vmem>>, vector<1x1x16x24xf32>
    %212 = vector.shape_cast %211 : vector<1x1x16x24xf32> to vector<16x24xf32>
    %cst_223 = arith.constant dense<0.000000e+00> : vector<8x24xf32>
    %213 = tpu.matmul %210, %212, %cst_223 {dimension_numbers = #tpu.dot_dimension_numbers<[1], [0], [0], [1], [0, 0, 1, 1], [], []>} : vector<8x16xf32>, vector<16x24xf32>, vector<8x24xf32> -> vector<8x24xf32>
    %214 = arith.addf %209, %213 : vector<8x24xf32>
    %215 = vector.broadcast %188 : vector<1x24xf32> to vector<8x24xf32>
    %216 = arith.addf %214, %215 : vector<8x24xf32>
    %c0_224 = arith.constant 0 : index
    %c1_225 = arith.constant 1 : index
    %c0_226 = arith.constant 0 : index
    %c0_227 = arith.constant 0 : index
    %217 = vector.load %arg11[%c0_224, %c1_225, %c0_226, %c0_227] : memref<2x2x8x24xf32, #tpu.memory_space<vmem>>, vector<1x1x8x24xf32>
    %218 = vector.shape_cast %217 : vector<1x1x8x24xf32> to vector<8x24xf32>
    %219 = vector.shape_cast %202 : vector<8x24xf32> to vector<1x1x8x24xf32>
    tpu.vector_store %arg11[%c0_224, %c1_225, %c0_226, %c0_227], %219 {strides = array<i32>} : memref<2x2x8x24xf32, #tpu.memory_space<vmem>>, vector<1x1x8x24xf32>,
    %c0_228 = arith.constant 0 : index
    %c1_229 = arith.constant 1 : index
    %c0_230 = arith.constant 0 : index
    %c0_231 = arith.constant 0 : index
    %220 = vector.load %arg12[%c0_228, %c1_229, %c0_230, %c0_231] : memref<2x2x8x24xf32, #tpu.memory_space<vmem>>, vector<1x1x8x24xf32>
    %221 = vector.shape_cast %220 : vector<1x1x8x24xf32> to vector<8x24xf32>
    %222 = vector.shape_cast %216 : vector<8x24xf32> to vector<1x1x8x24xf32>
    tpu.vector_store %arg12[%c0_228, %c1_229, %c0_230, %c0_231], %222 {strides = array<i32>} : memref<2x2x8x24xf32, #tpu.memory_space<vmem>>, vector<1x1x8x24xf32>,
    %223 = vector.extract_strided_slice %12 {offsets = [0, 0], sizes = [8, 16], strides = [1, 1]} : vector<16x16xf32> to vector<8x16xf32>
    %c1_232 = arith.constant 1 : index
    %c0_233 = arith.constant 0 : index
    %c0_234 = arith.constant 0 : index
    %c0_235 = arith.constant 0 : index
    %224 = vector.load %arg1[%c1_232, %c0_233, %c0_234, %c0_235] : memref<2x3x16x32xf32, #tpu.memory_space<vmem>>, vector<1x1x16x32xf32>
    %225 = vector.shape_cast %224 : vector<1x1x16x32xf32> to vector<16x32xf32>
    %c1_236 = arith.constant 1 : index
    %c1_237 = arith.constant 1 : index
    %c0_238 = arith.constant 0 : index
    %c0_239 = arith.constant 0 : index
    %226 = vector.load %arg1[%c1_236, %c1_237, %c0_238, %c0_239] : memref<2x3x16x32xf32, #tpu.memory_space<vmem>>, vector<1x1x16x32xf32>
    %227 = vector.shape_cast %226 : vector<1x1x16x32xf32> to vector<16x32xf32>
    %c1_240 = arith.constant 1 : index
    %c2_241 = arith.constant 2 : index
    %c0_242 = arith.constant 0 : index
    %c0_243 = arith.constant 0 : index
    %228 = vector.load %arg1[%c1_240, %c2_241, %c0_242, %c0_243] : memref<2x3x16x32xf32, #tpu.memory_space<vmem>>, vector<1x1x16x32xf32>
    %229 = vector.shape_cast %228 : vector<1x1x16x32xf32> to vector<16x32xf32>
    %c1_244 = arith.constant 1 : index
    %c0_245 = arith.constant 0 : index
    %c0_246 = arith.constant 0 : index
    %230 = vector.load %arg2[%c1_244, %c0_245, %c0_246] : memref<2x1x32xf32, #tpu.memory_space<vmem>>, vector<1x1x32xf32>
    %231 = vector.shape_cast %230 : vector<1x1x32xf32> to vector<1x32xf32>
    %cst_247 = arith.constant dense<0.000000e+00> : vector<8x16xf32>
    %232 = tpu.matmul %6, %223, %cst_247 {dimension_numbers = #tpu.dot_dimension_numbers<[1], [0], [0], [1], [0, 0, 1, 1], [], []>} : vector<8x8xf32>, vector<8x16xf32>, vector<8x16xf32> -> vector<8x16xf32>
    %cst_248 = arith.constant dense<0.000000e+00> : vector<8x32xf32>
    %233 = tpu.matmul %232, %225, %cst_248 {dimension_numbers = #tpu.dot_dimension_numbers<[1], [0], [0], [1], [0, 0, 1, 1], [], []>} : vector<8x16xf32>, vector<16x32xf32>, vector<8x32xf32> -> vector<8x32xf32>
    %cst_249 = arith.constant dense<0.000000e+00> : vector<8x32xf32>
    %234 = tpu.matmul %223, %227, %cst_249 {dimension_numbers = #tpu.dot_dimension_numbers<[1], [0], [0], [1], [0, 0, 1, 1], [], []>} : vector<8x16xf32>, vector<16x32xf32>, vector<8x32xf32> -> vector<8x32xf32>
    %235 = arith.addf %233, %234 : vector<8x32xf32>
    %cst_250 = arith.constant dense<0.000000e+00> : vector<8x16xf32>
    %236 = tpu.matmul %11, %223, %cst_250 {dimension_numbers = #tpu.dot_dimension_numbers<[1], [0], [0], [1], [0, 0, 1, 1], [], []>} : vector<8x8xf32>, vector<8x16xf32>, vector<8x16xf32> -> vector<8x16xf32>
    %cst_251 = arith.constant dense<0.000000e+00> : vector<8x32xf32>
    %237 = tpu.matmul %236, %229, %cst_251 {dimension_numbers = #tpu.dot_dimension_numbers<[1], [0], [0], [1], [0, 0, 1, 1], [], []>} : vector<8x16xf32>, vector<16x32xf32>, vector<8x32xf32> -> vector<8x32xf32>
    %238 = arith.addf %235, %237 : vector<8x32xf32>
    %239 = vector.broadcast %231 : vector<1x32xf32> to vector<8x32xf32>
    %240 = arith.addf %238, %239 : vector<8x32xf32>
    %c1_252 = arith.constant 1 : index
    %c0_253 = arith.constant 0 : index
    %c0_254 = arith.constant 0 : index
    %c0_255 = arith.constant 0 : index
    %241 = vector.load %arg3[%c1_252, %c0_253, %c0_254, %c0_255] : memref<2x3x32x32xf32, #tpu.memory_space<vmem>>, vector<1x1x32x32xf32>
    %242 = vector.shape_cast %241 : vector<1x1x32x32xf32> to vector<32x32xf32>
    %c1_256 = arith.constant 1 : index
    %c1_257 = arith.constant 1 : index
    %c0_258 = arith.constant 0 : index
    %c0_259 = arith.constant 0 : index
    %243 = vector.load %arg3[%c1_256, %c1_257, %c0_258, %c0_259] : memref<2x3x32x32xf32, #tpu.memory_space<vmem>>, vector<1x1x32x32xf32>
    %244 = vector.shape_cast %243 : vector<1x1x32x32xf32> to vector<32x32xf32>
    %c1_260 = arith.constant 1 : index
    %c2_261 = arith.constant 2 : index
    %c0_262 = arith.constant 0 : index
    %c0_263 = arith.constant 0 : index
    %245 = vector.load %arg3[%c1_260, %c2_261, %c0_262, %c0_263] : memref<2x3x32x32xf32, #tpu.memory_space<vmem>>, vector<1x1x32x32xf32>
    %246 = vector.shape_cast %245 : vector<1x1x32x32xf32> to vector<32x32xf32>
    %c1_264 = arith.constant 1 : index
    %c0_265 = arith.constant 0 : index
    %c0_266 = arith.constant 0 : index
    %247 = vector.load %arg4[%c1_264, %c0_265, %c0_266] : memref<2x1x32xf32, #tpu.memory_space<vmem>>, vector<1x1x32xf32>
    %248 = vector.shape_cast %247 : vector<1x1x32xf32> to vector<1x32xf32>
    %c1_267 = arith.constant 1 : index
    %c0_268 = arith.constant 0 : index
    %c0_269 = arith.constant 0 : index
    %249 = vector.load %arg5[%c1_267, %c0_268, %c0_269] : memref<2x32x32xf32, #tpu.memory_space<vmem>>, vector<1x32x32xf32>
    %250 = vector.shape_cast %249 : vector<1x32x32xf32> to vector<32x32xf32>
    %c1_270 = arith.constant 1 : index
    %c0_271 = arith.constant 0 : index
    %c0_272 = arith.constant 0 : index
    %251 = vector.load %arg6[%c1_270, %c0_271, %c0_272] : memref<2x1x32xf32, #tpu.memory_space<vmem>>, vector<1x1x32xf32>
    %252 = vector.shape_cast %251 : vector<1x1x32xf32> to vector<1x32xf32>
    %cst_273 = arith.constant 0.000000e+00 : f32
    %253 = vector.broadcast %cst_273 : f32 to vector<8x32xf32>
    %254 = arith.maximumf %240, %253 : vector<8x32xf32>
    %cst_274 = arith.constant dense<0.000000e+00> : vector<8x32xf32>
    %255 = tpu.matmul %6, %254, %cst_274 {dimension_numbers = #tpu.dot_dimension_numbers<[1], [0], [0], [1], [0, 0, 1, 1], [], []>} : vector<8x8xf32>, vector<8x32xf32>, vector<8x32xf32> -> vector<8x32xf32>
    %cst_275 = arith.constant dense<0.000000e+00> : vector<8x32xf32>
    %256 = tpu.matmul %255, %242, %cst_275 {dimension_numbers = #tpu.dot_dimension_numbers<[1], [0], [0], [1], [0, 0, 1, 1], [], []>} : vector<8x32xf32>, vector<32x32xf32>, vector<8x32xf32> -> vector<8x32xf32>
    %cst_276 = arith.constant dense<0.000000e+00> : vector<8x32xf32>
    %257 = tpu.matmul %254, %244, %cst_276 {dimension_numbers = #tpu.dot_dimension_numbers<[1], [0], [0], [1], [0, 0, 1, 1], [], []>} : vector<8x32xf32>, vector<32x32xf32>, vector<8x32xf32> -> vector<8x32xf32>
    %258 = arith.addf %256, %257 : vector<8x32xf32>
    %cst_277 = arith.constant dense<0.000000e+00> : vector<8x32xf32>
    %259 = tpu.matmul %11, %254, %cst_277 {dimension_numbers = #tpu.dot_dimension_numbers<[1], [0], [0], [1], [0, 0, 1, 1], [], []>} : vector<8x8xf32>, vector<8x32xf32>, vector<8x32xf32> -> vector<8x32xf32>
    %cst_278 = arith.constant dense<0.000000e+00> : vector<8x32xf32>
    %260 = tpu.matmul %259, %246, %cst_278 {dimension_numbers = #tpu.dot_dimension_numbers<[1], [0], [0], [1], [0, 0, 1, 1], [], []>} : vector<8x32xf32>, vector<32x32xf32>, vector<8x32xf32> -> vector<8x32xf32>
    %261 = arith.addf %258, %260 : vector<8x32xf32>
    %262 = vector.broadcast %248 : vector<1x32xf32> to vector<8x32xf32>
    %263 = arith.addf %261, %262 : vector<8x32xf32>
    %cst_279 = arith.constant 0.000000e+00 : f32
    %264 = vector.broadcast %cst_279 : f32 to vector<8x32xf32>
    %265 = arith.maximumf %263, %264 : vector<8x32xf32>
    %cst_280 = arith.constant dense<0.000000e+00> : vector<8x32xf32>
    %266 = tpu.matmul %265, %250, %cst_280 {dimension_numbers = #tpu.dot_dimension_numbers<[1], [0], [0], [1], [0, 0, 1, 1], [], []>} : vector<8x32xf32>, vector<32x32xf32>, vector<8x32xf32> -> vector<8x32xf32>
    %267 = vector.broadcast %252 : vector<1x32xf32> to vector<8x32xf32>
    %268 = arith.addf %266, %267 : vector<8x32xf32>
    %269 = arith.addf %268, %240 : vector<8x32xf32>
    %c1_281 = arith.constant 1 : index
    %c0_282 = arith.constant 0 : index
    %c0_283 = arith.constant 0 : index
    %270 = vector.load %arg8[%c1_281, %c0_282, %c0_283] : memref<2x1x16xf32, #tpu.memory_space<vmem>>, vector<1x1x16xf32>
    %271 = vector.shape_cast %270 : vector<1x1x16xf32> to vector<1x16xf32>
    %c1_284 = arith.constant 1 : index
    %c1_285 = arith.constant 1 : index
    %c0_286 = arith.constant 0 : index
    %c0_287 = arith.constant 0 : index
    %272 = vector.load %arg7[%c1_284, %c1_285, %c0_286, %c0_287] : memref<2x4x32x16xf32, #tpu.memory_space<vmem>>, vector<1x1x32x16xf32>
    %273 = vector.shape_cast %272 : vector<1x1x32x16xf32> to vector<32x16xf32>
    %cst_288 = arith.constant dense<0.000000e+00> : vector<8x16xf32>
    %274 = tpu.matmul %269, %273, %cst_288 {dimension_numbers = #tpu.dot_dimension_numbers<[1], [0], [0], [1], [0, 0, 1, 1], [], []>} : vector<8x32xf32>, vector<32x16xf32>, vector<8x16xf32> -> vector<8x16xf32>
    %cst_289 = arith.constant dense<0.000000e+00> : vector<8x32xf32>
    %275 = tpu.matmul %6, %269, %cst_289 {dimension_numbers = #tpu.dot_dimension_numbers<[1], [0], [0], [1], [0, 0, 1, 1], [], []>} : vector<8x8xf32>, vector<8x32xf32>, vector<8x32xf32> -> vector<8x32xf32>
    %c1_290 = arith.constant 1 : index
    %c3_291 = arith.constant 3 : index
    %c0_292 = arith.constant 0 : index
    %c0_293 = arith.constant 0 : index
    %276 = vector.load %arg7[%c1_290, %c3_291, %c0_292, %c0_293] : memref<2x4x32x16xf32, #tpu.memory_space<vmem>>, vector<1x1x32x16xf32>
    %277 = vector.shape_cast %276 : vector<1x1x32x16xf32> to vector<32x16xf32>
    %cst_294 = arith.constant dense<0.000000e+00> : vector<8x16xf32>
    %278 = tpu.matmul %275, %277, %cst_294 {dimension_numbers = #tpu.dot_dimension_numbers<[1], [0], [0], [1], [0, 0, 1, 1], [], []>} : vector<8x32xf32>, vector<32x16xf32>, vector<8x16xf32> -> vector<8x16xf32>
    %279 = arith.addf %274, %278 : vector<8x16xf32>
    %280 = vector.broadcast %271 : vector<1x16xf32> to vector<8x16xf32>
    %281 = arith.addf %279, %280 : vector<8x16xf32>
    %c1_295 = arith.constant 1 : index
    %c2_296 = arith.constant 2 : index
    %c0_297 = arith.constant 0 : index
    %c0_298 = arith.constant 0 : index
    %282 = vector.load %arg7[%c1_295, %c2_296, %c0_297, %c0_298] : memref<2x4x32x16xf32, #tpu.memory_space<vmem>>, vector<1x1x32x16xf32>
    %283 = vector.shape_cast %282 : vector<1x1x32x16xf32> to vector<32x16xf32>
    %cst_299 = arith.constant dense<0.000000e+00> : vector<8x16xf32>
    %284 = tpu.matmul %269, %283, %cst_299 {dimension_numbers = #tpu.dot_dimension_numbers<[1], [0], [0], [1], [0, 0, 1, 1], [], []>} : vector<8x32xf32>, vector<32x16xf32>, vector<8x16xf32> -> vector<8x16xf32>
    %cst_300 = arith.constant dense<0.000000e+00> : vector<8x32xf32>
    %285 = tpu.matmul %11, %269, %cst_300 {dimension_numbers = #tpu.dot_dimension_numbers<[1], [0], [0], [1], [0, 0, 1, 1], [], []>} : vector<8x8xf32>, vector<8x32xf32>, vector<8x32xf32> -> vector<8x32xf32>
    %c1_301 = arith.constant 1 : index
    %c0_302 = arith.constant 0 : index
    %c0_303 = arith.constant 0 : index
    %c0_304 = arith.constant 0 : index
    %286 = vector.load %arg7[%c1_301, %c0_302, %c0_303, %c0_304] : memref<2x4x32x16xf32, #tpu.memory_space<vmem>>, vector<1x1x32x16xf32>
    %287 = vector.shape_cast %286 : vector<1x1x32x16xf32> to vector<32x16xf32>
    %cst_305 = arith.constant dense<0.000000e+00> : vector<8x16xf32>
    %288 = tpu.matmul %285, %287, %cst_305 {dimension_numbers = #tpu.dot_dimension_numbers<[1], [0], [0], [1], [0, 0, 1, 1], [], []>} : vector<8x32xf32>, vector<32x16xf32>, vector<8x16xf32> -> vector<8x16xf32>
    %289 = arith.addf %284, %288 : vector<8x16xf32>
    %290 = vector.broadcast %271 : vector<1x16xf32> to vector<8x16xf32>
    %291 = arith.addf %289, %290 : vector<8x16xf32>
    %c1_306 = arith.constant 1 : index
    %c0_307 = arith.constant 0 : index
    %c0_308 = arith.constant 0 : index
    %292 = vector.load %arg10[%c1_306, %c0_307, %c0_308] : memref<2x1x24xf32, #tpu.memory_space<vmem>>, vector<1x1x24xf32>
    %293 = vector.shape_cast %292 : vector<1x1x24xf32> to vector<1x24xf32>
    %cst_309 = arith.constant dense<0.000000e+00> : vector<8x16xf32>
    %294 = tpu.matmul %6, %291, %cst_309 {dimension_numbers = #tpu.dot_dimension_numbers<[1], [0], [0], [1], [0, 0, 1, 1], [], []>} : vector<8x8xf32>, vector<8x16xf32>, vector<8x16xf32> -> vector<8x16xf32>
    %c1_310 = arith.constant 1 : index
    %c0_311 = arith.constant 0 : index
    %c0_312 = arith.constant 0 : index
    %c0_313 = arith.constant 0 : index
    %295 = vector.load %arg9[%c1_310, %c0_311, %c0_312, %c0_313] : memref<2x3x16x24xf32, #tpu.memory_space<vmem>>, vector<1x1x16x24xf32>
    %296 = vector.shape_cast %295 : vector<1x1x16x24xf32> to vector<16x24xf32>
    %cst_314 = arith.constant dense<0.000000e+00> : vector<8x24xf32>
    %297 = tpu.matmul %294, %296, %cst_314 {dimension_numbers = #tpu.dot_dimension_numbers<[1], [0], [0], [1], [0, 0, 1, 1], [], []>} : vector<8x16xf32>, vector<16x24xf32>, vector<8x24xf32> -> vector<8x24xf32>
    %c1_315 = arith.constant 1 : index
    %c1_316 = arith.constant 1 : index
    %c0_317 = arith.constant 0 : index
    %c0_318 = arith.constant 0 : index
    %298 = vector.load %arg9[%c1_315, %c1_316, %c0_317, %c0_318] : memref<2x3x16x24xf32, #tpu.memory_space<vmem>>, vector<1x1x16x24xf32>
    %299 = vector.shape_cast %298 : vector<1x1x16x24xf32> to vector<16x24xf32>
    %cst_319 = arith.constant dense<0.000000e+00> : vector<8x24xf32>
    %300 = tpu.matmul %281, %299, %cst_319 {dimension_numbers = #tpu.dot_dimension_numbers<[1], [0], [0], [1], [0, 0, 1, 1], [], []>} : vector<8x16xf32>, vector<16x24xf32>, vector<8x24xf32> -> vector<8x24xf32>
    %301 = arith.addf %297, %300 : vector<8x24xf32>
    %c1_320 = arith.constant 1 : index
    %c2_321 = arith.constant 2 : index
    %c0_322 = arith.constant 0 : index
    %c0_323 = arith.constant 0 : index
    %302 = vector.load %arg9[%c1_320, %c2_321, %c0_322, %c0_323] : memref<2x3x16x24xf32, #tpu.memory_space<vmem>>, vector<1x1x16x24xf32>
    %303 = vector.shape_cast %302 : vector<1x1x16x24xf32> to vector<16x24xf32>
    %cst_324 = arith.constant dense<0.000000e+00> : vector<8x24xf32>
    %304 = tpu.matmul %291, %303, %cst_324 {dimension_numbers = #tpu.dot_dimension_numbers<[1], [0], [0], [1], [0, 0, 1, 1], [], []>} : vector<8x16xf32>, vector<16x24xf32>, vector<8x24xf32> -> vector<8x24xf32>
    %305 = arith.addf %301, %304 : vector<8x24xf32>
    %306 = vector.broadcast %293 : vector<1x24xf32> to vector<8x24xf32>
    %307 = arith.addf %305, %306 : vector<8x24xf32>
    %c1_325 = arith.constant 1 : index
    %c0_326 = arith.constant 0 : index
    %c0_327 = arith.constant 0 : index
    %c0_328 = arith.constant 0 : index
    %308 = vector.load %arg9[%c1_325, %c0_326, %c0_327, %c0_328] : memref<2x3x16x24xf32, #tpu.memory_space<vmem>>, vector<1x1x16x24xf32>
    %309 = vector.shape_cast %308 : vector<1x1x16x24xf32> to vector<16x24xf32>
    %cst_329 = arith.constant dense<0.000000e+00> : vector<8x24xf32>
    %310 = tpu.matmul %281, %309, %cst_329 {dimension_numbers = #tpu.dot_dimension_numbers<[1], [0], [0], [1], [0, 0, 1, 1], [], []>} : vector<8x16xf32>, vector<16x24xf32>, vector<8x24xf32> -> vector<8x24xf32>
    %c1_330 = arith.constant 1 : index
    %c1_331 = arith.constant 1 : index
    %c0_332 = arith.constant 0 : index
    %c0_333 = arith.constant 0 : index
    %311 = vector.load %arg9[%c1_330, %c1_331, %c0_332, %c0_333] : memref<2x3x16x24xf32, #tpu.memory_space<vmem>>, vector<1x1x16x24xf32>
    %312 = vector.shape_cast %311 : vector<1x1x16x24xf32> to vector<16x24xf32>
    %cst_334 = arith.constant dense<0.000000e+00> : vector<8x24xf32>
    %313 = tpu.matmul %291, %312, %cst_334 {dimension_numbers = #tpu.dot_dimension_numbers<[1], [0], [0], [1], [0, 0, 1, 1], [], []>} : vector<8x16xf32>, vector<16x24xf32>, vector<8x24xf32> -> vector<8x24xf32>
    %314 = arith.addf %310, %313 : vector<8x24xf32>
    %cst_335 = arith.constant dense<0.000000e+00> : vector<8x16xf32>
    %315 = tpu.matmul %11, %281, %cst_335 {dimension_numbers = #tpu.dot_dimension_numbers<[1], [0], [0], [1], [0, 0, 1, 1], [], []>} : vector<8x8xf32>, vector<8x16xf32>, vector<8x16xf32> -> vector<8x16xf32>
    %c1_336 = arith.constant 1 : index
    %c2_337 = arith.constant 2 : index
    %c0_338 = arith.constant 0 : index
    %c0_339 = arith.constant 0 : index
    %316 = vector.load %arg9[%c1_336, %c2_337, %c0_338, %c0_339] : memref<2x3x16x24xf32, #tpu.memory_space<vmem>>, vector<1x1x16x24xf32>
    %317 = vector.shape_cast %316 : vector<1x1x16x24xf32> to vector<16x24xf32>
    %cst_340 = arith.constant dense<0.000000e+00> : vector<8x24xf32>
    %318 = tpu.matmul %315, %317, %cst_340 {dimension_numbers = #tpu.dot_dimension_numbers<[1], [0], [0], [1], [0, 0, 1, 1], [], []>} : vector<8x16xf32>, vector<16x24xf32>, vector<8x24xf32> -> vector<8x24xf32>
    %319 = arith.addf %314, %318 : vector<8x24xf32>
    %320 = vector.broadcast %293 : vector<1x24xf32> to vector<8x24xf32>
    %321 = arith.addf %319, %320 : vector<8x24xf32>
    %c1_341 = arith.constant 1 : index
    %c0_342 = arith.constant 0 : index
    %c0_343 = arith.constant 0 : index
    %c0_344 = arith.constant 0 : index
    %322 = vector.load %arg11[%c1_341, %c0_342, %c0_343, %c0_344] : memref<2x2x8x24xf32, #tpu.memory_space<vmem>>, vector<1x1x8x24xf32>
    %323 = vector.shape_cast %322 : vector<1x1x8x24xf32> to vector<8x24xf32>
    %324 = vector.shape_cast %307 : vector<8x24xf32> to vector<1x1x8x24xf32>
    tpu.vector_store %arg11[%c1_341, %c0_342, %c0_343, %c0_344], %324 {strides = array<i32>} : memref<2x2x8x24xf32, #tpu.memory_space<vmem>>, vector<1x1x8x24xf32>,
    %c1_345 = arith.constant 1 : index
    %c0_346 = arith.constant 0 : index
    %c0_347 = arith.constant 0 : index
    %c0_348 = arith.constant 0 : index
    %325 = vector.load %arg12[%c1_345, %c0_346, %c0_347, %c0_348] : memref<2x2x8x24xf32, #tpu.memory_space<vmem>>, vector<1x1x8x24xf32>
    %326 = vector.shape_cast %325 : vector<1x1x8x24xf32> to vector<8x24xf32>
    %327 = vector.shape_cast %321 : vector<8x24xf32> to vector<1x1x8x24xf32>
    tpu.vector_store %arg12[%c1_345, %c0_346, %c0_347, %c0_348], %327 {strides = array<i32>} : memref<2x2x8x24xf32, #tpu.memory_space<vmem>>, vector<1x1x8x24xf32>,
    %328 = vector.extract_strided_slice %12 {offsets = [8, 0], sizes = [8, 16], strides = [1, 1]} : vector<16x16xf32> to vector<8x16xf32>
    %c1_349 = arith.constant 1 : index
    %c0_350 = arith.constant 0 : index
    %c0_351 = arith.constant 0 : index
    %c0_352 = arith.constant 0 : index
    %329 = vector.load %arg1[%c1_349, %c0_350, %c0_351, %c0_352] : memref<2x3x16x32xf32, #tpu.memory_space<vmem>>, vector<1x1x16x32xf32>
    %330 = vector.shape_cast %329 : vector<1x1x16x32xf32> to vector<16x32xf32>
    %c1_353 = arith.constant 1 : index
    %c1_354 = arith.constant 1 : index
    %c0_355 = arith.constant 0 : index
    %c0_356 = arith.constant 0 : index
    %331 = vector.load %arg1[%c1_353, %c1_354, %c0_355, %c0_356] : memref<2x3x16x32xf32, #tpu.memory_space<vmem>>, vector<1x1x16x32xf32>
    %332 = vector.shape_cast %331 : vector<1x1x16x32xf32> to vector<16x32xf32>
    %c1_357 = arith.constant 1 : index
    %c2_358 = arith.constant 2 : index
    %c0_359 = arith.constant 0 : index
    %c0_360 = arith.constant 0 : index
    %333 = vector.load %arg1[%c1_357, %c2_358, %c0_359, %c0_360] : memref<2x3x16x32xf32, #tpu.memory_space<vmem>>, vector<1x1x16x32xf32>
    %334 = vector.shape_cast %333 : vector<1x1x16x32xf32> to vector<16x32xf32>
    %c1_361 = arith.constant 1 : index
    %c0_362 = arith.constant 0 : index
    %c0_363 = arith.constant 0 : index
    %335 = vector.load %arg2[%c1_361, %c0_362, %c0_363] : memref<2x1x32xf32, #tpu.memory_space<vmem>>, vector<1x1x32xf32>
    %336 = vector.shape_cast %335 : vector<1x1x32xf32> to vector<1x32xf32>
    %cst_364 = arith.constant dense<0.000000e+00> : vector<8x16xf32>
    %337 = tpu.matmul %6, %328, %cst_364 {dimension_numbers = #tpu.dot_dimension_numbers<[1], [0], [0], [1], [0, 0, 1, 1], [], []>} : vector<8x8xf32>, vector<8x16xf32>, vector<8x16xf32> -> vector<8x16xf32>
    %cst_365 = arith.constant dense<0.000000e+00> : vector<8x32xf32>
    %338 = tpu.matmul %337, %330, %cst_365 {dimension_numbers = #tpu.dot_dimension_numbers<[1], [0], [0], [1], [0, 0, 1, 1], [], []>} : vector<8x16xf32>, vector<16x32xf32>, vector<8x32xf32> -> vector<8x32xf32>
    %cst_366 = arith.constant dense<0.000000e+00> : vector<8x32xf32>
    %339 = tpu.matmul %328, %332, %cst_366 {dimension_numbers = #tpu.dot_dimension_numbers<[1], [0], [0], [1], [0, 0, 1, 1], [], []>} : vector<8x16xf32>, vector<16x32xf32>, vector<8x32xf32> -> vector<8x32xf32>
    %340 = arith.addf %338, %339 : vector<8x32xf32>
    %cst_367 = arith.constant dense<0.000000e+00> : vector<8x16xf32>
    %341 = tpu.matmul %11, %328, %cst_367 {dimension_numbers = #tpu.dot_dimension_numbers<[1], [0], [0], [1], [0, 0, 1, 1], [], []>} : vector<8x8xf32>, vector<8x16xf32>, vector<8x16xf32> -> vector<8x16xf32>
    %cst_368 = arith.constant dense<0.000000e+00> : vector<8x32xf32>
    %342 = tpu.matmul %341, %334, %cst_368 {dimension_numbers = #tpu.dot_dimension_numbers<[1], [0], [0], [1], [0, 0, 1, 1], [], []>} : vector<8x16xf32>, vector<16x32xf32>, vector<8x32xf32> -> vector<8x32xf32>
    %343 = arith.addf %340, %342 : vector<8x32xf32>
    %344 = vector.broadcast %336 : vector<1x32xf32> to vector<8x32xf32>
    %345 = arith.addf %343, %344 : vector<8x32xf32>
    %c1_369 = arith.constant 1 : index
    %c0_370 = arith.constant 0 : index
    %c0_371 = arith.constant 0 : index
    %c0_372 = arith.constant 0 : index
    %346 = vector.load %arg3[%c1_369, %c0_370, %c0_371, %c0_372] : memref<2x3x32x32xf32, #tpu.memory_space<vmem>>, vector<1x1x32x32xf32>
    %347 = vector.shape_cast %346 : vector<1x1x32x32xf32> to vector<32x32xf32>
    %c1_373 = arith.constant 1 : index
    %c1_374 = arith.constant 1 : index
    %c0_375 = arith.constant 0 : index
    %c0_376 = arith.constant 0 : index
    %348 = vector.load %arg3[%c1_373, %c1_374, %c0_375, %c0_376] : memref<2x3x32x32xf32, #tpu.memory_space<vmem>>, vector<1x1x32x32xf32>
    %349 = vector.shape_cast %348 : vector<1x1x32x32xf32> to vector<32x32xf32>
    %c1_377 = arith.constant 1 : index
    %c2_378 = arith.constant 2 : index
    %c0_379 = arith.constant 0 : index
    %c0_380 = arith.constant 0 : index
    %350 = vector.load %arg3[%c1_377, %c2_378, %c0_379, %c0_380] : memref<2x3x32x32xf32, #tpu.memory_space<vmem>>, vector<1x1x32x32xf32>
    %351 = vector.shape_cast %350 : vector<1x1x32x32xf32> to vector<32x32xf32>
    %c1_381 = arith.constant 1 : index
    %c0_382 = arith.constant 0 : index
    %c0_383 = arith.constant 0 : index
    %352 = vector.load %arg4[%c1_381, %c0_382, %c0_383] : memref<2x1x32xf32, #tpu.memory_space<vmem>>, vector<1x1x32xf32>
    %353 = vector.shape_cast %352 : vector<1x1x32xf32> to vector<1x32xf32>
    %c1_384 = arith.constant 1 : index
    %c0_385 = arith.constant 0 : index
    %c0_386 = arith.constant 0 : index
    %354 = vector.load %arg5[%c1_384, %c0_385, %c0_386] : memref<2x32x32xf32, #tpu.memory_space<vmem>>, vector<1x32x32xf32>
    %355 = vector.shape_cast %354 : vector<1x32x32xf32> to vector<32x32xf32>
    %c1_387 = arith.constant 1 : index
    %c0_388 = arith.constant 0 : index
    %c0_389 = arith.constant 0 : index
    %356 = vector.load %arg6[%c1_387, %c0_388, %c0_389] : memref<2x1x32xf32, #tpu.memory_space<vmem>>, vector<1x1x32xf32>
    %357 = vector.shape_cast %356 : vector<1x1x32xf32> to vector<1x32xf32>
    %cst_390 = arith.constant 0.000000e+00 : f32
    %358 = vector.broadcast %cst_390 : f32 to vector<8x32xf32>
    %359 = arith.maximumf %345, %358 : vector<8x32xf32>
    %cst_391 = arith.constant dense<0.000000e+00> : vector<8x32xf32>
    %360 = tpu.matmul %6, %359, %cst_391 {dimension_numbers = #tpu.dot_dimension_numbers<[1], [0], [0], [1], [0, 0, 1, 1], [], []>} : vector<8x8xf32>, vector<8x32xf32>, vector<8x32xf32> -> vector<8x32xf32>
    %cst_392 = arith.constant dense<0.000000e+00> : vector<8x32xf32>
    %361 = tpu.matmul %360, %347, %cst_392 {dimension_numbers = #tpu.dot_dimension_numbers<[1], [0], [0], [1], [0, 0, 1, 1], [], []>} : vector<8x32xf32>, vector<32x32xf32>, vector<8x32xf32> -> vector<8x32xf32>
    %cst_393 = arith.constant dense<0.000000e+00> : vector<8x32xf32>
    %362 = tpu.matmul %359, %349, %cst_393 {dimension_numbers = #tpu.dot_dimension_numbers<[1], [0], [0], [1], [0, 0, 1, 1], [], []>} : vector<8x32xf32>, vector<32x32xf32>, vector<8x32xf32> -> vector<8x32xf32>
    %363 = arith.addf %361, %362 : vector<8x32xf32>
    %cst_394 = arith.constant dense<0.000000e+00> : vector<8x32xf32>
    %364 = tpu.matmul %11, %359, %cst_394 {dimension_numbers = #tpu.dot_dimension_numbers<[1], [0], [0], [1], [0, 0, 1, 1], [], []>} : vector<8x8xf32>, vector<8x32xf32>, vector<8x32xf32> -> vector<8x32xf32>
    %cst_395 = arith.constant dense<0.000000e+00> : vector<8x32xf32>
    %365 = tpu.matmul %364, %351, %cst_395 {dimension_numbers = #tpu.dot_dimension_numbers<[1], [0], [0], [1], [0, 0, 1, 1], [], []>} : vector<8x32xf32>, vector<32x32xf32>, vector<8x32xf32> -> vector<8x32xf32>
    %366 = arith.addf %363, %365 : vector<8x32xf32>
    %367 = vector.broadcast %353 : vector<1x32xf32> to vector<8x32xf32>
    %368 = arith.addf %366, %367 : vector<8x32xf32>
    %cst_396 = arith.constant 0.000000e+00 : f32
    %369 = vector.broadcast %cst_396 : f32 to vector<8x32xf32>
    %370 = arith.maximumf %368, %369 : vector<8x32xf32>
    %cst_397 = arith.constant dense<0.000000e+00> : vector<8x32xf32>
    %371 = tpu.matmul %370, %355, %cst_397 {dimension_numbers = #tpu.dot_dimension_numbers<[1], [0], [0], [1], [0, 0, 1, 1], [], []>} : vector<8x32xf32>, vector<32x32xf32>, vector<8x32xf32> -> vector<8x32xf32>
    %372 = vector.broadcast %357 : vector<1x32xf32> to vector<8x32xf32>
    %373 = arith.addf %371, %372 : vector<8x32xf32>
    %374 = arith.addf %373, %345 : vector<8x32xf32>
    %c1_398 = arith.constant 1 : index
    %c0_399 = arith.constant 0 : index
    %c0_400 = arith.constant 0 : index
    %375 = vector.load %arg8[%c1_398, %c0_399, %c0_400] : memref<2x1x16xf32, #tpu.memory_space<vmem>>, vector<1x1x16xf32>
    %376 = vector.shape_cast %375 : vector<1x1x16xf32> to vector<1x16xf32>
    %c1_401 = arith.constant 1 : index
    %c1_402 = arith.constant 1 : index
    %c0_403 = arith.constant 0 : index
    %c0_404 = arith.constant 0 : index
    %377 = vector.load %arg7[%c1_401, %c1_402, %c0_403, %c0_404] : memref<2x4x32x16xf32, #tpu.memory_space<vmem>>, vector<1x1x32x16xf32>
    %378 = vector.shape_cast %377 : vector<1x1x32x16xf32> to vector<32x16xf32>
    %cst_405 = arith.constant dense<0.000000e+00> : vector<8x16xf32>
    %379 = tpu.matmul %374, %378, %cst_405 {dimension_numbers = #tpu.dot_dimension_numbers<[1], [0], [0], [1], [0, 0, 1, 1], [], []>} : vector<8x32xf32>, vector<32x16xf32>, vector<8x16xf32> -> vector<8x16xf32>
    %cst_406 = arith.constant dense<0.000000e+00> : vector<8x32xf32>
    %380 = tpu.matmul %6, %374, %cst_406 {dimension_numbers = #tpu.dot_dimension_numbers<[1], [0], [0], [1], [0, 0, 1, 1], [], []>} : vector<8x8xf32>, vector<8x32xf32>, vector<8x32xf32> -> vector<8x32xf32>
    %c1_407 = arith.constant 1 : index
    %c3_408 = arith.constant 3 : index
    %c0_409 = arith.constant 0 : index
    %c0_410 = arith.constant 0 : index
    %381 = vector.load %arg7[%c1_407, %c3_408, %c0_409, %c0_410] : memref<2x4x32x16xf32, #tpu.memory_space<vmem>>, vector<1x1x32x16xf32>
    %382 = vector.shape_cast %381 : vector<1x1x32x16xf32> to vector<32x16xf32>
    %cst_411 = arith.constant dense<0.000000e+00> : vector<8x16xf32>
    %383 = tpu.matmul %380, %382, %cst_411 {dimension_numbers = #tpu.dot_dimension_numbers<[1], [0], [0], [1], [0, 0, 1, 1], [], []>} : vector<8x32xf32>, vector<32x16xf32>, vector<8x16xf32> -> vector<8x16xf32>
    %384 = arith.addf %379, %383 : vector<8x16xf32>
    %385 = vector.broadcast %376 : vector<1x16xf32> to vector<8x16xf32>
    %386 = arith.addf %384, %385 : vector<8x16xf32>
    %c1_412 = arith.constant 1 : index
    %c2_413 = arith.constant 2 : index
    %c0_414 = arith.constant 0 : index
    %c0_415 = arith.constant 0 : index
    %387 = vector.load %arg7[%c1_412, %c2_413, %c0_414, %c0_415] : memref<2x4x32x16xf32, #tpu.memory_space<vmem>>, vector<1x1x32x16xf32>
    %388 = vector.shape_cast %387 : vector<1x1x32x16xf32> to vector<32x16xf32>
    %cst_416 = arith.constant dense<0.000000e+00> : vector<8x16xf32>
    %389 = tpu.matmul %374, %388, %cst_416 {dimension_numbers = #tpu.dot_dimension_numbers<[1], [0], [0], [1], [0, 0, 1, 1], [], []>} : vector<8x32xf32>, vector<32x16xf32>, vector<8x16xf32> -> vector<8x16xf32>
    %cst_417 = arith.constant dense<0.000000e+00> : vector<8x32xf32>
    %390 = tpu.matmul %11, %374, %cst_417 {dimension_numbers = #tpu.dot_dimension_numbers<[1], [0], [0], [1], [0, 0, 1, 1], [], []>} : vector<8x8xf32>, vector<8x32xf32>, vector<8x32xf32> -> vector<8x32xf32>
    %c1_418 = arith.constant 1 : index
    %c0_419 = arith.constant 0 : index
    %c0_420 = arith.constant 0 : index
    %c0_421 = arith.constant 0 : index
    %391 = vector.load %arg7[%c1_418, %c0_419, %c0_420, %c0_421] : memref<2x4x32x16xf32, #tpu.memory_space<vmem>>, vector<1x1x32x16xf32>
    %392 = vector.shape_cast %391 : vector<1x1x32x16xf32> to vector<32x16xf32>
    %cst_422 = arith.constant dense<0.000000e+00> : vector<8x16xf32>
    %393 = tpu.matmul %390, %392, %cst_422 {dimension_numbers = #tpu.dot_dimension_numbers<[1], [0], [0], [1], [0, 0, 1, 1], [], []>} : vector<8x32xf32>, vector<32x16xf32>, vector<8x16xf32> -> vector<8x16xf32>
    %394 = arith.addf %389, %393 : vector<8x16xf32>
    %395 = vector.broadcast %376 : vector<1x16xf32> to vector<8x16xf32>
    %396 = arith.addf %394, %395 : vector<8x16xf32>
    %c1_423 = arith.constant 1 : index
    %c0_424 = arith.constant 0 : index
    %c0_425 = arith.constant 0 : index
    %397 = vector.load %arg10[%c1_423, %c0_424, %c0_425] : memref<2x1x24xf32, #tpu.memory_space<vmem>>, vector<1x1x24xf32>
    %398 = vector.shape_cast %397 : vector<1x1x24xf32> to vector<1x24xf32>
    %cst_426 = arith.constant dense<0.000000e+00> : vector<8x16xf32>
    %399 = tpu.matmul %6, %396, %cst_426 {dimension_numbers = #tpu.dot_dimension_numbers<[1], [0], [0], [1], [0, 0, 1, 1], [], []>} : vector<8x8xf32>, vector<8x16xf32>, vector<8x16xf32> -> vector<8x16xf32>
    %c1_427 = arith.constant 1 : index
    %c0_428 = arith.constant 0 : index
    %c0_429 = arith.constant 0 : index
    %c0_430 = arith.constant 0 : index
    %400 = vector.load %arg9[%c1_427, %c0_428, %c0_429, %c0_430] : memref<2x3x16x24xf32, #tpu.memory_space<vmem>>, vector<1x1x16x24xf32>
    %401 = vector.shape_cast %400 : vector<1x1x16x24xf32> to vector<16x24xf32>
    %cst_431 = arith.constant dense<0.000000e+00> : vector<8x24xf32>
    %402 = tpu.matmul %399, %401, %cst_431 {dimension_numbers = #tpu.dot_dimension_numbers<[1], [0], [0], [1], [0, 0, 1, 1], [], []>} : vector<8x16xf32>, vector<16x24xf32>, vector<8x24xf32> -> vector<8x24xf32>
    %c1_432 = arith.constant 1 : index
    %c1_433 = arith.constant 1 : index
    %c0_434 = arith.constant 0 : index
    %c0_435 = arith.constant 0 : index
    %403 = vector.load %arg9[%c1_432, %c1_433, %c0_434, %c0_435] : memref<2x3x16x24xf32, #tpu.memory_space<vmem>>, vector<1x1x16x24xf32>
    %404 = vector.shape_cast %403 : vector<1x1x16x24xf32> to vector<16x24xf32>
    %cst_436 = arith.constant dense<0.000000e+00> : vector<8x24xf32>
    %405 = tpu.matmul %386, %404, %cst_436 {dimension_numbers = #tpu.dot_dimension_numbers<[1], [0], [0], [1], [0, 0, 1, 1], [], []>} : vector<8x16xf32>, vector<16x24xf32>, vector<8x24xf32> -> vector<8x24xf32>
    %406 = arith.addf %402, %405 : vector<8x24xf32>
    %c1_437 = arith.constant 1 : index
    %c2_438 = arith.constant 2 : index
    %c0_439 = arith.constant 0 : index
    %c0_440 = arith.constant 0 : index
    %407 = vector.load %arg9[%c1_437, %c2_438, %c0_439, %c0_440] : memref<2x3x16x24xf32, #tpu.memory_space<vmem>>, vector<1x1x16x24xf32>
    %408 = vector.shape_cast %407 : vector<1x1x16x24xf32> to vector<16x24xf32>
    %cst_441 = arith.constant dense<0.000000e+00> : vector<8x24xf32>
    %409 = tpu.matmul %396, %408, %cst_441 {dimension_numbers = #tpu.dot_dimension_numbers<[1], [0], [0], [1], [0, 0, 1, 1], [], []>} : vector<8x16xf32>, vector<16x24xf32>, vector<8x24xf32> -> vector<8x24xf32>
    %410 = arith.addf %406, %409 : vector<8x24xf32>
    %411 = vector.broadcast %398 : vector<1x24xf32> to vector<8x24xf32>
    %412 = arith.addf %410, %411 : vector<8x24xf32>
    %c1_442 = arith.constant 1 : index
    %c0_443 = arith.constant 0 : index
    %c0_444 = arith.constant 0 : index
    %c0_445 = arith.constant 0 : index
    %413 = vector.load %arg9[%c1_442, %c0_443, %c0_444, %c0_445] : memref<2x3x16x24xf32, #tpu.memory_space<vmem>>, vector<1x1x16x24xf32>
    %414 = vector.shape_cast %413 : vector<1x1x16x24xf32> to vector<16x24xf32>
    %cst_446 = arith.constant dense<0.000000e+00> : vector<8x24xf32>
    %415 = tpu.matmul %386, %414, %cst_446 {dimension_numbers = #tpu.dot_dimension_numbers<[1], [0], [0], [1], [0, 0, 1, 1], [], []>} : vector<8x16xf32>, vector<16x24xf32>, vector<8x24xf32> -> vector<8x24xf32>
    %c1_447 = arith.constant 1 : index
    %c1_448 = arith.constant 1 : index
    %c0_449 = arith.constant 0 : index
    %c0_450 = arith.constant 0 : index
    %416 = vector.load %arg9[%c1_447, %c1_448, %c0_449, %c0_450] : memref<2x3x16x24xf32, #tpu.memory_space<vmem>>, vector<1x1x16x24xf32>
    %417 = vector.shape_cast %416 : vector<1x1x16x24xf32> to vector<16x24xf32>
    %cst_451 = arith.constant dense<0.000000e+00> : vector<8x24xf32>
    %418 = tpu.matmul %396, %417, %cst_451 {dimension_numbers = #tpu.dot_dimension_numbers<[1], [0], [0], [1], [0, 0, 1, 1], [], []>} : vector<8x16xf32>, vector<16x24xf32>, vector<8x24xf32> -> vector<8x24xf32>
    %419 = arith.addf %415, %418 : vector<8x24xf32>
    %cst_452 = arith.constant dense<0.000000e+00> : vector<8x16xf32>
    %420 = tpu.matmul %11, %386, %cst_452 {dimension_numbers = #tpu.dot_dimension_numbers<[1], [0], [0], [1], [0, 0, 1, 1], [], []>} : vector<8x8xf32>, vector<8x16xf32>, vector<8x16xf32> -> vector<8x16xf32>
    %c1_453 = arith.constant 1 : index
    %c2_454 = arith.constant 2 : index
    %c0_455 = arith.constant 0 : index
    %c0_456 = arith.constant 0 : index
    %421 = vector.load %arg9[%c1_453, %c2_454, %c0_455, %c0_456] : memref<2x3x16x24xf32, #tpu.memory_space<vmem>>, vector<1x1x16x24xf32>
    %422 = vector.shape_cast %421 : vector<1x1x16x24xf32> to vector<16x24xf32>
    %cst_457 = arith.constant dense<0.000000e+00> : vector<8x24xf32>
    %423 = tpu.matmul %420, %422, %cst_457 {dimension_numbers = #tpu.dot_dimension_numbers<[1], [0], [0], [1], [0, 0, 1, 1], [], []>} : vector<8x16xf32>, vector<16x24xf32>, vector<8x24xf32> -> vector<8x24xf32>
    %424 = arith.addf %419, %423 : vector<8x24xf32>
    %425 = vector.broadcast %398 : vector<1x24xf32> to vector<8x24xf32>
    %426 = arith.addf %424, %425 : vector<8x24xf32>
    %c1_458 = arith.constant 1 : index
    %c1_459 = arith.constant 1 : index
    %c0_460 = arith.constant 0 : index
    %c0_461 = arith.constant 0 : index
    %427 = vector.load %arg11[%c1_458, %c1_459, %c0_460, %c0_461] : memref<2x2x8x24xf32, #tpu.memory_space<vmem>>, vector<1x1x8x24xf32>
    %428 = vector.shape_cast %427 : vector<1x1x8x24xf32> to vector<8x24xf32>
    %429 = vector.shape_cast %412 : vector<8x24xf32> to vector<1x1x8x24xf32>
    tpu.vector_store %arg11[%c1_458, %c1_459, %c0_460, %c0_461], %429 {strides = array<i32>} : memref<2x2x8x24xf32, #tpu.memory_space<vmem>>, vector<1x1x8x24xf32>,
    %c1_462 = arith.constant 1 : index
    %c1_463 = arith.constant 1 : index
    %c0_464 = arith.constant 0 : index
    %c0_465 = arith.constant 0 : index
    %430 = vector.load %arg12[%c1_462, %c1_463, %c0_464, %c0_465] : memref<2x2x8x24xf32, #tpu.memory_space<vmem>>, vector<1x1x8x24xf32>
    %431 = vector.shape_cast %430 : vector<1x1x8x24xf32> to vector<8x24xf32>
    %432 = vector.shape_cast %426 : vector<8x24xf32> to vector<1x1x8x24xf32>
    tpu.vector_store %arg12[%c1_462, %c1_463, %c0_464, %c0_465], %432 {strides = array<i32>} : memref<2x2x8x24xf32, #tpu.memory_space<vmem>>, vector<1x1x8x24xf32>,
    return
  }
}

</mosaic_0001>

<llo_original>
// kernel: _lambda_.5
$region0: #{_lambda_.5}
  #allocation0 [shape = 'u32[]', space=smem, size = 0x4, offset = 0x4, fixed_abs, tag = 'smem constant byte address 0x4 - core index']
  #allocation1 [shape = 'u32[144,128]{1,0:T(1,128)}', space=vmem, size = 0x12000, scoped, tag = 'internal scratch']
  %s0 = inlined_call_operand.vmem [shape: f32[2,16,24], index: 0, kind: input, shape index: {}]
  %s1 = inlined_call_operand.vmem [shape: f32[2,16,24], index: 1, kind: input, shape index: {}]
  %s2 = inlined_call_operand.hbm [shape: f32[1,1], index: 2, kind: output, shape index: {0}]
  %s3 = inlined_call_operand.hbm [shape: f32[1,1], index: 3, kind: output, shape index: {1}]
  %s4 = inlined_call_operand.hbm [shape: f32[1,1], index: 4, kind: output, shape index: {2}]
  %5 = xla_tuple %s2, %s3, %s4
  %s6 = sld [smem:[#allocation0]]
  $region34: #{_lambda_.5} parent=0
    _
  %s8 = ssub.s32 1, %s6
  %s9 = scalar_select 0, %s8, %s6
  $region1: #{_lambda_.5} parent=0
    #allocation2 [shape = 'u8[512]{0}', space=vmem, size = 0x400, scoped, tag = 'output window, operand 0, single buffered']
    #allocation3 [shape = 's32[1]{0}', space=sflag, size = 0x4, scoped, tag = 'scoped memory for _lambda_.5']
    #allocation4 [shape = 'u8[512]{0}', space=vmem, size = 0x400, scoped, tag = 'output window, operand 1, single buffered']
    #allocation5 [shape = 's32[1]{0}', space=sflag, size = 0x4, scoped, tag = 'scoped memory for _lambda_.5']
    #allocation6 [shape = 'u8[512]{0}', space=vmem, size = 0x400, scoped, tag = 'output window, operand 2, single buffered']
    %10 = vsyncpa [#allocation3], 0
    %11 = vsyncpa [#allocation5], 0
    // Predicated region
    $region2: #{_lambda_.5} parent=1 // pred_check
      _
    $region3: #{_lambda_.5} parent=1 // pred_check_branch
      %13 = sbr.rel (0) target = $region5
    $region4: #{_lambda_.5} parent=1 // pred_region
      _
    $region5: #{_lambda_.5} parent=1 // pred_fallthru
      _
    // Predicated region
    $region6: #{_lambda_.5} parent=1 // pred_check
      _
    $region7: #{_lambda_.5} parent=1 // pred_check_branch
      %15 = sbr.rel (0) target = $region9
    $region8: #{_lambda_.5} parent=1 // pred_region
      _
    $region9: #{_lambda_.5} parent=1 // pred_fallthru
      _
    %v16 = vld [vmem:[%s0] sm:$0xff]
    %v17 = vld [vmem:[%s0 + $0x8] sm:$0xff]
    %v18 = vld [vmem:[%s1] sm:$0xff]
    %v19 = vld [vmem:[%s1 + $0x8] sm:$0xff]
    %v20 = vsub.f32 %v18, %v16
    %v21 = vsub.f32 %v19, %v17
    %v22 = vand.u32 2147483647, %v20
    %v23 = vand.u32 2147483647, %v21
    %vm24 = vcmask 195584
    %v25 = vsel %vm24, %v22, 0.0
    %v26 = vsel %vm24, %v23, 0.0
    %v27 = vadd.f32 %v25, %v26
    %v28 = vrot.slane %v27, 4
    %v29 = vadd.f32 %v27, %v28
    %v30 = vrot.slane %v29, 2
    %v31 = vadd.f32 %v29, %v30
    %v32 = vrot.slane %v31, 1
    %v33 = vadd.f32 %v31, %v32
    %v34 = vsel %vm24, %v33, 0.0
    %35 = vadd.xlane.f32.xlu0 %v34
    %v36 = vpop.xlane.xlu0 %35
    %v37 = vadd.f32 %v36, 0.0
    %vm40 = vcmask 1040384
    %v41 = vrot.slane %v18, 7
    %v42 = vrot.slane %v19, 7
    %v43 = vsel %vm40, %v41, %v42
    %v46 = vsub.f32 %v18, %v41
    %v47 = vsub.f32 %v19, %v43
    %v50 = vrot.slane %v16, 7
    %v51 = vrot.slane %v17, 7
    %v52 = vsel %vm40, %v50, %v51
    %v55 = vsub.f32 %v16, %v50
    %v56 = vsub.f32 %v17, %v52
    %v57 = vsub.f32 %v46, %v55
    %v58 = vsub.f32 %v47, %v56
    %v59 = vand.u32 2147483647, %v57
    %v60 = vand.u32 2147483647, %v58
    %vm63 = vcmask 1046528
    %v64 = vrot.slane %v59, 1
    %v65 = vrot.slane %v60, 1
    %v66 = vsel %vm63, %v64, %v65
    %v69 = vsel %vm24, %v66, 0.0
    %vm70 = vcmask 194560
    %v71 = vsel %vm70, %v65, 0.0
    %v72 = vadd.f32 %v69, %v71
    %v73 = vrot.slane %v72, 4
    %v74 = vadd.f32 %v72, %v73
    %v75 = vrot.slane %v74, 2
    %v76 = vadd.f32 %v74, %v75
    %v77 = vrot.slane %v76, 1
    %v78 = vadd.f32 %v76, %v77
    %v79 = vsel %vm24, %v78, 0.0
    %80 = vadd.xlane.f32.xlu0 %v79
    %v81 = vpop.xlane.xlu0 %80
    %v82 = vadd.f32 %v81, 0.0
    %vm83 = vcmask 1041408
    %v84 = vrot.slane %v18, 6
    %v85 = vrot.slane %v19, 6
    %v86 = vsel %vm83, %v84, %v85
    %v89 = vadd.f32 %v18, %v84
    %v90 = vadd.f32 %v19, %v86
    %v91 = vmul.f32 %v18, 2.0
    %v92 = vmul.f32 %v19, 2.0
    %v95 = vrot.slane %v91, 7
    %v96 = vrot.slane %v92, 7
    %v97 = vsel %vm40, %v95, %v96
    %v100 = vsub.f32 %v89, %v95
    %v101 = vsub.f32 %v90, %v97
    %v102 = vrot.slane %v16, 6
    %v103 = vrot.slane %v17, 6
    %v104 = vsel %vm83, %v102, %v103
    %v107 = vadd.f32 %v16, %v102
    %v108 = vadd.f32 %v17, %v104
    %v109 = vmul.f32 %v16, 2.0
    %v110 = vmul.f32 %v17, 2.0
    %v113 = vrot.slane %v109, 7
    %v114 = vrot.slane %v110, 7
    %v115 = vsel %vm40, %v113, %v114
    %v118 = vsub.f32 %v107, %v113
    %v119 = vsub.f32 %v108, %v115
    %v120 = vsub.f32 %v100, %v118
    %v121 = vsub.f32 %v101, %v119
    %v122 = vand.u32 2147483647, %v120
    %v123 = vand.u32 2147483647, %v121
    %vm126 = vcmask 1045504
    %v127 = vrot.slane %v122, 2
    %v128 = vrot.slane %v123, 2
    %v129 = vsel %vm126, %v127, %v128
    %v132 = vsel %vm24, %v129, 0.0
    %vm133 = vcmask 193536
    %v134 = vsel %vm133, %v128, 0.0
    %v135 = vadd.f32 %v132, %v134
    %v136 = vrot.slane %v135, 4
    %v137 = vadd.f32 %v135, %v136
    %v138 = vrot.slane %v137, 2
    %v139 = vadd.f32 %v137, %v138
    %v140 = vrot.slane %v139, 1
    %v141 = vadd.f32 %v139, %v140
    %v142 = vsel %vm24, %v141, 0.0
    %143 = vadd.xlane.f32.xlu0 %v142
    %v144 = vpop.xlane.xlu0 %143
    %v145 = vadd.f32 %v144, 0.0
    %s146 = scalar_lea.vmem %s0, 16
    %v147 = vld [vmem:[%s146] sm:$0xff]
    %v148 = vld [vmem:[%s146 + $0x8] sm:$0xff]
    %s149 = scalar_lea.vmem %s1, 16
    %v150 = vld [vmem:[%s149] sm:$0xff]
    %v151 = vld [vmem:[%s149 + $0x8] sm:$0xff]
    %v152 = vsub.f32 %v150, %v147
    %v153 = vsub.f32 %v151, %v148
    %v154 = vand.u32 2147483647, %v152
    %v155 = vand.u32 2147483647, %v153
    %v156 = vsel %vm24, %v154, 0.0
    %v157 = vsel %vm24, %v155, 0.0
    %v158 = vadd.f32 %v156, %v157
    %v159 = vrot.slane %v158, 4
    %v160 = vadd.f32 %v158, %v159
    %v161 = vrot.slane %v160, 2
    %v162 = vadd.f32 %v160, %v161
    %v163 = vrot.slane %v162, 1
    %v164 = vadd.f32 %v162, %v163
    %v165 = vsel %vm24, %v164, 0.0
    %166 = vadd.xlane.f32.xlu0 %v165
    %v167 = vpop.xlane.xlu0 %166
    %v168 = vadd.f32 %v37, %v167
    %v171 = vrot.slane %v150, 7
    %v172 = vrot.slane %v151, 7
    %v173 = vsel %vm40, %v171, %v172
    %v176 = vsub.f32 %v150, %v171
    %v177 = vsub.f32 %v151, %v173
    %v180 = vrot.slane %v147, 7
    %v181 = vrot.slane %v148, 7
    %v182 = vsel %vm40, %v180, %v181
    %v185 = vsub.f32 %v147, %v180
    %v186 = vsub.f32 %v148, %v182
    %v187 = vsub.f32 %v176, %v185
    %v188 = vsub.f32 %v177, %v186
    %v189 = vand.u32 2147483647, %v187
    %v190 = vand.u32 2147483647, %v188
    %v193 = vrot.slane %v189, 1
    %v194 = vrot.slane %v190, 1
    %v195 = vsel %vm63, %v193, %v194
    %v198 = vsel %vm24, %v195, 0.0
    %v199 = vsel %vm70, %v194, 0.0
    %v200 = vadd.f32 %v198, %v199
    %v201 = vrot.slane %v200, 4
    %v202 = vadd.f32 %v200, %v201
    %v203 = vrot.slane %v202, 2
    %v204 = vadd.f32 %v202, %v203
    %v205 = vrot.slane %v204, 1
    %v206 = vadd.f32 %v204, %v205
    %v207 = vsel %vm24, %v206, 0.0
    %208 = vadd.xlane.f32.xlu0 %v207
    %v209 = vpop.xlane.xlu0 %208
    %v210 = vadd.f32 %v82, %v209
    %v211 = vrot.slane %v150, 6
    %v212 = vrot.slane %v151, 6
    %v213 = vsel %vm83, %v211, %v212
    %v216 = vadd.f32 %v150, %v211
    %v217 = vadd.f32 %v151, %v213
    %v218 = vmul.f32 %v150, 2.0
    %v219 = vmul.f32 %v151, 2.0
    %v222 = vrot.slane %v218, 7
    %v223 = vrot.slane %v219, 7
    %v224 = vsel %vm40, %v222, %v223
    %v227 = vsub.f32 %v216, %v222
    %v228 = vsub.f32 %v217, %v224
    %v229 = vrot.slane %v147, 6
    %v230 = vrot.slane %v148, 6
    %v231 = vsel %vm83, %v229, %v230
    %v234 = vadd.f32 %v147, %v229
    %v235 = vadd.f32 %v148, %v231
    %v236 = vmul.f32 %v147, 2.0
    %v237 = vmul.f32 %v148, 2.0
    %v240 = vrot.slane %v236, 7
    %v241 = vrot.slane %v237, 7
    %v242 = vsel %vm40, %v240, %v241
    %v245 = vsub.f32 %v234, %v240
    %v246 = vsub.f32 %v235, %v242
    %v247 = vsub.f32 %v227, %v245
    %v248 = vsub.f32 %v228, %v246
    %v249 = vand.u32 2147483647, %v247
    %v250 = vand.u32 2147483647, %v248
    %v253 = vrot.slane %v249, 2
    %v254 = vrot.slane %v250, 2
    %v255 = vsel %vm126, %v253, %v254
    %v258 = vsel %vm24, %v255, 0.0
    %v259 = vsel %vm133, %v254, 0.0
    %v260 = vadd.f32 %v258, %v259
    %v261 = vrot.slane %v260, 4
    %v262 = vadd.f32 %v260, %v261
    %v263 = vrot.slane %v262, 2
    %v264 = vadd.f32 %v262, %v263
    %v265 = vrot.slane %v264, 1
    %v266 = vadd.f32 %v264, %v265
    %v267 = vsel %vm24, %v266, 0.0
    %268 = vadd.xlane.f32.xlu0 %v267
    %v269 = vpop.xlane.xlu0 %268
    %v270 = vadd.f32 %v145, %v269
    %v271 = vrcp.pop 768.0
    %v272 = vmul.f32 %v168, %v271
    %vm273 = vcmask 0
    %274 = vst.msk [vmem:[#allocation2] sm:$0x1] %vm273, %v272
    %v275 = vrcp.pop 720.0
    %v276 = vmul.f32 %v210, %v275
    %277 = vst.msk [vmem:[#allocation4] sm:$0x1] %vm273, %v276
    %v278 = vrcp.pop 672.0
    %v279 = vmul.f32 %v270, %v278
    %280 = vst.msk [vmem:[#allocation6] sm:$0x1] %vm273, %v279
    // Predicated region
    $region10: #{_lambda_.5} parent=1 // pred_check
      _
    $region11: #{_lambda_.5} parent=1 // pred_check_branch
      %282 = sbr.rel (0) target = $region13
    $region12: #{_lambda_.5} parent=1 // pred_region
      %s284 = ssub.s32 16, 16
      %285 = vsyncadd [#allocation3], %s284
      %s287 = sshll.u32 [#allocation2], 4
      %s288 = int_to_ptr.vmem [resolvable:$true] %s287
      %290 = dma.vmem_to_hbm [thread:$0]  %s288, 16, %s2, [#allocation3]
    $region13: #{_lambda_.5} parent=1 // pred_fallthru
      _
    // Predicated region
    $region14: #{_lambda_.5} parent=1 // pred_check
      _
    $region15: #{_lambda_.5} parent=1 // pred_check_branch
      %292 = sbr.rel (0) target = $region17
    $region16: #{_lambda_.5} parent=1 // pred_region
      %s294 = ssub.s32 16, 16
      %295 = vsyncadd [#allocation5], %s294
      %s297 = sshll.u32 [#allocation4], 4
      %s298 = int_to_ptr.vmem [resolvable:$true] %s297
      %300 = dma.vmem_to_hbm [thread:$0]  %s298, 16, %s3, [#allocation5]
    $region17: #{_lambda_.5} parent=1 // pred_fallthru
      _
    // Predicated region
    $region18: #{_lambda_.5} parent=1 // pred_check
      _
    $region19: #{_lambda_.5} parent=1 // pred_check_branch
      %302 = sbr.rel (0) target = $region21
    $region20: #{_lambda_.5} parent=1 // pred_region
      %s304 = ssub.s32 16, 16
      %305 = vsyncadd [#allocation5], %s304
      %s307 = sshll.u32 [#allocation6], 4
      %s308 = int_to_ptr.vmem [resolvable:$true] %s307
      %310 = dma.vmem_to_hbm [thread:$0]  %s308, 16, %s4, [#allocation5]
    $region21: #{_lambda_.5} parent=1 // pred_fallthru
      _
    // Predicated region
    $region22: #{_lambda_.5} parent=1 // pred_check
      _
    $region23: #{_lambda_.5} parent=1 // pred_check_branch
      %312 = sbr.rel (0) target = $region25
    $region24: #{_lambda_.5} parent=1 // pred_region
      %313 = dma.done [#allocation3], 16
    $region25: #{_lambda_.5} parent=1 // pred_fallthru
      _
    // Predicated region
    $region26: #{_lambda_.5} parent=1 // pred_check
      _
    $region27: #{_lambda_.5} parent=1 // pred_check_branch
      %315 = sbr.rel (0) target = $region29
    $region28: #{_lambda_.5} parent=1 // pred_region
      %316 = dma.done [#allocation5], 16
    $region29: #{_lambda_.5} parent=1 // pred_fallthru
      _
    // Predicated region
    $region30: #{_lambda_.5} parent=1 // pred_check
      _
    $region31: #{_lambda_.5} parent=1 // pred_check_branch
      %318 = sbr.rel (0) target = $region33
    $region32: #{_lambda_.5} parent=1 // pred_region
      %319 = dma.done [#allocation5], 16
    $region33: #{_lambda_.5} parent=1 // pred_fallthru
      _
    %320 = vsyncpa [#allocation3], 1
    %321 = vsyncpa [#allocation5], 1

// kernel: _lambda_.3
$region0: #{_lambda_.3}
  #allocation0 [shape = 'u32[]', space=smem, size = 0x4, offset = 0x4, fixed_abs, tag = 'smem constant byte address 0x4 - core index']
  #allocation1 [shape = 'u32[144,128]{1,0:T(1,128)}', space=vmem, size = 0x12000, scoped, tag = 'internal scratch']
  #allocation2 [shape = 'f32[16,16]{1,0:T(8,128)}', space=vmem, size = 0x2000, scoped, tag = 'scratch operand']
  %s0 = inlined_call_operand.vmem [shape: f32[2,9,24], index: 0, kind: input, shape index: {}]
  %s1 = inlined_call_operand.vmem [shape: f32[2,9,24], index: 1, kind: input, shape index: {}]
  %s2 = inlined_call_operand.vmem [shape: f32[4,24,32], index: 2, kind: input, shape index: {}]
  %s3 = inlined_call_operand.vmem [shape: f32[1,32], index: 3, kind: input, shape index: {}]
  %s4 = inlined_call_operand.vmem [shape: f32[3,32,32], index: 4, kind: input, shape index: {}]
  %s5 = inlined_call_operand.vmem [shape: f32[1,32], index: 5, kind: input, shape index: {}]
  %s6 = inlined_call_operand.vmem [shape: f32[32,32], index: 6, kind: input, shape index: {}]
  %s7 = inlined_call_operand.vmem [shape: f32[1,32], index: 7, kind: input, shape index: {}]
  %s8 = inlined_call_operand.vmem [shape: f32[3,32,16], index: 8, kind: input, shape index: {}]
  %s9 = inlined_call_operand.vmem [shape: f32[1,16], index: 9, kind: input, shape index: {}]
  %s10 = inlined_call_operand.vmem [shape: f32[32,16], index: 10, kind: input, shape index: {}]
  %s11 = inlined_call_operand.vmem [shape: f32[1,32], index: 11, kind: input, shape index: {}]
  %s12 = inlined_call_operand.vmem [shape: f32[16,16], index: 12, kind: output, shape index: {0}]
  %s13 = inlined_call_operand.hbm [shape: f32[1,1], index: 13, kind: output, shape index: {1}]
  %14 = xla_tuple %s12, %s13
  %s15 = sld [smem:[#allocation0]]
  $region66: #{_lambda_.3} parent=0
    _
  %s17 = ssub.s32 1, %s15
  %s18 = scalar_select 0, %s17, %s15
  $region1: #{_lambda_.3} parent=0
    #allocation3 [shape = 'u8[512]{0}', space=vmem, size = 0x400, scoped, tag = 'output window, operand 1, single buffered']
    #allocation4 [shape = 's32[1]{0}', space=sflag, size = 0x4, scoped, tag = 'scoped memory for _lambda_.3']
    %19 = vsyncpa [#allocation4], 0
    // Predicated region
    $region2: #{_lambda_.3} parent=1 // pred_check
      _
    $region3: #{_lambda_.3} parent=1 // pred_check_branch
      %21 = sbr.rel (0) target = $region5
    $region4: #{_lambda_.3} parent=1 // pred_region
      _
    $region5: #{_lambda_.3} parent=1 // pred_fallthru
      _
    // Predicated region
    $region6: #{_lambda_.3} parent=1 // pred_check
      _
    $region7: #{_lambda_.3} parent=1 // pred_check_branch
      %23 = sbr.rel (0) target = $region9
    $region8: #{_lambda_.3} parent=1 // pred_region
      _
    $region9: #{_lambda_.3} parent=1 // pred_fallthru
      _
    // Predicated region
    $region10: #{_lambda_.3} parent=1 // pred_check
      _
    $region11: #{_lambda_.3} parent=1 // pred_check_branch
      %25 = sbr.rel (0) target = $region13
    $region12: #{_lambda_.3} parent=1 // pred_region
      _
    $region13: #{_lambda_.3} parent=1 // pred_fallthru
      _
    // Predicated region
    $region14: #{_lambda_.3} parent=1 // pred_check
      _
    $region15: #{_lambda_.3} parent=1 // pred_check_branch
      %27 = sbr.rel (0) target = $region17
    $region16: #{_lambda_.3} parent=1 // pred_region
      _
    $region17: #{_lambda_.3} parent=1 // pred_fallthru
      _
    // Predicated region
    $region18: #{_lambda_.3} parent=1 // pred_check
      _
    $region19: #{_lambda_.3} parent=1 // pred_check_branch
      %29 = sbr.rel (0) target = $region21
    $region20: #{_lambda_.3} parent=1 // pred_region
      _
    $region21: #{_lambda_.3} parent=1 // pred_fallthru
      _
    // Predicated region
    $region22: #{_lambda_.3} parent=1 // pred_check
      _
    $region23: #{_lambda_.3} parent=1 // pred_check_branch
      %31 = sbr.rel (0) target = $region25
    $region24: #{_lambda_.3} parent=1 // pred_region
      _
    $region25: #{_lambda_.3} parent=1 // pred_fallthru
      _
    // Predicated region
    $region26: #{_lambda_.3} parent=1 // pred_check
      _
    $region27: #{_lambda_.3} parent=1 // pred_check_branch
      %33 = sbr.rel (0) target = $region29
    $region28: #{_lambda_.3} parent=1 // pred_region
      _
    $region29: #{_lambda_.3} parent=1 // pred_fallthru
      _
    // Predicated region
    $region30: #{_lambda_.3} parent=1 // pred_check
      _
    $region31: #{_lambda_.3} parent=1 // pred_check_branch
      %35 = sbr.rel (0) target = $region33
    $region32: #{_lambda_.3} parent=1 // pred_region
      _
    $region33: #{_lambda_.3} parent=1 // pred_fallthru
      _
    // Predicated region
    $region34: #{_lambda_.3} parent=1 // pred_check
      _
    $region35: #{_lambda_.3} parent=1 // pred_check_branch
      %37 = sbr.rel (0) target = $region37
    $region36: #{_lambda_.3} parent=1 // pred_region
      _
    $region37: #{_lambda_.3} parent=1 // pred_fallthru
      _
    // Predicated region
    $region38: #{_lambda_.3} parent=1 // pred_check
      _
    $region39: #{_lambda_.3} parent=1 // pred_check_branch
      %39 = sbr.rel (0) target = $region41
    $region40: #{_lambda_.3} parent=1 // pred_region
      _
    $region41: #{_lambda_.3} parent=1 // pred_fallthru
      _
    // Predicated region
    $region42: #{_lambda_.3} parent=1 // pred_check
      _
    $region43: #{_lambda_.3} parent=1 // pred_check_branch
      %41 = sbr.rel (0) target = $region45
    $region44: #{_lambda_.3} parent=1 // pred_region
      _
    $region45: #{_lambda_.3} parent=1 // pred_fallthru
      _
    // Predicated region
    $region46: #{_lambda_.3} parent=1 // pred_check
      _
    $region47: #{_lambda_.3} parent=1 // pred_check_branch
      %43 = sbr.rel (0) target = $region49
    $region48: #{_lambda_.3} parent=1 // pred_region
      _
    $region49: #{_lambda_.3} parent=1 // pred_fallthru
      _
    %v44 = vlaneseq
    %v45 = vshrl.u32 %v44, 7
    %v46 = vlaneseq
    %v47 = vand.u32 %v46, 127
    %v48 = vadd.s32 %v47, 1
    %vm49 = vcmp.eq.s32.totalorder %v45, %v48
    %v50 = vsel %vm49, 1, 0
    %v51 = vcvt.s32.f32 %v50
    %v52 = vadd.s32 %v45, 1
    %vm53 = vcmp.eq.s32.totalorder %v52, %v47
    %v54 = vsel %vm53, 1, 0
    %v55 = vcvt.s32.f32 %v54
    %v56 = vld [vmem:[%s3] sm:$0x1]
    %v57 = vld [vmem:[%s0] sm:$0xff]
    %v58 = vld [vmem:[%s0 + $0x8] sm:$0x1]
    %v59 = vld [vmem:[%s1] sm:$0xff]
    %v60 = vld [vmem:[%s1 + $0x8] sm:$0x1]
    %v61 = vld [vmem:[%s2] sm:$0xff]
    %v62 = vld [vmem:[%s2 + $0x8] sm:$0xff]
    %v63 = vld [vmem:[%s2 + $0x10] sm:$0xff]
    %s64 = scalar_lea.vmem %s2, 24
    %v65 = vld [vmem:[%s64] sm:$0xff]
    %v66 = vld [vmem:[%s64 + $0x8] sm:$0xff]
    %v67 = vld [vmem:[%s64 + $0x10] sm:$0xff]
    %vm68 = vcmask 195584
    %v70 = vsel %vm68, %v59, 0
    %72 = vmatprep.subr.mxu0 0.0
    %73 = vmatpush1.msra.mxu0 %v65
    %74 = vmatprep.subr.mxu0 0.0
    %75 = vmatpush1.msra.mxu0 %v66
    %76 = vmatprep.subr.mxu0 0.0
    %77 = vmatpush1.msra.mxu0 %v67
    %78 = vmatprep.subr.mxu0 0.0
    %79 = vmatpush1.msra.mxu0 0.0
    %80 = vmatprep.subr.mxu0 0.0
    %81 = vmatpush1.msra.mxu0 0.0
    %82 = vmatprep.subr.mxu0 0.0
    %83 = vmatpush1.msra.mxu0 0.0
    %84 = vmatprep.subr.mxu0 0.0
    %85 = vmatpush1.msra.mxu0 0.0
    %86 = vmatprep.subr.mxu0 0.0
    %87 = vmatpush1.msra.mxu0 0.0
    %88 = vmatprep.subr.mxu0 0.0
    %89 = vmatpush1.msra.mxu0 0.0
    %90 = vmatprep.subr.mxu0 0.0
    %91 = vmatpush1.msra.mxu0 0.0
    %92 = vmatprep.subr.mxu0 0.0
    %93 = vmatpush1.msra.mxu0 0.0
    %94 = vmatprep.subr.mxu0 0.0
    %95 = vmatpush1.msra.mxu0 0.0
    %96 = vmatprep.subr.mxu0 0.0
    %97 = vmatpush1.msra.mxu0 0.0
    %98 = vmatprep.subr.mxu0 0.0
    %99 = vmatpush1.msra.mxu0 0.0
    %100 = vmatprep.subr.mxu0 0.0
    %101 = vmatpush1.msra.mxu0 0.0
    %102 = vmatprep.subr.mxu0 0.0
    %103 = vmatpush1.msra.mxu0 0.0
    %104 = vmatprep.subr.mxu0 0.0
    %105 = vmatpush1.msra.mxu0 0.0
    %106 = vmatprep.subr.mxu0 0.0
    %107 = vmatpush1.msra.mxu0 0.0
    %108 = vmatprep.subr.mxu0 0.0
    %109 = vmatpush1.msra.mxu0 0.0
    %110 = vmatprep.subr.mxu0 0.0
    %111 = vmatpush1.msra.mxu0 0.0
    %112 = vmatprep.subr.mxu0 0.0
    %113 = vmatpush1.msra.mxu0 0.0
    %114 = vmatprep.subr.mxu0 0.0
    %115 = vmatpush1.msra.mxu0 0.0
    %116 = vmatprep.subr.mxu0 0.0
    %117 = vmatpush1.msra.mxu0 0.0
    %118 = vmatprep.subr.mxu0 0.0
    %119 = vmatpush1.msra.mxu0 0.0
    %120 = vmatprep.subr.mxu0 0.0
    %121 = vmatpush1.msra.mxu0 0.0
    %122 = vmatprep.subr.mxu0 0.0
    %123 = vmatpush1.msra.mxu0 0.0
    %124 = vmatprep.subr.mxu0 0.0
    %125 = vmatpush1.msra.mxu0 0.0
    %126 = vmatprep.subr.mxu0 0.0
    %127 = vmatpush1.msra.mxu0 0.0
    %128 = vmatprep.subr.mxu0 0.0
    %129 = vmatpush1.msra.mxu0 0.0
    %130 = vmatprep.subr.mxu0 0.0
    %131 = vmatpush1.msra.mxu0 0.0
    %132 = vmatprep.subr.mxu0 0.0
    %133 = vmatpush1.msra.mxu0 0.0
    %134 = vmatprep.subr.mxu0 0.0
    %135 = vmatpush1.msra.mxu0 0.0
    %136 = vmatprep.mubr.f32.mxu0 0.0
    %137 = vmatmul.mubr.f32.gmra.mrb[0].mxu0 %v70
    %v138 = vpop.f32.mrb[0].mxu0
    %v139 = vadd.f32 0.0, %v138
    %v140 = vpop.f32.mrb[0].mxu0
    %141 = vdwg.mxu0
    %v143 = vsel %vm68, %v57, 0
    %145 = vmatprep.subr.mxu0 0.0
    %146 = vmatpush1.msra.mxu0 %v61
    %147 = vmatprep.subr.mxu0 0.0
    %148 = vmatpush1.msra.mxu0 %v62
    %149 = vmatprep.subr.mxu0 0.0
    %150 = vmatpush1.msra.mxu0 %v63
    %151 = vmatprep.subr.mxu0 0.0
    %152 = vmatpush1.msra.mxu0 0.0
    %153 = vmatprep.subr.mxu0 0.0
    %154 = vmatpush1.msra.mxu0 0.0
    %155 = vmatprep.subr.mxu0 0.0
    %156 = vmatpush1.msra.mxu0 0.0
    %157 = vmatprep.subr.mxu0 0.0
    %158 = vmatpush1.msra.mxu0 0.0
    %159 = vmatprep.subr.mxu0 0.0
    %160 = vmatpush1.msra.mxu0 0.0
    %161 = vmatprep.subr.mxu0 0.0
    %162 = vmatpush1.msra.mxu0 0.0
    %163 = vmatprep.subr.mxu0 0.0
    %164 = vmatpush1.msra.mxu0 0.0
    %165 = vmatprep.subr.mxu0 0.0
    %166 = vmatpush1.msra.mxu0 0.0
    %167 = vmatprep.subr.mxu0 0.0
    %168 = vmatpush1.msra.mxu0 0.0
    %169 = vmatprep.subr.mxu0 0.0
    %170 = vmatpush1.msra.mxu0 0.0
    %171 = vmatprep.subr.mxu0 0.0
    %172 = vmatpush1.msra.mxu0 0.0
    %173 = vmatprep.subr.mxu0 0.0
    %174 = vmatpush1.msra.mxu0 0.0
    %175 = vmatprep.subr.mxu0 0.0
    %176 = vmatpush1.msra.mxu0 0.0
    %177 = vmatprep.subr.mxu0 0.0
    %178 = vmatpush1.msra.mxu0 0.0
    %179 = vmatprep.subr.mxu0 0.0
    %180 = vmatpush1.msra.mxu0 0.0
    %181 = vmatprep.subr.mxu0 0.0
    %182 = vmatpush1.msra.mxu0 0.0
    %183 = vmatprep.subr.mxu0 0.0
    %184 = vmatpush1.msra.mxu0 0.0
    %185 = vmatprep.subr.mxu0 0.0
    %186 = vmatpush1.msra.mxu0 0.0
    %187 = vmatprep.subr.mxu0 0.0
    %188 = vmatpush1.msra.mxu0 0.0
    %189 = vmatprep.subr.mxu0 0.0
    %190 = vmatpush1.msra.mxu0 0.0
    %191 = vmatprep.subr.mxu0 0.0
    %192 = vmatpush1.msra.mxu0 0.0
    %193 = vmatprep.subr.mxu0 0.0
    %194 = vmatpush1.msra.mxu0 0.0
    %195 = vmatprep.subr.mxu0 0.0
    %196 = vmatpush1.msra.mxu0 0.0
    %197 = vmatprep.subr.mxu0 0.0
    %198 = vmatpush1.msra.mxu0 0.0
    %199 = vmatprep.subr.mxu0 0.0
    %200 = vmatpush1.msra.mxu0 0.0
    %201 = vmatprep.subr.mxu0 0.0
    %202 = vmatpush1.msra.mxu0 0.0
    %203 = vmatprep.subr.mxu0 0.0
    %204 = vmatpush1.msra.mxu0 0.0
    %205 = vmatprep.subr.mxu0 0.0
    %206 = vmatpush1.msra.mxu0 0.0
    %207 = vmatprep.subr.mxu0 0.0
    %208 = vmatpush1.msra.mxu0 0.0
    %209 = vmatprep.mubr.f32.mxu0 0.0
    %210 = vmatmul.mubr.f32.gmra.mrb[0].mxu0 %v143
    %v211 = vpop.f32.mrb[0].mxu0
    %v212 = vadd.f32 %v139, %v211
    %v213 = vpop.f32.mrb[0].mxu0
    %214 = vdwg.mxu0
    %s215 = scalar_lea.vmem %s2, 48
    %v216 = vld [vmem:[%s215] sm:$0xff]
    %v217 = vld [vmem:[%s215 + $0x8] sm:$0xff]
    %v218 = vld [vmem:[%s215 + $0x10] sm:$0xff]
    %vm220 = vcmask 1046528
    %v221 = vrot.slane %v57, 1
    %v222 = vrot.slane %v58, 1
    %v223 = vsel %vm220, %v221, %v222
    %v224 = vsel %vm68, %v223, 0
    %226 = vmatprep.subr.mxu0 0.0
    %227 = vmatpush1.msra.mxu0 %v216
    %228 = vmatprep.subr.mxu0 0.0
    %229 = vmatpush1.msra.mxu0 %v217
    %230 = vmatprep.subr.mxu0 0.0
    %231 = vmatpush1.msra.mxu0 %v218
    %232 = vmatprep.subr.mxu0 0.0
    %233 = vmatpush1.msra.mxu0 0.0
    %234 = vmatprep.subr.mxu0 0.0
    %235 = vmatpush1.msra.mxu0 0.0
    %236 = vmatprep.subr.mxu0 0.0
    %237 = vmatpush1.msra.mxu0 0.0
    %238 = vmatprep.subr.mxu0 0.0
    %239 = vmatpush1.msra.mxu0 0.0
    %240 = vmatprep.subr.mxu0 0.0
    %241 = vmatpush1.msra.mxu0 0.0
    %242 = vmatprep.subr.mxu0 0.0
    %243 = vmatpush1.msra.mxu0 0.0
    %244 = vmatprep.subr.mxu0 0.0
    %245 = vmatpush1.msra.mxu0 0.0
    %246 = vmatprep.subr.mxu0 0.0
    %247 = vmatpush1.msra.mxu0 0.0
    %248 = vmatprep.subr.mxu0 0.0
    %249 = vmatpush1.msra.mxu0 0.0
    %250 = vmatprep.subr.mxu0 0.0
    %251 = vmatpush1.msra.mxu0 0.0
    %252 = vmatprep.subr.mxu0 0.0
    %253 = vmatpush1.msra.mxu0 0.0
    %254 = vmatprep.subr.mxu0 0.0
    %255 = vmatpush1.msra.mxu0 0.0
    %256 = vmatprep.subr.mxu0 0.0
    %257 = vmatpush1.msra.mxu0 0.0
    %258 = vmatprep.subr.mxu0 0.0
    %259 = vmatpush1.msra.mxu0 0.0
    %260 = vmatprep.subr.mxu0 0.0
    %261 = vmatpush1.msra.mxu0 0.0
    %262 = vmatprep.subr.mxu0 0.0
    %263 = vmatpush1.msra.mxu0 0.0
    %264 = vmatprep.subr.mxu0 0.0
    %265 = vmatpush1.msra.mxu0 0.0
    %266 = vmatprep.subr.mxu0 0.0
    %267 = vmatpush1.msra.mxu0 0.0
    %268 = vmatprep.subr.mxu0 0.0
    %269 = vmatpush1.msra.mxu0 0.0
    %270 = vmatprep.subr.mxu0 0.0
    %271 = vmatpush1.msra.mxu0 0.0
    %272 = vmatprep.subr.mxu0 0.0
    %273 = vmatpush1.msra.mxu0 0.0
    %274 = vmatprep.subr.mxu0 0.0
    %275 = vmatpush1.msra.mxu0 0.0
    %276 = vmatprep.subr.mxu0 0.0
    %277 = vmatpush1.msra.mxu0 0.0
    %278 = vmatprep.subr.mxu0 0.0
    %279 = vmatpush1.msra.mxu0 0.0
    %280 = vmatprep.subr.mxu0 0.0
    %281 = vmatpush1.msra.mxu0 0.0
    %282 = vmatprep.subr.mxu0 0.0
    %283 = vmatpush1.msra.mxu0 0.0
    %284 = vmatprep.subr.mxu0 0.0
    %285 = vmatpush1.msra.mxu0 0.0
    %286 = vmatprep.subr.mxu0 0.0
    %287 = vmatpush1.msra.mxu0 0.0
    %288 = vmatprep.subr.mxu0 0.0
    %289 = vmatpush1.msra.mxu0 0.0
    %290 = vmatprep.mubr.f32.mxu0 0.0
    %291 = vmatmul.mubr.f32.gmra.mrb[0].mxu0 %v224
    %v292 = vpop.f32.mrb[0].mxu0
    %v293 = vadd.f32 0.0, %v292
    %v294 = vpop.f32.mrb[0].mxu0
    %295 = vdwg.mxu0
    %v296 = vadd.f32 %v212, %v293
    %s297 = scalar_lea.vmem %s2, 72
    %v298 = vld [vmem:[%s297] sm:$0xff]
    %v299 = vld [vmem:[%s297 + $0x8] sm:$0xff]
    %v300 = vld [vmem:[%s297 + $0x10] sm:$0xff]
    %v302 = vrot.slane %v59, 1
    %v303 = vrot.slane %v60, 1
    %v304 = vsel %vm220, %v302, %v303
    %v305 = vsel %vm68, %v304, 0
    %307 = vmatprep.subr.mxu0 0.0
    %308 = vmatpush1.msra.mxu0 %v298
    %309 = vmatprep.subr.mxu0 0.0
    %310 = vmatpush1.msra.mxu0 %v299
    %311 = vmatprep.subr.mxu0 0.0
    %312 = vmatpush1.msra.mxu0 %v300
    %313 = vmatprep.subr.mxu0 0.0
    %314 = vmatpush1.msra.mxu0 0.0
    %315 = vmatprep.subr.mxu0 0.0
    %316 = vmatpush1.msra.mxu0 0.0
    %317 = vmatprep.subr.mxu0 0.0
    %318 = vmatpush1.msra.mxu0 0.0
    %319 = vmatprep.subr.mxu0 0.0
    %320 = vmatpush1.msra.mxu0 0.0
    %321 = vmatprep.subr.mxu0 0.0
    %322 = vmatpush1.msra.mxu0 0.0
    %323 = vmatprep.subr.mxu0 0.0
    %324 = vmatpush1.msra.mxu0 0.0
    %325 = vmatprep.subr.mxu0 0.0
    %326 = vmatpush1.msra.mxu0 0.0
    %327 = vmatprep.subr.mxu0 0.0
    %328 = vmatpush1.msra.mxu0 0.0
    %329 = vmatprep.subr.mxu0 0.0
    %330 = vmatpush1.msra.mxu0 0.0
    %331 = vmatprep.subr.mxu0 0.0
    %332 = vmatpush1.msra.mxu0 0.0
    %333 = vmatprep.subr.mxu0 0.0
    %334 = vmatpush1.msra.mxu0 0.0
    %335 = vmatprep.subr.mxu0 0.0
    %336 = vmatpush1.msra.mxu0 0.0
    %337 = vmatprep.subr.mxu0 0.0
    %338 = vmatpush1.msra.mxu0 0.0
    %339 = vmatprep.subr.mxu0 0.0
    %340 = vmatpush1.msra.mxu0 0.0
    %341 = vmatprep.subr.mxu0 0.0
    %342 = vmatpush1.msra.mxu0 0.0
    %343 = vmatprep.subr.mxu0 0.0
    %344 = vmatpush1.msra.mxu0 0.0
    %345 = vmatprep.subr.mxu0 0.0
    %346 = vmatpush1.msra.mxu0 0.0
    %347 = vmatprep.subr.mxu0 0.0
    %348 = vmatpush1.msra.mxu0 0.0
    %349 = vmatprep.subr.mxu0 0.0
    %350 = vmatpush1.msra.mxu0 0.0
    %351 = vmatprep.subr.mxu0 0.0
    %352 = vmatpush1.msra.mxu0 0.0
    %353 = vmatprep.subr.mxu0 0.0
    %354 = vmatpush1.msra.mxu0 0.0
    %355 = vmatprep.subr.mxu0 0.0
    %356 = vmatpush1.msra.mxu0 0.0
    %357 = vmatprep.subr.mxu0 0.0
    %358 = vmatpush1.msra.mxu0 0.0
    %359 = vmatprep.subr.mxu0 0.0
    %360 = vmatpush1.msra.mxu0 0.0
    %361 = vmatprep.subr.mxu0 0.0
    %362 = vmatpush1.msra.mxu0 0.0
    %363 = vmatprep.subr.mxu0 0.0
    %364 = vmatpush1.msra.mxu0 0.0
    %365 = vmatprep.subr.mxu0 0.0
    %366 = vmatpush1.msra.mxu0 0.0
    %367 = vmatprep.subr.mxu0 0.0
    %368 = vmatpush1.msra.mxu0 0.0
    %369 = vmatprep.subr.mxu0 0.0
    %370 = vmatpush1.msra.mxu0 0.0
    %371 = vmatprep.mubr.f32.mxu0 0.0
    %372 = vmatmul.mubr.f32.gmra.mrb[0].mxu0 %v305
    %v373 = vpop.f32.mrb[0].mxu0
    %v374 = vadd.f32 0.0, %v373
    %v375 = vpop.f32.mrb[0].mxu0
    %376 = vdwg.mxu0
    %v377 = vadd.f32 %v296, %v374
    %v379 = vlaneseq
    %v380 = vshrl.u32 %v379, 7
    %v381 = vsub.s32 0, %v380
    %v382 = vrot.slane %v56, %v381
    %v384 = vadd.f32 %v377, %v382
    %v385 = vld [vmem:[%s4] sm:$0xff]
    %v386 = vld [vmem:[%s4 + $0x8] sm:$0xff]
    %v387 = vld [vmem:[%s4 + $0x10] sm:$0xff]
    %v388 = vld [vmem:[%s4 + $0x18] sm:$0xff]
    %s389 = scalar_lea.vmem %s4, 32
    %v390 = vld [vmem:[%s389] sm:$0xff]
    %v391 = vld [vmem:[%s389 + $0x8] sm:$0xff]
    %v392 = vld [vmem:[%s389 + $0x10] sm:$0xff]
    %v393 = vld [vmem:[%s389 + $0x18] sm:$0xff]
    %s394 = scalar_lea.vmem %s4, 64
    %v395 = vld [vmem:[%s394] sm:$0xff]
    %v396 = vld [vmem:[%s394 + $0x8] sm:$0xff]
    %v397 = vld [vmem:[%s394 + $0x10] sm:$0xff]
    %v398 = vld [vmem:[%s394 + $0x18] sm:$0xff]
    %v399 = vld [vmem:[%s5] sm:$0x1]
    %v400 = vld [vmem:[%s6] sm:$0xff]
    %v401 = vld [vmem:[%s6 + $0x8] sm:$0xff]
    %v402 = vld [vmem:[%s6 + $0x10] sm:$0xff]
    %v403 = vld [vmem:[%s6 + $0x18] sm:$0xff]
    %v404 = vld [vmem:[%s7] sm:$0x1]
    %v405 = vmax.f32 %v384, 0.0
    %vm406 = vcmask 64512
    %v408 = vsel %vm406, %v51, 0
    %410 = vmatprep.subr.mxu0 0.0
    %411 = vmatpush1.msra.mxu0 %v405
    %412 = vmatprep.subr.mxu0 0.0
    %413 = vmatpush1.msra.mxu0 0.0
    %414 = vmatprep.subr.mxu0 0.0
    %415 = vmatpush1.msra.mxu0 0.0
    %416 = vmatprep.subr.mxu0 0.0
    %417 = vmatpush1.msra.mxu0 0.0
    %418 = vmatprep.subr.mxu0 0.0
    %419 = vmatpush1.msra.mxu0 0.0
    %420 = vmatprep.subr.mxu0 0.0
    %421 = vmatpush1.msra.mxu0 0.0
    %422 = vmatprep.subr.mxu0 0.0
    %423 = vmatpush1.msra.mxu0 0.0
    %424 = vmatprep.subr.mxu0 0.0
    %425 = vmatpush1.msra.mxu0 0.0
    %426 = vmatprep.subr.mxu0 0.0
    %427 = vmatpush1.msra.mxu0 0.0
    %428 = vmatprep.subr.mxu0 0.0
    %429 = vmatpush1.msra.mxu0 0.0
    %430 = vmatprep.subr.mxu0 0.0
    %431 = vmatpush1.msra.mxu0 0.0
    %432 = vmatprep.subr.mxu0 0.0
    %433 = vmatpush1.msra.mxu0 0.0
    %434 = vmatprep.subr.mxu0 0.0
    %435 = vmatpush1.msra.mxu0 0.0
    %436 = vmatprep.subr.mxu0 0.0
    %437 = vmatpush1.msra.mxu0 0.0
    %438 = vmatprep.subr.mxu0 0.0
    %439 = vmatpush1.msra.mxu0 0.0
    %440 = vmatprep.subr.mxu0 0.0
    %441 = vmatpush1.msra.mxu0 0.0
    %442 = vmatprep.subr.mxu0 0.0
    %443 = vmatpush1.msra.mxu0 0.0
    %444 = vmatprep.subr.mxu0 0.0
    %445 = vmatpush1.msra.mxu0 0.0
    %446 = vmatprep.subr.mxu0 0.0
    %447 = vmatpush1.msra.mxu0 0.0
    %448 = vmatprep.subr.mxu0 0.0
    %449 = vmatpush1.msra.mxu0 0.0
    %450 = vmatprep.subr.mxu0 0.0
    %451 = vmatpush1.msra.mxu0 0.0
    %452 = vmatprep.subr.mxu0 0.0
    %453 = vmatpush1.msra.mxu0 0.0
    %454 = vmatprep.subr.mxu0 0.0
    %455 = vmatpush1.msra.mxu0 0.0
    %456 = vmatprep.subr.mxu0 0.0
    %457 = vmatpush1.msra.mxu0 0.0
    %458 = vmatprep.subr.mxu0 0.0
    %459 = vmatpush1.msra.mxu0 0.0
    %460 = vmatprep.subr.mxu0 0.0
    %461 = vmatpush1.msra.mxu0 0.0
    %462 = vmatprep.subr.mxu0 0.0
    %463 = vmatpush1.msra.mxu0 0.0
    %464 = vmatprep.subr.mxu0 0.0
    %465 = vmatpush1.msra.mxu0 0.0
    %466 = vmatprep.subr.mxu0 0.0
    %467 = vmatpush1.msra.mxu0 0.0
    %468 = vmatprep.subr.mxu0 0.0
    %469 = vmatpush1.msra.mxu0 0.0
    %470 = vmatprep.subr.mxu0 0.0
    %471 = vmatpush1.msra.mxu0 0.0
    %472 = vmatprep.subr.mxu0 0.0
    %473 = vmatpush1.msra.mxu0 0.0
    %474 = vmatprep.mubr.f32.mxu0 0.0
    %475 = vmatmul.mubr.f32.gmra.mrb[0].mxu0 %v408
    %v476 = vpop.f32.mrb[0].mxu0
    %v477 = vadd.f32 0.0, %v476
    %v478 = vpop.f32.mrb[0].mxu0
    %479 = vdwg.mxu0
    %vm480 = vcmask 261120
    %v482 = vsel %vm480, %v405, 0
    %484 = vmatprep.subr.mxu0 0.0
    %485 = vmatpush1.msra.mxu0 %v390
    %486 = vmatprep.subr.mxu0 0.0
    %487 = vmatpush1.msra.mxu0 %v391
    %488 = vmatprep.subr.mxu0 0.0
    %489 = vmatpush1.msra.mxu0 %v392
    %490 = vmatprep.subr.mxu0 0.0
    %491 = vmatpush1.msra.mxu0 %v393
    %492 = vmatprep.subr.mxu0 0.0
    %493 = vmatpush1.msra.mxu0 0.0
    %494 = vmatprep.subr.mxu0 0.0
    %495 = vmatpush1.msra.mxu0 0.0
    %496 = vmatprep.subr.mxu0 0.0
    %497 = vmatpush1.msra.mxu0 0.0
    %498 = vmatprep.subr.mxu0 0.0
    %499 = vmatpush1.msra.mxu0 0.0
    %500 = vmatprep.subr.mxu0 0.0
    %501 = vmatpush1.msra.mxu0 0.0
    %502 = vmatprep.subr.mxu0 0.0
    %503 = vmatpush1.msra.mxu0 0.0
    %504 = vmatprep.subr.mxu0 0.0
    %505 = vmatpush1.msra.mxu0 0.0
    %506 = vmatprep.subr.mxu0 0.0
    %507 = vmatpush1.msra.mxu0 0.0
    %508 = vmatprep.subr.mxu0 0.0
    %509 = vmatpush1.msra.mxu0 0.0
    %510 = vmatprep.subr.mxu0 0.0
    %511 = vmatpush1.msra.mxu0 0.0
    %512 = vmatprep.subr.mxu0 0.0
    %513 = vmatpush1.msra.mxu0 0.0
    %514 = vmatprep.subr.mxu0 0.0
    %515 = vmatpush1.msra.mxu0 0.0
    %516 = vmatprep.subr.mxu0 0.0
    %517 = vmatpush1.msra.mxu0 0.0
    %518 = vmatprep.subr.mxu0 0.0
    %519 = vmatpush1.msra.mxu0 0.0
    %520 = vmatprep.subr.mxu0 0.0
    %521 = vmatpush1.msra.mxu0 0.0
    %522 = vmatprep.subr.mxu0 0.0
    %523 = vmatpush1.msra.mxu0 0.0
    %524 = vmatprep.subr.mxu0 0.0
    %525 = vmatpush1.msra.mxu0 0.0
    %526 = vmatprep.subr.mxu0 0.0
    %527 = vmatpush1.msra.mxu0 0.0
    %528 = vmatprep.subr.mxu0 0.0
    %529 = vmatpush1.msra.mxu0 0.0
    %530 = vmatprep.subr.mxu0 0.0
    %531 = vmatpush1.msra.mxu0 0.0
    %532 = vmatprep.subr.mxu0 0.0
    %533 = vmatpush1.msra.mxu0 0.0
    %534 = vmatprep.subr.mxu0 0.0
    %535 = vmatpush1.msra.mxu0 0.0
    %536 = vmatprep.subr.mxu0 0.0
    %537 = vmatpush1.msra.mxu0 0.0
    %538 = vmatprep.subr.mxu0 0.0
    %539 = vmatpush1.msra.mxu0 0.0
    %540 = vmatprep.subr.mxu0 0.0
    %541 = vmatpush1.msra.mxu0 0.0
    %542 = vmatprep.subr.mxu0 0.0
    %543 = vmatpush1.msra.mxu0 0.0
    %544 = vmatprep.subr.mxu0 0.0
    %545 = vmatpush1.msra.mxu0 0.0
    %546 = vmatprep.subr.mxu0 0.0
    %547 = vmatpush1.msra.mxu0 0.0
    %548 = vmatprep.mubr.f32.mxu0 0.0
    %549 = vmatmul.mubr.f32.gmra.mrb[0].mxu0 %v482
    %v550 = vpop.f32.mrb[0].mxu0
    %v551 = vadd.f32 0.0, %v550
    %v552 = vpop.f32.mrb[0].mxu0
    %553 = vdwg.mxu0
    %v555 = vsel %vm480, %v477, 0
    %557 = vmatprep.subr.mxu0 0.0
    %558 = vmatpush1.msra.mxu0 %v385
    %559 = vmatprep.subr.mxu0 0.0
    %560 = vmatpush1.msra.mxu0 %v386
    %561 = vmatprep.subr.mxu0 0.0
    %562 = vmatpush1.msra.mxu0 %v387
    %563 = vmatprep.subr.mxu0 0.0
    %564 = vmatpush1.msra.mxu0 %v388
    %565 = vmatprep.subr.mxu0 0.0
    %566 = vmatpush1.msra.mxu0 0.0
    %567 = vmatprep.subr.mxu0 0.0
    %568 = vmatpush1.msra.mxu0 0.0
    %569 = vmatprep.subr.mxu0 0.0
    %570 = vmatpush1.msra.mxu0 0.0
    %571 = vmatprep.subr.mxu0 0.0
    %572 = vmatpush1.msra.mxu0 0.0
    %573 = vmatprep.subr.mxu0 0.0
    %574 = vmatpush1.msra.mxu0 0.0
    %575 = vmatprep.subr.mxu0 0.0
    %576 = vmatpush1.msra.mxu0 0.0
    %577 = vmatprep.subr.mxu0 0.0
    %578 = vmatpush1.msra.mxu0 0.0
    %579 = vmatprep.subr.mxu0 0.0
    %580 = vmatpush1.msra.mxu0 0.0
    %581 = vmatprep.subr.mxu0 0.0
    %582 = vmatpush1.msra.mxu0 0.0
    %583 = vmatprep.subr.mxu0 0.0
    %584 = vmatpush1.msra.mxu0 0.0
    %585 = vmatprep.subr.mxu0 0.0
    %586 = vmatpush1.msra.mxu0 0.0
    %587 = vmatprep.subr.mxu0 0.0
    %588 = vmatpush1.msra.mxu0 0.0
    %589 = vmatprep.subr.mxu0 0.0
    %590 = vmatpush1.msra.mxu0 0.0
    %591 = vmatprep.subr.mxu0 0.0
    %592 = vmatpush1.msra.mxu0 0.0
    %593 = vmatprep.subr.mxu0 0.0
    %594 = vmatpush1.msra.mxu0 0.0
    %595 = vmatprep.subr.mxu0 0.0
    %596 = vmatpush1.msra.mxu0 0.0
    %597 = vmatprep.subr.mxu0 0.0
    %598 = vmatpush1.msra.mxu0 0.0
    %599 = vmatprep.subr.mxu0 0.0
    %600 = vmatpush1.msra.mxu0 0.0
    %601 = vmatprep.subr.mxu0 0.0
    %602 = vmatpush1.msra.mxu0 0.0
    %603 = vmatprep.subr.mxu0 0.0
    %604 = vmatpush1.msra.mxu0 0.0
    %605 = vmatprep.subr.mxu0 0.0
    %606 = vmatpush1.msra.mxu0 0.0
    %607 = vmatprep.subr.mxu0 0.0
    %608 = vmatpush1.msra.mxu0 0.0
    %609 = vmatprep.subr.mxu0 0.0
    %610 = vmatpush1.msra.mxu0 0.0
    %611 = vmatprep.subr.mxu0 0.0
    %612 = vmatpush1.msra.mxu0 0.0
    %613 = vmatprep.subr.mxu0 0.0
    %614 = vmatpush1.msra.mxu0 0.0
    %615 = vmatprep.subr.mxu0 0.0
    %616 = vmatpush1.msra.mxu0 0.0
    %617 = vmatprep.subr.mxu0 0.0
    %618 = vmatpush1.msra.mxu0 0.0
    %619 = vmatprep.subr.mxu0 0.0
    %620 = vmatpush1.msra.mxu0 0.0
    %621 = vmatprep.mubr.f32.mxu0 0.0
    %622 = vmatmul.mubr.f32.gmra.mrb[0].mxu0 %v555
    %v623 = vpop.f32.mrb[0].mxu0
    %v624 = vadd.f32 %v551, %v623
    %v625 = vpop.f32.mrb[0].mxu0
    %626 = vdwg.mxu0
    %v628 = vsel %vm406, %v55, 0
    %630 = vmatprep.subr.mxu0 0.0
    %631 = vmatpush1.msra.mxu0 %v405
    %632 = vmatprep.subr.mxu0 0.0
    %633 = vmatpush1.msra.mxu0 0.0
    %634 = vmatprep.subr.mxu0 0.0
    %635 = vmatpush1.msra.mxu0 0.0
    %636 = vmatprep.subr.mxu0 0.0
    %637 = vmatpush1.msra.mxu0 0.0
    %638 = vmatprep.subr.mxu0 0.0
    %639 = vmatpush1.msra.mxu0 0.0
    %640 = vmatprep.subr.mxu0 0.0
    %641 = vmatpush1.msra.mxu0 0.0
    %642 = vmatprep.subr.mxu0 0.0
    %643 = vmatpush1.msra.mxu0 0.0
    %644 = vmatprep.subr.mxu0 0.0
    %645 = vmatpush1.msra.mxu0 0.0
    %646 = vmatprep.subr.mxu0 0.0
    %647 = vmatpush1.msra.mxu0 0.0
    %648 = vmatprep.subr.mxu0 0.0
    %649 = vmatpush1.msra.mxu0 0.0
    %650 = vmatprep.subr.mxu0 0.0
    %651 = vmatpush1.msra.mxu0 0.0
    %652 = vmatprep.subr.mxu0 0.0
    %653 = vmatpush1.msra.mxu0 0.0
    %654 = vmatprep.subr.mxu0 0.0
    %655 = vmatpush1.msra.mxu0 0.0
    %656 = vmatprep.subr.mxu0 0.0
    %657 = vmatpush1.msra.mxu0 0.0
    %658 = vmatprep.subr.mxu0 0.0
    %659 = vmatpush1.msra.mxu0 0.0
    %660 = vmatprep.subr.mxu0 0.0
    %661 = vmatpush1.msra.mxu0 0.0
    %662 = vmatprep.subr.mxu0 0.0
    %663 = vmatpush1.msra.mxu0 0.0
    %664 = vmatprep.subr.mxu0 0.0
    %665 = vmatpush1.msra.mxu0 0.0
    %666 = vmatprep.subr.mxu0 0.0
    %667 = vmatpush1.msra.mxu0 0.0
    %668 = vmatprep.subr.mxu0 0.0
    %669 = vmatpush1.msra.mxu0 0.0
    %670 = vmatprep.subr.mxu0 0.0
    %671 = vmatpush1.msra.mxu0 0.0
    %672 = vmatprep.subr.mxu0 0.0
    %673 = vmatpush1.msra.mxu0 0.0
    %674 = vmatprep.subr.mxu0 0.0
    %675 = vmatpush1.msra.mxu0 0.0
    %676 = vmatprep.subr.mxu0 0.0
    %677 = vmatpush1.msra.mxu0 0.0
    %678 = vmatprep.subr.mxu0 0.0
    %679 = vmatpush1.msra.mxu0 0.0
    %680 = vmatprep.subr.mxu0 0.0
    %681 = vmatpush1.msra.mxu0 0.0
    %682 = vmatprep.subr.mxu0 0.0
    %683 = vmatpush1.msra.mxu0 0.0
    %684 = vmatprep.subr.mxu0 0.0
    %685 = vmatpush1.msra.mxu0 0.0
    %686 = vmatprep.subr.mxu0 0.0
    %687 = vmatpush1.msra.mxu0 0.0
    %688 = vmatprep.subr.mxu0 0.0
    %689 = vmatpush1.msra.mxu0 0.0
    %690 = vmatprep.subr.mxu0 0.0
    %691 = vmatpush1.msra.mxu0 0.0
    %692 = vmatprep.subr.mxu0 0.0
    %693 = vmatpush1.msra.mxu0 0.0
    %694 = vmatprep.mubr.f32.mxu0 0.0
    %695 = vmatmul.mubr.f32.gmra.mrb[0].mxu0 %v628
    %v696 = vpop.f32.mrb[0].mxu0
    %v697 = vadd.f32 0.0, %v696
    %v698 = vpop.f32.mrb[0].mxu0
    %699 = vdwg.mxu0
    %v701 = vsel %vm480, %v697, 0
    %703 = vmatprep.subr.mxu0 0.0
    %704 = vmatpush1.msra.mxu0 %v395
    %705 = vmatprep.subr.mxu0 0.0
    %706 = vmatpush1.msra.mxu0 %v396
    %707 = vmatprep.subr.mxu0 0.0
    %708 = vmatpush1.msra.mxu0 %v397
    %709 = vmatprep.subr.mxu0 0.0
    %710 = vmatpush1.msra.mxu0 %v398
    %711 = vmatprep.subr.mxu0 0.0
    %712 = vmatpush1.msra.mxu0 0.0
    %713 = vmatprep.subr.mxu0 0.0
    %714 = vmatpush1.msra.mxu0 0.0
    %715 = vmatprep.subr.mxu0 0.0
    %716 = vmatpush1.msra.mxu0 0.0
    %717 = vmatprep.subr.mxu0 0.0
    %718 = vmatpush1.msra.mxu0 0.0
    %719 = vmatprep.subr.mxu0 0.0
    %720 = vmatpush1.msra.mxu0 0.0
    %721 = vmatprep.subr.mxu0 0.0
    %722 = vmatpush1.msra.mxu0 0.0
    %723 = vmatprep.subr.mxu0 0.0
    %724 = vmatpush1.msra.mxu0 0.0
    %725 = vmatprep.subr.mxu0 0.0
    %726 = vmatpush1.msra.mxu0 0.0
    %727 = vmatprep.subr.mxu0 0.0
    %728 = vmatpush1.msra.mxu0 0.0
    %729 = vmatprep.subr.mxu0 0.0
    %730 = vmatpush1.msra.mxu0 0.0
    %731 = vmatprep.subr.mxu0 0.0
    %732 = vmatpush1.msra.mxu0 0.0
    %733 = vmatprep.subr.mxu0 0.0
    %734 = vmatpush1.msra.mxu0 0.0
    %735 = vmatprep.subr.mxu0 0.0
    %736 = vmatpush1.msra.mxu0 0.0
    %737 = vmatprep.subr.mxu0 0.0
    %738 = vmatpush1.msra.mxu0 0.0
    %739 = vmatprep.subr.mxu0 0.0
    %740 = vmatpush1.msra.mxu0 0.0
    %741 = vmatprep.subr.mxu0 0.0
    %742 = vmatpush1.msra.mxu0 0.0
    %743 = vmatprep.subr.mxu0 0.0
    %744 = vmatpush1.msra.mxu0 0.0
    %745 = vmatprep.subr.mxu0 0.0
    %746 = vmatpush1.msra.mxu0 0.0
    %747 = vmatprep.subr.mxu0 0.0
    %748 = vmatpush1.msra.mxu0 0.0
    %749 = vmatprep.subr.mxu0 0.0
    %750 = vmatpush1.msra.mxu0 0.0
    %751 = vmatprep.subr.mxu0 0.0
    %752 = vmatpush1.msra.mxu0 0.0
    %753 = vmatprep.subr.mxu0 0.0
    %754 = vmatpush1.msra.mxu0 0.0
    %755 = vmatprep.subr.mxu0 0.0
    %756 = vmatpush1.msra.mxu0 0.0
    %757 = vmatprep.subr.mxu0 0.0
    %758 = vmatpush1.msra.mxu0 0.0
    %759 = vmatprep.subr.mxu0 0.0
    %760 = vmatpush1.msra.mxu0 0.0
    %761 = vmatprep.subr.mxu0 0.0
    %762 = vmatpush1.msra.mxu0 0.0
    %763 = vmatprep.subr.mxu0 0.0
    %764 = vmatpush1.msra.mxu0 0.0
    %765 = vmatprep.subr.mxu0 0.0
    %766 = vmatpush1.msra.mxu0 0.0
    %767 = vmatprep.mubr.f32.mxu0 0.0
    %768 = vmatmul.mubr.f32.gmra.mrb[0].mxu0 %v701
    %v769 = vpop.f32.mrb[0].mxu0
    %v770 = vadd.f32 0.0, %v769
    %v771 = vpop.f32.mrb[0].mxu0
    %772 = vdwg.mxu0
    %v773 = vadd.f32 %v624, %v770
    %v775 = vlaneseq
    %v776 = vshrl.u32 %v775, 7
    %v777 = vsub.s32 0, %v776
    %v778 = vrot.slane %v399, %v777
    %v780 = vadd.f32 %v773, %v778
    %v781 = vmax.f32 %v780, 0.0
    %v783 = vlaneseq
    %v784 = vshrl.u32 %v783, 7
    %v785 = vsub.s32 0, %v784
    %v786 = vrot.slane %v404, %v785
    %v789 = vsel %vm480, %v781, 0
    %791 = vmatprep.subr.mxu0 0.0
    %792 = vmatpush1.msra.mxu0 %v400
    %793 = vmatprep.subr.mxu0 0.0
    %794 = vmatpush1.msra.mxu0 %v401
    %795 = vmatprep.subr.mxu0 0.0
    %796 = vmatpush1.msra.mxu0 %v402
    %797 = vmatprep.subr.mxu0 0.0
    %798 = vmatpush1.msra.mxu0 %v403
    %799 = vmatprep.subr.mxu0 0.0
    %800 = vmatpush1.msra.mxu0 0.0
    %801 = vmatprep.subr.mxu0 0.0
    %802 = vmatpush1.msra.mxu0 0.0
    %803 = vmatprep.subr.mxu0 0.0
    %804 = vmatpush1.msra.mxu0 0.0
    %805 = vmatprep.subr.mxu0 0.0
    %806 = vmatpush1.msra.mxu0 0.0
    %807 = vmatprep.subr.mxu0 0.0
    %808 = vmatpush1.msra.mxu0 0.0
    %809 = vmatprep.subr.mxu0 0.0
    %810 = vmatpush1.msra.mxu0 0.0
    %811 = vmatprep.subr.mxu0 0.0
    %812 = vmatpush1.msra.mxu0 0.0
    %813 = vmatprep.subr.mxu0 0.0
    %814 = vmatpush1.msra.mxu0 0.0
    %815 = vmatprep.subr.mxu0 0.0
    %816 = vmatpush1.msra.mxu0 0.0
    %817 = vmatprep.subr.mxu0 0.0
    %818 = vmatpush1.msra.mxu0 0.0
    %819 = vmatprep.subr.mxu0 0.0
    %820 = vmatpush1.msra.mxu0 0.0
    %821 = vmatprep.subr.mxu0 0.0
    %822 = vmatpush1.msra.mxu0 0.0
    %823 = vmatprep.subr.mxu0 0.0
    %824 = vmatpush1.msra.mxu0 0.0
    %825 = vmatprep.subr.mxu0 0.0
    %826 = vmatpush1.msra.mxu0 0.0
    %827 = vmatprep.subr.mxu0 0.0
    %828 = vmatpush1.msra.mxu0 0.0
    %829 = vmatprep.subr.mxu0 0.0
    %830 = vmatpush1.msra.mxu0 0.0
    %831 = vmatprep.subr.mxu0 0.0
    %832 = vmatpush1.msra.mxu0 0.0
    %833 = vmatprep.subr.mxu0 0.0
    %834 = vmatpush1.msra.mxu0 0.0
    %835 = vmatprep.subr.mxu0 0.0
    %836 = vmatpush1.msra.mxu0 0.0
    %837 = vmatprep.subr.mxu0 0.0
    %838 = vmatpush1.msra.mxu0 0.0
    %839 = vmatprep.subr.mxu0 0.0
    %840 = vmatpush1.msra.mxu0 0.0
    %841 = vmatprep.subr.mxu0 0.0
    %842 = vmatpush1.msra.mxu0 0.0
    %843 = vmatprep.subr.mxu0 0.0
    %844 = vmatpush1.msra.mxu0 0.0
    %845 = vmatprep.subr.mxu0 0.0
    %846 = vmatpush1.msra.mxu0 0.0
    %847 = vmatprep.subr.mxu0 0.0
    %848 = vmatpush1.msra.mxu0 0.0
    %849 = vmatprep.subr.mxu0 0.0
    %850 = vmatpush1.msra.mxu0 0.0
    %851 = vmatprep.subr.mxu0 0.0
    %852 = vmatpush1.msra.mxu0 0.0
    %853 = vmatprep.subr.mxu0 0.0
    %854 = vmatpush1.msra.mxu0 0.0
    %855 = vmatprep.mubr.f32.mxu0 0.0
    %856 = vmatmul.mubr.f32.gmra.mrb[0].mxu0 %v789
    %v857 = vpop.f32.mrb[0].mxu0
    %v858 = vadd.f32 %v786, %v857
    %v859 = vpop.f32.mrb[0].mxu0
    %860 = vdwg.mxu0
    %v861 = vadd.f32 %v858, %v384
    %v862 = vld [vmem:[%s8] sm:$0xff]
    %v863 = vld [vmem:[%s8 + $0x8] sm:$0xff]
    %v864 = vld [vmem:[%s8 + $0x10] sm:$0xff]
    %v865 = vld [vmem:[%s8 + $0x18] sm:$0xff]
    %s866 = scalar_lea.vmem %s8, 32
    %v867 = vld [vmem:[%s866] sm:$0xff]
    %v868 = vld [vmem:[%s866 + $0x8] sm:$0xff]
    %v869 = vld [vmem:[%s866 + $0x10] sm:$0xff]
    %v870 = vld [vmem:[%s866 + $0x18] sm:$0xff]
    %s871 = scalar_lea.vmem %s8, 64
    %v872 = vld [vmem:[%s871] sm:$0xff]
    %v873 = vld [vmem:[%s871 + $0x8] sm:$0xff]
    %v874 = vld [vmem:[%s871 + $0x10] sm:$0xff]
    %v875 = vld [vmem:[%s871 + $0x18] sm:$0xff]
    %v876 = vld [vmem:[%s9] sm:$0x1]
    %877 = vmatprep.subr.mxu0 0.0
    %878 = vmatpush1.msra.mxu0 %v861
    %879 = vmatprep.subr.mxu0 0.0
    %880 = vmatpush1.msra.mxu0 0.0
    %881 = vmatprep.subr.mxu0 0.0
    %882 = vmatpush1.msra.mxu0 0.0
    %883 = vmatprep.subr.mxu0 0.0
    %884 = vmatpush1.msra.mxu0 0.0
    %885 = vmatprep.subr.mxu0 0.0
    %886 = vmatpush1.msra.mxu0 0.0
    %887 = vmatprep.subr.mxu0 0.0
    %888 = vmatpush1.msra.mxu0 0.0
    %889 = vmatprep.subr.mxu0 0.0
    %890 = vmatpush1.msra.mxu0 0.0
    %891 = vmatprep.subr.mxu0 0.0
    %892 = vmatpush1.msra.mxu0 0.0
    %893 = vmatprep.subr.mxu0 0.0
    %894 = vmatpush1.msra.mxu0 0.0
    %895 = vmatprep.subr.mxu0 0.0
    %896 = vmatpush1.msra.mxu0 0.0
    %897 = vmatprep.subr.mxu0 0.0
    %898 = vmatpush1.msra.mxu0 0.0
    %899 = vmatprep.subr.mxu0 0.0
    %900 = vmatpush1.msra.mxu0 0.0
    %901 = vmatprep.subr.mxu0 0.0
    %902 = vmatpush1.msra.mxu0 0.0
    %903 = vmatprep.subr.mxu0 0.0
    %904 = vmatpush1.msra.mxu0 0.0
    %905 = vmatprep.subr.mxu0 0.0
    %906 = vmatpush1.msra.mxu0 0.0
    %907 = vmatprep.subr.mxu0 0.0
    %908 = vmatpush1.msra.mxu0 0.0
    %909 = vmatprep.subr.mxu0 0.0
    %910 = vmatpush1.msra.mxu0 0.0
    %911 = vmatprep.subr.mxu0 0.0
    %912 = vmatpush1.msra.mxu0 0.0
    %913 = vmatprep.subr.mxu0 0.0
    %914 = vmatpush1.msra.mxu0 0.0
    %915 = vmatprep.subr.mxu0 0.0
    %916 = vmatpush1.msra.mxu0 0.0
    %917 = vmatprep.subr.mxu0 0.0
    %918 = vmatpush1.msra.mxu0 0.0
    %919 = vmatprep.subr.mxu0 0.0
    %920 = vmatpush1.msra.mxu0 0.0
    %921 = vmatprep.subr.mxu0 0.0
    %922 = vmatpush1.msra.mxu0 0.0
    %923 = vmatprep.subr.mxu0 0.0
    %924 = vmatpush1.msra.mxu0 0.0
    %925 = vmatprep.subr.mxu0 0.0
    %926 = vmatpush1.msra.mxu0 0.0
    %927 = vmatprep.subr.mxu0 0.0
    %928 = vmatpush1.msra.mxu0 0.0
    %929 = vmatprep.subr.mxu0 0.0
    %930 = vmatpush1.msra.mxu0 0.0
    %931 = vmatprep.subr.mxu0 0.0
    %932 = vmatpush1.msra.mxu0 0.0
    %933 = vmatprep.subr.mxu0 0.0
    %934 = vmatpush1.msra.mxu0 0.0
    %935 = vmatprep.subr.mxu0 0.0
    %936 = vmatpush1.msra.mxu0 0.0
    %937 = vmatprep.subr.mxu0 0.0
    %938 = vmatpush1.msra.mxu0 0.0
    %939 = vmatprep.subr.mxu0 0.0
    %940 = vmatpush1.msra.mxu0 0.0
    %941 = vmatprep.mubr.f32.mxu0 0.0
    %942 = vmatmul.mubr.f32.gmra.mrb[0].mxu0 %v408
    %v943 = vpop.f32.mrb[0].mxu0
    %v944 = vadd.f32 0.0, %v943
    %v945 = vpop.f32.mrb[0].mxu0
    %946 = vdwg.mxu0
    %v948 = vsel %vm480, %v861, 0
    %950 = vmatprep.subr.mxu0 0.0
    %951 = vmatpush1.msra.mxu0 %v867
    %952 = vmatprep.subr.mxu0 0.0
    %953 = vmatpush1.msra.mxu0 %v868
    %954 = vmatprep.subr.mxu0 0.0
    %955 = vmatpush1.msra.mxu0 %v869
    %956 = vmatprep.subr.mxu0 0.0
    %957 = vmatpush1.msra.mxu0 %v870
    %958 = vmatprep.subr.mxu0 0.0
    %959 = vmatpush1.msra.mxu0 0.0
    %960 = vmatprep.subr.mxu0 0.0
    %961 = vmatpush1.msra.mxu0 0.0
    %962 = vmatprep.subr.mxu0 0.0
    %963 = vmatpush1.msra.mxu0 0.0
    %964 = vmatprep.subr.mxu0 0.0
    %965 = vmatpush1.msra.mxu0 0.0
    %966 = vmatprep.subr.mxu0 0.0
    %967 = vmatpush1.msra.mxu0 0.0
    %968 = vmatprep.subr.mxu0 0.0
    %969 = vmatpush1.msra.mxu0 0.0
    %970 = vmatprep.subr.mxu0 0.0
    %971 = vmatpush1.msra.mxu0 0.0
    %972 = vmatprep.subr.mxu0 0.0
    %973 = vmatpush1.msra.mxu0 0.0
    %974 = vmatprep.subr.mxu0 0.0
    %975 = vmatpush1.msra.mxu0 0.0
    %976 = vmatprep.subr.mxu0 0.0
    %977 = vmatpush1.msra.mxu0 0.0
    %978 = vmatprep.subr.mxu0 0.0
    %979 = vmatpush1.msra.mxu0 0.0
    %980 = vmatprep.subr.mxu0 0.0
    %981 = vmatpush1.msra.mxu0 0.0
    %982 = vmatprep.subr.mxu0 0.0
    %983 = vmatpush1.msra.mxu0 0.0
    %984 = vmatprep.subr.mxu0 0.0
    %985 = vmatpush1.msra.mxu0 0.0
    %986 = vmatprep.subr.mxu0 0.0
    %987 = vmatpush1.msra.mxu0 0.0
    %988 = vmatprep.subr.mxu0 0.0
    %989 = vmatpush1.msra.mxu0 0.0
    %990 = vmatprep.subr.mxu0 0.0
    %991 = vmatpush1.msra.mxu0 0.0
    %992 = vmatprep.subr.mxu0 0.0
    %993 = vmatpush1.msra.mxu0 0.0
    %994 = vmatprep.subr.mxu0 0.0
    %995 = vmatpush1.msra.mxu0 0.0
    %996 = vmatprep.subr.mxu0 0.0
    %997 = vmatpush1.msra.mxu0 0.0
    %998 = vmatprep.subr.mxu0 0.0
    %999 = vmatpush1.msra.mxu0 0.0
    %1000 = vmatprep.subr.mxu0 0.0
    %1001 = vmatpush1.msra.mxu0 0.0
    %1002 = vmatprep.subr.mxu0 0.0
    %1003 = vmatpush1.msra.mxu0 0.0
    %1004 = vmatprep.subr.mxu0 0.0
    %1005 = vmatpush1.msra.mxu0 0.0
    %1006 = vmatprep.subr.mxu0 0.0
    %1007 = vmatpush1.msra.mxu0 0.0
    %1008 = vmatprep.subr.mxu0 0.0
    %1009 = vmatpush1.msra.mxu0 0.0
    %1010 = vmatprep.subr.mxu0 0.0
    %1011 = vmatpush1.msra.mxu0 0.0
    %1012 = vmatprep.subr.mxu0 0.0
    %1013 = vmatpush1.msra.mxu0 0.0
    %1014 = vmatprep.mubr.f32.mxu0 0.0
    %1015 = vmatmul.mubr.f32.gmra.mrb[0].mxu0 %v948
    %v1016 = vpop.f32.mrb[0].mxu0
    %v1017 = vadd.f32 0.0, %v1016
    %v1018 = vpop.f32.mrb[0].mxu0
    %1019 = vdwg.mxu0
    %v1021 = vsel %vm480, %v944, 0
    %1023 = vmatprep.subr.mxu0 0.0
    %1024 = vmatpush1.msra.mxu0 %v862
    %1025 = vmatprep.subr.mxu0 0.0
    %1026 = vmatpush1.msra.mxu0 %v863
    %1027 = vmatprep.subr.mxu0 0.0
    %1028 = vmatpush1.msra.mxu0 %v864
    %1029 = vmatprep.subr.mxu0 0.0
    %1030 = vmatpush1.msra.mxu0 %v865
    %1031 = vmatprep.subr.mxu0 0.0
    %1032 = vmatpush1.msra.mxu0 0.0
    %1033 = vmatprep.subr.mxu0 0.0
    %1034 = vmatpush1.msra.mxu0 0.0
    %1035 = vmatprep.subr.mxu0 0.0
    %1036 = vmatpush1.msra.mxu0 0.0
    %1037 = vmatprep.subr.mxu0 0.0
    %1038 = vmatpush1.msra.mxu0 0.0
    %1039 = vmatprep.subr.mxu0 0.0
    %1040 = vmatpush1.msra.mxu0 0.0
    %1041 = vmatprep.subr.mxu0 0.0
    %1042 = vmatpush1.msra.mxu0 0.0
    %1043 = vmatprep.subr.mxu0 0.0
    %1044 = vmatpush1.msra.mxu0 0.0
    %1045 = vmatprep.subr.mxu0 0.0
    %1046 = vmatpush1.msra.mxu0 0.0
    %1047 = vmatprep.subr.mxu0 0.0
    %1048 = vmatpush1.msra.mxu0 0.0
    %1049 = vmatprep.subr.mxu0 0.0
    %1050 = vmatpush1.msra.mxu0 0.0
    %1051 = vmatprep.subr.mxu0 0.0
    %1052 = vmatpush1.msra.mxu0 0.0
    %1053 = vmatprep.subr.mxu0 0.0
    %1054 = vmatpush1.msra.mxu0 0.0
    %1055 = vmatprep.subr.mxu0 0.0
    %1056 = vmatpush1.msra.mxu0 0.0
    %1057 = vmatprep.subr.mxu0 0.0
    %1058 = vmatpush1.msra.mxu0 0.0
    %1059 = vmatprep.subr.mxu0 0.0
    %1060 = vmatpush1.msra.mxu0 0.0
    %1061 = vmatprep.subr.mxu0 0.0
    %1062 = vmatpush1.msra.mxu0 0.0
    %1063 = vmatprep.subr.mxu0 0.0
    %1064 = vmatpush1.msra.mxu0 0.0
    %1065 = vmatprep.subr.mxu0 0.0
    %1066 = vmatpush1.msra.mxu0 0.0
    %1067 = vmatprep.subr.mxu0 0.0
    %1068 = vmatpush1.msra.mxu0 0.0
    %1069 = vmatprep.subr.mxu0 0.0
    %1070 = vmatpush1.msra.mxu0 0.0
    %1071 = vmatprep.subr.mxu0 0.0
    %1072 = vmatpush1.msra.mxu0 0.0
    %1073 = vmatprep.subr.mxu0 0.0
    %1074 = vmatpush1.msra.mxu0 0.0
    %1075 = vmatprep.subr.mxu0 0.0
    %1076 = vmatpush1.msra.mxu0 0.0
    %1077 = vmatprep.subr.mxu0 0.0
    %1078 = vmatpush1.msra.mxu0 0.0
    %1079 = vmatprep.subr.mxu0 0.0
    %1080 = vmatpush1.msra.mxu0 0.0
    %1081 = vmatprep.subr.mxu0 0.0
    %1082 = vmatpush1.msra.mxu0 0.0
    %1083 = vmatprep.subr.mxu0 0.0
    %1084 = vmatpush1.msra.mxu0 0.0
    %1085 = vmatprep.subr.mxu0 0.0
    %1086 = vmatpush1.msra.mxu0 0.0
    %1087 = vmatprep.mubr.f32.mxu0 0.0
    %1088 = vmatmul.mubr.f32.gmra.mrb[0].mxu0 %v1021
    %v1089 = vpop.f32.mrb[0].mxu0
    %v1090 = vadd.f32 %v1017, %v1089
    %v1091 = vpop.f32.mrb[0].mxu0
    %1092 = vdwg.mxu0
    %1093 = vmatprep.subr.mxu0 0.0
    %1094 = vmatpush1.msra.mxu0 %v861
    %1095 = vmatprep.subr.mxu0 0.0
    %1096 = vmatpush1.msra.mxu0 0.0
    %1097 = vmatprep.subr.mxu0 0.0
    %1098 = vmatpush1.msra.mxu0 0.0
    %1099 = vmatprep.subr.mxu0 0.0
    %1100 = vmatpush1.msra.mxu0 0.0
    %1101 = vmatprep.subr.mxu0 0.0
    %1102 = vmatpush1.msra.mxu0 0.0
    %1103 = vmatprep.subr.mxu0 0.0
    %1104 = vmatpush1.msra.mxu0 0.0
    %1105 = vmatprep.subr.mxu0 0.0
    %1106 = vmatpush1.msra.mxu0 0.0
    %1107 = vmatprep.subr.mxu0 0.0
    %1108 = vmatpush1.msra.mxu0 0.0
    %1109 = vmatprep.subr.mxu0 0.0
    %1110 = vmatpush1.msra.mxu0 0.0
    %1111 = vmatprep.subr.mxu0 0.0
    %1112 = vmatpush1.msra.mxu0 0.0
    %1113 = vmatprep.subr.mxu0 0.0
    %1114 = vmatpush1.msra.mxu0 0.0
    %1115 = vmatprep.subr.mxu0 0.0
    %1116 = vmatpush1.msra.mxu0 0.0
    %1117 = vmatprep.subr.mxu0 0.0
    %1118 = vmatpush1.msra.mxu0 0.0
    %1119 = vmatprep.subr.mxu0 0.0
    %1120 = vmatpush1.msra.mxu0 0.0
    %1121 = vmatprep.subr.mxu0 0.0
    %1122 = vmatpush1.msra.mxu0 0.0
    %1123 = vmatprep.subr.mxu0 0.0
    %1124 = vmatpush1.msra.mxu0 0.0
    %1125 = vmatprep.subr.mxu0 0.0
    %1126 = vmatpush1.msra.mxu0 0.0
    %1127 = vmatprep.subr.mxu0 0.0
    %1128 = vmatpush1.msra.mxu0 0.0
    %1129 = vmatprep.subr.mxu0 0.0
    %1130 = vmatpush1.msra.mxu0 0.0
    %1131 = vmatprep.subr.mxu0 0.0
    %1132 = vmatpush1.msra.mxu0 0.0
    %1133 = vmatprep.subr.mxu0 0.0
    %1134 = vmatpush1.msra.mxu0 0.0
    %1135 = vmatprep.subr.mxu0 0.0
    %1136 = vmatpush1.msra.mxu0 0.0
    %1137 = vmatprep.subr.mxu0 0.0
    %1138 = vmatpush1.msra.mxu0 0.0
    %1139 = vmatprep.subr.mxu0 0.0
    %1140 = vmatpush1.msra.mxu0 0.0
    %1141 = vmatprep.subr.mxu0 0.0
    %1142 = vmatpush1.msra.mxu0 0.0
    %1143 = vmatprep.subr.mxu0 0.0
    %1144 = vmatpush1.msra.mxu0 0.0
    %1145 = vmatprep.subr.mxu0 0.0
    %1146 = vmatpush1.msra.mxu0 0.0
    %1147 = vmatprep.subr.mxu0 0.0
    %1148 = vmatpush1.msra.mxu0 0.0
    %1149 = vmatprep.subr.mxu0 0.0
    %1150 = vmatpush1.msra.mxu0 0.0
    %1151 = vmatprep.subr.mxu0 0.0
    %1152 = vmatpush1.msra.mxu0 0.0
    %1153 = vmatprep.subr.mxu0 0.0
    %1154 = vmatpush1.msra.mxu0 0.0
    %1155 = vmatprep.subr.mxu0 0.0
    %1156 = vmatpush1.msra.mxu0 0.0
    %1157 = vmatprep.mubr.f32.mxu0 0.0
    %1158 = vmatmul.mubr.f32.gmra.mrb[0].mxu0 %v628
    %v1159 = vpop.f32.mrb[0].mxu0
    %v1160 = vadd.f32 0.0, %v1159
    %v1161 = vpop.f32.mrb[0].mxu0
    %1162 = vdwg.mxu0
    %v1164 = vsel %vm480, %v1160, 0
    %1166 = vmatprep.subr.mxu0 0.0
    %1167 = vmatpush1.msra.mxu0 %v872
    %1168 = vmatprep.subr.mxu0 0.0
    %1169 = vmatpush1.msra.mxu0 %v873
    %1170 = vmatprep.subr.mxu0 0.0
    %1171 = vmatpush1.msra.mxu0 %v874
    %1172 = vmatprep.subr.mxu0 0.0
    %1173 = vmatpush1.msra.mxu0 %v875
    %1174 = vmatprep.subr.mxu0 0.0
    %1175 = vmatpush1.msra.mxu0 0.0
    %1176 = vmatprep.subr.mxu0 0.0
    %1177 = vmatpush1.msra.mxu0 0.0
    %1178 = vmatprep.subr.mxu0 0.0
    %1179 = vmatpush1.msra.mxu0 0.0
    %1180 = vmatprep.subr.mxu0 0.0
    %1181 = vmatpush1.msra.mxu0 0.0
    %1182 = vmatprep.subr.mxu0 0.0
    %1183 = vmatpush1.msra.mxu0 0.0
    %1184 = vmatprep.subr.mxu0 0.0
    %1185 = vmatpush1.msra.mxu0 0.0
    %1186 = vmatprep.subr.mxu0 0.0
    %1187 = vmatpush1.msra.mxu0 0.0
    %1188 = vmatprep.subr.mxu0 0.0
    %1189 = vmatpush1.msra.mxu0 0.0
    %1190 = vmatprep.subr.mxu0 0.0
    %1191 = vmatpush1.msra.mxu0 0.0
    %1192 = vmatprep.subr.mxu0 0.0
    %1193 = vmatpush1.msra.mxu0 0.0
    %1194 = vmatprep.subr.mxu0 0.0
    %1195 = vmatpush1.msra.mxu0 0.0
    %1196 = vmatprep.subr.mxu0 0.0
    %1197 = vmatpush1.msra.mxu0 0.0
    %1198 = vmatprep.subr.mxu0 0.0
    %1199 = vmatpush1.msra.mxu0 0.0
    %1200 = vmatprep.subr.mxu0 0.0
    %1201 = vmatpush1.msra.mxu0 0.0
    %1202 = vmatprep.subr.mxu0 0.0
    %1203 = vmatpush1.msra.mxu0 0.0
    %1204 = vmatprep.subr.mxu0 0.0
    %1205 = vmatpush1.msra.mxu0 0.0
    %1206 = vmatprep.subr.mxu0 0.0
    %1207 = vmatpush1.msra.mxu0 0.0
    %1208 = vmatprep.subr.mxu0 0.0
    %1209 = vmatpush1.msra.mxu0 0.0
    %1210 = vmatprep.subr.mxu0 0.0
    %1211 = vmatpush1.msra.mxu0 0.0
    %1212 = vmatprep.subr.mxu0 0.0
    %1213 = vmatpush1.msra.mxu0 0.0
    %1214 = vmatprep.subr.mxu0 0.0
    %1215 = vmatpush1.msra.mxu0 0.0
    %1216 = vmatprep.subr.mxu0 0.0
    %1217 = vmatpush1.msra.mxu0 0.0
    %1218 = vmatprep.subr.mxu0 0.0
    %1219 = vmatpush1.msra.mxu0 0.0
    %1220 = vmatprep.subr.mxu0 0.0
    %1221 = vmatpush1.msra.mxu0 0.0
    %1222 = vmatprep.subr.mxu0 0.0
    %1223 = vmatpush1.msra.mxu0 0.0
    %1224 = vmatprep.subr.mxu0 0.0
    %1225 = vmatpush1.msra.mxu0 0.0
    %1226 = vmatprep.subr.mxu0 0.0
    %1227 = vmatpush1.msra.mxu0 0.0
    %1228 = vmatprep.subr.mxu0 0.0
    %1229 = vmatpush1.msra.mxu0 0.0
    %1230 = vmatprep.mubr.f32.mxu0 0.0
    %1231 = vmatmul.mubr.f32.gmra.mrb[0].mxu0 %v1164
    %v1232 = vpop.f32.mrb[0].mxu0
    %v1233 = vadd.f32 0.0, %v1232
    %v1234 = vpop.f32.mrb[0].mxu0
    %1235 = vdwg.mxu0
    %v1236 = vadd.f32 %v1090, %v1233
    %v1238 = vlaneseq
    %v1239 = vshrl.u32 %v1238, 7
    %v1240 = vsub.s32 0, %v1239
    %v1241 = vrot.slane %v876, %v1240
    %v1243 = vadd.f32 %v1236, %v1241
    %vm1244 = vcmask 130048
    %1245 = vst.msk [vmem:[#allocation2] sm:$0xff] %vm1244, %v1243
    %s1246 = scalar_lea.vmem %s0, 16
    %v1247 = vld [vmem:[%s1246] sm:$0xff]
    %v1248 = vld [vmem:[%s1246 + $0x8] sm:$0x1]
    %s1249 = scalar_lea.vmem %s1, 16
    %v1250 = vld [vmem:[%s1249] sm:$0xff]
    %v1251 = vld [vmem:[%s1249 + $0x8] sm:$0x1]
    %v1252 = vld [vmem:[%s2] sm:$0xff]
    %v1253 = vld [vmem:[%s2 + $0x8] sm:$0xff]
    %v1254 = vld [vmem:[%s2 + $0x10] sm:$0xff]
    %v1255 = vld [vmem:[%s64] sm:$0xff]
    %v1256 = vld [vmem:[%s64 + $0x8] sm:$0xff]
    %v1257 = vld [vmem:[%s64 + $0x10] sm:$0xff]
    %v1259 = vsel %vm68, %v1250, 0
    %1261 = vmatprep.subr.mxu0 0.0
    %1262 = vmatpush1.msra.mxu0 %v1255
    %1263 = vmatprep.subr.mxu0 0.0
    %1264 = vmatpush1.msra.mxu0 %v1256
    %1265 = vmatprep.subr.mxu0 0.0
    %1266 = vmatpush1.msra.mxu0 %v1257
    %1267 = vmatprep.subr.mxu0 0.0
    %1268 = vmatpush1.msra.mxu0 0.0
    %1269 = vmatprep.subr.mxu0 0.0
    %1270 = vmatpush1.msra.mxu0 0.0
    %1271 = vmatprep.subr.mxu0 0.0
    %1272 = vmatpush1.msra.mxu0 0.0
    %1273 = vmatprep.subr.mxu0 0.0
    %1274 = vmatpush1.msra.mxu0 0.0
    %1275 = vmatprep.subr.mxu0 0.0
    %1276 = vmatpush1.msra.mxu0 0.0
    %1277 = vmatprep.subr.mxu0 0.0
    %1278 = vmatpush1.msra.mxu0 0.0
    %1279 = vmatprep.subr.mxu0 0.0
    %1280 = vmatpush1.msra.mxu0 0.0
    %1281 = vmatprep.subr.mxu0 0.0
    %1282 = vmatpush1.msra.mxu0 0.0
    %1283 = vmatprep.subr.mxu0 0.0
    %1284 = vmatpush1.msra.mxu0 0.0
    %1285 = vmatprep.subr.mxu0 0.0
    %1286 = vmatpush1.msra.mxu0 0.0
    %1287 = vmatprep.subr.mxu0 0.0
    %1288 = vmatpush1.msra.mxu0 0.0
    %1289 = vmatprep.subr.mxu0 0.0
    %1290 = vmatpush1.msra.mxu0 0.0
    %1291 = vmatprep.subr.mxu0 0.0
    %1292 = vmatpush1.msra.mxu0 0.0
    %1293 = vmatprep.subr.mxu0 0.0
    %1294 = vmatpush1.msra.mxu0 0.0
    %1295 = vmatprep.subr.mxu0 0.0
    %1296 = vmatpush1.msra.mxu0 0.0
    %1297 = vmatprep.subr.mxu0 0.0
    %1298 = vmatpush1.msra.mxu0 0.0
    %1299 = vmatprep.subr.mxu0 0.0
    %1300 = vmatpush1.msra.mxu0 0.0
    %1301 = vmatprep.subr.mxu0 0.0
    %1302 = vmatpush1.msra.mxu0 0.0
    %1303 = vmatprep.subr.mxu0 0.0
    %1304 = vmatpush1.msra.mxu0 0.0
    %1305 = vmatprep.subr.mxu0 0.0
    %1306 = vmatpush1.msra.mxu0 0.0
    %1307 = vmatprep.subr.mxu0 0.0
    %1308 = vmatpush1.msra.mxu0 0.0
    %1309 = vmatprep.subr.mxu0 0.0
    %1310 = vmatpush1.msra.mxu0 0.0
    %1311 = vmatprep.subr.mxu0 0.0
    %1312 = vmatpush1.msra.mxu0 0.0
    %1313 = vmatprep.subr.mxu0 0.0
    %1314 = vmatpush1.msra.mxu0 0.0
    %1315 = vmatprep.subr.mxu0 0.0
    %1316 = vmatpush1.msra.mxu0 0.0
    %1317 = vmatprep.subr.mxu0 0.0
    %1318 = vmatpush1.msra.mxu0 0.0
    %1319 = vmatprep.subr.mxu0 0.0
    %1320 = vmatpush1.msra.mxu0 0.0
    %1321 = vmatprep.subr.mxu0 0.0
    %1322 = vmatpush1.msra.mxu0 0.0
    %1323 = vmatprep.subr.mxu0 0.0
    %1324 = vmatpush1.msra.mxu0 0.0
    %1325 = vmatprep.mubr.f32.mxu0 0.0
    %1326 = vmatmul.mubr.f32.gmra.mrb[0].mxu0 %v1259
    %v1327 = vpop.f32.mrb[0].mxu0
    %v1328 = vadd.f32 0.0, %v1327
    %v1329 = vpop.f32.mrb[0].mxu0
    %1330 = vdwg.mxu0
    %v1332 = vsel %vm68, %v1247, 0
    %1334 = vmatprep.subr.mxu0 0.0
    %1335 = vmatpush1.msra.mxu0 %v1252
    %1336 = vmatprep.subr.mxu0 0.0
    %1337 = vmatpush1.msra.mxu0 %v1253
    %1338 = vmatprep.subr.mxu0 0.0
    %1339 = vmatpush1.msra.mxu0 %v1254
    %1340 = vmatprep.subr.mxu0 0.0
    %1341 = vmatpush1.msra.mxu0 0.0
    %1342 = vmatprep.subr.mxu0 0.0
    %1343 = vmatpush1.msra.mxu0 0.0
    %1344 = vmatprep.subr.mxu0 0.0
    %1345 = vmatpush1.msra.mxu0 0.0
    %1346 = vmatprep.subr.mxu0 0.0
    %1347 = vmatpush1.msra.mxu0 0.0
    %1348 = vmatprep.subr.mxu0 0.0
    %1349 = vmatpush1.msra.mxu0 0.0
    %1350 = vmatprep.subr.mxu0 0.0
    %1351 = vmatpush1.msra.mxu0 0.0
    %1352 = vmatprep.subr.mxu0 0.0
    %1353 = vmatpush1.msra.mxu0 0.0
    %1354 = vmatprep.subr.mxu0 0.0
    %1355 = vmatpush1.msra.mxu0 0.0
    %1356 = vmatprep.subr.mxu0 0.0
    %1357 = vmatpush1.msra.mxu0 0.0
    %1358 = vmatprep.subr.mxu0 0.0
    %1359 = vmatpush1.msra.mxu0 0.0
    %1360 = vmatprep.subr.mxu0 0.0
    %1361 = vmatpush1.msra.mxu0 0.0
    %1362 = vmatprep.subr.mxu0 0.0
    %1363 = vmatpush1.msra.mxu0 0.0
    %1364 = vmatprep.subr.mxu0 0.0
    %1365 = vmatpush1.msra.mxu0 0.0
    %1366 = vmatprep.subr.mxu0 0.0
    %1367 = vmatpush1.msra.mxu0 0.0
    %1368 = vmatprep.subr.mxu0 0.0
    %1369 = vmatpush1.msra.mxu0 0.0
    %1370 = vmatprep.subr.mxu0 0.0
    %1371 = vmatpush1.msra.mxu0 0.0
    %1372 = vmatprep.subr.mxu0 0.0
    %1373 = vmatpush1.msra.mxu0 0.0
    %1374 = vmatprep.subr.mxu0 0.0
    %1375 = vmatpush1.msra.mxu0 0.0
    %1376 = vmatprep.subr.mxu0 0.0
    %1377 = vmatpush1.msra.mxu0 0.0
    %1378 = vmatprep.subr.mxu0 0.0
    %1379 = vmatpush1.msra.mxu0 0.0
    %1380 = vmatprep.subr.mxu0 0.0
    %1381 = vmatpush1.msra.mxu0 0.0
    %1382 = vmatprep.subr.mxu0 0.0
    %1383 = vmatpush1.msra.mxu0 0.0
    %1384 = vmatprep.subr.mxu0 0.0
    %1385 = vmatpush1.msra.mxu0 0.0
    %1386 = vmatprep.subr.mxu0 0.0
    %1387 = vmatpush1.msra.mxu0 0.0
    %1388 = vmatprep.subr.mxu0 0.0
    %1389 = vmatpush1.msra.mxu0 0.0
    %1390 = vmatprep.subr.mxu0 0.0
    %1391 = vmatpush1.msra.mxu0 0.0
    %1392 = vmatprep.subr.mxu0 0.0
    %1393 = vmatpush1.msra.mxu0 0.0
    %1394 = vmatprep.subr.mxu0 0.0
    %1395 = vmatpush1.msra.mxu0 0.0
    %1396 = vmatprep.subr.mxu0 0.0
    %1397 = vmatpush1.msra.mxu0 0.0
    %1398 = vmatprep.mubr.f32.mxu0 0.0
    %1399 = vmatmul.mubr.f32.gmra.mrb[0].mxu0 %v1332
    %v1400 = vpop.f32.mrb[0].mxu0
    %v1401 = vadd.f32 %v1328, %v1400
    %v1402 = vpop.f32.mrb[0].mxu0
    %1403 = vdwg.mxu0
    %v1404 = vld [vmem:[%s215] sm:$0xff]
    %v1405 = vld [vmem:[%s215 + $0x8] sm:$0xff]
    %v1406 = vld [vmem:[%s215 + $0x10] sm:$0xff]
    %v1408 = vrot.slane %v1247, 1
    %v1409 = vrot.slane %v1248, 1
    %v1410 = vsel %vm220, %v1408, %v1409
    %v1411 = vsel %vm68, %v1410, 0
    %1413 = vmatprep.subr.mxu0 0.0
    %1414 = vmatpush1.msra.mxu0 %v1404
    %1415 = vmatprep.subr.mxu0 0.0
    %1416 = vmatpush1.msra.mxu0 %v1405
    %1417 = vmatprep.subr.mxu0 0.0
    %1418 = vmatpush1.msra.mxu0 %v1406
    %1419 = vmatprep.subr.mxu0 0.0
    %1420 = vmatpush1.msra.mxu0 0.0
    %1421 = vmatprep.subr.mxu0 0.0
    %1422 = vmatpush1.msra.mxu0 0.0
    %1423 = vmatprep.subr.mxu0 0.0
    %1424 = vmatpush1.msra.mxu0 0.0
    %1425 = vmatprep.subr.mxu0 0.0
    %1426 = vmatpush1.msra.mxu0 0.0
    %1427 = vmatprep.subr.mxu0 0.0
    %1428 = vmatpush1.msra.mxu0 0.0
    %1429 = vmatprep.subr.mxu0 0.0
    %1430 = vmatpush1.msra.mxu0 0.0
    %1431 = vmatprep.subr.mxu0 0.0
    %1432 = vmatpush1.msra.mxu0 0.0
    %1433 = vmatprep.subr.mxu0 0.0
    %1434 = vmatpush1.msra.mxu0 0.0
    %1435 = vmatprep.subr.mxu0 0.0
    %1436 = vmatpush1.msra.mxu0 0.0
    %1437 = vmatprep.subr.mxu0 0.0
    %1438 = vmatpush1.msra.mxu0 0.0
    %1439 = vmatprep.subr.mxu0 0.0
    %1440 = vmatpush1.msra.mxu0 0.0
    %1441 = vmatprep.subr.mxu0 0.0
    %1442 = vmatpush1.msra.mxu0 0.0
    %1443 = vmatprep.subr.mxu0 0.0
    %1444 = vmatpush1.msra.mxu0 0.0
    %1445 = vmatprep.subr.mxu0 0.0
    %1446 = vmatpush1.msra.mxu0 0.0
    %1447 = vmatprep.subr.mxu0 0.0
    %1448 = vmatpush1.msra.mxu0 0.0
    %1449 = vmatprep.subr.mxu0 0.0
    %1450 = vmatpush1.msra.mxu0 0.0
    %1451 = vmatprep.subr.mxu0 0.0
    %1452 = vmatpush1.msra.mxu0 0.0
    %1453 = vmatprep.subr.mxu0 0.0
    %1454 = vmatpush1.msra.mxu0 0.0
    %1455 = vmatprep.subr.mxu0 0.0
    %1456 = vmatpush1.msra.mxu0 0.0
    %1457 = vmatprep.subr.mxu0 0.0
    %1458 = vmatpush1.msra.mxu0 0.0
    %1459 = vmatprep.subr.mxu0 0.0
    %1460 = vmatpush1.msra.mxu0 0.0
    %1461 = vmatprep.subr.mxu0 0.0
    %1462 = vmatpush1.msra.mxu0 0.0
    %1463 = vmatprep.subr.mxu0 0.0
    %1464 = vmatpush1.msra.mxu0 0.0
    %1465 = vmatprep.subr.mxu0 0.0
    %1466 = vmatpush1.msra.mxu0 0.0
    %1467 = vmatprep.subr.mxu0 0.0
    %1468 = vmatpush1.msra.mxu0 0.0
    %1469 = vmatprep.subr.mxu0 0.0
    %1470 = vmatpush1.msra.mxu0 0.0
    %1471 = vmatprep.subr.mxu0 0.0
    %1472 = vmatpush1.msra.mxu0 0.0
    %1473 = vmatprep.subr.mxu0 0.0
    %1474 = vmatpush1.msra.mxu0 0.0
    %1475 = vmatprep.subr.mxu0 0.0
    %1476 = vmatpush1.msra.mxu0 0.0
    %1477 = vmatprep.mubr.f32.mxu0 0.0
    %1478 = vmatmul.mubr.f32.gmra.mrb[0].mxu0 %v1411
    %v1479 = vpop.f32.mrb[0].mxu0
    %v1480 = vadd.f32 0.0, %v1479
    %v1481 = vpop.f32.mrb[0].mxu0
    %1482 = vdwg.mxu0
    %v1483 = vadd.f32 %v1401, %v1480
    %v1484 = vld [vmem:[%s297] sm:$0xff]
    %v1485 = vld [vmem:[%s297 + $0x8] sm:$0xff]
    %v1486 = vld [vmem:[%s297 + $0x10] sm:$0xff]
    %v1488 = vrot.slane %v1250, 1
    %v1489 = vrot.slane %v1251, 1
    %v1490 = vsel %vm220, %v1488, %v1489
    %v1491 = vsel %vm68, %v1490, 0
    %1493 = vmatprep.subr.mxu0 0.0
    %1494 = vmatpush1.msra.mxu0 %v1484
    %1495 = vmatprep.subr.mxu0 0.0
    %1496 = vmatpush1.msra.mxu0 %v1485
    %1497 = vmatprep.subr.mxu0 0.0
    %1498 = vmatpush1.msra.mxu0 %v1486
    %1499 = vmatprep.subr.mxu0 0.0
    %1500 = vmatpush1.msra.mxu0 0.0
    %1501 = vmatprep.subr.mxu0 0.0
    %1502 = vmatpush1.msra.mxu0 0.0
    %1503 = vmatprep.subr.mxu0 0.0
    %1504 = vmatpush1.msra.mxu0 0.0
    %1505 = vmatprep.subr.mxu0 0.0
    %1506 = vmatpush1.msra.mxu0 0.0
    %1507 = vmatprep.subr.mxu0 0.0
    %1508 = vmatpush1.msra.mxu0 0.0
    %1509 = vmatprep.subr.mxu0 0.0
    %1510 = vmatpush1.msra.mxu0 0.0
    %1511 = vmatprep.subr.mxu0 0.0
    %1512 = vmatpush1.msra.mxu0 0.0
    %1513 = vmatprep.subr.mxu0 0.0
    %1514 = vmatpush1.msra.mxu0 0.0
    %1515 = vmatprep.subr.mxu0 0.0
    %1516 = vmatpush1.msra.mxu0 0.0
    %1517 = vmatprep.subr.mxu0 0.0
    %1518 = vmatpush1.msra.mxu0 0.0
    %1519 = vmatprep.subr.mxu0 0.0
    %1520 = vmatpush1.msra.mxu0 0.0
    %1521 = vmatprep.subr.mxu0 0.0
    %1522 = vmatpush1.msra.mxu0 0.0
    %1523 = vmatprep.subr.mxu0 0.0
    %1524 = vmatpush1.msra.mxu0 0.0
    %1525 = vmatprep.subr.mxu0 0.0
    %1526 = vmatpush1.msra.mxu0 0.0
    %1527 = vmatprep.subr.mxu0 0.0
    %1528 = vmatpush1.msra.mxu0 0.0
    %1529 = vmatprep.subr.mxu0 0.0
    %1530 = vmatpush1.msra.mxu0 0.0
    %1531 = vmatprep.subr.mxu0 0.0
    %1532 = vmatpush1.msra.mxu0 0.0
    %1533 = vmatprep.subr.mxu0 0.0
    %1534 = vmatpush1.msra.mxu0 0.0
    %1535 = vmatprep.subr.mxu0 0.0
    %1536 = vmatpush1.msra.mxu0 0.0
    %1537 = vmatprep.subr.mxu0 0.0
    %1538 = vmatpush1.msra.mxu0 0.0
    %1539 = vmatprep.subr.mxu0 0.0
    %1540 = vmatpush1.msra.mxu0 0.0
    %1541 = vmatprep.subr.mxu0 0.0
    %1542 = vmatpush1.msra.mxu0 0.0
    %1543 = vmatprep.subr.mxu0 0.0
    %1544 = vmatpush1.msra.mxu0 0.0
    %1545 = vmatprep.subr.mxu0 0.0
    %1546 = vmatpush1.msra.mxu0 0.0
    %1547 = vmatprep.subr.mxu0 0.0
    %1548 = vmatpush1.msra.mxu0 0.0
    %1549 = vmatprep.subr.mxu0 0.0
    %1550 = vmatpush1.msra.mxu0 0.0
    %1551 = vmatprep.subr.mxu0 0.0
    %1552 = vmatpush1.msra.mxu0 0.0
    %1553 = vmatprep.subr.mxu0 0.0
    %1554 = vmatpush1.msra.mxu0 0.0
    %1555 = vmatprep.subr.mxu0 0.0
    %1556 = vmatpush1.msra.mxu0 0.0
    %1557 = vmatprep.mubr.f32.mxu0 0.0
    %1558 = vmatmul.mubr.f32.gmra.mrb[0].mxu0 %v1491
    %v1559 = vpop.f32.mrb[0].mxu0
    %v1560 = vadd.f32 0.0, %v1559
    %v1561 = vpop.f32.mrb[0].mxu0
    %1562 = vdwg.mxu0
    %v1563 = vadd.f32 %v1483, %v1560
    %v1564 = vadd.f32 %v1563, %v382
    %v1565 = vld [vmem:[%s4] sm:$0xff]
    %v1566 = vld [vmem:[%s4 + $0x8] sm:$0xff]
    %v1567 = vld [vmem:[%s4 + $0x10] sm:$0xff]
    %v1568 = vld [vmem:[%s4 + $0x18] sm:$0xff]
    %v1569 = vld [vmem:[%s389] sm:$0xff]
    %v1570 = vld [vmem:[%s389 + $0x8] sm:$0xff]
    %v1571 = vld [vmem:[%s389 + $0x10] sm:$0xff]
    %v1572 = vld [vmem:[%s389 + $0x18] sm:$0xff]
    %v1573 = vld [vmem:[%s394] sm:$0xff]
    %v1574 = vld [vmem:[%s394 + $0x8] sm:$0xff]
    %v1575 = vld [vmem:[%s394 + $0x10] sm:$0xff]
    %v1576 = vld [vmem:[%s394 + $0x18] sm:$0xff]
    %v1577 = vld [vmem:[%s5] sm:$0x1]
    %v1578 = vld [vmem:[%s6] sm:$0xff]
    %v1579 = vld [vmem:[%s6 + $0x8] sm:$0xff]
    %v1580 = vld [vmem:[%s6 + $0x10] sm:$0xff]
    %v1581 = vld [vmem:[%s6 + $0x18] sm:$0xff]
    %v1582 = vld [vmem:[%s7] sm:$0x1]
    %v1583 = vmax.f32 %v1564, 0.0
    %1584 = vmatprep.subr.mxu0 0.0
    %1585 = vmatpush1.msra.mxu0 %v1583
    %1586 = vmatprep.subr.mxu0 0.0
    %1587 = vmatpush1.msra.mxu0 0.0
    %1588 = vmatprep.subr.mxu0 0.0
    %1589 = vmatpush1.msra.mxu0 0.0
    %1590 = vmatprep.subr.mxu0 0.0
    %1591 = vmatpush1.msra.mxu0 0.0
    %1592 = vmatprep.subr.mxu0 0.0
    %1593 = vmatpush1.msra.mxu0 0.0
    %1594 = vmatprep.subr.mxu0 0.0
    %1595 = vmatpush1.msra.mxu0 0.0
    %1596 = vmatprep.subr.mxu0 0.0
    %1597 = vmatpush1.msra.mxu0 0.0
    %1598 = vmatprep.subr.mxu0 0.0
    %1599 = vmatpush1.msra.mxu0 0.0
    %1600 = vmatprep.subr.mxu0 0.0
    %1601 = vmatpush1.msra.mxu0 0.0
    %1602 = vmatprep.subr.mxu0 0.0
    %1603 = vmatpush1.msra.mxu0 0.0
    %1604 = vmatprep.subr.mxu0 0.0
    %1605 = vmatpush1.msra.mxu0 0.0
    %1606 = vmatprep.subr.mxu0 0.0
    %1607 = vmatpush1.msra.mxu0 0.0
    %1608 = vmatprep.subr.mxu0 0.0
    %1609 = vmatpush1.msra.mxu0 0.0
    %1610 = vmatprep.subr.mxu0 0.0
    %1611 = vmatpush1.msra.mxu0 0.0
    %1612 = vmatprep.subr.mxu0 0.0
    %1613 = vmatpush1.msra.mxu0 0.0
    %1614 = vmatprep.subr.mxu0 0.0
    %1615 = vmatpush1.msra.mxu0 0.0
    %1616 = vmatprep.subr.mxu0 0.0
    %1617 = vmatpush1.msra.mxu0 0.0
    %1618 = vmatprep.subr.mxu0 0.0
    %1619 = vmatpush1.msra.mxu0 0.0
    %1620 = vmatprep.subr.mxu0 0.0
    %1621 = vmatpush1.msra.mxu0 0.0
    %1622 = vmatprep.subr.mxu0 0.0
    %1623 = vmatpush1.msra.mxu0 0.0
    %1624 = vmatprep.subr.mxu0 0.0
    %1625 = vmatpush1.msra.mxu0 0.0
    %1626 = vmatprep.subr.mxu0 0.0
    %1627 = vmatpush1.msra.mxu0 0.0
    %1628 = vmatprep.subr.mxu0 0.0
    %1629 = vmatpush1.msra.mxu0 0.0
    %1630 = vmatprep.subr.mxu0 0.0
    %1631 = vmatpush1.msra.mxu0 0.0
    %1632 = vmatprep.subr.mxu0 0.0
    %1633 = vmatpush1.msra.mxu0 0.0
    %1634 = vmatprep.subr.mxu0 0.0
    %1635 = vmatpush1.msra.mxu0 0.0
    %1636 = vmatprep.subr.mxu0 0.0
    %1637 = vmatpush1.msra.mxu0 0.0
    %1638 = vmatprep.subr.mxu0 0.0
    %1639 = vmatpush1.msra.mxu0 0.0
    %1640 = vmatprep.subr.mxu0 0.0
    %1641 = vmatpush1.msra.mxu0 0.0
    %1642 = vmatprep.subr.mxu0 0.0
    %1643 = vmatpush1.msra.mxu0 0.0
    %1644 = vmatprep.subr.mxu0 0.0
    %1645 = vmatpush1.msra.mxu0 0.0
    %1646 = vmatprep.subr.mxu0 0.0
    %1647 = vmatpush1.msra.mxu0 0.0
    %1648 = vmatprep.mubr.f32.mxu0 0.0
    %1649 = vmatmul.mubr.f32.gmra.mrb[0].mxu0 %v408
    %v1650 = vpop.f32.mrb[0].mxu0
    %v1651 = vadd.f32 0.0, %v1650
    %v1652 = vpop.f32.mrb[0].mxu0
    %1653 = vdwg.mxu0
    %v1655 = vsel %vm480, %v1583, 0
    %1657 = vmatprep.subr.mxu0 0.0
    %1658 = vmatpush1.msra.mxu0 %v1569
    %1659 = vmatprep.subr.mxu0 0.0
    %1660 = vmatpush1.msra.mxu0 %v1570
    %1661 = vmatprep.subr.mxu0 0.0
    %1662 = vmatpush1.msra.mxu0 %v1571
    %1663 = vmatprep.subr.mxu0 0.0
    %1664 = vmatpush1.msra.mxu0 %v1572
    %1665 = vmatprep.subr.mxu0 0.0
    %1666 = vmatpush1.msra.mxu0 0.0
    %1667 = vmatprep.subr.mxu0 0.0
    %1668 = vmatpush1.msra.mxu0 0.0
    %1669 = vmatprep.subr.mxu0 0.0
    %1670 = vmatpush1.msra.mxu0 0.0
    %1671 = vmatprep.subr.mxu0 0.0
    %1672 = vmatpush1.msra.mxu0 0.0
    %1673 = vmatprep.subr.mxu0 0.0
    %1674 = vmatpush1.msra.mxu0 0.0
    %1675 = vmatprep.subr.mxu0 0.0
    %1676 = vmatpush1.msra.mxu0 0.0
    %1677 = vmatprep.subr.mxu0 0.0
    %1678 = vmatpush1.msra.mxu0 0.0
    %1679 = vmatprep.subr.mxu0 0.0
    %1680 = vmatpush1.msra.mxu0 0.0
    %1681 = vmatprep.subr.mxu0 0.0
    %1682 = vmatpush1.msra.mxu0 0.0
    %1683 = vmatprep.subr.mxu0 0.0
    %1684 = vmatpush1.msra.mxu0 0.0
    %1685 = vmatprep.subr.mxu0 0.0
    %1686 = vmatpush1.msra.mxu0 0.0
    %1687 = vmatprep.subr.mxu0 0.0
    %1688 = vmatpush1.msra.mxu0 0.0
    %1689 = vmatprep.subr.mxu0 0.0
    %1690 = vmatpush1.msra.mxu0 0.0
    %1691 = vmatprep.subr.mxu0 0.0
    %1692 = vmatpush1.msra.mxu0 0.0
    %1693 = vmatprep.subr.mxu0 0.0
    %1694 = vmatpush1.msra.mxu0 0.0
    %1695 = vmatprep.subr.mxu0 0.0
    %1696 = vmatpush1.msra.mxu0 0.0
    %1697 = vmatprep.subr.mxu0 0.0
    %1698 = vmatpush1.msra.mxu0 0.0
    %1699 = vmatprep.subr.mxu0 0.0
    %1700 = vmatpush1.msra.mxu0 0.0
    %1701 = vmatprep.subr.mxu0 0.0
    %1702 = vmatpush1.msra.mxu0 0.0
    %1703 = vmatprep.subr.mxu0 0.0
    %1704 = vmatpush1.msra.mxu0 0.0
    %1705 = vmatprep.subr.mxu0 0.0
    %1706 = vmatpush1.msra.mxu0 0.0
    %1707 = vmatprep.subr.mxu0 0.0
    %1708 = vmatpush1.msra.mxu0 0.0
    %1709 = vmatprep.subr.mxu0 0.0
    %1710 = vmatpush1.msra.mxu0 0.0
    %1711 = vmatprep.subr.mxu0 0.0
    %1712 = vmatpush1.msra.mxu0 0.0
    %1713 = vmatprep.subr.mxu0 0.0
    %1714 = vmatpush1.msra.mxu0 0.0
    %1715 = vmatprep.subr.mxu0 0.0
    %1716 = vmatpush1.msra.mxu0 0.0
    %1717 = vmatprep.subr.mxu0 0.0
    %1718 = vmatpush1.msra.mxu0 0.0
    %1719 = vmatprep.subr.mxu0 0.0
    %1720 = vmatpush1.msra.mxu0 0.0
    %1721 = vmatprep.mubr.f32.mxu0 0.0
    %1722 = vmatmul.mubr.f32.gmra.mrb[0].mxu0 %v1655
    %v1723 = vpop.f32.mrb[0].mxu0
    %v1724 = vadd.f32 0.0, %v1723
    %v1725 = vpop.f32.mrb[0].mxu0
    %1726 = vdwg.mxu0
    %v1728 = vsel %vm480, %v1651, 0
    %1730 = vmatprep.subr.mxu0 0.0
    %1731 = vmatpush1.msra.mxu0 %v1565
    %1732 = vmatprep.subr.mxu0 0.0
    %1733 = vmatpush1.msra.mxu0 %v1566
    %1734 = vmatprep.subr.mxu0 0.0
    %1735 = vmatpush1.msra.mxu0 %v1567
    %1736 = vmatprep.subr.mxu0 0.0
    %1737 = vmatpush1.msra.mxu0 %v1568
    %1738 = vmatprep.subr.mxu0 0.0
    %1739 = vmatpush1.msra.mxu0 0.0
    %1740 = vmatprep.subr.mxu0 0.0
    %1741 = vmatpush1.msra.mxu0 0.0
    %1742 = vmatprep.subr.mxu0 0.0
    %1743 = vmatpush1.msra.mxu0 0.0
    %1744 = vmatprep.subr.mxu0 0.0
    %1745 = vmatpush1.msra.mxu0 0.0
    %1746 = vmatprep.subr.mxu0 0.0
    %1747 = vmatpush1.msra.mxu0 0.0
    %1748 = vmatprep.subr.mxu0 0.0
    %1749 = vmatpush1.msra.mxu0 0.0
    %1750 = vmatprep.subr.mxu0 0.0
    %1751 = vmatpush1.msra.mxu0 0.0
    %1752 = vmatprep.subr.mxu0 0.0
    %1753 = vmatpush1.msra.mxu0 0.0
    %1754 = vmatprep.subr.mxu0 0.0
    %1755 = vmatpush1.msra.mxu0 0.0
    %1756 = vmatprep.subr.mxu0 0.0
    %1757 = vmatpush1.msra.mxu0 0.0
    %1758 = vmatprep.subr.mxu0 0.0
    %1759 = vmatpush1.msra.mxu0 0.0
    %1760 = vmatprep.subr.mxu0 0.0
    %1761 = vmatpush1.msra.mxu0 0.0
    %1762 = vmatprep.subr.mxu0 0.0
    %1763 = vmatpush1.msra.mxu0 0.0
    %1764 = vmatprep.subr.mxu0 0.0
    %1765 = vmatpush1.msra.mxu0 0.0
    %1766 = vmatprep.subr.mxu0 0.0
    %1767 = vmatpush1.msra.mxu0 0.0
    %1768 = vmatprep.subr.mxu0 0.0
    %1769 = vmatpush1.msra.mxu0 0.0
    %1770 = vmatprep.subr.mxu0 0.0
    %1771 = vmatpush1.msra.mxu0 0.0
    %1772 = vmatprep.subr.mxu0 0.0
    %1773 = vmatpush1.msra.mxu0 0.0
    %1774 = vmatprep.subr.mxu0 0.0
    %1775 = vmatpush1.msra.mxu0 0.0
    %1776 = vmatprep.subr.mxu0 0.0
    %1777 = vmatpush1.msra.mxu0 0.0
    %1778 = vmatprep.subr.mxu0 0.0
    %1779 = vmatpush1.msra.mxu0 0.0
    %1780 = vmatprep.subr.mxu0 0.0
    %1781 = vmatpush1.msra.mxu0 0.0
    %1782 = vmatprep.subr.mxu0 0.0
    %1783 = vmatpush1.msra.mxu0 0.0
    %1784 = vmatprep.subr.mxu0 0.0
    %1785 = vmatpush1.msra.mxu0 0.0
    %1786 = vmatprep.subr.mxu0 0.0
    %1787 = vmatpush1.msra.mxu0 0.0
    %1788 = vmatprep.subr.mxu0 0.0
    %1789 = vmatpush1.msra.mxu0 0.0
    %1790 = vmatprep.subr.mxu0 0.0
    %1791 = vmatpush1.msra.mxu0 0.0
    %1792 = vmatprep.subr.mxu0 0.0
    %1793 = vmatpush1.msra.mxu0 0.0
    %1794 = vmatprep.mubr.f32.mxu0 0.0
    %1795 = vmatmul.mubr.f32.gmra.mrb[0].mxu0 %v1728
    %v1796 = vpop.f32.mrb[0].mxu0
    %v1797 = vadd.f32 %v1724, %v1796
    %v1798 = vpop.f32.mrb[0].mxu0
    %1799 = vdwg.mxu0
    %1800 = vmatprep.subr.mxu0 0.0
    %1801 = vmatpush1.msra.mxu0 %v1583
    %1802 = vmatprep.subr.mxu0 0.0
    %1803 = vmatpush1.msra.mxu0 0.0
    %1804 = vmatprep.subr.mxu0 0.0
    %1805 = vmatpush1.msra.mxu0 0.0
    %1806 = vmatprep.subr.mxu0 0.0
    %1807 = vmatpush1.msra.mxu0 0.0
    %1808 = vmatprep.subr.mxu0 0.0
    %1809 = vmatpush1.msra.mxu0 0.0
    %1810 = vmatprep.subr.mxu0 0.0
    %1811 = vmatpush1.msra.mxu0 0.0
    %1812 = vmatprep.subr.mxu0 0.0
    %1813 = vmatpush1.msra.mxu0 0.0
    %1814 = vmatprep.subr.mxu0 0.0
    %1815 = vmatpush1.msra.mxu0 0.0
    %1816 = vmatprep.subr.mxu0 0.0
    %1817 = vmatpush1.msra.mxu0 0.0
    %1818 = vmatprep.subr.mxu0 0.0
    %1819 = vmatpush1.msra.mxu0 0.0
    %1820 = vmatprep.subr.mxu0 0.0
    %1821 = vmatpush1.msra.mxu0 0.0
    %1822 = vmatprep.subr.mxu0 0.0
    %1823 = vmatpush1.msra.mxu0 0.0
    %1824 = vmatprep.subr.mxu0 0.0
    %1825 = vmatpush1.msra.mxu0 0.0
    %1826 = vmatprep.subr.mxu0 0.0
    %1827 = vmatpush1.msra.mxu0 0.0
    %1828 = vmatprep.subr.mxu0 0.0
    %1829 = vmatpush1.msra.mxu0 0.0
    %1830 = vmatprep.subr.mxu0 0.0
    %1831 = vmatpush1.msra.mxu0 0.0
    %1832 = vmatprep.subr.mxu0 0.0
    %1833 = vmatpush1.msra.mxu0 0.0
    %1834 = vmatprep.subr.mxu0 0.0
    %1835 = vmatpush1.msra.mxu0 0.0
    %1836 = vmatprep.subr.mxu0 0.0
    %1837 = vmatpush1.msra.mxu0 0.0
    %1838 = vmatprep.subr.mxu0 0.0
    %1839 = vmatpush1.msra.mxu0 0.0
    %1840 = vmatprep.subr.mxu0 0.0
    %1841 = vmatpush1.msra.mxu0 0.0
    %1842 = vmatprep.subr.mxu0 0.0
    %1843 = vmatpush1.msra.mxu0 0.0
    %1844 = vmatprep.subr.mxu0 0.0
    %1845 = vmatpush1.msra.mxu0 0.0
    %1846 = vmatprep.subr.mxu0 0.0
    %1847 = vmatpush1.msra.mxu0 0.0
    %1848 = vmatprep.subr.mxu0 0.0
    %1849 = vmatpush1.msra.mxu0 0.0
    %1850 = vmatprep.subr.mxu0 0.0
    %1851 = vmatpush1.msra.mxu0 0.0
    %1852 = vmatprep.subr.mxu0 0.0
    %1853 = vmatpush1.msra.mxu0 0.0
    %1854 = vmatprep.subr.mxu0 0.0
    %1855 = vmatpush1.msra.mxu0 0.0
    %1856 = vmatprep.subr.mxu0 0.0
    %1857 = vmatpush1.msra.mxu0 0.0
    %1858 = vmatprep.subr.mxu0 0.0
    %1859 = vmatpush1.msra.mxu0 0.0
    %1860 = vmatprep.subr.mxu0 0.0
    %1861 = vmatpush1.msra.mxu0 0.0
    %1862 = vmatprep.subr.mxu0 0.0
    %1863 = vmatpush1.msra.mxu0 0.0
    %1864 = vmatprep.mubr.f32.mxu0 0.0
    %1865 = vmatmul.mubr.f32.gmra.mrb[0].mxu0 %v628
    %v1866 = vpop.f32.mrb[0].mxu0
    %v1867 = vadd.f32 0.0, %v1866
    %v1868 = vpop.f32.mrb[0].mxu0
    %1869 = vdwg.mxu0
    %v1871 = vsel %vm480, %v1867, 0
    %1873 = vmatprep.subr.mxu0 0.0
    %1874 = vmatpush1.msra.mxu0 %v1573
    %1875 = vmatprep.subr.mxu0 0.0
    %1876 = vmatpush1.msra.mxu0 %v1574
    %1877 = vmatprep.subr.mxu0 0.0
    %1878 = vmatpush1.msra.mxu0 %v1575
    %1879 = vmatprep.subr.mxu0 0.0
    %1880 = vmatpush1.msra.mxu0 %v1576
    %1881 = vmatprep.subr.mxu0 0.0
    %1882 = vmatpush1.msra.mxu0 0.0
    %1883 = vmatprep.subr.mxu0 0.0
    %1884 = vmatpush1.msra.mxu0 0.0
    %1885 = vmatprep.subr.mxu0 0.0
    %1886 = vmatpush1.msra.mxu0 0.0
    %1887 = vmatprep.subr.mxu0 0.0
    %1888 = vmatpush1.msra.mxu0 0.0
    %1889 = vmatprep.subr.mxu0 0.0
    %1890 = vmatpush1.msra.mxu0 0.0
    %1891 = vmatprep.subr.mxu0 0.0
    %1892 = vmatpush1.msra.mxu0 0.0
    %1893 = vmatprep.subr.mxu0 0.0
    %1894 = vmatpush1.msra.mxu0 0.0
    %1895 = vmatprep.subr.mxu0 0.0
    %1896 = vmatpush1.msra.mxu0 0.0
    %1897 = vmatprep.subr.mxu0 0.0
    %1898 = vmatpush1.msra.mxu0 0.0
    %1899 = vmatprep.subr.mxu0 0.0
    %1900 = vmatpush1.msra.mxu0 0.0
    %1901 = vmatprep.subr.mxu0 0.0
    %1902 = vmatpush1.msra.mxu0 0.0
    %1903 = vmatprep.subr.mxu0 0.0
    %1904 = vmatpush1.msra.mxu0 0.0
    %1905 = vmatprep.subr.mxu0 0.0
    %1906 = vmatpush1.msra.mxu0 0.0
    %1907 = vmatprep.subr.mxu0 0.0
    %1908 = vmatpush1.msra.mxu0 0.0
    %1909 = vmatprep.subr.mxu0 0.0
    %1910 = vmatpush1.msra.mxu0 0.0
    %1911 = vmatprep.subr.mxu0 0.0
    %1912 = vmatpush1.msra.mxu0 0.0
    %1913 = vmatprep.subr.mxu0 0.0
    %1914 = vmatpush1.msra.mxu0 0.0
    %1915 = vmatprep.subr.mxu0 0.0
    %1916 = vmatpush1.msra.mxu0 0.0
    %1917 = vmatprep.subr.mxu0 0.0
    %1918 = vmatpush1.msra.mxu0 0.0
    %1919 = vmatprep.subr.mxu0 0.0
    %1920 = vmatpush1.msra.mxu0 0.0
    %1921 = vmatprep.subr.mxu0 0.0
    %1922 = vmatpush1.msra.mxu0 0.0
    %1923 = vmatprep.subr.mxu0 0.0
    %1924 = vmatpush1.msra.mxu0 0.0
    %1925 = vmatprep.subr.mxu0 0.0
    %1926 = vmatpush1.msra.mxu0 0.0
    %1927 = vmatprep.subr.mxu0 0.0
    %1928 = vmatpush1.msra.mxu0 0.0
    %1929 = vmatprep.subr.mxu0 0.0
    %1930 = vmatpush1.msra.mxu0 0.0
    %1931 = vmatprep.subr.mxu0 0.0
    %1932 = vmatpush1.msra.mxu0 0.0
    %1933 = vmatprep.subr.mxu0 0.0
    %1934 = vmatpush1.msra.mxu0 0.0
    %1935 = vmatprep.subr.mxu0 0.0
    %1936 = vmatpush1.msra.mxu0 0.0
    %1937 = vmatprep.mubr.f32.mxu0 0.0
    %1938 = vmatmul.mubr.f32.gmra.mrb[0].mxu0 %v1871
    %v1939 = vpop.f32.mrb[0].mxu0
    %v1940 = vadd.f32 0.0, %v1939
    %v1941 = vpop.f32.mrb[0].mxu0
    %1942 = vdwg.mxu0
    %v1943 = vadd.f32 %v1797, %v1940
    %v1945 = vlaneseq
    %v1946 = vshrl.u32 %v1945, 7
    %v1947 = vsub.s32 0, %v1946
    %v1948 = vrot.slane %v1577, %v1947
    %v1950 = vadd.f32 %v1943, %v1948
    %v1951 = vmax.f32 %v1950, 0.0
    %v1953 = vlaneseq
    %v1954 = vshrl.u32 %v1953, 7
    %v1955 = vsub.s32 0, %v1954
    %v1956 = vrot.slane %v1582, %v1955
    %v1959 = vsel %vm480, %v1951, 0
    %1961 = vmatprep.subr.mxu0 0.0
    %1962 = vmatpush1.msra.mxu0 %v1578
    %1963 = vmatprep.subr.mxu0 0.0
    %1964 = vmatpush1.msra.mxu0 %v1579
    %1965 = vmatprep.subr.mxu0 0.0
    %1966 = vmatpush1.msra.mxu0 %v1580
    %1967 = vmatprep.subr.mxu0 0.0
    %1968 = vmatpush1.msra.mxu0 %v1581
    %1969 = vmatprep.subr.mxu0 0.0
    %1970 = vmatpush1.msra.mxu0 0.0
    %1971 = vmatprep.subr.mxu0 0.0
    %1972 = vmatpush1.msra.mxu0 0.0
    %1973 = vmatprep.subr.mxu0 0.0
    %1974 = vmatpush1.msra.mxu0 0.0
    %1975 = vmatprep.subr.mxu0 0.0
    %1976 = vmatpush1.msra.mxu0 0.0
    %1977 = vmatprep.subr.mxu0 0.0
    %1978 = vmatpush1.msra.mxu0 0.0
    %1979 = vmatprep.subr.mxu0 0.0
    %1980 = vmatpush1.msra.mxu0 0.0
    %1981 = vmatprep.subr.mxu0 0.0
    %1982 = vmatpush1.msra.mxu0 0.0
    %1983 = vmatprep.subr.mxu0 0.0
    %1984 = vmatpush1.msra.mxu0 0.0
    %1985 = vmatprep.subr.mxu0 0.0
    %1986 = vmatpush1.msra.mxu0 0.0
    %1987 = vmatprep.subr.mxu0 0.0
    %1988 = vmatpush1.msra.mxu0 0.0
    %1989 = vmatprep.subr.mxu0 0.0
    %1990 = vmatpush1.msra.mxu0 0.0
    %1991 = vmatprep.subr.mxu0 0.0
    %1992 = vmatpush1.msra.mxu0 0.0
    %1993 = vmatprep.subr.mxu0 0.0
    %1994 = vmatpush1.msra.mxu0 0.0
    %1995 = vmatprep.subr.mxu0 0.0
    %1996 = vmatpush1.msra.mxu0 0.0
    %1997 = vmatprep.subr.mxu0 0.0
    %1998 = vmatpush1.msra.mxu0 0.0
    %1999 = vmatprep.subr.mxu0 0.0
    %2000 = vmatpush1.msra.mxu0 0.0
    %2001 = vmatprep.subr.mxu0 0.0
    %2002 = vmatpush1.msra.mxu0 0.0
    %2003 = vmatprep.subr.mxu0 0.0
    %2004 = vmatpush1.msra.mxu0 0.0
    %2005 = vmatprep.subr.mxu0 0.0
    %2006 = vmatpush1.msra.mxu0 0.0
    %2007 = vmatprep.subr.mxu0 0.0
    %2008 = vmatpush1.msra.mxu0 0.0
    %2009 = vmatprep.subr.mxu0 0.0
    %2010 = vmatpush1.msra.mxu0 0.0
    %2011 = vmatprep.subr.mxu0 0.0
    %2012 = vmatpush1.msra.mxu0 0.0
    %2013 = vmatprep.subr.mxu0 0.0
    %2014 = vmatpush1.msra.mxu0 0.0
    %2015 = vmatprep.subr.mxu0 0.0
    %2016 = vmatpush1.msra.mxu0 0.0
    %2017 = vmatprep.subr.mxu0 0.0
    %2018 = vmatpush1.msra.mxu0 0.0
    %2019 = vmatprep.subr.mxu0 0.0
    %2020 = vmatpush1.msra.mxu0 0.0
    %2021 = vmatprep.subr.mxu0 0.0
    %2022 = vmatpush1.msra.mxu0 0.0
    %2023 = vmatprep.subr.mxu0 0.0
    %2024 = vmatpush1.msra.mxu0 0.0
    %2025 = vmatprep.mubr.f32.mxu0 0.0
    %2026 = vmatmul.mubr.f32.gmra.mrb[0].mxu0 %v1959
    %v2027 = vpop.f32.mrb[0].mxu0
    %v2028 = vadd.f32 %v1956, %v2027
    %v2029 = vpop.f32.mrb[0].mxu0
    %2030 = vdwg.mxu0
    %v2031 = vadd.f32 %v2028, %v1564
    %v2032 = vld [vmem:[%s8] sm:$0xff]
    %v2033 = vld [vmem:[%s8 + $0x8] sm:$0xff]
    %v2034 = vld [vmem:[%s8 + $0x10] sm:$0xff]
    %v2035 = vld [vmem:[%s8 + $0x18] sm:$0xff]
    %v2036 = vld [vmem:[%s866] sm:$0xff]
    %v2037 = vld [vmem:[%s866 + $0x8] sm:$0xff]
    %v2038 = vld [vmem:[%s866 + $0x10] sm:$0xff]
    %v2039 = vld [vmem:[%s866 + $0x18] sm:$0xff]
    %v2040 = vld [vmem:[%s871] sm:$0xff]
    %v2041 = vld [vmem:[%s871 + $0x8] sm:$0xff]
    %v2042 = vld [vmem:[%s871 + $0x10] sm:$0xff]
    %v2043 = vld [vmem:[%s871 + $0x18] sm:$0xff]
    %v2044 = vld [vmem:[%s9] sm:$0x1]
    %2045 = vmatprep.subr.mxu0 0.0
    %2046 = vmatpush1.msra.mxu0 %v2031
    %2047 = vmatprep.subr.mxu0 0.0
    %2048 = vmatpush1.msra.mxu0 0.0
    %2049 = vmatprep.subr.mxu0 0.0
    %2050 = vmatpush1.msra.mxu0 0.0
    %2051 = vmatprep.subr.mxu0 0.0
    %2052 = vmatpush1.msra.mxu0 0.0
    %2053 = vmatprep.subr.mxu0 0.0
    %2054 = vmatpush1.msra.mxu0 0.0
    %2055 = vmatprep.subr.mxu0 0.0
    %2056 = vmatpush1.msra.mxu0 0.0
    %2057 = vmatprep.subr.mxu0 0.0
    %2058 = vmatpush1.msra.mxu0 0.0
    %2059 = vmatprep.subr.mxu0 0.0
    %2060 = vmatpush1.msra.mxu0 0.0
    %2061 = vmatprep.subr.mxu0 0.0
    %2062 = vmatpush1.msra.mxu0 0.0
    %2063 = vmatprep.subr.mxu0 0.0
    %2064 = vmatpush1.msra.mxu0 0.0
    %2065 = vmatprep.subr.mxu0 0.0
    %2066 = vmatpush1.msra.mxu0 0.0
    %2067 = vmatprep.subr.mxu0 0.0
    %2068 = vmatpush1.msra.mxu0 0.0
    %2069 = vmatprep.subr.mxu0 0.0
    %2070 = vmatpush1.msra.mxu0 0.0
    %2071 = vmatprep.subr.mxu0 0.0
    %2072 = vmatpush1.msra.mxu0 0.0
    %2073 = vmatprep.subr.mxu0 0.0
    %2074 = vmatpush1.msra.mxu0 0.0
    %2075 = vmatprep.subr.mxu0 0.0
    %2076 = vmatpush1.msra.mxu0 0.0
    %2077 = vmatprep.subr.mxu0 0.0
    %2078 = vmatpush1.msra.mxu0 0.0
    %2079 = vmatprep.subr.mxu0 0.0
    %2080 = vmatpush1.msra.mxu0 0.0
    %2081 = vmatprep.subr.mxu0 0.0
    %2082 = vmatpush1.msra.mxu0 0.0
    %2083 = vmatprep.subr.mxu0 0.0
    %2084 = vmatpush1.msra.mxu0 0.0
    %2085 = vmatprep.subr.mxu0 0.0
    %2086 = vmatpush1.msra.mxu0 0.0
    %2087 = vmatprep.subr.mxu0 0.0
    %2088 = vmatpush1.msra.mxu0 0.0
    %2089 = vmatprep.subr.mxu0 0.0
    %2090 = vmatpush1.msra.mxu0 0.0
    %2091 = vmatprep.subr.mxu0 0.0
    %2092 = vmatpush1.msra.mxu0 0.0
    %2093 = vmatprep.subr.mxu0 0.0
    %2094 = vmatpush1.msra.mxu0 0.0
    %2095 = vmatprep.subr.mxu0 0.0
    %2096 = vmatpush1.msra.mxu0 0.0
    %2097 = vmatprep.subr.mxu0 0.0
    %2098 = vmatpush1.msra.mxu0 0.0
    %2099 = vmatprep.subr.mxu0 0.0
    %2100 = vmatpush1.msra.mxu0 0.0
    %2101 = vmatprep.subr.mxu0 0.0
    %2102 = vmatpush1.msra.mxu0 0.0
    %2103 = vmatprep.subr.mxu0 0.0
    %2104 = vmatpush1.msra.mxu0 0.0
    %2105 = vmatprep.subr.mxu0 0.0
    %2106 = vmatpush1.msra.mxu0 0.0
    %2107 = vmatprep.subr.mxu0 0.0
    %2108 = vmatpush1.msra.mxu0 0.0
    %2109 = vmatprep.mubr.f32.mxu0 0.0
    %2110 = vmatmul.mubr.f32.gmra.mrb[0].mxu0 %v408
    %v2111 = vpop.f32.mrb[0].mxu0
    %v2112 = vadd.f32 0.0, %v2111
    %v2113 = vpop.f32.mrb[0].mxu0
    %2114 = vdwg.mxu0
    %v2116 = vsel %vm480, %v2031, 0
    %2118 = vmatprep.subr.mxu0 0.0
    %2119 = vmatpush1.msra.mxu0 %v2036
    %2120 = vmatprep.subr.mxu0 0.0
    %2121 = vmatpush1.msra.mxu0 %v2037
    %2122 = vmatprep.subr.mxu0 0.0
    %2123 = vmatpush1.msra.mxu0 %v2038
    %2124 = vmatprep.subr.mxu0 0.0
    %2125 = vmatpush1.msra.mxu0 %v2039
    %2126 = vmatprep.subr.mxu0 0.0
    %2127 = vmatpush1.msra.mxu0 0.0
    %2128 = vmatprep.subr.mxu0 0.0
    %2129 = vmatpush1.msra.mxu0 0.0
    %2130 = vmatprep.subr.mxu0 0.0
    %2131 = vmatpush1.msra.mxu0 0.0
    %2132 = vmatprep.subr.mxu0 0.0
    %2133 = vmatpush1.msra.mxu0 0.0
    %2134 = vmatprep.subr.mxu0 0.0
    %2135 = vmatpush1.msra.mxu0 0.0
    %2136 = vmatprep.subr.mxu0 0.0
    %2137 = vmatpush1.msra.mxu0 0.0
    %2138 = vmatprep.subr.mxu0 0.0
    %2139 = vmatpush1.msra.mxu0 0.0
    %2140 = vmatprep.subr.mxu0 0.0
    %2141 = vmatpush1.msra.mxu0 0.0
    %2142 = vmatprep.subr.mxu0 0.0
    %2143 = vmatpush1.msra.mxu0 0.0
    %2144 = vmatprep.subr.mxu0 0.0
    %2145 = vmatpush1.msra.mxu0 0.0
    %2146 = vmatprep.subr.mxu0 0.0
    %2147 = vmatpush1.msra.mxu0 0.0
    %2148 = vmatprep.subr.mxu0 0.0
    %2149 = vmatpush1.msra.mxu0 0.0
    %2150 = vmatprep.subr.mxu0 0.0
    %2151 = vmatpush1.msra.mxu0 0.0
    %2152 = vmatprep.subr.mxu0 0.0
    %2153 = vmatpush1.msra.mxu0 0.0
    %2154 = vmatprep.subr.mxu0 0.0
    %2155 = vmatpush1.msra.mxu0 0.0
    %2156 = vmatprep.subr.mxu0 0.0
    %2157 = vmatpush1.msra.mxu0 0.0
    %2158 = vmatprep.subr.mxu0 0.0
    %2159 = vmatpush1.msra.mxu0 0.0
    %2160 = vmatprep.subr.mxu0 0.0
    %2161 = vmatpush1.msra.mxu0 0.0
    %2162 = vmatprep.subr.mxu0 0.0
    %2163 = vmatpush1.msra.mxu0 0.0
    %2164 = vmatprep.subr.mxu0 0.0
    %2165 = vmatpush1.msra.mxu0 0.0
    %2166 = vmatprep.subr.mxu0 0.0
    %2167 = vmatpush1.msra.mxu0 0.0
    %2168 = vmatprep.subr.mxu0 0.0
    %2169 = vmatpush1.msra.mxu0 0.0
    %2170 = vmatprep.subr.mxu0 0.0
    %2171 = vmatpush1.msra.mxu0 0.0
    %2172 = vmatprep.subr.mxu0 0.0
    %2173 = vmatpush1.msra.mxu0 0.0
    %2174 = vmatprep.subr.mxu0 0.0
    %2175 = vmatpush1.msra.mxu0 0.0
    %2176 = vmatprep.subr.mxu0 0.0
    %2177 = vmatpush1.msra.mxu0 0.0
    %2178 = vmatprep.subr.mxu0 0.0
    %2179 = vmatpush1.msra.mxu0 0.0
    %2180 = vmatprep.subr.mxu0 0.0
    %2181 = vmatpush1.msra.mxu0 0.0
    %2182 = vmatprep.mubr.f32.mxu0 0.0
    %2183 = vmatmul.mubr.f32.gmra.mrb[0].mxu0 %v2116
    %v2184 = vpop.f32.mrb[0].mxu0
    %v2185 = vadd.f32 0.0, %v2184
    %v2186 = vpop.f32.mrb[0].mxu0
    %2187 = vdwg.mxu0
    %v2189 = vsel %vm480, %v2112, 0
    %2191 = vmatprep.subr.mxu0 0.0
    %2192 = vmatpush1.msra.mxu0 %v2032
    %2193 = vmatprep.subr.mxu0 0.0
    %2194 = vmatpush1.msra.mxu0 %v2033
    %2195 = vmatprep.subr.mxu0 0.0
    %2196 = vmatpush1.msra.mxu0 %v2034
    %2197 = vmatprep.subr.mxu0 0.0
    %2198 = vmatpush1.msra.mxu0 %v2035
    %2199 = vmatprep.subr.mxu0 0.0
    %2200 = vmatpush1.msra.mxu0 0.0
    %2201 = vmatprep.subr.mxu0 0.0
    %2202 = vmatpush1.msra.mxu0 0.0
    %2203 = vmatprep.subr.mxu0 0.0
    %2204 = vmatpush1.msra.mxu0 0.0
    %2205 = vmatprep.subr.mxu0 0.0
    %2206 = vmatpush1.msra.mxu0 0.0
    %2207 = vmatprep.subr.mxu0 0.0
    %2208 = vmatpush1.msra.mxu0 0.0
    %2209 = vmatprep.subr.mxu0 0.0
    %2210 = vmatpush1.msra.mxu0 0.0
    %2211 = vmatprep.subr.mxu0 0.0
    %2212 = vmatpush1.msra.mxu0 0.0
    %2213 = vmatprep.subr.mxu0 0.0
    %2214 = vmatpush1.msra.mxu0 0.0
    %2215 = vmatprep.subr.mxu0 0.0
    %2216 = vmatpush1.msra.mxu0 0.0
    %2217 = vmatprep.subr.mxu0 0.0
    %2218 = vmatpush1.msra.mxu0 0.0
    %2219 = vmatprep.subr.mxu0 0.0
    %2220 = vmatpush1.msra.mxu0 0.0
    %2221 = vmatprep.subr.mxu0 0.0
    %2222 = vmatpush1.msra.mxu0 0.0
    %2223 = vmatprep.subr.mxu0 0.0
    %2224 = vmatpush1.msra.mxu0 0.0
    %2225 = vmatprep.subr.mxu0 0.0
    %2226 = vmatpush1.msra.mxu0 0.0
    %2227 = vmatprep.subr.mxu0 0.0
    %2228 = vmatpush1.msra.mxu0 0.0
    %2229 = vmatprep.subr.mxu0 0.0
    %2230 = vmatpush1.msra.mxu0 0.0
    %2231 = vmatprep.subr.mxu0 0.0
    %2232 = vmatpush1.msra.mxu0 0.0
    %2233 = vmatprep.subr.mxu0 0.0
    %2234 = vmatpush1.msra.mxu0 0.0
    %2235 = vmatprep.subr.mxu0 0.0
    %2236 = vmatpush1.msra.mxu0 0.0
    %2237 = vmatprep.subr.mxu0 0.0
    %2238 = vmatpush1.msra.mxu0 0.0
    %2239 = vmatprep.subr.mxu0 0.0
    %2240 = vmatpush1.msra.mxu0 0.0
    %2241 = vmatprep.subr.mxu0 0.0
    %2242 = vmatpush1.msra.mxu0 0.0
    %2243 = vmatprep.subr.mxu0 0.0
    %2244 = vmatpush1.msra.mxu0 0.0
    %2245 = vmatprep.subr.mxu0 0.0
    %2246 = vmatpush1.msra.mxu0 0.0
    %2247 = vmatprep.subr.mxu0 0.0
    %2248 = vmatpush1.msra.mxu0 0.0
    %2249 = vmatprep.subr.mxu0 0.0
    %2250 = vmatpush1.msra.mxu0 0.0
    %2251 = vmatprep.subr.mxu0 0.0
    %2252 = vmatpush1.msra.mxu0 0.0
    %2253 = vmatprep.subr.mxu0 0.0
    %2254 = vmatpush1.msra.mxu0 0.0
    %2255 = vmatprep.mubr.f32.mxu0 0.0
    %2256 = vmatmul.mubr.f32.gmra.mrb[0].mxu0 %v2189
    %v2257 = vpop.f32.mrb[0].mxu0
    %v2258 = vadd.f32 %v2185, %v2257
    %v2259 = vpop.f32.mrb[0].mxu0
    %2260 = vdwg.mxu0
    %2261 = vmatprep.subr.mxu0 0.0
    %2262 = vmatpush1.msra.mxu0 %v2031
    %2263 = vmatprep.subr.mxu0 0.0
    %2264 = vmatpush1.msra.mxu0 0.0
    %2265 = vmatprep.subr.mxu0 0.0
    %2266 = vmatpush1.msra.mxu0 0.0
    %2267 = vmatprep.subr.mxu0 0.0
    %2268 = vmatpush1.msra.mxu0 0.0
    %2269 = vmatprep.subr.mxu0 0.0
    %2270 = vmatpush1.msra.mxu0 0.0
    %2271 = vmatprep.subr.mxu0 0.0
    %2272 = vmatpush1.msra.mxu0 0.0
    %2273 = vmatprep.subr.mxu0 0.0
    %2274 = vmatpush1.msra.mxu0 0.0
    %2275 = vmatprep.subr.mxu0 0.0
    %2276 = vmatpush1.msra.mxu0 0.0
    %2277 = vmatprep.subr.mxu0 0.0
    %2278 = vmatpush1.msra.mxu0 0.0
    %2279 = vmatprep.subr.mxu0 0.0
    %2280 = vmatpush1.msra.mxu0 0.0
    %2281 = vmatprep.subr.mxu0 0.0
    %2282 = vmatpush1.msra.mxu0 0.0
    %2283 = vmatprep.subr.mxu0 0.0
    %2284 = vmatpush1.msra.mxu0 0.0
    %2285 = vmatprep.subr.mxu0 0.0
    %2286 = vmatpush1.msra.mxu0 0.0
    %2287 = vmatprep.subr.mxu0 0.0
    %2288 = vmatpush1.msra.mxu0 0.0
    %2289 = vmatprep.subr.mxu0 0.0
    %2290 = vmatpush1.msra.mxu0 0.0
    %2291 = vmatprep.subr.mxu0 0.0
    %2292 = vmatpush1.msra.mxu0 0.0
    %2293 = vmatprep.subr.mxu0 0.0
    %2294 = vmatpush1.msra.mxu0 0.0
    %2295 = vmatprep.subr.mxu0 0.0
    %2296 = vmatpush1.msra.mxu0 0.0
    %2297 = vmatprep.subr.mxu0 0.0
    %2298 = vmatpush1.msra.mxu0 0.0
    %2299 = vmatprep.subr.mxu0 0.0
    %2300 = vmatpush1.msra.mxu0 0.0
    %2301 = vmatprep.subr.mxu0 0.0
    %2302 = vmatpush1.msra.mxu0 0.0
    %2303 = vmatprep.subr.mxu0 0.0
    %2304 = vmatpush1.msra.mxu0 0.0
    %2305 = vmatprep.subr.mxu0 0.0
    %2306 = vmatpush1.msra.mxu0 0.0
    %2307 = vmatprep.subr.mxu0 0.0
    %2308 = vmatpush1.msra.mxu0 0.0
    %2309 = vmatprep.subr.mxu0 0.0
    %2310 = vmatpush1.msra.mxu0 0.0
    %2311 = vmatprep.subr.mxu0 0.0
    %2312 = vmatpush1.msra.mxu0 0.0
    %2313 = vmatprep.subr.mxu0 0.0
    %2314 = vmatpush1.msra.mxu0 0.0
    %2315 = vmatprep.subr.mxu0 0.0
    %2316 = vmatpush1.msra.mxu0 0.0
    %2317 = vmatprep.subr.mxu0 0.0
    %2318 = vmatpush1.msra.mxu0 0.0
    %2319 = vmatprep.subr.mxu0 0.0
    %2320 = vmatpush1.msra.mxu0 0.0
    %2321 = vmatprep.subr.mxu0 0.0
    %2322 = vmatpush1.msra.mxu0 0.0
    %2323 = vmatprep.subr.mxu0 0.0
    %2324 = vmatpush1.msra.mxu0 0.0
    %2325 = vmatprep.mubr.f32.mxu0 0.0
    %2326 = vmatmul.mubr.f32.gmra.mrb[0].mxu0 %v628
    %v2327 = vpop.f32.mrb[0].mxu0
    %v2328 = vadd.f32 0.0, %v2327
    %v2329 = vpop.f32.mrb[0].mxu0
    %2330 = vdwg.mxu0
    %v2332 = vsel %vm480, %v2328, 0
    %2334 = vmatprep.subr.mxu0 0.0
    %2335 = vmatpush1.msra.mxu0 %v2040
    %2336 = vmatprep.subr.mxu0 0.0
    %2337 = vmatpush1.msra.mxu0 %v2041
    %2338 = vmatprep.subr.mxu0 0.0
    %2339 = vmatpush1.msra.mxu0 %v2042
    %2340 = vmatprep.subr.mxu0 0.0
    %2341 = vmatpush1.msra.mxu0 %v2043
    %2342 = vmatprep.subr.mxu0 0.0
    %2343 = vmatpush1.msra.mxu0 0.0
    %2344 = vmatprep.subr.mxu0 0.0
    %2345 = vmatpush1.msra.mxu0 0.0
    %2346 = vmatprep.subr.mxu0 0.0
    %2347 = vmatpush1.msra.mxu0 0.0
    %2348 = vmatprep.subr.mxu0 0.0
    %2349 = vmatpush1.msra.mxu0 0.0
    %2350 = vmatprep.subr.mxu0 0.0
    %2351 = vmatpush1.msra.mxu0 0.0
    %2352 = vmatprep.subr.mxu0 0.0
    %2353 = vmatpush1.msra.mxu0 0.0
    %2354 = vmatprep.subr.mxu0 0.0
    %2355 = vmatpush1.msra.mxu0 0.0
    %2356 = vmatprep.subr.mxu0 0.0
    %2357 = vmatpush1.msra.mxu0 0.0
    %2358 = vmatprep.subr.mxu0 0.0
    %2359 = vmatpush1.msra.mxu0 0.0
    %2360 = vmatprep.subr.mxu0 0.0
    %2361 = vmatpush1.msra.mxu0 0.0
    %2362 = vmatprep.subr.mxu0 0.0
    %2363 = vmatpush1.msra.mxu0 0.0
    %2364 = vmatprep.subr.mxu0 0.0
    %2365 = vmatpush1.msra.mxu0 0.0
    %2366 = vmatprep.subr.mxu0 0.0
    %2367 = vmatpush1.msra.mxu0 0.0
    %2368 = vmatprep.subr.mxu0 0.0
    %2369 = vmatpush1.msra.mxu0 0.0
    %2370 = vmatprep.subr.mxu0 0.0
    %2371 = vmatpush1.msra.mxu0 0.0
    %2372 = vmatprep.subr.mxu0 0.0
    %2373 = vmatpush1.msra.mxu0 0.0
    %2374 = vmatprep.subr.mxu0 0.0
    %2375 = vmatpush1.msra.mxu0 0.0
    %2376 = vmatprep.subr.mxu0 0.0
    %2377 = vmatpush1.msra.mxu0 0.0
    %2378 = vmatprep.subr.mxu0 0.0
    %2379 = vmatpush1.msra.mxu0 0.0
    %2380 = vmatprep.subr.mxu0 0.0
    %2381 = vmatpush1.msra.mxu0 0.0
    %2382 = vmatprep.subr.mxu0 0.0
    %2383 = vmatpush1.msra.mxu0 0.0
    %2384 = vmatprep.subr.mxu0 0.0
    %2385 = vmatpush1.msra.mxu0 0.0
    %2386 = vmatprep.subr.mxu0 0.0
    %2387 = vmatpush1.msra.mxu0 0.0
    %2388 = vmatprep.subr.mxu0 0.0
    %2389 = vmatpush1.msra.mxu0 0.0
    %2390 = vmatprep.subr.mxu0 0.0
    %2391 = vmatpush1.msra.mxu0 0.0
    %2392 = vmatprep.subr.mxu0 0.0
    %2393 = vmatpush1.msra.mxu0 0.0
    %2394 = vmatprep.subr.mxu0 0.0
    %2395 = vmatpush1.msra.mxu0 0.0
    %2396 = vmatprep.subr.mxu0 0.0
    %2397 = vmatpush1.msra.mxu0 0.0
    %2398 = vmatprep.mubr.f32.mxu0 0.0
    %2399 = vmatmul.mubr.f32.gmra.mrb[0].mxu0 %v2332
    %v2400 = vpop.f32.mrb[0].mxu0
    %v2401 = vadd.f32 0.0, %v2400
    %v2402 = vpop.f32.mrb[0].mxu0
    %2403 = vdwg.mxu0
    %v2404 = vadd.f32 %v2258, %v2401
    %v2406 = vlaneseq
    %v2407 = vshrl.u32 %v2406, 7
    %v2408 = vsub.s32 0, %v2407
    %v2409 = vrot.slane %v2044, %v2408
    %v2411 = vadd.f32 %v2404, %v2409
    %2412 = vst.msk [vmem:[#allocation2 + $0x8] sm:$0xff] %vm1244, %v2411
    %v2413 = vld [vmem:[#allocation2] sm:$0xff]
    %v2414 = vld [vmem:[#allocation2 + $0x8] sm:$0xff]
    %v2415 = vld [vmem:[%s10] sm:$0xff]
    %v2416 = vld [vmem:[%s10 + $0x8] sm:$0xff]
    %v2417 = vld [vmem:[%s10 + $0x10] sm:$0xff]
    %v2418 = vld [vmem:[%s10 + $0x18] sm:$0xff]
    %v2419 = vmul.f32 %v2413, %v2413
    %v2420 = vmul.f32 %v2414, %v2414
    %v2421 = vsel %vm1244, %v2419, 0.0
    %2422 = vadd.xlane.f32.xlu0 %v2421
    %v2423 = vpop.xlane.xlu0 %2422
    %v2424 = vsel %vm1244, %v2420, 0.0
    %2425 = vadd.xlane.f32.xlu0 %v2424
    %v2426 = vpop.xlane.xlu0 %2425
    %v2428 = vsel %vm1244, %v2413, 0
    %v2431 = vsel %vm1244, %v2414, 0
    %v2434 = vsel %vm1244, %v2415, 0
    %v2437 = vsel %vm1244, %v2416, 0
    %v2440 = vsel %vm1244, %v2417, 0
    %v2443 = vsel %vm1244, %v2418, 0
    %2445 = vmatprep.subr.mxu0 0.0
    %2446 = vmatpush1.xpose.msra.mxu0 %v2434
    %2447 = vmatprep.subr.mxu0 0.0
    %2448 = vmatpush1.xpose.msra.mxu0 %v2437
    %2449 = vmatprep.subr.mxu0 0.0
    %2450 = vmatpush1.xpose.msra.mxu0 %v2440
    %2451 = vmatprep.subr.mxu0 0.0
    %2452 = vmatpush1.xpose.msra.mxu0 %v2443
    %2453 = vmatprep.subr.mxu0 0.0
    %2454 = vmatpush1.xpose.msra.mxu0 0.0
    %2455 = vmatprep.subr.mxu0 0.0
    %2456 = vmatpush1.xpose.msra.mxu0 0.0
    %2457 = vmatprep.subr.mxu0 0.0
    %2458 = vmatpush1.xpose.msra.mxu0 0.0
    %2459 = vmatprep.subr.mxu0 0.0
    %2460 = vmatpush1.xpose.msra.mxu0 0.0
    %2461 = vmatprep.subr.mxu0 0.0
    %2462 = vmatpush1.xpose.msra.mxu0 0.0
    %2463 = vmatprep.subr.mxu0 0.0
    %2464 = vmatpush1.xpose.msra.mxu0 0.0
    %2465 = vmatprep.subr.mxu0 0.0
    %2466 = vmatpush1.xpose.msra.mxu0 0.0
    %2467 = vmatprep.subr.mxu0 0.0
    %2468 = vmatpush1.xpose.msra.mxu0 0.0
    %2469 = vmatprep.subr.mxu0 0.0
    %2470 = vmatpush1.xpose.msra.mxu0 0.0
    %2471 = vmatprep.subr.mxu0 0.0
    %2472 = vmatpush1.xpose.msra.mxu0 0.0
    %2473 = vmatprep.subr.mxu0 0.0
    %2474 = vmatpush1.xpose.msra.mxu0 0.0
    %2475 = vmatprep.subr.mxu0 0.0
    %2476 = vmatpush1.xpose.msra.mxu0 0.0
    %2477 = vmatprep.subr.mxu0 0.0
    %2478 = vmatpush1.xpose.msra.mxu0 0.0
    %2479 = vmatprep.subr.mxu0 0.0
    %2480 = vmatpush1.xpose.msra.mxu0 0.0
    %2481 = vmatprep.subr.mxu0 0.0
    %2482 = vmatpush1.xpose.msra.mxu0 0.0
    %2483 = vmatprep.subr.mxu0 0.0
    %2484 = vmatpush1.xpose.msra.mxu0 0.0
    %2485 = vmatprep.subr.mxu0 0.0
    %2486 = vmatpush1.xpose.msra.mxu0 0.0
    %2487 = vmatprep.subr.mxu0 0.0
    %2488 = vmatpush1.xpose.msra.mxu0 0.0
    %2489 = vmatprep.subr.mxu0 0.0
    %2490 = vmatpush1.xpose.msra.mxu0 0.0
    %2491 = vmatprep.subr.mxu0 0.0
    %2492 = vmatpush1.xpose.msra.mxu0 0.0
    %2493 = vmatprep.subr.mxu0 0.0
    %2494 = vmatpush1.xpose.msra.mxu0 0.0
    %2495 = vmatprep.subr.mxu0 0.0
    %2496 = vmatpush1.xpose.msra.mxu0 0.0
    %2497 = vmatprep.subr.mxu0 0.0
    %2498 = vmatpush1.xpose.msra.mxu0 0.0
    %2499 = vmatprep.subr.mxu0 0.0
    %2500 = vmatpush1.xpose.msra.mxu0 0.0
    %2501 = vmatprep.subr.mxu0 0.0
    %2502 = vmatpush1.xpose.msra.mxu0 0.0
    %2503 = vmatprep.subr.mxu0 0.0
    %2504 = vmatpush1.xpose.msra.mxu0 0.0
    %2505 = vmatprep.subr.mxu0 0.0
    %2506 = vmatpush1.xpose.msra.mxu0 0.0
    %2507 = vmatprep.subr.mxu0 0.0
    %2508 = vmatpush1.xpose.msra.mxu0 0.0
    %2509 = vmatprep.mubr.f32.mxu0 0.0
    %2510 = vmatmul.mubr.f32.gmra.mrb[0].mxu0 %v2428
    %v2511 = vpop.f32.mrb[0].mxu0
    %v2512 = vadd.f32 0.0, %v2511
    %v2513 = vpop.f32.mrb[0].mxu0
    %2514 = vmatprep.mubr.f32.mxu0 0.0
    %2515 = vmatmul.mubr.f32.gmra.mrb[0].mxu0 %v2431
    %v2516 = vpop.f32.mrb[0].mxu0
    %v2517 = vadd.f32 0.0, %v2516
    %v2518 = vpop.f32.mrb[0].mxu0
    %2519 = vdwg.mxu0
    %v2520 = vmul.f32 %v2512, 2.0
    %v2521 = vmul.f32 %v2517, 2.0
    %v2522 = vsub.f32 %v2423, %v2520
    %v2523 = vsub.f32 %v2426, %v2521
    %v2524 = vld [vmem:[%s11] sm:$0x1]
    %v2526 = vlaneseq
    %v2527 = vshrl.u32 %v2526, 7
    %v2528 = vsub.s32 0, %v2527
    %v2529 = vrot.slane %v2524, %v2528
    %v2531 = vadd.f32 %v2522, %v2529
    %v2532 = vadd.f32 %v2523, %v2529
    %v2533 = vsel %vm480, %v2531, inf
    %2534 = vmin.xlane.f32.xlu0 %v2533
    %v2535 = vpop.xlane.xlu0 %2534
    %v2536 = vsel %vm480, %v2532, inf
    %2537 = vmin.xlane.f32.xlu0 %v2536
    %v2538 = vpop.xlane.xlu0 %2537
    %vm2539 = vcmp.le.f32.partialorder %v2531, %v2535
    %vm2540 = vcmp.le.f32.partialorder %v2532, %v2538
    %v2541 = vsel %vm2539, %v47, 32
    %v2542 = vsel %vm2540, %v47, 32
    %v2543 = vsel %vm480, %v2541, 2147483647
    %v2544 = vand.u32 %v2543, 65535
    %v2545 = vshra.s32 %v2543, 16
    %v2546 = vcvt.s32.f32 %v2544
    %v2547 = vcvt.s32.f32 %v2545
    %2548 = vmin.xlane.f32.xlu0 %v2547
    %v2549 = vpop.xlane.xlu0 %2548
    %vm2550 = vcmp.eq.f32.partialorder %v2547, %v2549
    %v2551 = vsel %vm2550, %v2546, inf
    %2552 = vmin.xlane.f32.xlu0 %v2551
    %v2553 = vpop.xlane.xlu0 %2552
    %v2554 = vcvt.f32.s32 %v2553
    %v2555 = vcvt.f32.s32 %v2549
    %v2556 = vshll.u32 %v2555, 16
    %v2557 = vadd.s32 %v2556, %v2554
    %v2558 = vsel %vm480, %v2542, 2147483647
    %v2559 = vand.u32 %v2558, 65535
    %v2560 = vshra.s32 %v2558, 16
    %v2561 = vcvt.s32.f32 %v2559
    %v2562 = vcvt.s32.f32 %v2560
    %2563 = vmin.xlane.f32.xlu0 %v2562
    %v2564 = vpop.xlane.xlu0 %2563
    %vm2565 = vcmp.eq.f32.partialorder %v2562, %v2564
    %v2566 = vsel %vm2565, %v2561, inf
    %2567 = vmin.xlane.f32.xlu0 %v2566
    %v2568 = vpop.xlane.xlu0 %2567
    %v2569 = vcvt.f32.s32 %v2568
    %v2570 = vcvt.f32.s32 %v2564
    %v2571 = vshll.u32 %v2570, 16
    %v2572 = vadd.s32 %v2571, %v2569
    %vm2573 = vcmp.eq.s32.totalorder %v47, %v2557
    %vm2574 = vcmp.eq.s32.totalorder %v47, %v2572
    %v2575 = vsel %vm2573, 1, 0
    %v2576 = vsel %vm2574, 1, 0
    %v2577 = vcvt.s32.f32 %v2575
    %v2578 = vcvt.s32.f32 %v2576
    %v2580 = vsel %vm480, %v2577, 0
    %v2583 = vsel %vm480, %v2578, 0
    %2585 = vmatprep.subr.mxu0 0.0
    %2586 = vmatpush1.msra.mxu0 %v2415
    %2587 = vmatprep.subr.mxu0 0.0
    %2588 = vmatpush1.msra.mxu0 %v2416
    %2589 = vmatprep.subr.mxu0 0.0
    %2590 = vmatpush1.msra.mxu0 %v2417
    %2591 = vmatprep.subr.mxu0 0.0
    %2592 = vmatpush1.msra.mxu0 %v2418
    %2593 = vmatprep.subr.mxu0 0.0
    %2594 = vmatpush1.msra.mxu0 0.0
    %2595 = vmatprep.subr.mxu0 0.0
    %2596 = vmatpush1.msra.mxu0 0.0
    %2597 = vmatprep.subr.mxu0 0.0
    %2598 = vmatpush1.msra.mxu0 0.0
    %2599 = vmatprep.subr.mxu0 0.0
    %2600 = vmatpush1.msra.mxu0 0.0
    %2601 = vmatprep.subr.mxu0 0.0
    %2602 = vmatpush1.msra.mxu0 0.0
    %2603 = vmatprep.subr.mxu0 0.0
    %2604 = vmatpush1.msra.mxu0 0.0
    %2605 = vmatprep.subr.mxu0 0.0
    %2606 = vmatpush1.msra.mxu0 0.0
    %2607 = vmatprep.subr.mxu0 0.0
    %2608 = vmatpush1.msra.mxu0 0.0
    %2609 = vmatprep.subr.mxu0 0.0
    %2610 = vmatpush1.msra.mxu0 0.0
    %2611 = vmatprep.subr.mxu0 0.0
    %2612 = vmatpush1.msra.mxu0 0.0
    %2613 = vmatprep.subr.mxu0 0.0
    %2614 = vmatpush1.msra.mxu0 0.0
    %2615 = vmatprep.subr.mxu0 0.0
    %2616 = vmatpush1.msra.mxu0 0.0
    %2617 = vmatprep.subr.mxu0 0.0
    %2618 = vmatpush1.msra.mxu0 0.0
    %2619 = vmatprep.subr.mxu0 0.0
    %2620 = vmatpush1.msra.mxu0 0.0
    %2621 = vmatprep.subr.mxu0 0.0
    %2622 = vmatpush1.msra.mxu0 0.0
    %2623 = vmatprep.subr.mxu0 0.0
    %2624 = vmatpush1.msra.mxu0 0.0
    %2625 = vmatprep.subr.mxu0 0.0
    %2626 = vmatpush1.msra.mxu0 0.0
    %2627 = vmatprep.subr.mxu0 0.0
    %2628 = vmatpush1.msra.mxu0 0.0
    %2629 = vmatprep.subr.mxu0 0.0
    %2630 = vmatpush1.msra.mxu0 0.0
    %2631 = vmatprep.subr.mxu0 0.0
    %2632 = vmatpush1.msra.mxu0 0.0
    %2633 = vmatprep.subr.mxu0 0.0
    %2634 = vmatpush1.msra.mxu0 0.0
    %2635 = vmatprep.subr.mxu0 0.0
    %2636 = vmatpush1.msra.mxu0 0.0
    %2637 = vmatprep.subr.mxu0 0.0
    %2638 = vmatpush1.msra.mxu0 0.0
    %2639 = vmatprep.subr.mxu0 0.0
    %2640 = vmatpush1.msra.mxu0 0.0
    %2641 = vmatprep.subr.mxu0 0.0
    %2642 = vmatpush1.msra.mxu0 0.0
    %2643 = vmatprep.subr.mxu0 0.0
    %2644 = vmatpush1.msra.mxu0 0.0
    %2645 = vmatprep.subr.mxu0 0.0
    %2646 = vmatpush1.msra.mxu0 0.0
    %2647 = vmatprep.subr.mxu0 0.0
    %2648 = vmatpush1.msra.mxu0 0.0
    %2649 = vmatprep.mubr.f32.mxu0 0.0
    %2650 = vmatmul.mubr.f32.gmra.mrb[0].mxu0 %v2580
    %v2651 = vpop.f32.mrb[0].mxu0
    %v2652 = vadd.f32 0.0, %v2651
    %v2653 = vpop.f32.mrb[0].mxu0
    %2654 = vmatprep.mubr.f32.mxu0 0.0
    %2655 = vmatmul.mubr.f32.gmra.mrb[0].mxu0 %v2583
    %v2656 = vpop.f32.mrb[0].mxu0
    %v2657 = vadd.f32 0.0, %v2656
    %v2658 = vpop.f32.mrb[0].mxu0
    %2659 = vdwg.mxu0
    %2660 = vst.msk [vmem:[%s12] sm:$0xff] %vm1244, %v2652
    %2661 = vst.msk [vmem:[%s12 + $0x8] sm:$0xff] %vm1244, %v2657
    %v2662 = vsub.f32 %v2652, %v2413
    %v2663 = vsub.f32 %v2657, %v2414
    %v2664 = vmul.f32 %v2662, %v2662
    %v2665 = vmul.f32 %v2663, %v2663
    %v2666 = vsel %vm1244, %v2664, 0.0
    %v2667 = vsel %vm1244, %v2665, 0.0
    %v2668 = vadd.f32 %v2666, %v2667
    %v2669 = vrot.slane %v2668, 4
    %v2670 = vadd.f32 %v2668, %v2669
    %v2671 = vrot.slane %v2670, 2
    %v2672 = vadd.f32 %v2670, %v2671
    %v2673 = vrot.slane %v2672, 1
    %v2674 = vadd.f32 %v2672, %v2673
    %v2675 = vsel %vm1244, %v2674, 0.0
    %2676 = vadd.xlane.f32.xlu0 %v2675
    %v2677 = vpop.xlane.xlu0 %2676
    %v2678 = vrcp.pop 256.0
    %v2679 = vmul.f32 %v2677, %v2678
    %vm2680 = vcmask 0
    %2681 = vst.msk [vmem:[#allocation3] sm:$0x1] %vm2680, %v2679
    // Predicated region
    $region50: #{_lambda_.3} parent=1 // pred_check
      _
    $region51: #{_lambda_.3} parent=1 // pred_check_branch
      %2683 = sbr.rel (0) target = $region53
    $region52: #{_lambda_.3} parent=1 // pred_region
      _
    $region53: #{_lambda_.3} parent=1 // pred_fallthru
      _
    // Predicated region
    $region54: #{_lambda_.3} parent=1 // pred_check
      _
    $region55: #{_lambda_.3} parent=1 // pred_check_branch
      %2685 = sbr.rel (0) target = $region57
    $region56: #{_lambda_.3} parent=1 // pred_region
      %s2687 = ssub.s32 16, 16
      %2688 = vsyncadd [#allocation4], %s2687
      %s2690 = sshll.u32 [#allocation3], 4
      %s2691 = int_to_ptr.vmem [resolvable:$true] %s2690
      %2693 = dma.vmem_to_hbm [thread:$0]  %s2691, 16, %s13, [#allocation4]
    $region57: #{_lambda_.3} parent=1 // pred_fallthru
      _
    // Predicated region
    $region58: #{_lambda_.3} parent=1 // pred_check
      _
    $region59: #{_lambda_.3} parent=1 // pred_check_branch
      %2695 = sbr.rel (0) target = $region61
    $region60: #{_lambda_.3} parent=1 // pred_region
      _
    $region61: #{_lambda_.3} parent=1 // pred_fallthru
      _
    // Predicated region
    $region62: #{_lambda_.3} parent=1 // pred_check
      _
    $region63: #{_lambda_.3} parent=1 // pred_check_branch
      %2697 = sbr.rel (0) target = $region65
    $region64: #{_lambda_.3} parent=1 // pred_region
      %2698 = dma.done [#allocation4], 16
    $region65: #{_lambda_.3} parent=1 // pred_fallthru
      _
    %2699 = vsyncpa [#allocation4], 1

// kernel: _lambda_.4
$region0: #{_lambda_.4}
  #allocation0 [shape = 'u32[]', space=smem, size = 0x4, offset = 0x4, fixed_abs, tag = 'smem constant byte address 0x4 - core index']
  #allocation1 [shape = 'u32[144,128]{1,0:T(1,128)}', space=vmem, size = 0x12000, scoped, tag = 'internal scratch']
  %s0 = inlined_call_operand.vmem [shape: f32[16,16], index: 0, kind: input, shape index: {}]
  %s1 = inlined_call_operand.vmem [shape: f32[2,3,16,32], index: 1, kind: input, shape index: {}]
  %s2 = inlined_call_operand.vmem [shape: f32[2,1,32], index: 2, kind: input, shape index: {}]
  %s3 = inlined_call_operand.vmem [shape: f32[2,3,32,32], index: 3, kind: input, shape index: {}]
  %s4 = inlined_call_operand.vmem [shape: f32[2,1,32], index: 4, kind: input, shape index: {}]
  %s5 = inlined_call_operand.vmem [shape: f32[2,32,32], index: 5, kind: input, shape index: {}]
  %s6 = inlined_call_operand.vmem [shape: f32[2,1,32], index: 6, kind: input, shape index: {}]
  %s7 = inlined_call_operand.vmem [shape: f32[2,4,32,16], index: 7, kind: input, shape index: {}]
  %s8 = inlined_call_operand.vmem [shape: f32[2,1,16], index: 8, kind: input, shape index: {}]
  %s9 = inlined_call_operand.vmem [shape: f32[2,3,16,24], index: 9, kind: input, shape index: {}]
  %s10 = inlined_call_operand.vmem [shape: f32[2,1,24], index: 10, kind: input, shape index: {}]
  %s11 = inlined_call_operand.vmem [shape: f32[2,2,8,24], index: 11, kind: output, shape index: {0}]
  %s12 = inlined_call_operand.vmem [shape: f32[2,2,8,24], index: 12, kind: output, shape index: {1}]
  %13 = xla_tuple %s11, %s12
  %s14 = sld [smem:[#allocation0]]
  $region62: #{_lambda_.4} parent=0
    _
  %s16 = ssub.s32 1, %s14
  %s17 = scalar_select 0, %s16, %s14
  // Predicated region
  $region2: #{_lambda_.4} parent=0 // pred_check
    _
  $region3: #{_lambda_.4} parent=0 // pred_check_branch
    %19 = sbr.rel (0) target = $region5
  $region4: #{_lambda_.4} parent=0 // pred_region
    _
  $region5: #{_lambda_.4} parent=0 // pred_fallthru
    _
  // Predicated region
  $region6: #{_lambda_.4} parent=0 // pred_check
    _
  $region7: #{_lambda_.4} parent=0 // pred_check_branch
    %21 = sbr.rel (0) target = $region9
  $region8: #{_lambda_.4} parent=0 // pred_region
    _
  $region9: #{_lambda_.4} parent=0 // pred_fallthru
    _
  // Predicated region
  $region10: #{_lambda_.4} parent=0 // pred_check
    _
  $region11: #{_lambda_.4} parent=0 // pred_check_branch
    %23 = sbr.rel (0) target = $region13
  $region12: #{_lambda_.4} parent=0 // pred_region
    _
  $region13: #{_lambda_.4} parent=0 // pred_fallthru
    _
  // Predicated region
  $region14: #{_lambda_.4} parent=0 // pred_check
    _
  $region15: #{_lambda_.4} parent=0 // pred_check_branch
    %25 = sbr.rel (0) target = $region17
  $region16: #{_lambda_.4} parent=0 // pred_region
    _
  $region17: #{_lambda_.4} parent=0 // pred_fallthru
    _
  // Predicated region
  $region18: #{_lambda_.4} parent=0 // pred_check
    _
  $region19: #{_lambda_.4} parent=0 // pred_check_branch
    %27 = sbr.rel (0) target = $region21
  $region20: #{_lambda_.4} parent=0 // pred_region
    _
  $region21: #{_lambda_.4} parent=0 // pred_fallthru
    _
  // Predicated region
  $region22: #{_lambda_.4} parent=0 // pred_check
    _
  $region23: #{_lambda_.4} parent=0 // pred_check_branch
    %29 = sbr.rel (0) target = $region25
  $region24: #{_lambda_.4} parent=0 // pred_region
    _
  $region25: #{_lambda_.4} parent=0 // pred_fallthru
    _
  // Predicated region
  $region26: #{_lambda_.4} parent=0 // pred_check
    _
  $region27: #{_lambda_.4} parent=0 // pred_check_branch
    %31 = sbr.rel (0) target = $region29
  $region28: #{_lambda_.4} parent=0 // pred_region
    _
  $region29: #{_lambda_.4} parent=0 // pred_fallthru
    _
  // Predicated region
  $region30: #{_lambda_.4} parent=0 // pred_check
    _
  $region31: #{_lambda_.4} parent=0 // pred_check_branch
    %33 = sbr.rel (0) target = $region33
  $region32: #{_lambda_.4} parent=0 // pred_region
    _
  $region33: #{_lambda_.4} parent=0 // pred_fallthru
    _
  // Predicated region
  $region34: #{_lambda_.4} parent=0 // pred_check
    _
  $region35: #{_lambda_.4} parent=0 // pred_check_branch
    %35 = sbr.rel (0) target = $region37
  $region36: #{_lambda_.4} parent=0 // pred_region
    _
  $region37: #{_lambda_.4} parent=0 // pred_fallthru
    _
  // Predicated region
  $region38: #{_lambda_.4} parent=0 // pred_check
    _
  $region39: #{_lambda_.4} parent=0 // pred_check_branch
    %37 = sbr.rel (0) target = $region41
  $region40: #{_lambda_.4} parent=0 // pred_region
    _
  $region41: #{_lambda_.4} parent=0 // pred_fallthru
    _
  // Predicated region
  $region42: #{_lambda_.4} parent=0 // pred_check
    _
  $region43: #{_lambda_.4} parent=0 // pred_check_branch
    %39 = sbr.rel (0) target = $region45
  $region44: #{_lambda_.4} parent=0 // pred_region
    _
  $region45: #{_lambda_.4} parent=0 // pred_fallthru
    _
  %v40 = vlaneseq
  %v41 = vshrl.u32 %v40, 7
  %v42 = vlaneseq
  %v43 = vand.u32 %v42, 127
  %v44 = vadd.s32 %v43, 1
  %vm45 = vcmp.eq.s32.totalorder %v41, %v44
  %v46 = vsel %vm45, 1, 0
  %v47 = vcvt.s32.f32 %v46
  %v48 = vadd.s32 %v41, 1
  %vm49 = vcmp.eq.s32.totalorder %v48, %v43
  %v50 = vsel %vm49, 1, 0
  %v51 = vcvt.s32.f32 %v50
  %v52 = vld [vmem:[%s0] sm:$0xff]
  %v53 = vld [vmem:[%s0 + $0x8] sm:$0xff]
  %v54 = vld [vmem:[%s1] sm:$0xff]
  %v55 = vld [vmem:[%s1 + $0x8] sm:$0xff]
  %s56 = scalar_lea.vmem %s1, 16
  %v57 = vld [vmem:[%s56] sm:$0xff]
  %v58 = vld [vmem:[%s56 + $0x8] sm:$0xff]
  %s59 = scalar_lea.vmem %s1, 32
  %v60 = vld [vmem:[%s59] sm:$0xff]
  %v61 = vld [vmem:[%s59 + $0x8] sm:$0xff]
  %v62 = vld [vmem:[%s2] sm:$0x1]
  %vm63 = vcmask 64512
  %v65 = vsel %vm63, %v47, 0
  %67 = vmatprep.subr.mxu0 0.0
  %68 = vmatpush1.msra.mxu0 %v52
  %69 = vmatprep.subr.mxu0 0.0
  %70 = vmatpush1.msra.mxu0 0.0
  %71 = vmatprep.subr.mxu0 0.0
  %72 = vmatpush1.msra.mxu0 0.0
  %73 = vmatprep.subr.mxu0 0.0
  %74 = vmatpush1.msra.mxu0 0.0
  %75 = vmatprep.subr.mxu0 0.0
  %76 = vmatpush1.msra.mxu0 0.0
  %77 = vmatprep.subr.mxu0 0.0
  %78 = vmatpush1.msra.mxu0 0.0
  %79 = vmatprep.subr.mxu0 0.0
  %80 = vmatpush1.msra.mxu0 0.0
  %81 = vmatprep.subr.mxu0 0.0
  %82 = vmatpush1.msra.mxu0 0.0
  %83 = vmatprep.subr.mxu0 0.0
  %84 = vmatpush1.msra.mxu0 0.0
  %85 = vmatprep.subr.mxu0 0.0
  %86 = vmatpush1.msra.mxu0 0.0
  %87 = vmatprep.subr.mxu0 0.0
  %88 = vmatpush1.msra.mxu0 0.0
  %89 = vmatprep.subr.mxu0 0.0
  %90 = vmatpush1.msra.mxu0 0.0
  %91 = vmatprep.subr.mxu0 0.0
  %92 = vmatpush1.msra.mxu0 0.0
  %93 = vmatprep.subr.mxu0 0.0
  %94 = vmatpush1.msra.mxu0 0.0
  %95 = vmatprep.subr.mxu0 0.0
  %96 = vmatpush1.msra.mxu0 0.0
  %97 = vmatprep.subr.mxu0 0.0
  %98 = vmatpush1.msra.mxu0 0.0
  %99 = vmatprep.subr.mxu0 0.0
  %100 = vmatpush1.msra.mxu0 0.0
  %101 = vmatprep.subr.mxu0 0.0
  %102 = vmatpush1.msra.mxu0 0.0
  %103 = vmatprep.subr.mxu0 0.0
  %104 = vmatpush1.msra.mxu0 0.0
  %105 = vmatprep.subr.mxu0 0.0
  %106 = vmatpush1.msra.mxu0 0.0
  %107 = vmatprep.subr.mxu0 0.0
  %108 = vmatpush1.msra.mxu0 0.0
  %109 = vmatprep.subr.mxu0 0.0
  %110 = vmatpush1.msra.mxu0 0.0
  %111 = vmatprep.subr.mxu0 0.0
  %112 = vmatpush1.msra.mxu0 0.0
  %113 = vmatprep.subr.mxu0 0.0
  %114 = vmatpush1.msra.mxu0 0.0
  %115 = vmatprep.subr.mxu0 0.0
  %116 = vmatpush1.msra.mxu0 0.0
  %117 = vmatprep.subr.mxu0 0.0
  %118 = vmatpush1.msra.mxu0 0.0
  %119 = vmatprep.subr.mxu0 0.0
  %120 = vmatpush1.msra.mxu0 0.0
  %121 = vmatprep.subr.mxu0 0.0
  %122 = vmatpush1.msra.mxu0 0.0
  %123 = vmatprep.subr.mxu0 0.0
  %124 = vmatpush1.msra.mxu0 0.0
  %125 = vmatprep.subr.mxu0 0.0
  %126 = vmatpush1.msra.mxu0 0.0
  %127 = vmatprep.subr.mxu0 0.0
  %128 = vmatpush1.msra.mxu0 0.0
  %129 = vmatprep.subr.mxu0 0.0
  %130 = vmatpush1.msra.mxu0 0.0
  %131 = vmatprep.mubr.f32.mxu0 0.0
  %132 = vmatmul.mubr.f32.gmra.mrb[0].mxu0 %v65
  %v133 = vpop.f32.mrb[0].mxu0
  %v134 = vadd.f32 0.0, %v133
  %v135 = vpop.f32.mrb[0].mxu0
  %136 = vdwg.mxu0
  %vm137 = vcmask 130048
  %v139 = vsel %vm137, %v52, 0
  %141 = vmatprep.subr.mxu0 0.0
  %142 = vmatpush1.msra.mxu0 %v57
  %143 = vmatprep.subr.mxu0 0.0
  %144 = vmatpush1.msra.mxu0 %v58
  %145 = vmatprep.subr.mxu0 0.0
  %146 = vmatpush1.msra.mxu0 0.0
  %147 = vmatprep.subr.mxu0 0.0
  %148 = vmatpush1.msra.mxu0 0.0
  %149 = vmatprep.subr.mxu0 0.0
  %150 = vmatpush1.msra.mxu0 0.0
  %151 = vmatprep.subr.mxu0 0.0
  %152 = vmatpush1.msra.mxu0 0.0
  %153 = vmatprep.subr.mxu0 0.0
  %154 = vmatpush1.msra.mxu0 0.0
  %155 = vmatprep.subr.mxu0 0.0
  %156 = vmatpush1.msra.mxu0 0.0
  %157 = vmatprep.subr.mxu0 0.0
  %158 = vmatpush1.msra.mxu0 0.0
  %159 = vmatprep.subr.mxu0 0.0
  %160 = vmatpush1.msra.mxu0 0.0
  %161 = vmatprep.subr.mxu0 0.0
  %162 = vmatpush1.msra.mxu0 0.0
  %163 = vmatprep.subr.mxu0 0.0
  %164 = vmatpush1.msra.mxu0 0.0
  %165 = vmatprep.subr.mxu0 0.0
  %166 = vmatpush1.msra.mxu0 0.0
  %167 = vmatprep.subr.mxu0 0.0
  %168 = vmatpush1.msra.mxu0 0.0
  %169 = vmatprep.subr.mxu0 0.0
  %170 = vmatpush1.msra.mxu0 0.0
  %171 = vmatprep.subr.mxu0 0.0
  %172 = vmatpush1.msra.mxu0 0.0
  %173 = vmatprep.subr.mxu0 0.0
  %174 = vmatpush1.msra.mxu0 0.0
  %175 = vmatprep.subr.mxu0 0.0
  %176 = vmatpush1.msra.mxu0 0.0
  %177 = vmatprep.subr.mxu0 0.0
  %178 = vmatpush1.msra.mxu0 0.0
  %179 = vmatprep.subr.mxu0 0.0
  %180 = vmatpush1.msra.mxu0 0.0
  %181 = vmatprep.subr.mxu0 0.0
  %182 = vmatpush1.msra.mxu0 0.0
  %183 = vmatprep.subr.mxu0 0.0
  %184 = vmatpush1.msra.mxu0 0.0
  %185 = vmatprep.subr.mxu0 0.0
  %186 = vmatpush1.msra.mxu0 0.0
  %187 = vmatprep.subr.mxu0 0.0
  %188 = vmatpush1.msra.mxu0 0.0
  %189 = vmatprep.subr.mxu0 0.0
  %190 = vmatpush1.msra.mxu0 0.0
  %191 = vmatprep.subr.mxu0 0.0
  %192 = vmatpush1.msra.mxu0 0.0
  %193 = vmatprep.subr.mxu0 0.0
  %194 = vmatpush1.msra.mxu0 0.0
  %195 = vmatprep.subr.mxu0 0.0
  %196 = vmatpush1.msra.mxu0 0.0
  %197 = vmatprep.subr.mxu0 0.0
  %198 = vmatpush1.msra.mxu0 0.0
  %199 = vmatprep.subr.mxu0 0.0
  %200 = vmatpush1.msra.mxu0 0.0
  %201 = vmatprep.subr.mxu0 0.0
  %202 = vmatpush1.msra.mxu0 0.0
  %203 = vmatprep.subr.mxu0 0.0
  %204 = vmatpush1.msra.mxu0 0.0
  %205 = vmatprep.mubr.f32.mxu0 0.0
  %206 = vmatmul.mubr.f32.gmra.mrb[0].mxu0 %v139
  %v207 = vpop.f32.mrb[0].mxu0
  %v208 = vadd.f32 0.0, %v207
  %v209 = vpop.f32.mrb[0].mxu0
  %210 = vdwg.mxu0
  %v212 = vsel %vm137, %v134, 0
  %214 = vmatprep.subr.mxu0 0.0
  %215 = vmatpush1.msra.mxu0 %v54
  %216 = vmatprep.subr.mxu0 0.0
  %217 = vmatpush1.msra.mxu0 %v55
  %218 = vmatprep.subr.mxu0 0.0
  %219 = vmatpush1.msra.mxu0 0.0
  %220 = vmatprep.subr.mxu0 0.0
  %221 = vmatpush1.msra.mxu0 0.0
  %222 = vmatprep.subr.mxu0 0.0
  %223 = vmatpush1.msra.mxu0 0.0
  %224 = vmatprep.subr.mxu0 0.0
  %225 = vmatpush1.msra.mxu0 0.0
  %226 = vmatprep.subr.mxu0 0.0
  %227 = vmatpush1.msra.mxu0 0.0
  %228 = vmatprep.subr.mxu0 0.0
  %229 = vmatpush1.msra.mxu0 0.0
  %230 = vmatprep.subr.mxu0 0.0
  %231 = vmatpush1.msra.mxu0 0.0
  %232 = vmatprep.subr.mxu0 0.0
  %233 = vmatpush1.msra.mxu0 0.0
  %234 = vmatprep.subr.mxu0 0.0
  %235 = vmatpush1.msra.mxu0 0.0
  %236 = vmatprep.subr.mxu0 0.0
  %237 = vmatpush1.msra.mxu0 0.0
  %238 = vmatprep.subr.mxu0 0.0
  %239 = vmatpush1.msra.mxu0 0.0
  %240 = vmatprep.subr.mxu0 0.0
  %241 = vmatpush1.msra.mxu0 0.0
  %242 = vmatprep.subr.mxu0 0.0
  %243 = vmatpush1.msra.mxu0 0.0
  %244 = vmatprep.subr.mxu0 0.0
  %245 = vmatpush1.msra.mxu0 0.0
  %246 = vmatprep.subr.mxu0 0.0
  %247 = vmatpush1.msra.mxu0 0.0
  %248 = vmatprep.subr.mxu0 0.0
  %249 = vmatpush1.msra.mxu0 0.0
  %250 = vmatprep.subr.mxu0 0.0
  %251 = vmatpush1.msra.mxu0 0.0
  %252 = vmatprep.subr.mxu0 0.0
  %253 = vmatpush1.msra.mxu0 0.0
  %254 = vmatprep.subr.mxu0 0.0
  %255 = vmatpush1.msra.mxu0 0.0
  %256 = vmatprep.subr.mxu0 0.0
  %257 = vmatpush1.msra.mxu0 0.0
  %258 = vmatprep.subr.mxu0 0.0
  %259 = vmatpush1.msra.mxu0 0.0
  %260 = vmatprep.subr.mxu0 0.0
  %261 = vmatpush1.msra.mxu0 0.0
  %262 = vmatprep.subr.mxu0 0.0
  %263 = vmatpush1.msra.mxu0 0.0
  %264 = vmatprep.subr.mxu0 0.0
  %265 = vmatpush1.msra.mxu0 0.0
  %266 = vmatprep.subr.mxu0 0.0
  %267 = vmatpush1.msra.mxu0 0.0
  %268 = vmatprep.subr.mxu0 0.0
  %269 = vmatpush1.msra.mxu0 0.0
  %270 = vmatprep.subr.mxu0 0.0
  %271 = vmatpush1.msra.mxu0 0.0
  %272 = vmatprep.subr.mxu0 0.0
  %273 = vmatpush1.msra.mxu0 0.0
  %274 = vmatprep.subr.mxu0 0.0
  %275 = vmatpush1.msra.mxu0 0.0
  %276 = vmatprep.subr.mxu0 0.0
  %277 = vmatpush1.msra.mxu0 0.0
  %278 = vmatprep.mubr.f32.mxu0 0.0
  %279 = vmatmul.mubr.f32.gmra.mrb[0].mxu0 %v212
  %v280 = vpop.f32.mrb[0].mxu0
  %v281 = vadd.f32 %v208, %v280
  %v282 = vpop.f32.mrb[0].mxu0
  %283 = vdwg.mxu0
  %v285 = vsel %vm63, %v51, 0
  %287 = vmatprep.subr.mxu0 0.0
  %288 = vmatpush1.msra.mxu0 %v52
  %289 = vmatprep.subr.mxu0 0.0
  %290 = vmatpush1.msra.mxu0 0.0
  %291 = vmatprep.subr.mxu0 0.0
  %292 = vmatpush1.msra.mxu0 0.0
  %293 = vmatprep.subr.mxu0 0.0
  %294 = vmatpush1.msra.mxu0 0.0
  %295 = vmatprep.subr.mxu0 0.0
  %296 = vmatpush1.msra.mxu0 0.0
  %297 = vmatprep.subr.mxu0 0.0
  %298 = vmatpush1.msra.mxu0 0.0
  %299 = vmatprep.subr.mxu0 0.0
  %300 = vmatpush1.msra.mxu0 0.0
  %301 = vmatprep.subr.mxu0 0.0
  %302 = vmatpush1.msra.mxu0 0.0
  %303 = vmatprep.subr.mxu0 0.0
  %304 = vmatpush1.msra.mxu0 0.0
  %305 = vmatprep.subr.mxu0 0.0
  %306 = vmatpush1.msra.mxu0 0.0
  %307 = vmatprep.subr.mxu0 0.0
  %308 = vmatpush1.msra.mxu0 0.0
  %309 = vmatprep.subr.mxu0 0.0
  %310 = vmatpush1.msra.mxu0 0.0
  %311 = vmatprep.subr.mxu0 0.0
  %312 = vmatpush1.msra.mxu0 0.0
  %313 = vmatprep.subr.mxu0 0.0
  %314 = vmatpush1.msra.mxu0 0.0
  %315 = vmatprep.subr.mxu0 0.0
  %316 = vmatpush1.msra.mxu0 0.0
  %317 = vmatprep.subr.mxu0 0.0
  %318 = vmatpush1.msra.mxu0 0.0
  %319 = vmatprep.subr.mxu0 0.0
  %320 = vmatpush1.msra.mxu0 0.0
  %321 = vmatprep.subr.mxu0 0.0
  %322 = vmatpush1.msra.mxu0 0.0
  %323 = vmatprep.subr.mxu0 0.0
  %324 = vmatpush1.msra.mxu0 0.0
  %325 = vmatprep.subr.mxu0 0.0
  %326 = vmatpush1.msra.mxu0 0.0
  %327 = vmatprep.subr.mxu0 0.0
  %328 = vmatpush1.msra.mxu0 0.0
  %329 = vmatprep.subr.mxu0 0.0
  %330 = vmatpush1.msra.mxu0 0.0
  %331 = vmatprep.subr.mxu0 0.0
  %332 = vmatpush1.msra.mxu0 0.0
  %333 = vmatprep.subr.mxu0 0.0
  %334 = vmatpush1.msra.mxu0 0.0
  %335 = vmatprep.subr.mxu0 0.0
  %336 = vmatpush1.msra.mxu0 0.0
  %337 = vmatprep.subr.mxu0 0.0
  %338 = vmatpush1.msra.mxu0 0.0
  %339 = vmatprep.subr.mxu0 0.0
  %340 = vmatpush1.msra.mxu0 0.0
  %341 = vmatprep.subr.mxu0 0.0
  %342 = vmatpush1.msra.mxu0 0.0
  %343 = vmatprep.subr.mxu0 0.0
  %344 = vmatpush1.msra.mxu0 0.0
  %345 = vmatprep.subr.mxu0 0.0
  %346 = vmatpush1.msra.mxu0 0.0
  %347 = vmatprep.subr.mxu0 0.0
  %348 = vmatpush1.msra.mxu0 0.0
  %349 = vmatprep.subr.mxu0 0.0
  %350 = vmatpush1.msra.mxu0 0.0
  %351 = vmatprep.mubr.f32.mxu0 0.0
  %352 = vmatmul.mubr.f32.gmra.mrb[0].mxu0 %v285
  %v353 = vpop.f32.mrb[0].mxu0
  %v354 = vadd.f32 0.0, %v353
  %v355 = vpop.f32.mrb[0].mxu0
  %356 = vdwg.mxu0
  %v358 = vsel %vm137, %v354, 0
  %360 = vmatprep.subr.mxu0 0.0
  %361 = vmatpush1.msra.mxu0 %v60
  %362 = vmatprep.subr.mxu0 0.0
  %363 = vmatpush1.msra.mxu0 %v61
  %364 = vmatprep.subr.mxu0 0.0
  %365 = vmatpush1.msra.mxu0 0.0
  %366 = vmatprep.subr.mxu0 0.0
  %367 = vmatpush1.msra.mxu0 0.0
  %368 = vmatprep.subr.mxu0 0.0
  %369 = vmatpush1.msra.mxu0 0.0
  %370 = vmatprep.subr.mxu0 0.0
  %371 = vmatpush1.msra.mxu0 0.0
  %372 = vmatprep.subr.mxu0 0.0
  %373 = vmatpush1.msra.mxu0 0.0
  %374 = vmatprep.subr.mxu0 0.0
  %375 = vmatpush1.msra.mxu0 0.0
  %376 = vmatprep.subr.mxu0 0.0
  %377 = vmatpush1.msra.mxu0 0.0
  %378 = vmatprep.subr.mxu0 0.0
  %379 = vmatpush1.msra.mxu0 0.0
  %380 = vmatprep.subr.mxu0 0.0
  %381 = vmatpush1.msra.mxu0 0.0
  %382 = vmatprep.subr.mxu0 0.0
  %383 = vmatpush1.msra.mxu0 0.0
  %384 = vmatprep.subr.mxu0 0.0
  %385 = vmatpush1.msra.mxu0 0.0
  %386 = vmatprep.subr.mxu0 0.0
  %387 = vmatpush1.msra.mxu0 0.0
  %388 = vmatprep.subr.mxu0 0.0
  %389 = vmatpush1.msra.mxu0 0.0
  %390 = vmatprep.subr.mxu0 0.0
  %391 = vmatpush1.msra.mxu0 0.0
  %392 = vmatprep.subr.mxu0 0.0
  %393 = vmatpush1.msra.mxu0 0.0
  %394 = vmatprep.subr.mxu0 0.0
  %395 = vmatpush1.msra.mxu0 0.0
  %396 = vmatprep.subr.mxu0 0.0
  %397 = vmatpush1.msra.mxu0 0.0
  %398 = vmatprep.subr.mxu0 0.0
  %399 = vmatpush1.msra.mxu0 0.0
  %400 = vmatprep.subr.mxu0 0.0
  %401 = vmatpush1.msra.mxu0 0.0
  %402 = vmatprep.subr.mxu0 0.0
  %403 = vmatpush1.msra.mxu0 0.0
  %404 = vmatprep.subr.mxu0 0.0
  %405 = vmatpush1.msra.mxu0 0.0
  %406 = vmatprep.subr.mxu0 0.0
  %407 = vmatpush1.msra.mxu0 0.0
  %408 = vmatprep.subr.mxu0 0.0
  %409 = vmatpush1.msra.mxu0 0.0
  %410 = vmatprep.subr.mxu0 0.0
  %411 = vmatpush1.msra.mxu0 0.0
  %412 = vmatprep.subr.mxu0 0.0
  %413 = vmatpush1.msra.mxu0 0.0
  %414 = vmatprep.subr.mxu0 0.0
  %415 = vmatpush1.msra.mxu0 0.0
  %416 = vmatprep.subr.mxu0 0.0
  %417 = vmatpush1.msra.mxu0 0.0
  %418 = vmatprep.subr.mxu0 0.0
  %419 = vmatpush1.msra.mxu0 0.0
  %420 = vmatprep.subr.mxu0 0.0
  %421 = vmatpush1.msra.mxu0 0.0
  %422 = vmatprep.subr.mxu0 0.0
  %423 = vmatpush1.msra.mxu0 0.0
  %424 = vmatprep.mubr.f32.mxu0 0.0
  %425 = vmatmul.mubr.f32.gmra.mrb[0].mxu0 %v358
  %v426 = vpop.f32.mrb[0].mxu0
  %v427 = vadd.f32 0.0, %v426
  %v428 = vpop.f32.mrb[0].mxu0
  %429 = vdwg.mxu0
  %v430 = vadd.f32 %v281, %v427
  %v432 = vlaneseq
  %v433 = vshrl.u32 %v432, 7
  %v434 = vsub.s32 0, %v433
  %v435 = vrot.slane %v62, %v434
  %v437 = vadd.f32 %v430, %v435
  %v438 = vld [vmem:[%s3] sm:$0xff]
  %v439 = vld [vmem:[%s3 + $0x8] sm:$0xff]
  %v440 = vld [vmem:[%s3 + $0x10] sm:$0xff]
  %v441 = vld [vmem:[%s3 + $0x18] sm:$0xff]
  %s442 = scalar_lea.vmem %s3, 32
  %v443 = vld [vmem:[%s442] sm:$0xff]
  %v444 = vld [vmem:[%s442 + $0x8] sm:$0xff]
  %v445 = vld [vmem:[%s442 + $0x10] sm:$0xff]
  %v446 = vld [vmem:[%s442 + $0x18] sm:$0xff]
  %s447 = scalar_lea.vmem %s3, 64
  %v448 = vld [vmem:[%s447] sm:$0xff]
  %v449 = vld [vmem:[%s447 + $0x8] sm:$0xff]
  %v450 = vld [vmem:[%s447 + $0x10] sm:$0xff]
  %v451 = vld [vmem:[%s447 + $0x18] sm:$0xff]
  %v452 = vld [vmem:[%s4] sm:$0x1]
  %v453 = vld [vmem:[%s5] sm:$0xff]
  %v454 = vld [vmem:[%s5 + $0x8] sm:$0xff]
  %v455 = vld [vmem:[%s5 + $0x10] sm:$0xff]
  %v456 = vld [vmem:[%s5 + $0x18] sm:$0xff]
  %v457 = vld [vmem:[%s6] sm:$0x1]
  %v458 = vmax.f32 %v437, 0.0
  %459 = vmatprep.subr.mxu0 0.0
  %460 = vmatpush1.msra.mxu0 %v458
  %461 = vmatprep.subr.mxu0 0.0
  %462 = vmatpush1.msra.mxu0 0.0
  %463 = vmatprep.subr.mxu0 0.0
  %464 = vmatpush1.msra.mxu0 0.0
  %465 = vmatprep.subr.mxu0 0.0
  %466 = vmatpush1.msra.mxu0 0.0
  %467 = vmatprep.subr.mxu0 0.0
  %468 = vmatpush1.msra.mxu0 0.0
  %469 = vmatprep.subr.mxu0 0.0
  %470 = vmatpush1.msra.mxu0 0.0
  %471 = vmatprep.subr.mxu0 0.0
  %472 = vmatpush1.msra.mxu0 0.0
  %473 = vmatprep.subr.mxu0 0.0
  %474 = vmatpush1.msra.mxu0 0.0
  %475 = vmatprep.subr.mxu0 0.0
  %476 = vmatpush1.msra.mxu0 0.0
  %477 = vmatprep.subr.mxu0 0.0
  %478 = vmatpush1.msra.mxu0 0.0
  %479 = vmatprep.subr.mxu0 0.0
  %480 = vmatpush1.msra.mxu0 0.0
  %481 = vmatprep.subr.mxu0 0.0
  %482 = vmatpush1.msra.mxu0 0.0
  %483 = vmatprep.subr.mxu0 0.0
  %484 = vmatpush1.msra.mxu0 0.0
  %485 = vmatprep.subr.mxu0 0.0
  %486 = vmatpush1.msra.mxu0 0.0
  %487 = vmatprep.subr.mxu0 0.0
  %488 = vmatpush1.msra.mxu0 0.0
  %489 = vmatprep.subr.mxu0 0.0
  %490 = vmatpush1.msra.mxu0 0.0
  %491 = vmatprep.subr.mxu0 0.0
  %492 = vmatpush1.msra.mxu0 0.0
  %493 = vmatprep.subr.mxu0 0.0
  %494 = vmatpush1.msra.mxu0 0.0
  %495 = vmatprep.subr.mxu0 0.0
  %496 = vmatpush1.msra.mxu0 0.0
  %497 = vmatprep.subr.mxu0 0.0
  %498 = vmatpush1.msra.mxu0 0.0
  %499 = vmatprep.subr.mxu0 0.0
  %500 = vmatpush1.msra.mxu0 0.0
  %501 = vmatprep.subr.mxu0 0.0
  %502 = vmatpush1.msra.mxu0 0.0
  %503 = vmatprep.subr.mxu0 0.0
  %504 = vmatpush1.msra.mxu0 0.0
  %505 = vmatprep.subr.mxu0 0.0
  %506 = vmatpush1.msra.mxu0 0.0
  %507 = vmatprep.subr.mxu0 0.0
  %508 = vmatpush1.msra.mxu0 0.0
  %509 = vmatprep.subr.mxu0 0.0
  %510 = vmatpush1.msra.mxu0 0.0
  %511 = vmatprep.subr.mxu0 0.0
  %512 = vmatpush1.msra.mxu0 0.0
  %513 = vmatprep.subr.mxu0 0.0
  %514 = vmatpush1.msra.mxu0 0.0
  %515 = vmatprep.subr.mxu0 0.0
  %516 = vmatpush1.msra.mxu0 0.0
  %517 = vmatprep.subr.mxu0 0.0
  %518 = vmatpush1.msra.mxu0 0.0
  %519 = vmatprep.subr.mxu0 0.0
  %520 = vmatpush1.msra.mxu0 0.0
  %521 = vmatprep.subr.mxu0 0.0
  %522 = vmatpush1.msra.mxu0 0.0
  %523 = vmatprep.mubr.f32.mxu0 0.0
  %524 = vmatmul.mubr.f32.gmra.mrb[0].mxu0 %v65
  %v525 = vpop.f32.mrb[0].mxu0
  %v526 = vadd.f32 0.0, %v525
  %v527 = vpop.f32.mrb[0].mxu0
  %528 = vdwg.mxu0
  %vm529 = vcmask 261120
  %v531 = vsel %vm529, %v458, 0
  %533 = vmatprep.subr.mxu0 0.0
  %534 = vmatpush1.msra.mxu0 %v443
  %535 = vmatprep.subr.mxu0 0.0
  %536 = vmatpush1.msra.mxu0 %v444
  %537 = vmatprep.subr.mxu0 0.0
  %538 = vmatpush1.msra.mxu0 %v445
  %539 = vmatprep.subr.mxu0 0.0
  %540 = vmatpush1.msra.mxu0 %v446
  %541 = vmatprep.subr.mxu0 0.0
  %542 = vmatpush1.msra.mxu0 0.0
  %543 = vmatprep.subr.mxu0 0.0
  %544 = vmatpush1.msra.mxu0 0.0
  %545 = vmatprep.subr.mxu0 0.0
  %546 = vmatpush1.msra.mxu0 0.0
  %547 = vmatprep.subr.mxu0 0.0
  %548 = vmatpush1.msra.mxu0 0.0
  %549 = vmatprep.subr.mxu0 0.0
  %550 = vmatpush1.msra.mxu0 0.0
  %551 = vmatprep.subr.mxu0 0.0
  %552 = vmatpush1.msra.mxu0 0.0
  %553 = vmatprep.subr.mxu0 0.0
  %554 = vmatpush1.msra.mxu0 0.0
  %555 = vmatprep.subr.mxu0 0.0
  %556 = vmatpush1.msra.mxu0 0.0
  %557 = vmatprep.subr.mxu0 0.0
  %558 = vmatpush1.msra.mxu0 0.0
  %559 = vmatprep.subr.mxu0 0.0
  %560 = vmatpush1.msra.mxu0 0.0
  %561 = vmatprep.subr.mxu0 0.0
  %562 = vmatpush1.msra.mxu0 0.0
  %563 = vmatprep.subr.mxu0 0.0
  %564 = vmatpush1.msra.mxu0 0.0
  %565 = vmatprep.subr.mxu0 0.0
  %566 = vmatpush1.msra.mxu0 0.0
  %567 = vmatprep.subr.mxu0 0.0
  %568 = vmatpush1.msra.mxu0 0.0
  %569 = vmatprep.subr.mxu0 0.0
  %570 = vmatpush1.msra.mxu0 0.0
  %571 = vmatprep.subr.mxu0 0.0
  %572 = vmatpush1.msra.mxu0 0.0
  %573 = vmatprep.subr.mxu0 0.0
  %574 = vmatpush1.msra.mxu0 0.0
  %575 = vmatprep.subr.mxu0 0.0
  %576 = vmatpush1.msra.mxu0 0.0
  %577 = vmatprep.subr.mxu0 0.0
  %578 = vmatpush1.msra.mxu0 0.0
  %579 = vmatprep.subr.mxu0 0.0
  %580 = vmatpush1.msra.mxu0 0.0
  %581 = vmatprep.subr.mxu0 0.0
  %582 = vmatpush1.msra.mxu0 0.0
  %583 = vmatprep.subr.mxu0 0.0
  %584 = vmatpush1.msra.mxu0 0.0
  %585 = vmatprep.subr.mxu0 0.0
  %586 = vmatpush1.msra.mxu0 0.0
  %587 = vmatprep.subr.mxu0 0.0
  %588 = vmatpush1.msra.mxu0 0.0
  %589 = vmatprep.subr.mxu0 0.0
  %590 = vmatpush1.msra.mxu0 0.0
  %591 = vmatprep.subr.mxu0 0.0
  %592 = vmatpush1.msra.mxu0 0.0
  %593 = vmatprep.subr.mxu0 0.0
  %594 = vmatpush1.msra.mxu0 0.0
  %595 = vmatprep.subr.mxu0 0.0
  %596 = vmatpush1.msra.mxu0 0.0
  %597 = vmatprep.mubr.f32.mxu0 0.0
  %598 = vmatmul.mubr.f32.gmra.mrb[0].mxu0 %v531
  %v599 = vpop.f32.mrb[0].mxu0
  %v600 = vadd.f32 0.0, %v599
  %v601 = vpop.f32.mrb[0].mxu0
  %602 = vdwg.mxu0
  %v604 = vsel %vm529, %v526, 0
  %606 = vmatprep.subr.mxu0 0.0
  %607 = vmatpush1.msra.mxu0 %v438
  %608 = vmatprep.subr.mxu0 0.0
  %609 = vmatpush1.msra.mxu0 %v439
  %610 = vmatprep.subr.mxu0 0.0
  %611 = vmatpush1.msra.mxu0 %v440
  %612 = vmatprep.subr.mxu0 0.0
  %613 = vmatpush1.msra.mxu0 %v441
  %614 = vmatprep.subr.mxu0 0.0
  %615 = vmatpush1.msra.mxu0 0.0
  %616 = vmatprep.subr.mxu0 0.0
  %617 = vmatpush1.msra.mxu0 0.0
  %618 = vmatprep.subr.mxu0 0.0
  %619 = vmatpush1.msra.mxu0 0.0
  %620 = vmatprep.subr.mxu0 0.0
  %621 = vmatpush1.msra.mxu0 0.0
  %622 = vmatprep.subr.mxu0 0.0
  %623 = vmatpush1.msra.mxu0 0.0
  %624 = vmatprep.subr.mxu0 0.0
  %625 = vmatpush1.msra.mxu0 0.0
  %626 = vmatprep.subr.mxu0 0.0
  %627 = vmatpush1.msra.mxu0 0.0
  %628 = vmatprep.subr.mxu0 0.0
  %629 = vmatpush1.msra.mxu0 0.0
  %630 = vmatprep.subr.mxu0 0.0
  %631 = vmatpush1.msra.mxu0 0.0
  %632 = vmatprep.subr.mxu0 0.0
  %633 = vmatpush1.msra.mxu0 0.0
  %634 = vmatprep.subr.mxu0 0.0
  %635 = vmatpush1.msra.mxu0 0.0
  %636 = vmatprep.subr.mxu0 0.0
  %637 = vmatpush1.msra.mxu0 0.0
  %638 = vmatprep.subr.mxu0 0.0
  %639 = vmatpush1.msra.mxu0 0.0
  %640 = vmatprep.subr.mxu0 0.0
  %641 = vmatpush1.msra.mxu0 0.0
  %642 = vmatprep.subr.mxu0 0.0
  %643 = vmatpush1.msra.mxu0 0.0
  %644 = vmatprep.subr.mxu0 0.0
  %645 = vmatpush1.msra.mxu0 0.0
  %646 = vmatprep.subr.mxu0 0.0
  %647 = vmatpush1.msra.mxu0 0.0
  %648 = vmatprep.subr.mxu0 0.0
  %649 = vmatpush1.msra.mxu0 0.0
  %650 = vmatprep.subr.mxu0 0.0
  %651 = vmatpush1.msra.mxu0 0.0
  %652 = vmatprep.subr.mxu0 0.0
  %653 = vmatpush1.msra.mxu0 0.0
  %654 = vmatprep.subr.mxu0 0.0
  %655 = vmatpush1.msra.mxu0 0.0
  %656 = vmatprep.subr.mxu0 0.0
  %657 = vmatpush1.msra.mxu0 0.0
  %658 = vmatprep.subr.mxu0 0.0
  %659 = vmatpush1.msra.mxu0 0.0
  %660 = vmatprep.subr.mxu0 0.0
  %661 = vmatpush1.msra.mxu0 0.0
  %662 = vmatprep.subr.mxu0 0.0
  %663 = vmatpush1.msra.mxu0 0.0
  %664 = vmatprep.subr.mxu0 0.0
  %665 = vmatpush1.msra.mxu0 0.0
  %666 = vmatprep.subr.mxu0 0.0
  %667 = vmatpush1.msra.mxu0 0.0
  %668 = vmatprep.subr.mxu0 0.0
  %669 = vmatpush1.msra.mxu0 0.0
  %670 = vmatprep.mubr.f32.mxu0 0.0
  %671 = vmatmul.mubr.f32.gmra.mrb[0].mxu0 %v604
  %v672 = vpop.f32.mrb[0].mxu0
  %v673 = vadd.f32 %v600, %v672
  %v674 = vpop.f32.mrb[0].mxu0
  %675 = vdwg.mxu0
  %676 = vmatprep.subr.mxu0 0.0
  %677 = vmatpush1.msra.mxu0 %v458
  %678 = vmatprep.subr.mxu0 0.0
  %679 = vmatpush1.msra.mxu0 0.0
  %680 = vmatprep.subr.mxu0 0.0
  %681 = vmatpush1.msra.mxu0 0.0
  %682 = vmatprep.subr.mxu0 0.0
  %683 = vmatpush1.msra.mxu0 0.0
  %684 = vmatprep.subr.mxu0 0.0
  %685 = vmatpush1.msra.mxu0 0.0
  %686 = vmatprep.subr.mxu0 0.0
  %687 = vmatpush1.msra.mxu0 0.0
  %688 = vmatprep.subr.mxu0 0.0
  %689 = vmatpush1.msra.mxu0 0.0
  %690 = vmatprep.subr.mxu0 0.0
  %691 = vmatpush1.msra.mxu0 0.0
  %692 = vmatprep.subr.mxu0 0.0
  %693 = vmatpush1.msra.mxu0 0.0
  %694 = vmatprep.subr.mxu0 0.0
  %695 = vmatpush1.msra.mxu0 0.0
  %696 = vmatprep.subr.mxu0 0.0
  %697 = vmatpush1.msra.mxu0 0.0
  %698 = vmatprep.subr.mxu0 0.0
  %699 = vmatpush1.msra.mxu0 0.0
  %700 = vmatprep.subr.mxu0 0.0
  %701 = vmatpush1.msra.mxu0 0.0
  %702 = vmatprep.subr.mxu0 0.0
  %703 = vmatpush1.msra.mxu0 0.0
  %704 = vmatprep.subr.mxu0 0.0
  %705 = vmatpush1.msra.mxu0 0.0
  %706 = vmatprep.subr.mxu0 0.0
  %707 = vmatpush1.msra.mxu0 0.0
  %708 = vmatprep.subr.mxu0 0.0
  %709 = vmatpush1.msra.mxu0 0.0
  %710 = vmatprep.subr.mxu0 0.0
  %711 = vmatpush1.msra.mxu0 0.0
  %712 = vmatprep.subr.mxu0 0.0
  %713 = vmatpush1.msra.mxu0 0.0
  %714 = vmatprep.subr.mxu0 0.0
  %715 = vmatpush1.msra.mxu0 0.0
  %716 = vmatprep.subr.mxu0 0.0
  %717 = vmatpush1.msra.mxu0 0.0
  %718 = vmatprep.subr.mxu0 0.0
  %719 = vmatpush1.msra.mxu0 0.0
  %720 = vmatprep.subr.mxu0 0.0
  %721 = vmatpush1.msra.mxu0 0.0
  %722 = vmatprep.subr.mxu0 0.0
  %723 = vmatpush1.msra.mxu0 0.0
  %724 = vmatprep.subr.mxu0 0.0
  %725 = vmatpush1.msra.mxu0 0.0
  %726 = vmatprep.subr.mxu0 0.0
  %727 = vmatpush1.msra.mxu0 0.0
  %728 = vmatprep.subr.mxu0 0.0
  %729 = vmatpush1.msra.mxu0 0.0
  %730 = vmatprep.subr.mxu0 0.0
  %731 = vmatpush1.msra.mxu0 0.0
  %732 = vmatprep.subr.mxu0 0.0
  %733 = vmatpush1.msra.mxu0 0.0
  %734 = vmatprep.subr.mxu0 0.0
  %735 = vmatpush1.msra.mxu0 0.0
  %736 = vmatprep.subr.mxu0 0.0
  %737 = vmatpush1.msra.mxu0 0.0
  %738 = vmatprep.subr.mxu0 0.0
  %739 = vmatpush1.msra.mxu0 0.0
  %740 = vmatprep.mubr.f32.mxu0 0.0
  %741 = vmatmul.mubr.f32.gmra.mrb[0].mxu0 %v285
  %v742 = vpop.f32.mrb[0].mxu0
  %v743 = vadd.f32 0.0, %v742
  %v744 = vpop.f32.mrb[0].mxu0
  %745 = vdwg.mxu0
  %v747 = vsel %vm529, %v743, 0
  %749 = vmatprep.subr.mxu0 0.0
  %750 = vmatpush1.msra.mxu0 %v448
  %751 = vmatprep.subr.mxu0 0.0
  %752 = vmatpush1.msra.mxu0 %v449
  %753 = vmatprep.subr.mxu0 0.0
  %754 = vmatpush1.msra.mxu0 %v450
  %755 = vmatprep.subr.mxu0 0.0
  %756 = vmatpush1.msra.mxu0 %v451
  %757 = vmatprep.subr.mxu0 0.0
  %758 = vmatpush1.msra.mxu0 0.0
  %759 = vmatprep.subr.mxu0 0.0
  %760 = vmatpush1.msra.mxu0 0.0
  %761 = vmatprep.subr.mxu0 0.0
  %762 = vmatpush1.msra.mxu0 0.0
  %763 = vmatprep.subr.mxu0 0.0
  %764 = vmatpush1.msra.mxu0 0.0
  %765 = vmatprep.subr.mxu0 0.0
  %766 = vmatpush1.msra.mxu0 0.0
  %767 = vmatprep.subr.mxu0 0.0
  %768 = vmatpush1.msra.mxu0 0.0
  %769 = vmatprep.subr.mxu0 0.0
  %770 = vmatpush1.msra.mxu0 0.0
  %771 = vmatprep.subr.mxu0 0.0
  %772 = vmatpush1.msra.mxu0 0.0
  %773 = vmatprep.subr.mxu0 0.0
  %774 = vmatpush1.msra.mxu0 0.0
  %775 = vmatprep.subr.mxu0 0.0
  %776 = vmatpush1.msra.mxu0 0.0
  %777 = vmatprep.subr.mxu0 0.0
  %778 = vmatpush1.msra.mxu0 0.0
  %779 = vmatprep.subr.mxu0 0.0
  %780 = vmatpush1.msra.mxu0 0.0
  %781 = vmatprep.subr.mxu0 0.0
  %782 = vmatpush1.msra.mxu0 0.0
  %783 = vmatprep.subr.mxu0 0.0
  %784 = vmatpush1.msra.mxu0 0.0
  %785 = vmatprep.subr.mxu0 0.0
  %786 = vmatpush1.msra.mxu0 0.0
  %787 = vmatprep.subr.mxu0 0.0
  %788 = vmatpush1.msra.mxu0 0.0
  %789 = vmatprep.subr.mxu0 0.0
  %790 = vmatpush1.msra.mxu0 0.0
  %791 = vmatprep.subr.mxu0 0.0
  %792 = vmatpush1.msra.mxu0 0.0
  %793 = vmatprep.subr.mxu0 0.0
  %794 = vmatpush1.msra.mxu0 0.0
  %795 = vmatprep.subr.mxu0 0.0
  %796 = vmatpush1.msra.mxu0 0.0
  %797 = vmatprep.subr.mxu0 0.0
  %798 = vmatpush1.msra.mxu0 0.0
  %799 = vmatprep.subr.mxu0 0.0
  %800 = vmatpush1.msra.mxu0 0.0
  %801 = vmatprep.subr.mxu0 0.0
  %802 = vmatpush1.msra.mxu0 0.0
  %803 = vmatprep.subr.mxu0 0.0
  %804 = vmatpush1.msra.mxu0 0.0
  %805 = vmatprep.subr.mxu0 0.0
  %806 = vmatpush1.msra.mxu0 0.0
  %807 = vmatprep.subr.mxu0 0.0
  %808 = vmatpush1.msra.mxu0 0.0
  %809 = vmatprep.subr.mxu0 0.0
  %810 = vmatpush1.msra.mxu0 0.0
  %811 = vmatprep.subr.mxu0 0.0
  %812 = vmatpush1.msra.mxu0 0.0
  %813 = vmatprep.mubr.f32.mxu0 0.0
  %814 = vmatmul.mubr.f32.gmra.mrb[0].mxu0 %v747
  %v815 = vpop.f32.mrb[0].mxu0
  %v816 = vadd.f32 0.0, %v815
  %v817 = vpop.f32.mrb[0].mxu0
  %818 = vdwg.mxu0
  %v819 = vadd.f32 %v673, %v816
  %v821 = vlaneseq
  %v822 = vshrl.u32 %v821, 7
  %v823 = vsub.s32 0, %v822
  %v824 = vrot.slane %v452, %v823
  %v826 = vadd.f32 %v819, %v824
  %v827 = vmax.f32 %v826, 0.0
  %v829 = vlaneseq
  %v830 = vshrl.u32 %v829, 7
  %v831 = vsub.s32 0, %v830
  %v832 = vrot.slane %v457, %v831
  %v835 = vsel %vm529, %v827, 0
  %837 = vmatprep.subr.mxu0 0.0
  %838 = vmatpush1.msra.mxu0 %v453
  %839 = vmatprep.subr.mxu0 0.0
  %840 = vmatpush1.msra.mxu0 %v454
  %841 = vmatprep.subr.mxu0 0.0
  %842 = vmatpush1.msra.mxu0 %v455
  %843 = vmatprep.subr.mxu0 0.0
  %844 = vmatpush1.msra.mxu0 %v456
  %845 = vmatprep.subr.mxu0 0.0
  %846 = vmatpush1.msra.mxu0 0.0
  %847 = vmatprep.subr.mxu0 0.0
  %848 = vmatpush1.msra.mxu0 0.0
  %849 = vmatprep.subr.mxu0 0.0
  %850 = vmatpush1.msra.mxu0 0.0
  %851 = vmatprep.subr.mxu0 0.0
  %852 = vmatpush1.msra.mxu0 0.0
  %853 = vmatprep.subr.mxu0 0.0
  %854 = vmatpush1.msra.mxu0 0.0
  %855 = vmatprep.subr.mxu0 0.0
  %856 = vmatpush1.msra.mxu0 0.0
  %857 = vmatprep.subr.mxu0 0.0
  %858 = vmatpush1.msra.mxu0 0.0
  %859 = vmatprep.subr.mxu0 0.0
  %860 = vmatpush1.msra.mxu0 0.0
  %861 = vmatprep.subr.mxu0 0.0
  %862 = vmatpush1.msra.mxu0 0.0
  %863 = vmatprep.subr.mxu0 0.0
  %864 = vmatpush1.msra.mxu0 0.0
  %865 = vmatprep.subr.mxu0 0.0
  %866 = vmatpush1.msra.mxu0 0.0
  %867 = vmatprep.subr.mxu0 0.0
  %868 = vmatpush1.msra.mxu0 0.0
  %869 = vmatprep.subr.mxu0 0.0
  %870 = vmatpush1.msra.mxu0 0.0
  %871 = vmatprep.subr.mxu0 0.0
  %872 = vmatpush1.msra.mxu0 0.0
  %873 = vmatprep.subr.mxu0 0.0
  %874 = vmatpush1.msra.mxu0 0.0
  %875 = vmatprep.subr.mxu0 0.0
  %876 = vmatpush1.msra.mxu0 0.0
  %877 = vmatprep.subr.mxu0 0.0
  %878 = vmatpush1.msra.mxu0 0.0
  %879 = vmatprep.subr.mxu0 0.0
  %880 = vmatpush1.msra.mxu0 0.0
  %881 = vmatprep.subr.mxu0 0.0
  %882 = vmatpush1.msra.mxu0 0.0
  %883 = vmatprep.subr.mxu0 0.0
  %884 = vmatpush1.msra.mxu0 0.0
  %885 = vmatprep.subr.mxu0 0.0
  %886 = vmatpush1.msra.mxu0 0.0
  %887 = vmatprep.subr.mxu0 0.0
  %888 = vmatpush1.msra.mxu0 0.0
  %889 = vmatprep.subr.mxu0 0.0
  %890 = vmatpush1.msra.mxu0 0.0
  %891 = vmatprep.subr.mxu0 0.0
  %892 = vmatpush1.msra.mxu0 0.0
  %893 = vmatprep.subr.mxu0 0.0
  %894 = vmatpush1.msra.mxu0 0.0
  %895 = vmatprep.subr.mxu0 0.0
  %896 = vmatpush1.msra.mxu0 0.0
  %897 = vmatprep.subr.mxu0 0.0
  %898 = vmatpush1.msra.mxu0 0.0
  %899 = vmatprep.subr.mxu0 0.0
  %900 = vmatpush1.msra.mxu0 0.0
  %901 = vmatprep.mubr.f32.mxu0 0.0
  %902 = vmatmul.mubr.f32.gmra.mrb[0].mxu0 %v835
  %v903 = vpop.f32.mrb[0].mxu0
  %v904 = vadd.f32 %v832, %v903
  %v905 = vpop.f32.mrb[0].mxu0
  %906 = vdwg.mxu0
  %v907 = vadd.f32 %v904, %v437
  %v908 = vld [vmem:[%s8] sm:$0x1]
  %s909 = scalar_lea.vmem %s7, 32
  %v910 = vld [vmem:[%s909] sm:$0xff]
  %v911 = vld [vmem:[%s909 + $0x8] sm:$0xff]
  %v912 = vld [vmem:[%s909 + $0x10] sm:$0xff]
  %v913 = vld [vmem:[%s909 + $0x18] sm:$0xff]
  %914 = vmatprep.subr.mxu0 0.0
  %915 = vmatpush1.msra.mxu0 %v907
  %916 = vmatprep.subr.mxu0 0.0
  %917 = vmatpush1.msra.mxu0 0.0
  %918 = vmatprep.subr.mxu0 0.0
  %919 = vmatpush1.msra.mxu0 0.0
  %920 = vmatprep.subr.mxu0 0.0
  %921 = vmatpush1.msra.mxu0 0.0
  %922 = vmatprep.subr.mxu0 0.0
  %923 = vmatpush1.msra.mxu0 0.0
  %924 = vmatprep.subr.mxu0 0.0
  %925 = vmatpush1.msra.mxu0 0.0
  %926 = vmatprep.subr.mxu0 0.0
  %927 = vmatpush1.msra.mxu0 0.0
  %928 = vmatprep.subr.mxu0 0.0
  %929 = vmatpush1.msra.mxu0 0.0
  %930 = vmatprep.subr.mxu0 0.0
  %931 = vmatpush1.msra.mxu0 0.0
  %932 = vmatprep.subr.mxu0 0.0
  %933 = vmatpush1.msra.mxu0 0.0
  %934 = vmatprep.subr.mxu0 0.0
  %935 = vmatpush1.msra.mxu0 0.0
  %936 = vmatprep.subr.mxu0 0.0
  %937 = vmatpush1.msra.mxu0 0.0
  %938 = vmatprep.subr.mxu0 0.0
  %939 = vmatpush1.msra.mxu0 0.0
  %940 = vmatprep.subr.mxu0 0.0
  %941 = vmatpush1.msra.mxu0 0.0
  %942 = vmatprep.subr.mxu0 0.0
  %943 = vmatpush1.msra.mxu0 0.0
  %944 = vmatprep.subr.mxu0 0.0
  %945 = vmatpush1.msra.mxu0 0.0
  %946 = vmatprep.subr.mxu0 0.0
  %947 = vmatpush1.msra.mxu0 0.0
  %948 = vmatprep.subr.mxu0 0.0
  %949 = vmatpush1.msra.mxu0 0.0
  %950 = vmatprep.subr.mxu0 0.0
  %951 = vmatpush1.msra.mxu0 0.0
  %952 = vmatprep.subr.mxu0 0.0
  %953 = vmatpush1.msra.mxu0 0.0
  %954 = vmatprep.subr.mxu0 0.0
  %955 = vmatpush1.msra.mxu0 0.0
  %956 = vmatprep.subr.mxu0 0.0
  %957 = vmatpush1.msra.mxu0 0.0
  %958 = vmatprep.subr.mxu0 0.0
  %959 = vmatpush1.msra.mxu0 0.0
  %960 = vmatprep.subr.mxu0 0.0
  %961 = vmatpush1.msra.mxu0 0.0
  %962 = vmatprep.subr.mxu0 0.0
  %963 = vmatpush1.msra.mxu0 0.0
  %964 = vmatprep.subr.mxu0 0.0
  %965 = vmatpush1.msra.mxu0 0.0
  %966 = vmatprep.subr.mxu0 0.0
  %967 = vmatpush1.msra.mxu0 0.0
  %968 = vmatprep.subr.mxu0 0.0
  %969 = vmatpush1.msra.mxu0 0.0
  %970 = vmatprep.subr.mxu0 0.0
  %971 = vmatpush1.msra.mxu0 0.0
  %972 = vmatprep.subr.mxu0 0.0
  %973 = vmatpush1.msra.mxu0 0.0
  %974 = vmatprep.subr.mxu0 0.0
  %975 = vmatpush1.msra.mxu0 0.0
  %976 = vmatprep.subr.mxu0 0.0
  %977 = vmatpush1.msra.mxu0 0.0
  %978 = vmatprep.mubr.f32.mxu0 0.0
  %979 = vmatmul.mubr.f32.gmra.mrb[0].mxu0 %v65
  %v980 = vpop.f32.mrb[0].mxu0
  %v981 = vadd.f32 0.0, %v980
  %v982 = vpop.f32.mrb[0].mxu0
  %983 = vdwg.mxu0
  %s984 = scalar_lea.vmem %s7, 96
  %v985 = vld [vmem:[%s984] sm:$0xff]
  %v986 = vld [vmem:[%s984 + $0x8] sm:$0xff]
  %v987 = vld [vmem:[%s984 + $0x10] sm:$0xff]
  %v988 = vld [vmem:[%s984 + $0x18] sm:$0xff]
  %v990 = vsel %vm529, %v981, 0
  %992 = vmatprep.subr.mxu0 0.0
  %993 = vmatpush1.msra.mxu0 %v985
  %994 = vmatprep.subr.mxu0 0.0
  %995 = vmatpush1.msra.mxu0 %v986
  %996 = vmatprep.subr.mxu0 0.0
  %997 = vmatpush1.msra.mxu0 %v987
  %998 = vmatprep.subr.mxu0 0.0
  %999 = vmatpush1.msra.mxu0 %v988
  %1000 = vmatprep.subr.mxu0 0.0
  %1001 = vmatpush1.msra.mxu0 0.0
  %1002 = vmatprep.subr.mxu0 0.0
  %1003 = vmatpush1.msra.mxu0 0.0
  %1004 = vmatprep.subr.mxu0 0.0
  %1005 = vmatpush1.msra.mxu0 0.0
  %1006 = vmatprep.subr.mxu0 0.0
  %1007 = vmatpush1.msra.mxu0 0.0
  %1008 = vmatprep.subr.mxu0 0.0
  %1009 = vmatpush1.msra.mxu0 0.0
  %1010 = vmatprep.subr.mxu0 0.0
  %1011 = vmatpush1.msra.mxu0 0.0
  %1012 = vmatprep.subr.mxu0 0.0
  %1013 = vmatpush1.msra.mxu0 0.0
  %1014 = vmatprep.subr.mxu0 0.0
  %1015 = vmatpush1.msra.mxu0 0.0
  %1016 = vmatprep.subr.mxu0 0.0
  %1017 = vmatpush1.msra.mxu0 0.0
  %1018 = vmatprep.subr.mxu0 0.0
  %1019 = vmatpush1.msra.mxu0 0.0
  %1020 = vmatprep.subr.mxu0 0.0
  %1021 = vmatpush1.msra.mxu0 0.0
  %1022 = vmatprep.subr.mxu0 0.0
  %1023 = vmatpush1.msra.mxu0 0.0
  %1024 = vmatprep.subr.mxu0 0.0
  %1025 = vmatpush1.msra.mxu0 0.0
  %1026 = vmatprep.subr.mxu0 0.0
  %1027 = vmatpush1.msra.mxu0 0.0
  %1028 = vmatprep.subr.mxu0 0.0
  %1029 = vmatpush1.msra.mxu0 0.0
  %1030 = vmatprep.subr.mxu0 0.0
  %1031 = vmatpush1.msra.mxu0 0.0
  %1032 = vmatprep.subr.mxu0 0.0
  %1033 = vmatpush1.msra.mxu0 0.0
  %1034 = vmatprep.subr.mxu0 0.0
  %1035 = vmatpush1.msra.mxu0 0.0
  %1036 = vmatprep.subr.mxu0 0.0
  %1037 = vmatpush1.msra.mxu0 0.0
  %1038 = vmatprep.subr.mxu0 0.0
  %1039 = vmatpush1.msra.mxu0 0.0
  %1040 = vmatprep.subr.mxu0 0.0
  %1041 = vmatpush1.msra.mxu0 0.0
  %1042 = vmatprep.subr.mxu0 0.0
  %1043 = vmatpush1.msra.mxu0 0.0
  %1044 = vmatprep.subr.mxu0 0.0
  %1045 = vmatpush1.msra.mxu0 0.0
  %1046 = vmatprep.subr.mxu0 0.0
  %1047 = vmatpush1.msra.mxu0 0.0
  %1048 = vmatprep.subr.mxu0 0.0
  %1049 = vmatpush1.msra.mxu0 0.0
  %1050 = vmatprep.subr.mxu0 0.0
  %1051 = vmatpush1.msra.mxu0 0.0
  %1052 = vmatprep.subr.mxu0 0.0
  %1053 = vmatpush1.msra.mxu0 0.0
  %1054 = vmatprep.subr.mxu0 0.0
  %1055 = vmatpush1.msra.mxu0 0.0
  %1056 = vmatprep.mubr.f32.mxu0 0.0
  %1057 = vmatmul.mubr.f32.gmra.mrb[0].mxu0 %v990
  %v1058 = vpop.f32.mrb[0].mxu0
  %v1059 = vadd.f32 0.0, %v1058
  %v1060 = vpop.f32.mrb[0].mxu0
  %1061 = vdwg.mxu0
  %v1063 = vsel %vm529, %v907, 0
  %1065 = vmatprep.subr.mxu0 0.0
  %1066 = vmatpush1.msra.mxu0 %v910
  %1067 = vmatprep.subr.mxu0 0.0
  %1068 = vmatpush1.msra.mxu0 %v911
  %1069 = vmatprep.subr.mxu0 0.0
  %1070 = vmatpush1.msra.mxu0 %v912
  %1071 = vmatprep.subr.mxu0 0.0
  %1072 = vmatpush1.msra.mxu0 %v913
  %1073 = vmatprep.subr.mxu0 0.0
  %1074 = vmatpush1.msra.mxu0 0.0
  %1075 = vmatprep.subr.mxu0 0.0
  %1076 = vmatpush1.msra.mxu0 0.0
  %1077 = vmatprep.subr.mxu0 0.0
  %1078 = vmatpush1.msra.mxu0 0.0
  %1079 = vmatprep.subr.mxu0 0.0
  %1080 = vmatpush1.msra.mxu0 0.0
  %1081 = vmatprep.subr.mxu0 0.0
  %1082 = vmatpush1.msra.mxu0 0.0
  %1083 = vmatprep.subr.mxu0 0.0
  %1084 = vmatpush1.msra.mxu0 0.0
  %1085 = vmatprep.subr.mxu0 0.0
  %1086 = vmatpush1.msra.mxu0 0.0
  %1087 = vmatprep.subr.mxu0 0.0
  %1088 = vmatpush1.msra.mxu0 0.0
  %1089 = vmatprep.subr.mxu0 0.0
  %1090 = vmatpush1.msra.mxu0 0.0
  %1091 = vmatprep.subr.mxu0 0.0
  %1092 = vmatpush1.msra.mxu0 0.0
  %1093 = vmatprep.subr.mxu0 0.0
  %1094 = vmatpush1.msra.mxu0 0.0
  %1095 = vmatprep.subr.mxu0 0.0
  %1096 = vmatpush1.msra.mxu0 0.0
  %1097 = vmatprep.subr.mxu0 0.0
  %1098 = vmatpush1.msra.mxu0 0.0
  %1099 = vmatprep.subr.mxu0 0.0
  %1100 = vmatpush1.msra.mxu0 0.0
  %1101 = vmatprep.subr.mxu0 0.0
  %1102 = vmatpush1.msra.mxu0 0.0
  %1103 = vmatprep.subr.mxu0 0.0
  %1104 = vmatpush1.msra.mxu0 0.0
  %1105 = vmatprep.subr.mxu0 0.0
  %1106 = vmatpush1.msra.mxu0 0.0
  %1107 = vmatprep.subr.mxu0 0.0
  %1108 = vmatpush1.msra.mxu0 0.0
  %1109 = vmatprep.subr.mxu0 0.0
  %1110 = vmatpush1.msra.mxu0 0.0
  %1111 = vmatprep.subr.mxu0 0.0
  %1112 = vmatpush1.msra.mxu0 0.0
  %1113 = vmatprep.subr.mxu0 0.0
  %1114 = vmatpush1.msra.mxu0 0.0
  %1115 = vmatprep.subr.mxu0 0.0
  %1116 = vmatpush1.msra.mxu0 0.0
  %1117 = vmatprep.subr.mxu0 0.0
  %1118 = vmatpush1.msra.mxu0 0.0
  %1119 = vmatprep.subr.mxu0 0.0
  %1120 = vmatpush1.msra.mxu0 0.0
  %1121 = vmatprep.subr.mxu0 0.0
  %1122 = vmatpush1.msra.mxu0 0.0
  %1123 = vmatprep.subr.mxu0 0.0
  %1124 = vmatpush1.msra.mxu0 0.0
  %1125 = vmatprep.subr.mxu0 0.0
  %1126 = vmatpush1.msra.mxu0 0.0
  %1127 = vmatprep.subr.mxu0 0.0
  %1128 = vmatpush1.msra.mxu0 0.0
  %1129 = vmatprep.mubr.f32.mxu0 0.0
  %1130 = vmatmul.mubr.f32.gmra.mrb[0].mxu0 %v1063
  %v1131 = vpop.f32.mrb[0].mxu0
  %v1132 = vadd.f32 %v1059, %v1131
  %v1133 = vpop.f32.mrb[0].mxu0
  %1134 = vdwg.mxu0
  %v1136 = vlaneseq
  %v1137 = vshrl.u32 %v1136, 7
  %v1138 = vsub.s32 0, %v1137
  %v1139 = vrot.slane %v908, %v1138
  %v1141 = vadd.f32 %v1132, %v1139
  %s1142 = scalar_lea.vmem %s7, 64
  %v1143 = vld [vmem:[%s1142] sm:$0xff]
  %v1144 = vld [vmem:[%s1142 + $0x8] sm:$0xff]
  %v1145 = vld [vmem:[%s1142 + $0x10] sm:$0xff]
  %v1146 = vld [vmem:[%s1142 + $0x18] sm:$0xff]
  %1147 = vmatprep.subr.mxu0 0.0
  %1148 = vmatpush1.msra.mxu0 %v907
  %1149 = vmatprep.subr.mxu0 0.0
  %1150 = vmatpush1.msra.mxu0 0.0
  %1151 = vmatprep.subr.mxu0 0.0
  %1152 = vmatpush1.msra.mxu0 0.0
  %1153 = vmatprep.subr.mxu0 0.0
  %1154 = vmatpush1.msra.mxu0 0.0
  %1155 = vmatprep.subr.mxu0 0.0
  %1156 = vmatpush1.msra.mxu0 0.0
  %1157 = vmatprep.subr.mxu0 0.0
  %1158 = vmatpush1.msra.mxu0 0.0
  %1159 = vmatprep.subr.mxu0 0.0
  %1160 = vmatpush1.msra.mxu0 0.0
  %1161 = vmatprep.subr.mxu0 0.0
  %1162 = vmatpush1.msra.mxu0 0.0
  %1163 = vmatprep.subr.mxu0 0.0
  %1164 = vmatpush1.msra.mxu0 0.0
  %1165 = vmatprep.subr.mxu0 0.0
  %1166 = vmatpush1.msra.mxu0 0.0
  %1167 = vmatprep.subr.mxu0 0.0
  %1168 = vmatpush1.msra.mxu0 0.0
  %1169 = vmatprep.subr.mxu0 0.0
  %1170 = vmatpush1.msra.mxu0 0.0
  %1171 = vmatprep.subr.mxu0 0.0
  %1172 = vmatpush1.msra.mxu0 0.0
  %1173 = vmatprep.subr.mxu0 0.0
  %1174 = vmatpush1.msra.mxu0 0.0
  %1175 = vmatprep.subr.mxu0 0.0
  %1176 = vmatpush1.msra.mxu0 0.0
  %1177 = vmatprep.subr.mxu0 0.0
  %1178 = vmatpush1.msra.mxu0 0.0
  %1179 = vmatprep.subr.mxu0 0.0
  %1180 = vmatpush1.msra.mxu0 0.0
  %1181 = vmatprep.subr.mxu0 0.0
  %1182 = vmatpush1.msra.mxu0 0.0
  %1183 = vmatprep.subr.mxu0 0.0
  %1184 = vmatpush1.msra.mxu0 0.0
  %1185 = vmatprep.subr.mxu0 0.0
  %1186 = vmatpush1.msra.mxu0 0.0
  %1187 = vmatprep.subr.mxu0 0.0
  %1188 = vmatpush1.msra.mxu0 0.0
  %1189 = vmatprep.subr.mxu0 0.0
  %1190 = vmatpush1.msra.mxu0 0.0
  %1191 = vmatprep.subr.mxu0 0.0
  %1192 = vmatpush1.msra.mxu0 0.0
  %1193 = vmatprep.subr.mxu0 0.0
  %1194 = vmatpush1.msra.mxu0 0.0
  %1195 = vmatprep.subr.mxu0 0.0
  %1196 = vmatpush1.msra.mxu0 0.0
  %1197 = vmatprep.subr.mxu0 0.0
  %1198 = vmatpush1.msra.mxu0 0.0
  %1199 = vmatprep.subr.mxu0 0.0
  %1200 = vmatpush1.msra.mxu0 0.0
  %1201 = vmatprep.subr.mxu0 0.0
  %1202 = vmatpush1.msra.mxu0 0.0
  %1203 = vmatprep.subr.mxu0 0.0
  %1204 = vmatpush1.msra.mxu0 0.0
  %1205 = vmatprep.subr.mxu0 0.0
  %1206 = vmatpush1.msra.mxu0 0.0
  %1207 = vmatprep.subr.mxu0 0.0
  %1208 = vmatpush1.msra.mxu0 0.0
  %1209 = vmatprep.subr.mxu0 0.0
  %1210 = vmatpush1.msra.mxu0 0.0
  %1211 = vmatprep.mubr.f32.mxu0 0.0
  %1212 = vmatmul.mubr.f32.gmra.mrb[0].mxu0 %v285
  %v1213 = vpop.f32.mrb[0].mxu0
  %v1214 = vadd.f32 0.0, %v1213
  %v1215 = vpop.f32.mrb[0].mxu0
  %1216 = vdwg.mxu0
  %v1217 = vld [vmem:[%s7] sm:$0xff]
  %v1218 = vld [vmem:[%s7 + $0x8] sm:$0xff]
  %v1219 = vld [vmem:[%s7 + $0x10] sm:$0xff]
  %v1220 = vld [vmem:[%s7 + $0x18] sm:$0xff]
  %v1222 = vsel %vm529, %v1214, 0
  %1224 = vmatprep.subr.mxu0 0.0
  %1225 = vmatpush1.msra.mxu0 %v1217
  %1226 = vmatprep.subr.mxu0 0.0
  %1227 = vmatpush1.msra.mxu0 %v1218
  %1228 = vmatprep.subr.mxu0 0.0
  %1229 = vmatpush1.msra.mxu0 %v1219
  %1230 = vmatprep.subr.mxu0 0.0
  %1231 = vmatpush1.msra.mxu0 %v1220
  %1232 = vmatprep.subr.mxu0 0.0
  %1233 = vmatpush1.msra.mxu0 0.0
  %1234 = vmatprep.subr.mxu0 0.0
  %1235 = vmatpush1.msra.mxu0 0.0
  %1236 = vmatprep.subr.mxu0 0.0
  %1237 = vmatpush1.msra.mxu0 0.0
  %1238 = vmatprep.subr.mxu0 0.0
  %1239 = vmatpush1.msra.mxu0 0.0
  %1240 = vmatprep.subr.mxu0 0.0
  %1241 = vmatpush1.msra.mxu0 0.0
  %1242 = vmatprep.subr.mxu0 0.0
  %1243 = vmatpush1.msra.mxu0 0.0
  %1244 = vmatprep.subr.mxu0 0.0
  %1245 = vmatpush1.msra.mxu0 0.0
  %1246 = vmatprep.subr.mxu0 0.0
  %1247 = vmatpush1.msra.mxu0 0.0
  %1248 = vmatprep.subr.mxu0 0.0
  %1249 = vmatpush1.msra.mxu0 0.0
  %1250 = vmatprep.subr.mxu0 0.0
  %1251 = vmatpush1.msra.mxu0 0.0
  %1252 = vmatprep.subr.mxu0 0.0
  %1253 = vmatpush1.msra.mxu0 0.0
  %1254 = vmatprep.subr.mxu0 0.0
  %1255 = vmatpush1.msra.mxu0 0.0
  %1256 = vmatprep.subr.mxu0 0.0
  %1257 = vmatpush1.msra.mxu0 0.0
  %1258 = vmatprep.subr.mxu0 0.0
  %1259 = vmatpush1.msra.mxu0 0.0
  %1260 = vmatprep.subr.mxu0 0.0
  %1261 = vmatpush1.msra.mxu0 0.0
  %1262 = vmatprep.subr.mxu0 0.0
  %1263 = vmatpush1.msra.mxu0 0.0
  %1264 = vmatprep.subr.mxu0 0.0
  %1265 = vmatpush1.msra.mxu0 0.0
  %1266 = vmatprep.subr.mxu0 0.0
  %1267 = vmatpush1.msra.mxu0 0.0
  %1268 = vmatprep.subr.mxu0 0.0
  %1269 = vmatpush1.msra.mxu0 0.0
  %1270 = vmatprep.subr.mxu0 0.0
  %1271 = vmatpush1.msra.mxu0 0.0
  %1272 = vmatprep.subr.mxu0 0.0
  %1273 = vmatpush1.msra.mxu0 0.0
  %1274 = vmatprep.subr.mxu0 0.0
  %1275 = vmatpush1.msra.mxu0 0.0
  %1276 = vmatprep.subr.mxu0 0.0
  %1277 = vmatpush1.msra.mxu0 0.0
  %1278 = vmatprep.subr.mxu0 0.0
  %1279 = vmatpush1.msra.mxu0 0.0
  %1280 = vmatprep.subr.mxu0 0.0
  %1281 = vmatpush1.msra.mxu0 0.0
  %1282 = vmatprep.subr.mxu0 0.0
  %1283 = vmatpush1.msra.mxu0 0.0
  %1284 = vmatprep.subr.mxu0 0.0
  %1285 = vmatpush1.msra.mxu0 0.0
  %1286 = vmatprep.subr.mxu0 0.0
  %1287 = vmatpush1.msra.mxu0 0.0
  %1288 = vmatprep.mubr.f32.mxu0 0.0
  %1289 = vmatmul.mubr.f32.gmra.mrb[0].mxu0 %v1222
  %v1290 = vpop.f32.mrb[0].mxu0
  %v1291 = vadd.f32 0.0, %v1290
  %v1292 = vpop.f32.mrb[0].mxu0
  %1293 = vdwg.mxu0
  %1294 = vmatprep.subr.mxu0 0.0
  %1295 = vmatpush1.msra.mxu0 %v1143
  %1296 = vmatprep.subr.mxu0 0.0
  %1297 = vmatpush1.msra.mxu0 %v1144
  %1298 = vmatprep.subr.mxu0 0.0
  %1299 = vmatpush1.msra.mxu0 %v1145
  %1300 = vmatprep.subr.mxu0 0.0
  %1301 = vmatpush1.msra.mxu0 %v1146
  %1302 = vmatprep.subr.mxu0 0.0
  %1303 = vmatpush1.msra.mxu0 0.0
  %1304 = vmatprep.subr.mxu0 0.0
  %1305 = vmatpush1.msra.mxu0 0.0
  %1306 = vmatprep.subr.mxu0 0.0
  %1307 = vmatpush1.msra.mxu0 0.0
  %1308 = vmatprep.subr.mxu0 0.0
  %1309 = vmatpush1.msra.mxu0 0.0
  %1310 = vmatprep.subr.mxu0 0.0
  %1311 = vmatpush1.msra.mxu0 0.0
  %1312 = vmatprep.subr.mxu0 0.0
  %1313 = vmatpush1.msra.mxu0 0.0
  %1314 = vmatprep.subr.mxu0 0.0
  %1315 = vmatpush1.msra.mxu0 0.0
  %1316 = vmatprep.subr.mxu0 0.0
  %1317 = vmatpush1.msra.mxu0 0.0
  %1318 = vmatprep.subr.mxu0 0.0
  %1319 = vmatpush1.msra.mxu0 0.0
  %1320 = vmatprep.subr.mxu0 0.0
  %1321 = vmatpush1.msra.mxu0 0.0
  %1322 = vmatprep.subr.mxu0 0.0
  %1323 = vmatpush1.msra.mxu0 0.0
  %1324 = vmatprep.subr.mxu0 0.0
  %1325 = vmatpush1.msra.mxu0 0.0
  %1326 = vmatprep.subr.mxu0 0.0
  %1327 = vmatpush1.msra.mxu0 0.0
  %1328 = vmatprep.subr.mxu0 0.0
  %1329 = vmatpush1.msra.mxu0 0.0
  %1330 = vmatprep.subr.mxu0 0.0
  %1331 = vmatpush1.msra.mxu0 0.0
  %1332 = vmatprep.subr.mxu0 0.0
  %1333 = vmatpush1.msra.mxu0 0.0
  %1334 = vmatprep.subr.mxu0 0.0
  %1335 = vmatpush1.msra.mxu0 0.0
  %1336 = vmatprep.subr.mxu0 0.0
  %1337 = vmatpush1.msra.mxu0 0.0
  %1338 = vmatprep.subr.mxu0 0.0
  %1339 = vmatpush1.msra.mxu0 0.0
  %1340 = vmatprep.subr.mxu0 0.0
  %1341 = vmatpush1.msra.mxu0 0.0
  %1342 = vmatprep.subr.mxu0 0.0
  %1343 = vmatpush1.msra.mxu0 0.0
  %1344 = vmatprep.subr.mxu0 0.0
  %1345 = vmatpush1.msra.mxu0 0.0
  %1346 = vmatprep.subr.mxu0 0.0
  %1347 = vmatpush1.msra.mxu0 0.0
  %1348 = vmatprep.subr.mxu0 0.0
  %1349 = vmatpush1.msra.mxu0 0.0
  %1350 = vmatprep.subr.mxu0 0.0
  %1351 = vmatpush1.msra.mxu0 0.0
  %1352 = vmatprep.subr.mxu0 0.0
  %1353 = vmatpush1.msra.mxu0 0.0
  %1354 = vmatprep.subr.mxu0 0.0
  %1355 = vmatpush1.msra.mxu0 0.0
  %1356 = vmatprep.subr.mxu0 0.0
  %1357 = vmatpush1.msra.mxu0 0.0
  %1358 = vmatprep.mubr.f32.mxu0 0.0
  %1359 = vmatmul.mubr.f32.gmra.mrb[0].mxu0 %v1063
  %v1360 = vpop.f32.mrb[0].mxu0
  %v1361 = vadd.f32 %v1291, %v1360
  %v1362 = vpop.f32.mrb[0].mxu0
  %1363 = vdwg.mxu0
  %v1364 = vadd.f32 %v1361, %v1139
  %v1365 = vld [vmem:[%s10] sm:$0x1]
  %1366 = vmatprep.subr.mxu0 0.0
  %1367 = vmatpush1.msra.mxu0 %v1364
  %1368 = vmatprep.subr.mxu0 0.0
  %1369 = vmatpush1.msra.mxu0 0.0
  %1370 = vmatprep.subr.mxu0 0.0
  %1371 = vmatpush1.msra.mxu0 0.0
  %1372 = vmatprep.subr.mxu0 0.0
  %1373 = vmatpush1.msra.mxu0 0.0
  %1374 = vmatprep.subr.mxu0 0.0
  %1375 = vmatpush1.msra.mxu0 0.0
  %1376 = vmatprep.subr.mxu0 0.0
  %1377 = vmatpush1.msra.mxu0 0.0
  %1378 = vmatprep.subr.mxu0 0.0
  %1379 = vmatpush1.msra.mxu0 0.0
  %1380 = vmatprep.subr.mxu0 0.0
  %1381 = vmatpush1.msra.mxu0 0.0
  %1382 = vmatprep.subr.mxu0 0.0
  %1383 = vmatpush1.msra.mxu0 0.0
  %1384 = vmatprep.subr.mxu0 0.0
  %1385 = vmatpush1.msra.mxu0 0.0
  %1386 = vmatprep.subr.mxu0 0.0
  %1387 = vmatpush1.msra.mxu0 0.0
  %1388 = vmatprep.subr.mxu0 0.0
  %1389 = vmatpush1.msra.mxu0 0.0
  %1390 = vmatprep.subr.mxu0 0.0
  %1391 = vmatpush1.msra.mxu0 0.0
  %1392 = vmatprep.subr.mxu0 0.0
  %1393 = vmatpush1.msra.mxu0 0.0
  %1394 = vmatprep.subr.mxu0 0.0
  %1395 = vmatpush1.msra.mxu0 0.0
  %1396 = vmatprep.subr.mxu0 0.0
  %1397 = vmatpush1.msra.mxu0 0.0
  %1398 = vmatprep.subr.mxu0 0.0
  %1399 = vmatpush1.msra.mxu0 0.0
  %1400 = vmatprep.subr.mxu0 0.0
  %1401 = vmatpush1.msra.mxu0 0.0
  %1402 = vmatprep.subr.mxu0 0.0
  %1403 = vmatpush1.msra.mxu0 0.0
  %1404 = vmatprep.subr.mxu0 0.0
  %1405 = vmatpush1.msra.mxu0 0.0
  %1406 = vmatprep.subr.mxu0 0.0
  %1407 = vmatpush1.msra.mxu0 0.0
  %1408 = vmatprep.subr.mxu0 0.0
  %1409 = vmatpush1.msra.mxu0 0.0
  %1410 = vmatprep.subr.mxu0 0.0
  %1411 = vmatpush1.msra.mxu0 0.0
  %1412 = vmatprep.subr.mxu0 0.0
  %1413 = vmatpush1.msra.mxu0 0.0
  %1414 = vmatprep.subr.mxu0 0.0
  %1415 = vmatpush1.msra.mxu0 0.0
  %1416 = vmatprep.subr.mxu0 0.0
  %1417 = vmatpush1.msra.mxu0 0.0
  %1418 = vmatprep.subr.mxu0 0.0
  %1419 = vmatpush1.msra.mxu0 0.0
  %1420 = vmatprep.subr.mxu0 0.0
  %1421 = vmatpush1.msra.mxu0 0.0
  %1422 = vmatprep.subr.mxu0 0.0
  %1423 = vmatpush1.msra.mxu0 0.0
  %1424 = vmatprep.subr.mxu0 0.0
  %1425 = vmatpush1.msra.mxu0 0.0
  %1426 = vmatprep.subr.mxu0 0.0
  %1427 = vmatpush1.msra.mxu0 0.0
  %1428 = vmatprep.subr.mxu0 0.0
  %1429 = vmatpush1.msra.mxu0 0.0
  %1430 = vmatprep.mubr.f32.mxu0 0.0
  %1431 = vmatmul.mubr.f32.gmra.mrb[0].mxu0 %v65
  %v1432 = vpop.f32.mrb[0].mxu0
  %v1433 = vadd.f32 0.0, %v1432
  %v1434 = vpop.f32.mrb[0].mxu0
  %1435 = vdwg.mxu0
  %v1436 = vld [vmem:[%s9] sm:$0xff]
  %v1437 = vld [vmem:[%s9 + $0x8] sm:$0xff]
  %s1438 = scalar_lea.vmem %s9, 16
  %v1439 = vld [vmem:[%s1438] sm:$0xff]
  %v1440 = vld [vmem:[%s1438 + $0x8] sm:$0xff]
  %v1442 = vsel %vm137, %v1141, 0
  %1444 = vmatprep.subr.mxu0 0.0
  %1445 = vmatpush1.msra.mxu0 %v1439
  %1446 = vmatprep.subr.mxu0 0.0
  %1447 = vmatpush1.msra.mxu0 %v1440
  %1448 = vmatprep.subr.mxu0 0.0
  %1449 = vmatpush1.msra.mxu0 0.0
  %1450 = vmatprep.subr.mxu0 0.0
  %1451 = vmatpush1.msra.mxu0 0.0
  %1452 = vmatprep.subr.mxu0 0.0
  %1453 = vmatpush1.msra.mxu0 0.0
  %1454 = vmatprep.subr.mxu0 0.0
  %1455 = vmatpush1.msra.mxu0 0.0
  %1456 = vmatprep.subr.mxu0 0.0
  %1457 = vmatpush1.msra.mxu0 0.0
  %1458 = vmatprep.subr.mxu0 0.0
  %1459 = vmatpush1.msra.mxu0 0.0
  %1460 = vmatprep.subr.mxu0 0.0
  %1461 = vmatpush1.msra.mxu0 0.0
  %1462 = vmatprep.subr.mxu0 0.0
  %1463 = vmatpush1.msra.mxu0 0.0
  %1464 = vmatprep.subr.mxu0 0.0
  %1465 = vmatpush1.msra.mxu0 0.0
  %1466 = vmatprep.subr.mxu0 0.0
  %1467 = vmatpush1.msra.mxu0 0.0
  %1468 = vmatprep.subr.mxu0 0.0
  %1469 = vmatpush1.msra.mxu0 0.0
  %1470 = vmatprep.subr.mxu0 0.0
  %1471 = vmatpush1.msra.mxu0 0.0
  %1472 = vmatprep.subr.mxu0 0.0
  %1473 = vmatpush1.msra.mxu0 0.0
  %1474 = vmatprep.subr.mxu0 0.0
  %1475 = vmatpush1.msra.mxu0 0.0
  %1476 = vmatprep.subr.mxu0 0.0
  %1477 = vmatpush1.msra.mxu0 0.0
  %1478 = vmatprep.subr.mxu0 0.0
  %1479 = vmatpush1.msra.mxu0 0.0
  %1480 = vmatprep.subr.mxu0 0.0
  %1481 = vmatpush1.msra.mxu0 0.0
  %1482 = vmatprep.subr.mxu0 0.0
  %1483 = vmatpush1.msra.mxu0 0.0
  %1484 = vmatprep.subr.mxu0 0.0
  %1485 = vmatpush1.msra.mxu0 0.0
  %1486 = vmatprep.subr.mxu0 0.0
  %1487 = vmatpush1.msra.mxu0 0.0
  %1488 = vmatprep.subr.mxu0 0.0
  %1489 = vmatpush1.msra.mxu0 0.0
  %1490 = vmatprep.subr.mxu0 0.0
  %1491 = vmatpush1.msra.mxu0 0.0
  %1492 = vmatprep.subr.mxu0 0.0
  %1493 = vmatpush1.msra.mxu0 0.0
  %1494 = vmatprep.subr.mxu0 0.0
  %1495 = vmatpush1.msra.mxu0 0.0
  %1496 = vmatprep.subr.mxu0 0.0
  %1497 = vmatpush1.msra.mxu0 0.0
  %1498 = vmatprep.subr.mxu0 0.0
  %1499 = vmatpush1.msra.mxu0 0.0
  %1500 = vmatprep.subr.mxu0 0.0
  %1501 = vmatpush1.msra.mxu0 0.0
  %1502 = vmatprep.subr.mxu0 0.0
  %1503 = vmatpush1.msra.mxu0 0.0
  %1504 = vmatprep.subr.mxu0 0.0
  %1505 = vmatpush1.msra.mxu0 0.0
  %1506 = vmatprep.subr.mxu0 0.0
  %1507 = vmatpush1.msra.mxu0 0.0
  %1508 = vmatprep.mubr.f32.mxu0 0.0
  %1509 = vmatmul.mubr.f32.gmra.mrb[0].mxu0 %v1442
  %v1510 = vpop.f32.mrb[0].mxu0
  %v1511 = vadd.f32 0.0, %v1510
  %v1512 = vpop.f32.mrb[0].mxu0
  %1513 = vdwg.mxu0
  %v1515 = vsel %vm137, %v1433, 0
  %1517 = vmatprep.subr.mxu0 0.0
  %1518 = vmatpush1.msra.mxu0 %v1436
  %1519 = vmatprep.subr.mxu0 0.0
  %1520 = vmatpush1.msra.mxu0 %v1437
  %1521 = vmatprep.subr.mxu0 0.0
  %1522 = vmatpush1.msra.mxu0 0.0
  %1523 = vmatprep.subr.mxu0 0.0
  %1524 = vmatpush1.msra.mxu0 0.0
  %1525 = vmatprep.subr.mxu0 0.0
  %1526 = vmatpush1.msra.mxu0 0.0
  %1527 = vmatprep.subr.mxu0 0.0
  %1528 = vmatpush1.msra.mxu0 0.0
  %1529 = vmatprep.subr.mxu0 0.0
  %1530 = vmatpush1.msra.mxu0 0.0
  %1531 = vmatprep.subr.mxu0 0.0
  %1532 = vmatpush1.msra.mxu0 0.0
  %1533 = vmatprep.subr.mxu0 0.0
  %1534 = vmatpush1.msra.mxu0 0.0
  %1535 = vmatprep.subr.mxu0 0.0
  %1536 = vmatpush1.msra.mxu0 0.0
  %1537 = vmatprep.subr.mxu0 0.0
  %1538 = vmatpush1.msra.mxu0 0.0
  %1539 = vmatprep.subr.mxu0 0.0
  %1540 = vmatpush1.msra.mxu0 0.0
  %1541 = vmatprep.subr.mxu0 0.0
  %1542 = vmatpush1.msra.mxu0 0.0
  %1543 = vmatprep.subr.mxu0 0.0
  %1544 = vmatpush1.msra.mxu0 0.0
  %1545 = vmatprep.subr.mxu0 0.0
  %1546 = vmatpush1.msra.mxu0 0.0
  %1547 = vmatprep.subr.mxu0 0.0
  %1548 = vmatpush1.msra.mxu0 0.0
  %1549 = vmatprep.subr.mxu0 0.0
  %1550 = vmatpush1.msra.mxu0 0.0
  %1551 = vmatprep.subr.mxu0 0.0
  %1552 = vmatpush1.msra.mxu0 0.0
  %1553 = vmatprep.subr.mxu0 0.0
  %1554 = vmatpush1.msra.mxu0 0.0
  %1555 = vmatprep.subr.mxu0 0.0
  %1556 = vmatpush1.msra.mxu0 0.0
  %1557 = vmatprep.subr.mxu0 0.0
  %1558 = vmatpush1.msra.mxu0 0.0
  %1559 = vmatprep.subr.mxu0 0.0
  %1560 = vmatpush1.msra.mxu0 0.0
  %1561 = vmatprep.subr.mxu0 0.0
  %1562 = vmatpush1.msra.mxu0 0.0
  %1563 = vmatprep.subr.mxu0 0.0
  %1564 = vmatpush1.msra.mxu0 0.0
  %1565 = vmatprep.subr.mxu0 0.0
  %1566 = vmatpush1.msra.mxu0 0.0
  %1567 = vmatprep.subr.mxu0 0.0
  %1568 = vmatpush1.msra.mxu0 0.0
  %1569 = vmatprep.subr.mxu0 0.0
  %1570 = vmatpush1.msra.mxu0 0.0
  %1571 = vmatprep.subr.mxu0 0.0
  %1572 = vmatpush1.msra.mxu0 0.0
  %1573 = vmatprep.subr.mxu0 0.0
  %1574 = vmatpush1.msra.mxu0 0.0
  %1575 = vmatprep.subr.mxu0 0.0
  %1576 = vmatpush1.msra.mxu0 0.0
  %1577 = vmatprep.subr.mxu0 0.0
  %1578 = vmatpush1.msra.mxu0 0.0
  %1579 = vmatprep.subr.mxu0 0.0
  %1580 = vmatpush1.msra.mxu0 0.0
  %1581 = vmatprep.mubr.f32.mxu0 0.0
  %1582 = vmatmul.mubr.f32.gmra.mrb[0].mxu0 %v1515
  %v1583 = vpop.f32.mrb[0].mxu0
  %v1584 = vadd.f32 %v1511, %v1583
  %v1585 = vpop.f32.mrb[0].mxu0
  %1586 = vdwg.mxu0
  %s1587 = scalar_lea.vmem %s9, 32
  %v1588 = vld [vmem:[%s1587] sm:$0xff]
  %v1589 = vld [vmem:[%s1587 + $0x8] sm:$0xff]
  %v1591 = vsel %vm137, %v1364, 0
  %1593 = vmatprep.subr.mxu0 0.0
  %1594 = vmatpush1.msra.mxu0 %v1588
  %1595 = vmatprep.subr.mxu0 0.0
  %1596 = vmatpush1.msra.mxu0 %v1589
  %1597 = vmatprep.subr.mxu0 0.0
  %1598 = vmatpush1.msra.mxu0 0.0
  %1599 = vmatprep.subr.mxu0 0.0
  %1600 = vmatpush1.msra.mxu0 0.0
  %1601 = vmatprep.subr.mxu0 0.0
  %1602 = vmatpush1.msra.mxu0 0.0
  %1603 = vmatprep.subr.mxu0 0.0
  %1604 = vmatpush1.msra.mxu0 0.0
  %1605 = vmatprep.subr.mxu0 0.0
  %1606 = vmatpush1.msra.mxu0 0.0
  %1607 = vmatprep.subr.mxu0 0.0
  %1608 = vmatpush1.msra.mxu0 0.0
  %1609 = vmatprep.subr.mxu0 0.0
  %1610 = vmatpush1.msra.mxu0 0.0
  %1611 = vmatprep.subr.mxu0 0.0
  %1612 = vmatpush1.msra.mxu0 0.0
  %1613 = vmatprep.subr.mxu0 0.0
  %1614 = vmatpush1.msra.mxu0 0.0
  %1615 = vmatprep.subr.mxu0 0.0
  %1616 = vmatpush1.msra.mxu0 0.0
  %1617 = vmatprep.subr.mxu0 0.0
  %1618 = vmatpush1.msra.mxu0 0.0
  %1619 = vmatprep.subr.mxu0 0.0
  %1620 = vmatpush1.msra.mxu0 0.0
  %1621 = vmatprep.subr.mxu0 0.0
  %1622 = vmatpush1.msra.mxu0 0.0
  %1623 = vmatprep.subr.mxu0 0.0
  %1624 = vmatpush1.msra.mxu0 0.0
  %1625 = vmatprep.subr.mxu0 0.0
  %1626 = vmatpush1.msra.mxu0 0.0
  %1627 = vmatprep.subr.mxu0 0.0
  %1628 = vmatpush1.msra.mxu0 0.0
  %1629 = vmatprep.subr.mxu0 0.0
  %1630 = vmatpush1.msra.mxu0 0.0
  %1631 = vmatprep.subr.mxu0 0.0
  %1632 = vmatpush1.msra.mxu0 0.0
  %1633 = vmatprep.subr.mxu0 0.0
  %1634 = vmatpush1.msra.mxu0 0.0
  %1635 = vmatprep.subr.mxu0 0.0
  %1636 = vmatpush1.msra.mxu0 0.0
  %1637 = vmatprep.subr.mxu0 0.0
  %1638 = vmatpush1.msra.mxu0 0.0
  %1639 = vmatprep.subr.mxu0 0.0
  %1640 = vmatpush1.msra.mxu0 0.0
  %1641 = vmatprep.subr.mxu0 0.0
  %1642 = vmatpush1.msra.mxu0 0.0
  %1643 = vmatprep.subr.mxu0 0.0
  %1644 = vmatpush1.msra.mxu0 0.0
  %1645 = vmatprep.subr.mxu0 0.0
  %1646 = vmatpush1.msra.mxu0 0.0
  %1647 = vmatprep.subr.mxu0 0.0
  %1648 = vmatpush1.msra.mxu0 0.0
  %1649 = vmatprep.subr.mxu0 0.0
  %1650 = vmatpush1.msra.mxu0 0.0
  %1651 = vmatprep.subr.mxu0 0.0
  %1652 = vmatpush1.msra.mxu0 0.0
  %1653 = vmatprep.subr.mxu0 0.0
  %1654 = vmatpush1.msra.mxu0 0.0
  %1655 = vmatprep.subr.mxu0 0.0
  %1656 = vmatpush1.msra.mxu0 0.0
  %1657 = vmatprep.mubr.f32.mxu0 0.0
  %1658 = vmatmul.mubr.f32.gmra.mrb[0].mxu0 %v1591
  %v1659 = vpop.f32.mrb[0].mxu0
  %v1660 = vadd.f32 0.0, %v1659
  %v1661 = vpop.f32.mrb[0].mxu0
  %1662 = vdwg.mxu0
  %v1663 = vadd.f32 %v1584, %v1660
  %v1665 = vlaneseq
  %v1666 = vshrl.u32 %v1665, 7
  %v1667 = vsub.s32 0, %v1666
  %v1668 = vrot.slane %v1365, %v1667
  %v1670 = vadd.f32 %v1663, %v1668
  %1671 = vmatprep.subr.mxu0 0.0
  %1672 = vmatpush1.msra.mxu0 %v1439
  %1673 = vmatprep.subr.mxu0 0.0
  %1674 = vmatpush1.msra.mxu0 %v1440
  %1675 = vmatprep.subr.mxu0 0.0
  %1676 = vmatpush1.msra.mxu0 0.0
  %1677 = vmatprep.subr.mxu0 0.0
  %1678 = vmatpush1.msra.mxu0 0.0
  %1679 = vmatprep.subr.mxu0 0.0
  %1680 = vmatpush1.msra.mxu0 0.0
  %1681 = vmatprep.subr.mxu0 0.0
  %1682 = vmatpush1.msra.mxu0 0.0
  %1683 = vmatprep.subr.mxu0 0.0
  %1684 = vmatpush1.msra.mxu0 0.0
  %1685 = vmatprep.subr.mxu0 0.0
  %1686 = vmatpush1.msra.mxu0 0.0
  %1687 = vmatprep.subr.mxu0 0.0
  %1688 = vmatpush1.msra.mxu0 0.0
  %1689 = vmatprep.subr.mxu0 0.0
  %1690 = vmatpush1.msra.mxu0 0.0
  %1691 = vmatprep.subr.mxu0 0.0
  %1692 = vmatpush1.msra.mxu0 0.0
  %1693 = vmatprep.subr.mxu0 0.0
  %1694 = vmatpush1.msra.mxu0 0.0
  %1695 = vmatprep.subr.mxu0 0.0
  %1696 = vmatpush1.msra.mxu0 0.0
  %1697 = vmatprep.subr.mxu0 0.0
  %1698 = vmatpush1.msra.mxu0 0.0
  %1699 = vmatprep.subr.mxu0 0.0
  %1700 = vmatpush1.msra.mxu0 0.0
  %1701 = vmatprep.subr.mxu0 0.0
  %1702 = vmatpush1.msra.mxu0 0.0
  %1703 = vmatprep.subr.mxu0 0.0
  %1704 = vmatpush1.msra.mxu0 0.0
  %1705 = vmatprep.subr.mxu0 0.0
  %1706 = vmatpush1.msra.mxu0 0.0
  %1707 = vmatprep.subr.mxu0 0.0
  %1708 = vmatpush1.msra.mxu0 0.0
  %1709 = vmatprep.subr.mxu0 0.0
  %1710 = vmatpush1.msra.mxu0 0.0
  %1711 = vmatprep.subr.mxu0 0.0
  %1712 = vmatpush1.msra.mxu0 0.0
  %1713 = vmatprep.subr.mxu0 0.0
  %1714 = vmatpush1.msra.mxu0 0.0
  %1715 = vmatprep.subr.mxu0 0.0
  %1716 = vmatpush1.msra.mxu0 0.0
  %1717 = vmatprep.subr.mxu0 0.0
  %1718 = vmatpush1.msra.mxu0 0.0
  %1719 = vmatprep.subr.mxu0 0.0
  %1720 = vmatpush1.msra.mxu0 0.0
  %1721 = vmatprep.subr.mxu0 0.0
  %1722 = vmatpush1.msra.mxu0 0.0
  %1723 = vmatprep.subr.mxu0 0.0
  %1724 = vmatpush1.msra.mxu0 0.0
  %1725 = vmatprep.subr.mxu0 0.0
  %1726 = vmatpush1.msra.mxu0 0.0
  %1727 = vmatprep.subr.mxu0 0.0
  %1728 = vmatpush1.msra.mxu0 0.0
  %1729 = vmatprep.subr.mxu0 0.0
  %1730 = vmatpush1.msra.mxu0 0.0
  %1731 = vmatprep.subr.mxu0 0.0
  %1732 = vmatpush1.msra.mxu0 0.0
  %1733 = vmatprep.subr.mxu0 0.0
  %1734 = vmatpush1.msra.mxu0 0.0
  %1735 = vmatprep.mubr.f32.mxu0 0.0
  %1736 = vmatmul.mubr.f32.gmra.mrb[0].mxu0 %v1591
  %v1737 = vpop.f32.mrb[0].mxu0
  %v1738 = vadd.f32 0.0, %v1737
  %v1739 = vpop.f32.mrb[0].mxu0
  %1740 = vdwg.mxu0
  %1741 = vmatprep.subr.mxu0 0.0
  %1742 = vmatpush1.msra.mxu0 %v1436
  %1743 = vmatprep.subr.mxu0 0.0
  %1744 = vmatpush1.msra.mxu0 %v1437
  %1745 = vmatprep.subr.mxu0 0.0
  %1746 = vmatpush1.msra.mxu0 0.0
  %1747 = vmatprep.subr.mxu0 0.0
  %1748 = vmatpush1.msra.mxu0 0.0
  %1749 = vmatprep.subr.mxu0 0.0
  %1750 = vmatpush1.msra.mxu0 0.0
  %1751 = vmatprep.subr.mxu0 0.0
  %1752 = vmatpush1.msra.mxu0 0.0
  %1753 = vmatprep.subr.mxu0 0.0
  %1754 = vmatpush1.msra.mxu0 0.0
  %1755 = vmatprep.subr.mxu0 0.0
  %1756 = vmatpush1.msra.mxu0 0.0
  %1757 = vmatprep.subr.mxu0 0.0
  %1758 = vmatpush1.msra.mxu0 0.0
  %1759 = vmatprep.subr.mxu0 0.0
  %1760 = vmatpush1.msra.mxu0 0.0
  %1761 = vmatprep.subr.mxu0 0.0
  %1762 = vmatpush1.msra.mxu0 0.0
  %1763 = vmatprep.subr.mxu0 0.0
  %1764 = vmatpush1.msra.mxu0 0.0
  %1765 = vmatprep.subr.mxu0 0.0
  %1766 = vmatpush1.msra.mxu0 0.0
  %1767 = vmatprep.subr.mxu0 0.0
  %1768 = vmatpush1.msra.mxu0 0.0
  %1769 = vmatprep.subr.mxu0 0.0
  %1770 = vmatpush1.msra.mxu0 0.0
  %1771 = vmatprep.subr.mxu0 0.0
  %1772 = vmatpush1.msra.mxu0 0.0
  %1773 = vmatprep.subr.mxu0 0.0
  %1774 = vmatpush1.msra.mxu0 0.0
  %1775 = vmatprep.subr.mxu0 0.0
  %1776 = vmatpush1.msra.mxu0 0.0
  %1777 = vmatprep.subr.mxu0 0.0
  %1778 = vmatpush1.msra.mxu0 0.0
  %1779 = vmatprep.subr.mxu0 0.0
  %1780 = vmatpush1.msra.mxu0 0.0
  %1781 = vmatprep.subr.mxu0 0.0
  %1782 = vmatpush1.msra.mxu0 0.0
  %1783 = vmatprep.subr.mxu0 0.0
  %1784 = vmatpush1.msra.mxu0 0.0
  %1785 = vmatprep.subr.mxu0 0.0
  %1786 = vmatpush1.msra.mxu0 0.0
  %1787 = vmatprep.subr.mxu0 0.0
  %1788 = vmatpush1.msra.mxu0 0.0
  %1789 = vmatprep.subr.mxu0 0.0
  %1790 = vmatpush1.msra.mxu0 0.0
  %1791 = vmatprep.subr.mxu0 0.0
  %1792 = vmatpush1.msra.mxu0 0.0
  %1793 = vmatprep.subr.mxu0 0.0
  %1794 = vmatpush1.msra.mxu0 0.0
  %1795 = vmatprep.subr.mxu0 0.0
  %1796 = vmatpush1.msra.mxu0 0.0
  %1797 = vmatprep.subr.mxu0 0.0
  %1798 = vmatpush1.msra.mxu0 0.0
  %1799 = vmatprep.subr.mxu0 0.0
  %1800 = vmatpush1.msra.mxu0 0.0
  %1801 = vmatprep.subr.mxu0 0.0
  %1802 = vmatpush1.msra.mxu0 0.0
  %1803 = vmatprep.subr.mxu0 0.0
  %1804 = vmatpush1.msra.mxu0 0.0
  %1805 = vmatprep.mubr.f32.mxu0 0.0
  %1806 = vmatmul.mubr.f32.gmra.mrb[0].mxu0 %v1442
  %v1807 = vpop.f32.mrb[0].mxu0
  %v1808 = vadd.f32 %v1738, %v1807
  %v1809 = vpop.f32.mrb[0].mxu0
  %1810 = vdwg.mxu0
  %1811 = vmatprep.subr.mxu0 0.0
  %1812 = vmatpush1.msra.mxu0 %v1141
  %1813 = vmatprep.subr.mxu0 0.0
  %1814 = vmatpush1.msra.mxu0 0.0
  %1815 = vmatprep.subr.mxu0 0.0
  %1816 = vmatpush1.msra.mxu0 0.0
  %1817 = vmatprep.subr.mxu0 0.0
  %1818 = vmatpush1.msra.mxu0 0.0
  %1819 = vmatprep.subr.mxu0 0.0
  %1820 = vmatpush1.msra.mxu0 0.0
  %1821 = vmatprep.subr.mxu0 0.0
  %1822 = vmatpush1.msra.mxu0 0.0
  %1823 = vmatprep.subr.mxu0 0.0
  %1824 = vmatpush1.msra.mxu0 0.0
  %1825 = vmatprep.subr.mxu0 0.0
  %1826 = vmatpush1.msra.mxu0 0.0
  %1827 = vmatprep.subr.mxu0 0.0
  %1828 = vmatpush1.msra.mxu0 0.0
  %1829 = vmatprep.subr.mxu0 0.0
  %1830 = vmatpush1.msra.mxu0 0.0
  %1831 = vmatprep.subr.mxu0 0.0
  %1832 = vmatpush1.msra.mxu0 0.0
  %1833 = vmatprep.subr.mxu0 0.0
  %1834 = vmatpush1.msra.mxu0 0.0
  %1835 = vmatprep.subr.mxu0 0.0
  %1836 = vmatpush1.msra.mxu0 0.0
  %1837 = vmatprep.subr.mxu0 0.0
  %1838 = vmatpush1.msra.mxu0 0.0
  %1839 = vmatprep.subr.mxu0 0.0
  %1840 = vmatpush1.msra.mxu0 0.0
  %1841 = vmatprep.subr.mxu0 0.0
  %1842 = vmatpush1.msra.mxu0 0.0
  %1843 = vmatprep.subr.mxu0 0.0
  %1844 = vmatpush1.msra.mxu0 0.0
  %1845 = vmatprep.subr.mxu0 0.0
  %1846 = vmatpush1.msra.mxu0 0.0
  %1847 = vmatprep.subr.mxu0 0.0
  %1848 = vmatpush1.msra.mxu0 0.0
  %1849 = vmatprep.subr.mxu0 0.0
  %1850 = vmatpush1.msra.mxu0 0.0
  %1851 = vmatprep.subr.mxu0 0.0
  %1852 = vmatpush1.msra.mxu0 0.0
  %1853 = vmatprep.subr.mxu0 0.0
  %1854 = vmatpush1.msra.mxu0 0.0
  %1855 = vmatprep.subr.mxu0 0.0
  %1856 = vmatpush1.msra.mxu0 0.0
  %1857 = vmatprep.subr.mxu0 0.0
  %1858 = vmatpush1.msra.mxu0 0.0
  %1859 = vmatprep.subr.mxu0 0.0
  %1860 = vmatpush1.msra.mxu0 0.0
  %1861 = vmatprep.subr.mxu0 0.0
  %1862 = vmatpush1.msra.mxu0 0.0
  %1863 = vmatprep.subr.mxu0 0.0
  %1864 = vmatpush1.msra.mxu0 0.0
  %1865 = vmatprep.subr.mxu0 0.0
  %1866 = vmatpush1.msra.mxu0 0.0
  %1867 = vmatprep.subr.mxu0 0.0
  %1868 = vmatpush1.msra.mxu0 0.0
  %1869 = vmatprep.subr.mxu0 0.0
  %1870 = vmatpush1.msra.mxu0 0.0
  %1871 = vmatprep.subr.mxu0 0.0
  %1872 = vmatpush1.msra.mxu0 0.0
  %1873 = vmatprep.subr.mxu0 0.0
  %1874 = vmatpush1.msra.mxu0 0.0
  %1875 = vmatprep.mubr.f32.mxu0 0.0
  %1876 = vmatmul.mubr.f32.gmra.mrb[0].mxu0 %v285
  %v1877 = vpop.f32.mrb[0].mxu0
  %v1878 = vadd.f32 0.0, %v1877
  %v1879 = vpop.f32.mrb[0].mxu0
  %1880 = vdwg.mxu0
  %v1882 = vsel %vm137, %v1878, 0
  %1884 = vmatprep.subr.mxu0 0.0
  %1885 = vmatpush1.msra.mxu0 %v1588
  %1886 = vmatprep.subr.mxu0 0.0
  %1887 = vmatpush1.msra.mxu0 %v1589
  %1888 = vmatprep.subr.mxu0 0.0
  %1889 = vmatpush1.msra.mxu0 0.0
  %1890 = vmatprep.subr.mxu0 0.0
  %1891 = vmatpush1.msra.mxu0 0.0
  %1892 = vmatprep.subr.mxu0 0.0
  %1893 = vmatpush1.msra.mxu0 0.0
  %1894 = vmatprep.subr.mxu0 0.0
  %1895 = vmatpush1.msra.mxu0 0.0
  %1896 = vmatprep.subr.mxu0 0.0
  %1897 = vmatpush1.msra.mxu0 0.0
  %1898 = vmatprep.subr.mxu0 0.0
  %1899 = vmatpush1.msra.mxu0 0.0
  %1900 = vmatprep.subr.mxu0 0.0
  %1901 = vmatpush1.msra.mxu0 0.0
  %1902 = vmatprep.subr.mxu0 0.0
  %1903 = vmatpush1.msra.mxu0 0.0
  %1904 = vmatprep.subr.mxu0 0.0
  %1905 = vmatpush1.msra.mxu0 0.0
  %1906 = vmatprep.subr.mxu0 0.0
  %1907 = vmatpush1.msra.mxu0 0.0
  %1908 = vmatprep.subr.mxu0 0.0
  %1909 = vmatpush1.msra.mxu0 0.0
  %1910 = vmatprep.subr.mxu0 0.0
  %1911 = vmatpush1.msra.mxu0 0.0
  %1912 = vmatprep.subr.mxu0 0.0
  %1913 = vmatpush1.msra.mxu0 0.0
  %1914 = vmatprep.subr.mxu0 0.0
  %1915 = vmatpush1.msra.mxu0 0.0
  %1916 = vmatprep.subr.mxu0 0.0
  %1917 = vmatpush1.msra.mxu0 0.0
  %1918 = vmatprep.subr.mxu0 0.0
  %1919 = vmatpush1.msra.mxu0 0.0
  %1920 = vmatprep.subr.mxu0 0.0
  %1921 = vmatpush1.msra.mxu0 0.0
  %1922 = vmatprep.subr.mxu0 0.0
  %1923 = vmatpush1.msra.mxu0 0.0
  %1924 = vmatprep.subr.mxu0 0.0
  %1925 = vmatpush1.msra.mxu0 0.0
  %1926 = vmatprep.subr.mxu0 0.0
  %1927 = vmatpush1.msra.mxu0 0.0
  %1928 = vmatprep.subr.mxu0 0.0
  %1929 = vmatpush1.msra.mxu0 0.0
  %1930 = vmatprep.subr.mxu0 0.0
  %1931 = vmatpush1.msra.mxu0 0.0
  %1932 = vmatprep.subr.mxu0 0.0
  %1933 = vmatpush1.msra.mxu0 0.0
  %1934 = vmatprep.subr.mxu0 0.0
  %1935 = vmatpush1.msra.mxu0 0.0
  %1936 = vmatprep.subr.mxu0 0.0
  %1937 = vmatpush1.msra.mxu0 0.0
  %1938 = vmatprep.subr.mxu0 0.0
  %1939 = vmatpush1.msra.mxu0 0.0
  %1940 = vmatprep.subr.mxu0 0.0
  %1941 = vmatpush1.msra.mxu0 0.0
  %1942 = vmatprep.subr.mxu0 0.0
  %1943 = vmatpush1.msra.mxu0 0.0
  %1944 = vmatprep.subr.mxu0 0.0
  %1945 = vmatpush1.msra.mxu0 0.0
  %1946 = vmatprep.subr.mxu0 0.0
  %1947 = vmatpush1.msra.mxu0 0.0
  %1948 = vmatprep.mubr.f32.mxu0 0.0
  %1949 = vmatmul.mubr.f32.gmra.mrb[0].mxu0 %v1882
  %v1950 = vpop.f32.mrb[0].mxu0
  %v1951 = vadd.f32 0.0, %v1950
  %v1952 = vpop.f32.mrb[0].mxu0
  %1953 = vdwg.mxu0
  %v1954 = vadd.f32 %v1808, %v1951
  %v1955 = vadd.f32 %v1954, %v1668
  %vm1956 = vcmask 195584
  %1957 = vst.msk [vmem:[%s11] sm:$0xff] %vm1956, %v1670
  %1958 = vst.msk [vmem:[%s12] sm:$0xff] %vm1956, %v1955
  %v1959 = vld [vmem:[%s1] sm:$0xff]
  %v1960 = vld [vmem:[%s1 + $0x8] sm:$0xff]
  %v1961 = vld [vmem:[%s56] sm:$0xff]
  %v1962 = vld [vmem:[%s56 + $0x8] sm:$0xff]
  %v1963 = vld [vmem:[%s59] sm:$0xff]
  %v1964 = vld [vmem:[%s59 + $0x8] sm:$0xff]
  %v1965 = vld [vmem:[%s2] sm:$0x1]
  %1966 = vmatprep.subr.mxu0 0.0
  %1967 = vmatpush1.msra.mxu0 %v53
  %1968 = vmatprep.subr.mxu0 0.0
  %1969 = vmatpush1.msra.mxu0 0.0
  %1970 = vmatprep.subr.mxu0 0.0
  %1971 = vmatpush1.msra.mxu0 0.0
  %1972 = vmatprep.subr.mxu0 0.0
  %1973 = vmatpush1.msra.mxu0 0.0
  %1974 = vmatprep.subr.mxu0 0.0
  %1975 = vmatpush1.msra.mxu0 0.0
  %1976 = vmatprep.subr.mxu0 0.0
  %1977 = vmatpush1.msra.mxu0 0.0
  %1978 = vmatprep.subr.mxu0 0.0
  %1979 = vmatpush1.msra.mxu0 0.0
  %1980 = vmatprep.subr.mxu0 0.0
  %1981 = vmatpush1.msra.mxu0 0.0
  %1982 = vmatprep.subr.mxu0 0.0
  %1983 = vmatpush1.msra.mxu0 0.0
  %1984 = vmatprep.subr.mxu0 0.0
  %1985 = vmatpush1.msra.mxu0 0.0
  %1986 = vmatprep.subr.mxu0 0.0
  %1987 = vmatpush1.msra.mxu0 0.0
  %1988 = vmatprep.subr.mxu0 0.0
  %1989 = vmatpush1.msra.mxu0 0.0
  %1990 = vmatprep.subr.mxu0 0.0
  %1991 = vmatpush1.msra.mxu0 0.0
  %1992 = vmatprep.subr.mxu0 0.0
  %1993 = vmatpush1.msra.mxu0 0.0
  %1994 = vmatprep.subr.mxu0 0.0
  %1995 = vmatpush1.msra.mxu0 0.0
  %1996 = vmatprep.subr.mxu0 0.0
  %1997 = vmatpush1.msra.mxu0 0.0
  %1998 = vmatprep.subr.mxu0 0.0
  %1999 = vmatpush1.msra.mxu0 0.0
  %2000 = vmatprep.subr.mxu0 0.0
  %2001 = vmatpush1.msra.mxu0 0.0
  %2002 = vmatprep.subr.mxu0 0.0
  %2003 = vmatpush1.msra.mxu0 0.0
  %2004 = vmatprep.subr.mxu0 0.0
  %2005 = vmatpush1.msra.mxu0 0.0
  %2006 = vmatprep.subr.mxu0 0.0
  %2007 = vmatpush1.msra.mxu0 0.0
  %2008 = vmatprep.subr.mxu0 0.0
  %2009 = vmatpush1.msra.mxu0 0.0
  %2010 = vmatprep.subr.mxu0 0.0
  %2011 = vmatpush1.msra.mxu0 0.0
  %2012 = vmatprep.subr.mxu0 0.0
  %2013 = vmatpush1.msra.mxu0 0.0
  %2014 = vmatprep.subr.mxu0 0.0
  %2015 = vmatpush1.msra.mxu0 0.0
  %2016 = vmatprep.subr.mxu0 0.0
  %2017 = vmatpush1.msra.mxu0 0.0
  %2018 = vmatprep.subr.mxu0 0.0
  %2019 = vmatpush1.msra.mxu0 0.0
  %2020 = vmatprep.subr.mxu0 0.0
  %2021 = vmatpush1.msra.mxu0 0.0
  %2022 = vmatprep.subr.mxu0 0.0
  %2023 = vmatpush1.msra.mxu0 0.0
  %2024 = vmatprep.subr.mxu0 0.0
  %2025 = vmatpush1.msra.mxu0 0.0
  %2026 = vmatprep.subr.mxu0 0.0
  %2027 = vmatpush1.msra.mxu0 0.0
  %2028 = vmatprep.subr.mxu0 0.0
  %2029 = vmatpush1.msra.mxu0 0.0
  %2030 = vmatprep.mubr.f32.mxu0 0.0
  %2031 = vmatmul.mubr.f32.gmra.mrb[0].mxu0 %v65
  %v2032 = vpop.f32.mrb[0].mxu0
  %v2033 = vadd.f32 0.0, %v2032
  %v2034 = vpop.f32.mrb[0].mxu0
  %2035 = vdwg.mxu0
  %v2037 = vsel %vm137, %v53, 0
  %2039 = vmatprep.subr.mxu0 0.0
  %2040 = vmatpush1.msra.mxu0 %v1961
  %2041 = vmatprep.subr.mxu0 0.0
  %2042 = vmatpush1.msra.mxu0 %v1962
  %2043 = vmatprep.subr.mxu0 0.0
  %2044 = vmatpush1.msra.mxu0 0.0
  %2045 = vmatprep.subr.mxu0 0.0
  %2046 = vmatpush1.msra.mxu0 0.0
  %2047 = vmatprep.subr.mxu0 0.0
  %2048 = vmatpush1.msra.mxu0 0.0
  %2049 = vmatprep.subr.mxu0 0.0
  %2050 = vmatpush1.msra.mxu0 0.0
  %2051 = vmatprep.subr.mxu0 0.0
  %2052 = vmatpush1.msra.mxu0 0.0
  %2053 = vmatprep.subr.mxu0 0.0
  %2054 = vmatpush1.msra.mxu0 0.0
  %2055 = vmatprep.subr.mxu0 0.0
  %2056 = vmatpush1.msra.mxu0 0.0
  %2057 = vmatprep.subr.mxu0 0.0
  %2058 = vmatpush1.msra.mxu0 0.0
  %2059 = vmatprep.subr.mxu0 0.0
  %2060 = vmatpush1.msra.mxu0 0.0
  %2061 = vmatprep.subr.mxu0 0.0
  %2062 = vmatpush1.msra.mxu0 0.0
  %2063 = vmatprep.subr.mxu0 0.0
  %2064 = vmatpush1.msra.mxu0 0.0
  %2065 = vmatprep.subr.mxu0 0.0
  %2066 = vmatpush1.msra.mxu0 0.0
  %2067 = vmatprep.subr.mxu0 0.0
  %2068 = vmatpush1.msra.mxu0 0.0
  %2069 = vmatprep.subr.mxu0 0.0
  %2070 = vmatpush1.msra.mxu0 0.0
  %2071 = vmatprep.subr.mxu0 0.0
  %2072 = vmatpush1.msra.mxu0 0.0
  %2073 = vmatprep.subr.mxu0 0.0
  %2074 = vmatpush1.msra.mxu0 0.0
  %2075 = vmatprep.subr.mxu0 0.0
  %2076 = vmatpush1.msra.mxu0 0.0
  %2077 = vmatprep.subr.mxu0 0.0
  %2078 = vmatpush1.msra.mxu0 0.0
  %2079 = vmatprep.subr.mxu0 0.0
  %2080 = vmatpush1.msra.mxu0 0.0
  %2081 = vmatprep.subr.mxu0 0.0
  %2082 = vmatpush1.msra.mxu0 0.0
  %2083 = vmatprep.subr.mxu0 0.0
  %2084 = vmatpush1.msra.mxu0 0.0
  %2085 = vmatprep.subr.mxu0 0.0
  %2086 = vmatpush1.msra.mxu0 0.0
  %2087 = vmatprep.subr.mxu0 0.0
  %2088 = vmatpush1.msra.mxu0 0.0
  %2089 = vmatprep.subr.mxu0 0.0
  %2090 = vmatpush1.msra.mxu0 0.0
  %2091 = vmatprep.subr.mxu0 0.0
  %2092 = vmatpush1.msra.mxu0 0.0
  %2093 = vmatprep.subr.mxu0 0.0
  %2094 = vmatpush1.msra.mxu0 0.0
  %2095 = vmatprep.subr.mxu0 0.0
  %2096 = vmatpush1.msra.mxu0 0.0
  %2097 = vmatprep.subr.mxu0 0.0
  %2098 = vmatpush1.msra.mxu0 0.0
  %2099 = vmatprep.subr.mxu0 0.0
  %2100 = vmatpush1.msra.mxu0 0.0
  %2101 = vmatprep.subr.mxu0 0.0
  %2102 = vmatpush1.msra.mxu0 0.0
  %2103 = vmatprep.mubr.f32.mxu0 0.0
  %2104 = vmatmul.mubr.f32.gmra.mrb[0].mxu0 %v2037
  %v2105 = vpop.f32.mrb[0].mxu0
  %v2106 = vadd.f32 0.0, %v2105
  %v2107 = vpop.f32.mrb[0].mxu0
  %2108 = vdwg.mxu0
  %v2110 = vsel %vm137, %v2033, 0
  %2112 = vmatprep.subr.mxu0 0.0
  %2113 = vmatpush1.msra.mxu0 %v1959
  %2114 = vmatprep.subr.mxu0 0.0
  %2115 = vmatpush1.msra.mxu0 %v1960
  %2116 = vmatprep.subr.mxu0 0.0
  %2117 = vmatpush1.msra.mxu0 0.0
  %2118 = vmatprep.subr.mxu0 0.0
  %2119 = vmatpush1.msra.mxu0 0.0
  %2120 = vmatprep.subr.mxu0 0.0
  %2121 = vmatpush1.msra.mxu0 0.0
  %2122 = vmatprep.subr.mxu0 0.0
  %2123 = vmatpush1.msra.mxu0 0.0
  %2124 = vmatprep.subr.mxu0 0.0
  %2125 = vmatpush1.msra.mxu0 0.0
  %2126 = vmatprep.subr.mxu0 0.0
  %2127 = vmatpush1.msra.mxu0 0.0
  %2128 = vmatprep.subr.mxu0 0.0
  %2129 = vmatpush1.msra.mxu0 0.0
  %2130 = vmatprep.subr.mxu0 0.0
  %2131 = vmatpush1.msra.mxu0 0.0
  %2132 = vmatprep.subr.mxu0 0.0
  %2133 = vmatpush1.msra.mxu0 0.0
  %2134 = vmatprep.subr.mxu0 0.0
  %2135 = vmatpush1.msra.mxu0 0.0
  %2136 = vmatprep.subr.mxu0 0.0
  %2137 = vmatpush1.msra.mxu0 0.0
  %2138 = vmatprep.subr.mxu0 0.0
  %2139 = vmatpush1.msra.mxu0 0.0
  %2140 = vmatprep.subr.mxu0 0.0
  %2141 = vmatpush1.msra.mxu0 0.0
  %2142 = vmatprep.subr.mxu0 0.0
  %2143 = vmatpush1.msra.mxu0 0.0
  %2144 = vmatprep.subr.mxu0 0.0
  %2145 = vmatpush1.msra.mxu0 0.0
  %2146 = vmatprep.subr.mxu0 0.0
  %2147 = vmatpush1.msra.mxu0 0.0
  %2148 = vmatprep.subr.mxu0 0.0
  %2149 = vmatpush1.msra.mxu0 0.0
  %2150 = vmatprep.subr.mxu0 0.0
  %2151 = vmatpush1.msra.mxu0 0.0
  %2152 = vmatprep.subr.mxu0 0.0
  %2153 = vmatpush1.msra.mxu0 0.0
  %2154 = vmatprep.subr.mxu0 0.0
  %2155 = vmatpush1.msra.mxu0 0.0
  %2156 = vmatprep.subr.mxu0 0.0
  %2157 = vmatpush1.msra.mxu0 0.0
  %2158 = vmatprep.subr.mxu0 0.0
  %2159 = vmatpush1.msra.mxu0 0.0
  %2160 = vmatprep.subr.mxu0 0.0
  %2161 = vmatpush1.msra.mxu0 0.0
  %2162 = vmatprep.subr.mxu0 0.0
  %2163 = vmatpush1.msra.mxu0 0.0
  %2164 = vmatprep.subr.mxu0 0.0
  %2165 = vmatpush1.msra.mxu0 0.0
  %2166 = vmatprep.subr.mxu0 0.0
  %2167 = vmatpush1.msra.mxu0 0.0
  %2168 = vmatprep.subr.mxu0 0.0
  %2169 = vmatpush1.msra.mxu0 0.0
  %2170 = vmatprep.subr.mxu0 0.0
  %2171 = vmatpush1.msra.mxu0 0.0
  %2172 = vmatprep.subr.mxu0 0.0
  %2173 = vmatpush1.msra.mxu0 0.0
  %2174 = vmatprep.subr.mxu0 0.0
  %2175 = vmatpush1.msra.mxu0 0.0
  %2176 = vmatprep.mubr.f32.mxu0 0.0
  %2177 = vmatmul.mubr.f32.gmra.mrb[0].mxu0 %v2110
  %v2178 = vpop.f32.mrb[0].mxu0
  %v2179 = vadd.f32 %v2106, %v2178
  %v2180 = vpop.f32.mrb[0].mxu0
  %2181 = vdwg.mxu0
  %2182 = vmatprep.subr.mxu0 0.0
  %2183 = vmatpush1.msra.mxu0 %v53
  %2184 = vmatprep.subr.mxu0 0.0
  %2185 = vmatpush1.msra.mxu0 0.0
  %2186 = vmatprep.subr.mxu0 0.0
  %2187 = vmatpush1.msra.mxu0 0.0
  %2188 = vmatprep.subr.mxu0 0.0
  %2189 = vmatpush1.msra.mxu0 0.0
  %2190 = vmatprep.subr.mxu0 0.0
  %2191 = vmatpush1.msra.mxu0 0.0
  %2192 = vmatprep.subr.mxu0 0.0
  %2193 = vmatpush1.msra.mxu0 0.0
  %2194 = vmatprep.subr.mxu0 0.0
  %2195 = vmatpush1.msra.mxu0 0.0
  %2196 = vmatprep.subr.mxu0 0.0
  %2197 = vmatpush1.msra.mxu0 0.0
  %2198 = vmatprep.subr.mxu0 0.0
  %2199 = vmatpush1.msra.mxu0 0.0
  %2200 = vmatprep.subr.mxu0 0.0
  %2201 = vmatpush1.msra.mxu0 0.0
  %2202 = vmatprep.subr.mxu0 0.0
  %2203 = vmatpush1.msra.mxu0 0.0
  %2204 = vmatprep.subr.mxu0 0.0
  %2205 = vmatpush1.msra.mxu0 0.0
  %2206 = vmatprep.subr.mxu0 0.0
  %2207 = vmatpush1.msra.mxu0 0.0
  %2208 = vmatprep.subr.mxu0 0.0
  %2209 = vmatpush1.msra.mxu0 0.0
  %2210 = vmatprep.subr.mxu0 0.0
  %2211 = vmatpush1.msra.mxu0 0.0
  %2212 = vmatprep.subr.mxu0 0.0
  %2213 = vmatpush1.msra.mxu0 0.0
  %2214 = vmatprep.subr.mxu0 0.0
  %2215 = vmatpush1.msra.mxu0 0.0
  %2216 = vmatprep.subr.mxu0 0.0
  %2217 = vmatpush1.msra.mxu0 0.0
  %2218 = vmatprep.subr.mxu0 0.0
  %2219 = vmatpush1.msra.mxu0 0.0
  %2220 = vmatprep.subr.mxu0 0.0
  %2221 = vmatpush1.msra.mxu0 0.0
  %2222 = vmatprep.subr.mxu0 0.0
  %2223 = vmatpush1.msra.mxu0 0.0
  %2224 = vmatprep.subr.mxu0 0.0
  %2225 = vmatpush1.msra.mxu0 0.0
  %2226 = vmatprep.subr.mxu0 0.0
  %2227 = vmatpush1.msra.mxu0 0.0
  %2228 = vmatprep.subr.mxu0 0.0
  %2229 = vmatpush1.msra.mxu0 0.0
  %2230 = vmatprep.subr.mxu0 0.0
  %2231 = vmatpush1.msra.mxu0 0.0
  %2232 = vmatprep.subr.mxu0 0.0
  %2233 = vmatpush1.msra.mxu0 0.0
  %2234 = vmatprep.subr.mxu0 0.0
  %2235 = vmatpush1.msra.mxu0 0.0
  %2236 = vmatprep.subr.mxu0 0.0
  %2237 = vmatpush1.msra.mxu0 0.0
  %2238 = vmatprep.subr.mxu0 0.0
  %2239 = vmatpush1.msra.mxu0 0.0
  %2240 = vmatprep.subr.mxu0 0.0
  %2241 = vmatpush1.msra.mxu0 0.0
  %2242 = vmatprep.subr.mxu0 0.0
  %2243 = vmatpush1.msra.mxu0 0.0
  %2244 = vmatprep.subr.mxu0 0.0
  %2245 = vmatpush1.msra.mxu0 0.0
  %2246 = vmatprep.mubr.f32.mxu0 0.0
  %2247 = vmatmul.mubr.f32.gmra.mrb[0].mxu0 %v285
  %v2248 = vpop.f32.mrb[0].mxu0
  %v2249 = vadd.f32 0.0, %v2248
  %v2250 = vpop.f32.mrb[0].mxu0
  %2251 = vdwg.mxu0
  %v2253 = vsel %vm137, %v2249, 0
  %2255 = vmatprep.subr.mxu0 0.0
  %2256 = vmatpush1.msra.mxu0 %v1963
  %2257 = vmatprep.subr.mxu0 0.0
  %2258 = vmatpush1.msra.mxu0 %v1964
  %2259 = vmatprep.subr.mxu0 0.0
  %2260 = vmatpush1.msra.mxu0 0.0
  %2261 = vmatprep.subr.mxu0 0.0
  %2262 = vmatpush1.msra.mxu0 0.0
  %2263 = vmatprep.subr.mxu0 0.0
  %2264 = vmatpush1.msra.mxu0 0.0
  %2265 = vmatprep.subr.mxu0 0.0
  %2266 = vmatpush1.msra.mxu0 0.0
  %2267 = vmatprep.subr.mxu0 0.0
  %2268 = vmatpush1.msra.mxu0 0.0
  %2269 = vmatprep.subr.mxu0 0.0
  %2270 = vmatpush1.msra.mxu0 0.0
  %2271 = vmatprep.subr.mxu0 0.0
  %2272 = vmatpush1.msra.mxu0 0.0
  %2273 = vmatprep.subr.mxu0 0.0
  %2274 = vmatpush1.msra.mxu0 0.0
  %2275 = vmatprep.subr.mxu0 0.0
  %2276 = vmatpush1.msra.mxu0 0.0
  %2277 = vmatprep.subr.mxu0 0.0
  %2278 = vmatpush1.msra.mxu0 0.0
  %2279 = vmatprep.subr.mxu0 0.0
  %2280 = vmatpush1.msra.mxu0 0.0
  %2281 = vmatprep.subr.mxu0 0.0
  %2282 = vmatpush1.msra.mxu0 0.0
  %2283 = vmatprep.subr.mxu0 0.0
  %2284 = vmatpush1.msra.mxu0 0.0
  %2285 = vmatprep.subr.mxu0 0.0
  %2286 = vmatpush1.msra.mxu0 0.0
  %2287 = vmatprep.subr.mxu0 0.0
  %2288 = vmatpush1.msra.mxu0 0.0
  %2289 = vmatprep.subr.mxu0 0.0
  %2290 = vmatpush1.msra.mxu0 0.0
  %2291 = vmatprep.subr.mxu0 0.0
  %2292 = vmatpush1.msra.mxu0 0.0
  %2293 = vmatprep.subr.mxu0 0.0
  %2294 = vmatpush1.msra.mxu0 0.0
  %2295 = vmatprep.subr.mxu0 0.0
  %2296 = vmatpush1.msra.mxu0 0.0
  %2297 = vmatprep.subr.mxu0 0.0
  %2298 = vmatpush1.msra.mxu0 0.0
  %2299 = vmatprep.subr.mxu0 0.0
  %2300 = vmatpush1.msra.mxu0 0.0
  %2301 = vmatprep.subr.mxu0 0.0
  %2302 = vmatpush1.msra.mxu0 0.0
  %2303 = vmatprep.subr.mxu0 0.0
  %2304 = vmatpush1.msra.mxu0 0.0
  %2305 = vmatprep.subr.mxu0 0.0
  %2306 = vmatpush1.msra.mxu0 0.0
  %2307 = vmatprep.subr.mxu0 0.0
  %2308 = vmatpush1.msra.mxu0 0.0
  %2309 = vmatprep.subr.mxu0 0.0
  %2310 = vmatpush1.msra.mxu0 0.0
  %2311 = vmatprep.subr.mxu0 0.0
  %2312 = vmatpush1.msra.mxu0 0.0
  %2313 = vmatprep.subr.mxu0 0.0
  %2314 = vmatpush1.msra.mxu0 0.0
  %2315 = vmatprep.subr.mxu0 0.0
  %2316 = vmatpush1.msra.mxu0 0.0
  %2317 = vmatprep.subr.mxu0 0.0
  %2318 = vmatpush1.msra.mxu0 0.0
  %2319 = vmatprep.mubr.f32.mxu0 0.0
  %2320 = vmatmul.mubr.f32.gmra.mrb[0].mxu0 %v2253
  %v2321 = vpop.f32.mrb[0].mxu0
  %v2322 = vadd.f32 0.0, %v2321
  %v2323 = vpop.f32.mrb[0].mxu0
  %2324 = vdwg.mxu0
  %v2325 = vadd.f32 %v2179, %v2322
  %v2327 = vlaneseq
  %v2328 = vshrl.u32 %v2327, 7
  %v2329 = vsub.s32 0, %v2328
  %v2330 = vrot.slane %v1965, %v2329
  %v2332 = vadd.f32 %v2325, %v2330
  %v2333 = vld [vmem:[%s3] sm:$0xff]
  %v2334 = vld [vmem:[%s3 + $0x8] sm:$0xff]
  %v2335 = vld [vmem:[%s3 + $0x10] sm:$0xff]
  %v2336 = vld [vmem:[%s3 + $0x18] sm:$0xff]
  %v2337 = vld [vmem:[%s442] sm:$0xff]
  %v2338 = vld [vmem:[%s442 + $0x8] sm:$0xff]
  %v2339 = vld [vmem:[%s442 + $0x10] sm:$0xff]
  %v2340 = vld [vmem:[%s442 + $0x18] sm:$0xff]
  %v2341 = vld [vmem:[%s447] sm:$0xff]
  %v2342 = vld [vmem:[%s447 + $0x8] sm:$0xff]
  %v2343 = vld [vmem:[%s447 + $0x10] sm:$0xff]
  %v2344 = vld [vmem:[%s447 + $0x18] sm:$0xff]
  %v2345 = vld [vmem:[%s4] sm:$0x1]
  %v2346 = vld [vmem:[%s5] sm:$0xff]
  %v2347 = vld [vmem:[%s5 + $0x8] sm:$0xff]
  %v2348 = vld [vmem:[%s5 + $0x10] sm:$0xff]
  %v2349 = vld [vmem:[%s5 + $0x18] sm:$0xff]
  %v2350 = vld [vmem:[%s6] sm:$0x1]
  %v2351 = vmax.f32 %v2332, 0.0
  %2352 = vmatprep.subr.mxu0 0.0
  %2353 = vmatpush1.msra.mxu0 %v2351
  %2354 = vmatprep.subr.mxu0 0.0
  %2355 = vmatpush1.msra.mxu0 0.0
  %2356 = vmatprep.subr.mxu0 0.0
  %2357 = vmatpush1.msra.mxu0 0.0
  %2358 = vmatprep.subr.mxu0 0.0
  %2359 = vmatpush1.msra.mxu0 0.0
  %2360 = vmatprep.subr.mxu0 0.0
  %2361 = vmatpush1.msra.mxu0 0.0
  %2362 = vmatprep.subr.mxu0 0.0
  %2363 = vmatpush1.msra.mxu0 0.0
  %2364 = vmatprep.subr.mxu0 0.0
  %2365 = vmatpush1.msra.mxu0 0.0
  %2366 = vmatprep.subr.mxu0 0.0
  %2367 = vmatpush1.msra.mxu0 0.0
  %2368 = vmatprep.subr.mxu0 0.0
  %2369 = vmatpush1.msra.mxu0 0.0
  %2370 = vmatprep.subr.mxu0 0.0
  %2371 = vmatpush1.msra.mxu0 0.0
  %2372 = vmatprep.subr.mxu0 0.0
  %2373 = vmatpush1.msra.mxu0 0.0
  %2374 = vmatprep.subr.mxu0 0.0
  %2375 = vmatpush1.msra.mxu0 0.0
  %2376 = vmatprep.subr.mxu0 0.0
  %2377 = vmatpush1.msra.mxu0 0.0
  %2378 = vmatprep.subr.mxu0 0.0
  %2379 = vmatpush1.msra.mxu0 0.0
  %2380 = vmatprep.subr.mxu0 0.0
  %2381 = vmatpush1.msra.mxu0 0.0
  %2382 = vmatprep.subr.mxu0 0.0
  %2383 = vmatpush1.msra.mxu0 0.0
  %2384 = vmatprep.subr.mxu0 0.0
  %2385 = vmatpush1.msra.mxu0 0.0
  %2386 = vmatprep.subr.mxu0 0.0
  %2387 = vmatpush1.msra.mxu0 0.0
  %2388 = vmatprep.subr.mxu0 0.0
  %2389 = vmatpush1.msra.mxu0 0.0
  %2390 = vmatprep.subr.mxu0 0.0
  %2391 = vmatpush1.msra.mxu0 0.0
  %2392 = vmatprep.subr.mxu0 0.0
  %2393 = vmatpush1.msra.mxu0 0.0
  %2394 = vmatprep.subr.mxu0 0.0
  %2395 = vmatpush1.msra.mxu0 0.0
  %2396 = vmatprep.subr.mxu0 0.0
  %2397 = vmatpush1.msra.mxu0 0.0
  %2398 = vmatprep.subr.mxu0 0.0
  %2399 = vmatpush1.msra.mxu0 0.0
  %2400 = vmatprep.subr.mxu0 0.0
  %2401 = vmatpush1.msra.mxu0 0.0
  %2402 = vmatprep.subr.mxu0 0.0
  %2403 = vmatpush1.msra.mxu0 0.0
  %2404 = vmatprep.subr.mxu0 0.0
  %2405 = vmatpush1.msra.mxu0 0.0
  %2406 = vmatprep.subr.mxu0 0.0
  %2407 = vmatpush1.msra.mxu0 0.0
  %2408 = vmatprep.subr.mxu0 0.0
  %2409 = vmatpush1.msra.mxu0 0.0
  %2410 = vmatprep.subr.mxu0 0.0
  %2411 = vmatpush1.msra.mxu0 0.0
  %2412 = vmatprep.subr.mxu0 0.0
  %2413 = vmatpush1.msra.mxu0 0.0
  %2414 = vmatprep.subr.mxu0 0.0
  %2415 = vmatpush1.msra.mxu0 0.0
  %2416 = vmatprep.mubr.f32.mxu0 0.0
  %2417 = vmatmul.mubr.f32.gmra.mrb[0].mxu0 %v65
  %v2418 = vpop.f32.mrb[0].mxu0
  %v2419 = vadd.f32 0.0, %v2418
  %v2420 = vpop.f32.mrb[0].mxu0
  %2421 = vdwg.mxu0
  %v2423 = vsel %vm529, %v2351, 0
  %2425 = vmatprep.subr.mxu0 0.0
  %2426 = vmatpush1.msra.mxu0 %v2337
  %2427 = vmatprep.subr.mxu0 0.0
  %2428 = vmatpush1.msra.mxu0 %v2338
  %2429 = vmatprep.subr.mxu0 0.0
  %2430 = vmatpush1.msra.mxu0 %v2339
  %2431 = vmatprep.subr.mxu0 0.0
  %2432 = vmatpush1.msra.mxu0 %v2340
  %2433 = vmatprep.subr.mxu0 0.0
  %2434 = vmatpush1.msra.mxu0 0.0
  %2435 = vmatprep.subr.mxu0 0.0
  %2436 = vmatpush1.msra.mxu0 0.0
  %2437 = vmatprep.subr.mxu0 0.0
  %2438 = vmatpush1.msra.mxu0 0.0
  %2439 = vmatprep.subr.mxu0 0.0
  %2440 = vmatpush1.msra.mxu0 0.0
  %2441 = vmatprep.subr.mxu0 0.0
  %2442 = vmatpush1.msra.mxu0 0.0
  %2443 = vmatprep.subr.mxu0 0.0
  %2444 = vmatpush1.msra.mxu0 0.0
  %2445 = vmatprep.subr.mxu0 0.0
  %2446 = vmatpush1.msra.mxu0 0.0
  %2447 = vmatprep.subr.mxu0 0.0
  %2448 = vmatpush1.msra.mxu0 0.0
  %2449 = vmatprep.subr.mxu0 0.0
  %2450 = vmatpush1.msra.mxu0 0.0
  %2451 = vmatprep.subr.mxu0 0.0
  %2452 = vmatpush1.msra.mxu0 0.0
  %2453 = vmatprep.subr.mxu0 0.0
  %2454 = vmatpush1.msra.mxu0 0.0
  %2455 = vmatprep.subr.mxu0 0.0
  %2456 = vmatpush1.msra.mxu0 0.0
  %2457 = vmatprep.subr.mxu0 0.0
  %2458 = vmatpush1.msra.mxu0 0.0
  %2459 = vmatprep.subr.mxu0 0.0
  %2460 = vmatpush1.msra.mxu0 0.0
  %2461 = vmatprep.subr.mxu0 0.0
  %2462 = vmatpush1.msra.mxu0 0.0
  %2463 = vmatprep.subr.mxu0 0.0
  %2464 = vmatpush1.msra.mxu0 0.0
  %2465 = vmatprep.subr.mxu0 0.0
  %2466 = vmatpush1.msra.mxu0 0.0
  %2467 = vmatprep.subr.mxu0 0.0
  %2468 = vmatpush1.msra.mxu0 0.0
  %2469 = vmatprep.subr.mxu0 0.0
  %2470 = vmatpush1.msra.mxu0 0.0
  %2471 = vmatprep.subr.mxu0 0.0
  %2472 = vmatpush1.msra.mxu0 0.0
  %2473 = vmatprep.subr.mxu0 0.0
  %2474 = vmatpush1.msra.mxu0 0.0
  %2475 = vmatprep.subr.mxu0 0.0
  %2476 = vmatpush1.msra.mxu0 0.0
  %2477 = vmatprep.subr.mxu0 0.0
  %2478 = vmatpush1.msra.mxu0 0.0
  %2479 = vmatprep.subr.mxu0 0.0
  %2480 = vmatpush1.msra.mxu0 0.0
  %2481 = vmatprep.subr.mxu0 0.0
  %2482 = vmatpush1.msra.mxu0 0.0
  %2483 = vmatprep.subr.mxu0 0.0
  %2484 = vmatpush1.msra.mxu0 0.0
  %2485 = vmatprep.subr.mxu0 0.0
  %2486 = vmatpush1.msra.mxu0 0.0
  %2487 = vmatprep.subr.mxu0 0.0
  %2488 = vmatpush1.msra.mxu0 0.0
  %2489 = vmatprep.mubr.f32.mxu0 0.0
  %2490 = vmatmul.mubr.f32.gmra.mrb[0].mxu0 %v2423
  %v2491 = vpop.f32.mrb[0].mxu0
  %v2492 = vadd.f32 0.0, %v2491
  %v2493 = vpop.f32.mrb[0].mxu0
  %2494 = vdwg.mxu0
  %v2496 = vsel %vm529, %v2419, 0
  %2498 = vmatprep.subr.mxu0 0.0
  %2499 = vmatpush1.msra.mxu0 %v2333
  %2500 = vmatprep.subr.mxu0 0.0
  %2501 = vmatpush1.msra.mxu0 %v2334
  %2502 = vmatprep.subr.mxu0 0.0
  %2503 = vmatpush1.msra.mxu0 %v2335
  %2504 = vmatprep.subr.mxu0 0.0
  %2505 = vmatpush1.msra.mxu0 %v2336
  %2506 = vmatprep.subr.mxu0 0.0
  %2507 = vmatpush1.msra.mxu0 0.0
  %2508 = vmatprep.subr.mxu0 0.0
  %2509 = vmatpush1.msra.mxu0 0.0
  %2510 = vmatprep.subr.mxu0 0.0
  %2511 = vmatpush1.msra.mxu0 0.0
  %2512 = vmatprep.subr.mxu0 0.0
  %2513 = vmatpush1.msra.mxu0 0.0
  %2514 = vmatprep.subr.mxu0 0.0
  %2515 = vmatpush1.msra.mxu0 0.0
  %2516 = vmatprep.subr.mxu0 0.0
  %2517 = vmatpush1.msra.mxu0 0.0
  %2518 = vmatprep.subr.mxu0 0.0
  %2519 = vmatpush1.msra.mxu0 0.0
  %2520 = vmatprep.subr.mxu0 0.0
  %2521 = vmatpush1.msra.mxu0 0.0
  %2522 = vmatprep.subr.mxu0 0.0
  %2523 = vmatpush1.msra.mxu0 0.0
  %2524 = vmatprep.subr.mxu0 0.0
  %2525 = vmatpush1.msra.mxu0 0.0
  %2526 = vmatprep.subr.mxu0 0.0
  %2527 = vmatpush1.msra.mxu0 0.0
  %2528 = vmatprep.subr.mxu0 0.0
  %2529 = vmatpush1.msra.mxu0 0.0
  %2530 = vmatprep.subr.mxu0 0.0
  %2531 = vmatpush1.msra.mxu0 0.0
  %2532 = vmatprep.subr.mxu0 0.0
  %2533 = vmatpush1.msra.mxu0 0.0
  %2534 = vmatprep.subr.mxu0 0.0
  %2535 = vmatpush1.msra.mxu0 0.0
  %2536 = vmatprep.subr.mxu0 0.0
  %2537 = vmatpush1.msra.mxu0 0.0
  %2538 = vmatprep.subr.mxu0 0.0
  %2539 = vmatpush1.msra.mxu0 0.0
  %2540 = vmatprep.subr.mxu0 0.0
  %2541 = vmatpush1.msra.mxu0 0.0
  %2542 = vmatprep.subr.mxu0 0.0
  %2543 = vmatpush1.msra.mxu0 0.0
  %2544 = vmatprep.subr.mxu0 0.0
  %2545 = vmatpush1.msra.mxu0 0.0
  %2546 = vmatprep.subr.mxu0 0.0
  %2547 = vmatpush1.msra.mxu0 0.0
  %2548 = vmatprep.subr.mxu0 0.0
  %2549 = vmatpush1.msra.mxu0 0.0
  %2550 = vmatprep.subr.mxu0 0.0
  %2551 = vmatpush1.msra.mxu0 0.0
  %2552 = vmatprep.subr.mxu0 0.0
  %2553 = vmatpush1.msra.mxu0 0.0
  %2554 = vmatprep.subr.mxu0 0.0
  %2555 = vmatpush1.msra.mxu0 0.0
  %2556 = vmatprep.subr.mxu0 0.0
  %2557 = vmatpush1.msra.mxu0 0.0
  %2558 = vmatprep.subr.mxu0 0.0
  %2559 = vmatpush1.msra.mxu0 0.0
  %2560 = vmatprep.subr.mxu0 0.0
  %2561 = vmatpush1.msra.mxu0 0.0
  %2562 = vmatprep.mubr.f32.mxu0 0.0
  %2563 = vmatmul.mubr.f32.gmra.mrb[0].mxu0 %v2496
  %v2564 = vpop.f32.mrb[0].mxu0
  %v2565 = vadd.f32 %v2492, %v2564
  %v2566 = vpop.f32.mrb[0].mxu0
  %2567 = vdwg.mxu0
  %2568 = vmatprep.subr.mxu0 0.0
  %2569 = vmatpush1.msra.mxu0 %v2351
  %2570 = vmatprep.subr.mxu0 0.0
  %2571 = vmatpush1.msra.mxu0 0.0
  %2572 = vmatprep.subr.mxu0 0.0
  %2573 = vmatpush1.msra.mxu0 0.0
  %2574 = vmatprep.subr.mxu0 0.0
  %2575 = vmatpush1.msra.mxu0 0.0
  %2576 = vmatprep.subr.mxu0 0.0
  %2577 = vmatpush1.msra.mxu0 0.0
  %2578 = vmatprep.subr.mxu0 0.0
  %2579 = vmatpush1.msra.mxu0 0.0
  %2580 = vmatprep.subr.mxu0 0.0
  %2581 = vmatpush1.msra.mxu0 0.0
  %2582 = vmatprep.subr.mxu0 0.0
  %2583 = vmatpush1.msra.mxu0 0.0
  %2584 = vmatprep.subr.mxu0 0.0
  %2585 = vmatpush1.msra.mxu0 0.0
  %2586 = vmatprep.subr.mxu0 0.0
  %2587 = vmatpush1.msra.mxu0 0.0
  %2588 = vmatprep.subr.mxu0 0.0
  %2589 = vmatpush1.msra.mxu0 0.0
  %2590 = vmatprep.subr.mxu0 0.0
  %2591 = vmatpush1.msra.mxu0 0.0
  %2592 = vmatprep.subr.mxu0 0.0
  %2593 = vmatpush1.msra.mxu0 0.0
  %2594 = vmatprep.subr.mxu0 0.0
  %2595 = vmatpush1.msra.mxu0 0.0
  %2596 = vmatprep.subr.mxu0 0.0
  %2597 = vmatpush1.msra.mxu0 0.0
  %2598 = vmatprep.subr.mxu0 0.0
  %2599 = vmatpush1.msra.mxu0 0.0
  %2600 = vmatprep.subr.mxu0 0.0
  %2601 = vmatpush1.msra.mxu0 0.0
  %2602 = vmatprep.subr.mxu0 0.0
  %2603 = vmatpush1.msra.mxu0 0.0
  %2604 = vmatprep.subr.mxu0 0.0
  %2605 = vmatpush1.msra.mxu0 0.0
  %2606 = vmatprep.subr.mxu0 0.0
  %2607 = vmatpush1.msra.mxu0 0.0
  %2608 = vmatprep.subr.mxu0 0.0
  %2609 = vmatpush1.msra.mxu0 0.0
  %2610 = vmatprep.subr.mxu0 0.0
  %2611 = vmatpush1.msra.mxu0 0.0
  %2612 = vmatprep.subr.mxu0 0.0
  %2613 = vmatpush1.msra.mxu0 0.0
  %2614 = vmatprep.subr.mxu0 0.0
  %2615 = vmatpush1.msra.mxu0 0.0
  %2616 = vmatprep.subr.mxu0 0.0
  %2617 = vmatpush1.msra.mxu0 0.0
  %2618 = vmatprep.subr.mxu0 0.0
  %2619 = vmatpush1.msra.mxu0 0.0
  %2620 = vmatprep.subr.mxu0 0.0
  %2621 = vmatpush1.msra.mxu0 0.0
  %2622 = vmatprep.subr.mxu0 0.0
  %2623 = vmatpush1.msra.mxu0 0.0
  %2624 = vmatprep.subr.mxu0 0.0
  %2625 = vmatpush1.msra.mxu0 0.0
  %2626 = vmatprep.subr.mxu0 0.0
  %2627 = vmatpush1.msra.mxu0 0.0
  %2628 = vmatprep.subr.mxu0 0.0
  %2629 = vmatpush1.msra.mxu0 0.0
  %2630 = vmatprep.subr.mxu0 0.0
  %2631 = vmatpush1.msra.mxu0 0.0
  %2632 = vmatprep.mubr.f32.mxu0 0.0
  %2633 = vmatmul.mubr.f32.gmra.mrb[0].mxu0 %v285
  %v2634 = vpop.f32.mrb[0].mxu0
  %v2635 = vadd.f32 0.0, %v2634
  %v2636 = vpop.f32.mrb[0].mxu0
  %2637 = vdwg.mxu0
  %v2639 = vsel %vm529, %v2635, 0
  %2641 = vmatprep.subr.mxu0 0.0
  %2642 = vmatpush1.msra.mxu0 %v2341
  %2643 = vmatprep.subr.mxu0 0.0
  %2644 = vmatpush1.msra.mxu0 %v2342
  %2645 = vmatprep.subr.mxu0 0.0
  %2646 = vmatpush1.msra.mxu0 %v2343
  %2647 = vmatprep.subr.mxu0 0.0
  %2648 = vmatpush1.msra.mxu0 %v2344
  %2649 = vmatprep.subr.mxu0 0.0
  %2650 = vmatpush1.msra.mxu0 0.0
  %2651 = vmatprep.subr.mxu0 0.0
  %2652 = vmatpush1.msra.mxu0 0.0
  %2653 = vmatprep.subr.mxu0 0.0
  %2654 = vmatpush1.msra.mxu0 0.0
  %2655 = vmatprep.subr.mxu0 0.0
  %2656 = vmatpush1.msra.mxu0 0.0
  %2657 = vmatprep.subr.mxu0 0.0
  %2658 = vmatpush1.msra.mxu0 0.0
  %2659 = vmatprep.subr.mxu0 0.0
  %2660 = vmatpush1.msra.mxu0 0.0
  %2661 = vmatprep.subr.mxu0 0.0
  %2662 = vmatpush1.msra.mxu0 0.0
  %2663 = vmatprep.subr.mxu0 0.0
  %2664 = vmatpush1.msra.mxu0 0.0
  %2665 = vmatprep.subr.mxu0 0.0
  %2666 = vmatpush1.msra.mxu0 0.0
  %2667 = vmatprep.subr.mxu0 0.0
  %2668 = vmatpush1.msra.mxu0 0.0
  %2669 = vmatprep.subr.mxu0 0.0
  %2670 = vmatpush1.msra.mxu0 0.0
  %2671 = vmatprep.subr.mxu0 0.0
  %2672 = vmatpush1.msra.mxu0 0.0
  %2673 = vmatprep.subr.mxu0 0.0
  %2674 = vmatpush1.msra.mxu0 0.0
  %2675 = vmatprep.subr.mxu0 0.0
  %2676 = vmatpush1.msra.mxu0 0.0
  %2677 = vmatprep.subr.mxu0 0.0
  %2678 = vmatpush1.msra.mxu0 0.0
  %2679 = vmatprep.subr.mxu0 0.0
  %2680 = vmatpush1.msra.mxu0 0.0
  %2681 = vmatprep.subr.mxu0 0.0
  %2682 = vmatpush1.msra.mxu0 0.0
  %2683 = vmatprep.subr.mxu0 0.0
  %2684 = vmatpush1.msra.mxu0 0.0
  %2685 = vmatprep.subr.mxu0 0.0
  %2686 = vmatpush1.msra.mxu0 0.0
  %2687 = vmatprep.subr.mxu0 0.0
  %2688 = vmatpush1.msra.mxu0 0.0
  %2689 = vmatprep.subr.mxu0 0.0
  %2690 = vmatpush1.msra.mxu0 0.0
  %2691 = vmatprep.subr.mxu0 0.0
  %2692 = vmatpush1.msra.mxu0 0.0
  %2693 = vmatprep.subr.mxu0 0.0
  %2694 = vmatpush1.msra.mxu0 0.0
  %2695 = vmatprep.subr.mxu0 0.0
  %2696 = vmatpush1.msra.mxu0 0.0
  %2697 = vmatprep.subr.mxu0 0.0
  %2698 = vmatpush1.msra.mxu0 0.0
  %2699 = vmatprep.subr.mxu0 0.0
  %2700 = vmatpush1.msra.mxu0 0.0
  %2701 = vmatprep.subr.mxu0 0.0
  %2702 = vmatpush1.msra.mxu0 0.0
  %2703 = vmatprep.subr.mxu0 0.0
  %2704 = vmatpush1.msra.mxu0 0.0
  %2705 = vmatprep.mubr.f32.mxu0 0.0
  %2706 = vmatmul.mubr.f32.gmra.mrb[0].mxu0 %v2639
  %v2707 = vpop.f32.mrb[0].mxu0
  %v2708 = vadd.f32 0.0, %v2707
  %v2709 = vpop.f32.mrb[0].mxu0
  %2710 = vdwg.mxu0
  %v2711 = vadd.f32 %v2565, %v2708
  %v2713 = vlaneseq
  %v2714 = vshrl.u32 %v2713, 7
  %v2715 = vsub.s32 0, %v2714
  %v2716 = vrot.slane %v2345, %v2715
  %v2718 = vadd.f32 %v2711, %v2716
  %v2719 = vmax.f32 %v2718, 0.0
  %v2721 = vlaneseq
  %v2722 = vshrl.u32 %v2721, 7
  %v2723 = vsub.s32 0, %v2722
  %v2724 = vrot.slane %v2350, %v2723
  %v2727 = vsel %vm529, %v2719, 0
  %2729 = vmatprep.subr.mxu0 0.0
  %2730 = vmatpush1.msra.mxu0 %v2346
  %2731 = vmatprep.subr.mxu0 0.0
  %2732 = vmatpush1.msra.mxu0 %v2347
  %2733 = vmatprep.subr.mxu0 0.0
  %2734 = vmatpush1.msra.mxu0 %v2348
  %2735 = vmatprep.subr.mxu0 0.0
  %2736 = vmatpush1.msra.mxu0 %v2349
  %2737 = vmatprep.subr.mxu0 0.0
  %2738 = vmatpush1.msra.mxu0 0.0
  %2739 = vmatprep.subr.mxu0 0.0
  %2740 = vmatpush1.msra.mxu0 0.0
  %2741 = vmatprep.subr.mxu0 0.0
  %2742 = vmatpush1.msra.mxu0 0.0
  %2743 = vmatprep.subr.mxu0 0.0
  %2744 = vmatpush1.msra.mxu0 0.0
  %2745 = vmatprep.subr.mxu0 0.0
  %2746 = vmatpush1.msra.mxu0 0.0
  %2747 = vmatprep.subr.mxu0 0.0
  %2748 = vmatpush1.msra.mxu0 0.0
  %2749 = vmatprep.subr.mxu0 0.0
  %2750 = vmatpush1.msra.mxu0 0.0
  %2751 = vmatprep.subr.mxu0 0.0
  %2752 = vmatpush1.msra.mxu0 0.0
  %2753 = vmatprep.subr.mxu0 0.0
  %2754 = vmatpush1.msra.mxu0 0.0
  %2755 = vmatprep.subr.mxu0 0.0
  %2756 = vmatpush1.msra.mxu0 0.0
  %2757 = vmatprep.subr.mxu0 0.0
  %2758 = vmatpush1.msra.mxu0 0.0
  %2759 = vmatprep.subr.mxu0 0.0
  %2760 = vmatpush1.msra.mxu0 0.0
  %2761 = vmatprep.subr.mxu0 0.0
  %2762 = vmatpush1.msra.mxu0 0.0
  %2763 = vmatprep.subr.mxu0 0.0
  %2764 = vmatpush1.msra.mxu0 0.0
  %2765 = vmatprep.subr.mxu0 0.0
  %2766 = vmatpush1.msra.mxu0 0.0
  %2767 = vmatprep.subr.mxu0 0.0
  %2768 = vmatpush1.msra.mxu0 0.0
  %2769 = vmatprep.subr.mxu0 0.0
  %2770 = vmatpush1.msra.mxu0 0.0
  %2771 = vmatprep.subr.mxu0 0.0
  %2772 = vmatpush1.msra.mxu0 0.0
  %2773 = vmatprep.subr.mxu0 0.0
  %2774 = vmatpush1.msra.mxu0 0.0
  %2775 = vmatprep.subr.mxu0 0.0
  %2776 = vmatpush1.msra.mxu0 0.0
  %2777 = vmatprep.subr.mxu0 0.0
  %2778 = vmatpush1.msra.mxu0 0.0
  %2779 = vmatprep.subr.mxu0 0.0
  %2780 = vmatpush1.msra.mxu0 0.0
  %2781 = vmatprep.subr.mxu0 0.0
  %2782 = vmatpush1.msra.mxu0 0.0
  %2783 = vmatprep.subr.mxu0 0.0
  %2784 = vmatpush1.msra.mxu0 0.0
  %2785 = vmatprep.subr.mxu0 0.0
  %2786 = vmatpush1.msra.mxu0 0.0
  %2787 = vmatprep.subr.mxu0 0.0
  %2788 = vmatpush1.msra.mxu0 0.0
  %2789 = vmatprep.subr.mxu0 0.0
  %2790 = vmatpush1.msra.mxu0 0.0
  %2791 = vmatprep.subr.mxu0 0.0
  %2792 = vmatpush1.msra.mxu0 0.0
  %2793 = vmatprep.mubr.f32.mxu0 0.0
  %2794 = vmatmul.mubr.f32.gmra.mrb[0].mxu0 %v2727
  %v2795 = vpop.f32.mrb[0].mxu0
  %v2796 = vadd.f32 %v2724, %v2795
  %v2797 = vpop.f32.mrb[0].mxu0
  %2798 = vdwg.mxu0
  %v2799 = vadd.f32 %v2796, %v2332
  %v2800 = vld [vmem:[%s8] sm:$0x1]
  %v2801 = vld [vmem:[%s909] sm:$0xff]
  %v2802 = vld [vmem:[%s909 + $0x8] sm:$0xff]
  %v2803 = vld [vmem:[%s909 + $0x10] sm:$0xff]
  %v2804 = vld [vmem:[%s909 + $0x18] sm:$0xff]
  %2805 = vmatprep.subr.mxu0 0.0
  %2806 = vmatpush1.msra.mxu0 %v2799
  %2807 = vmatprep.subr.mxu0 0.0
  %2808 = vmatpush1.msra.mxu0 0.0
  %2809 = vmatprep.subr.mxu0 0.0
  %2810 = vmatpush1.msra.mxu0 0.0
  %2811 = vmatprep.subr.mxu0 0.0
  %2812 = vmatpush1.msra.mxu0 0.0
  %2813 = vmatprep.subr.mxu0 0.0
  %2814 = vmatpush1.msra.mxu0 0.0
  %2815 = vmatprep.subr.mxu0 0.0
  %2816 = vmatpush1.msra.mxu0 0.0
  %2817 = vmatprep.subr.mxu0 0.0
  %2818 = vmatpush1.msra.mxu0 0.0
  %2819 = vmatprep.subr.mxu0 0.0
  %2820 = vmatpush1.msra.mxu0 0.0
  %2821 = vmatprep.subr.mxu0 0.0
  %2822 = vmatpush1.msra.mxu0 0.0
  %2823 = vmatprep.subr.mxu0 0.0
  %2824 = vmatpush1.msra.mxu0 0.0
  %2825 = vmatprep.subr.mxu0 0.0
  %2826 = vmatpush1.msra.mxu0 0.0
  %2827 = vmatprep.subr.mxu0 0.0
  %2828 = vmatpush1.msra.mxu0 0.0
  %2829 = vmatprep.subr.mxu0 0.0
  %2830 = vmatpush1.msra.mxu0 0.0
  %2831 = vmatprep.subr.mxu0 0.0
  %2832 = vmatpush1.msra.mxu0 0.0
  %2833 = vmatprep.subr.mxu0 0.0
  %2834 = vmatpush1.msra.mxu0 0.0
  %2835 = vmatprep.subr.mxu0 0.0
  %2836 = vmatpush1.msra.mxu0 0.0
  %2837 = vmatprep.subr.mxu0 0.0
  %2838 = vmatpush1.msra.mxu0 0.0
  %2839 = vmatprep.subr.mxu0 0.0
  %2840 = vmatpush1.msra.mxu0 0.0
  %2841 = vmatprep.subr.mxu0 0.0
  %2842 = vmatpush1.msra.mxu0 0.0
  %2843 = vmatprep.subr.mxu0 0.0
  %2844 = vmatpush1.msra.mxu0 0.0
  %2845 = vmatprep.subr.mxu0 0.0
  %2846 = vmatpush1.msra.mxu0 0.0
  %2847 = vmatprep.subr.mxu0 0.0
  %2848 = vmatpush1.msra.mxu0 0.0
  %2849 = vmatprep.subr.mxu0 0.0
  %2850 = vmatpush1.msra.mxu0 0.0
  %2851 = vmatprep.subr.mxu0 0.0
  %2852 = vmatpush1.msra.mxu0 0.0
  %2853 = vmatprep.subr.mxu0 0.0
  %2854 = vmatpush1.msra.mxu0 0.0
  %2855 = vmatprep.subr.mxu0 0.0
  %2856 = vmatpush1.msra.mxu0 0.0
  %2857 = vmatprep.subr.mxu0 0.0
  %2858 = vmatpush1.msra.mxu0 0.0
  %2859 = vmatprep.subr.mxu0 0.0
  %2860 = vmatpush1.msra.mxu0 0.0
  %2861 = vmatprep.subr.mxu0 0.0
  %2862 = vmatpush1.msra.mxu0 0.0
  %2863 = vmatprep.subr.mxu0 0.0
  %2864 = vmatpush1.msra.mxu0 0.0
  %2865 = vmatprep.subr.mxu0 0.0
  %2866 = vmatpush1.msra.mxu0 0.0
  %2867 = vmatprep.subr.mxu0 0.0
  %2868 = vmatpush1.msra.mxu0 0.0
  %2869 = vmatprep.mubr.f32.mxu0 0.0
  %2870 = vmatmul.mubr.f32.gmra.mrb[0].mxu0 %v65
  %v2871 = vpop.f32.mrb[0].mxu0
  %v2872 = vadd.f32 0.0, %v2871
  %v2873 = vpop.f32.mrb[0].mxu0
  %2874 = vdwg.mxu0
  %v2875 = vld [vmem:[%s984] sm:$0xff]
  %v2876 = vld [vmem:[%s984 + $0x8] sm:$0xff]
  %v2877 = vld [vmem:[%s984 + $0x10] sm:$0xff]
  %v2878 = vld [vmem:[%s984 + $0x18] sm:$0xff]
  %v2880 = vsel %vm529, %v2872, 0
  %2882 = vmatprep.subr.mxu0 0.0
  %2883 = vmatpush1.msra.mxu0 %v2875
  %2884 = vmatprep.subr.mxu0 0.0
  %2885 = vmatpush1.msra.mxu0 %v2876
  %2886 = vmatprep.subr.mxu0 0.0
  %2887 = vmatpush1.msra.mxu0 %v2877
  %2888 = vmatprep.subr.mxu0 0.0
  %2889 = vmatpush1.msra.mxu0 %v2878
  %2890 = vmatprep.subr.mxu0 0.0
  %2891 = vmatpush1.msra.mxu0 0.0
  %2892 = vmatprep.subr.mxu0 0.0
  %2893 = vmatpush1.msra.mxu0 0.0
  %2894 = vmatprep.subr.mxu0 0.0
  %2895 = vmatpush1.msra.mxu0 0.0
  %2896 = vmatprep.subr.mxu0 0.0
  %2897 = vmatpush1.msra.mxu0 0.0
  %2898 = vmatprep.subr.mxu0 0.0
  %2899 = vmatpush1.msra.mxu0 0.0
  %2900 = vmatprep.subr.mxu0 0.0
  %2901 = vmatpush1.msra.mxu0 0.0
  %2902 = vmatprep.subr.mxu0 0.0
  %2903 = vmatpush1.msra.mxu0 0.0
  %2904 = vmatprep.subr.mxu0 0.0
  %2905 = vmatpush1.msra.mxu0 0.0
  %2906 = vmatprep.subr.mxu0 0.0
  %2907 = vmatpush1.msra.mxu0 0.0
  %2908 = vmatprep.subr.mxu0 0.0
  %2909 = vmatpush1.msra.mxu0 0.0
  %2910 = vmatprep.subr.mxu0 0.0
  %2911 = vmatpush1.msra.mxu0 0.0
  %2912 = vmatprep.subr.mxu0 0.0
  %2913 = vmatpush1.msra.mxu0 0.0
  %2914 = vmatprep.subr.mxu0 0.0
  %2915 = vmatpush1.msra.mxu0 0.0
  %2916 = vmatprep.subr.mxu0 0.0
  %2917 = vmatpush1.msra.mxu0 0.0
  %2918 = vmatprep.subr.mxu0 0.0
  %2919 = vmatpush1.msra.mxu0 0.0
  %2920 = vmatprep.subr.mxu0 0.0
  %2921 = vmatpush1.msra.mxu0 0.0
  %2922 = vmatprep.subr.mxu0 0.0
  %2923 = vmatpush1.msra.mxu0 0.0
  %2924 = vmatprep.subr.mxu0 0.0
  %2925 = vmatpush1.msra.mxu0 0.0
  %2926 = vmatprep.subr.mxu0 0.0
  %2927 = vmatpush1.msra.mxu0 0.0
  %2928 = vmatprep.subr.mxu0 0.0
  %2929 = vmatpush1.msra.mxu0 0.0
  %2930 = vmatprep.subr.mxu0 0.0
  %2931 = vmatpush1.msra.mxu0 0.0
  %2932 = vmatprep.subr.mxu0 0.0
  %2933 = vmatpush1.msra.mxu0 0.0
  %2934 = vmatprep.subr.mxu0 0.0
  %2935 = vmatpush1.msra.mxu0 0.0
  %2936 = vmatprep.subr.mxu0 0.0
  %2937 = vmatpush1.msra.mxu0 0.0
  %2938 = vmatprep.subr.mxu0 0.0
  %2939 = vmatpush1.msra.mxu0 0.0
  %2940 = vmatprep.subr.mxu0 0.0
  %2941 = vmatpush1.msra.mxu0 0.0
  %2942 = vmatprep.subr.mxu0 0.0
  %2943 = vmatpush1.msra.mxu0 0.0
  %2944 = vmatprep.subr.mxu0 0.0
  %2945 = vmatpush1.msra.mxu0 0.0
  %2946 = vmatprep.mubr.f32.mxu0 0.0
  %2947 = vmatmul.mubr.f32.gmra.mrb[0].mxu0 %v2880
  %v2948 = vpop.f32.mrb[0].mxu0
  %v2949 = vadd.f32 0.0, %v2948
  %v2950 = vpop.f32.mrb[0].mxu0
  %2951 = vdwg.mxu0
  %v2953 = vsel %vm529, %v2799, 0
  %2955 = vmatprep.subr.mxu0 0.0
  %2956 = vmatpush1.msra.mxu0 %v2801
  %2957 = vmatprep.subr.mxu0 0.0
  %2958 = vmatpush1.msra.mxu0 %v2802
  %2959 = vmatprep.subr.mxu0 0.0
  %2960 = vmatpush1.msra.mxu0 %v2803
  %2961 = vmatprep.subr.mxu0 0.0
  %2962 = vmatpush1.msra.mxu0 %v2804
  %2963 = vmatprep.subr.mxu0 0.0
  %2964 = vmatpush1.msra.mxu0 0.0
  %2965 = vmatprep.subr.mxu0 0.0
  %2966 = vmatpush1.msra.mxu0 0.0
  %2967 = vmatprep.subr.mxu0 0.0
  %2968 = vmatpush1.msra.mxu0 0.0
  %2969 = vmatprep.subr.mxu0 0.0
  %2970 = vmatpush1.msra.mxu0 0.0
  %2971 = vmatprep.subr.mxu0 0.0
  %2972 = vmatpush1.msra.mxu0 0.0
  %2973 = vmatprep.subr.mxu0 0.0
  %2974 = vmatpush1.msra.mxu0 0.0
  %2975 = vmatprep.subr.mxu0 0.0
  %2976 = vmatpush1.msra.mxu0 0.0
  %2977 = vmatprep.subr.mxu0 0.0
  %2978 = vmatpush1.msra.mxu0 0.0
  %2979 = vmatprep.subr.mxu0 0.0
  %2980 = vmatpush1.msra.mxu0 0.0
  %2981 = vmatprep.subr.mxu0 0.0
  %2982 = vmatpush1.msra.mxu0 0.0
  %2983 = vmatprep.subr.mxu0 0.0
  %2984 = vmatpush1.msra.mxu0 0.0
  %2985 = vmatprep.subr.mxu0 0.0
  %2986 = vmatpush1.msra.mxu0 0.0
  %2987 = vmatprep.subr.mxu0 0.0
  %2988 = vmatpush1.msra.mxu0 0.0
  %2989 = vmatprep.subr.mxu0 0.0
  %2990 = vmatpush1.msra.mxu0 0.0
  %2991 = vmatprep.subr.mxu0 0.0
  %2992 = vmatpush1.msra.mxu0 0.0
  %2993 = vmatprep.subr.mxu0 0.0
  %2994 = vmatpush1.msra.mxu0 0.0
  %2995 = vmatprep.subr.mxu0 0.0
  %2996 = vmatpush1.msra.mxu0 0.0
  %2997 = vmatprep.subr.mxu0 0.0
  %2998 = vmatpush1.msra.mxu0 0.0
  %2999 = vmatprep.subr.mxu0 0.0
  %3000 = vmatpush1.msra.mxu0 0.0
  %3001 = vmatprep.subr.mxu0 0.0
  %3002 = vmatpush1.msra.mxu0 0.0
  %3003 = vmatprep.subr.mxu0 0.0
  %3004 = vmatpush1.msra.mxu0 0.0
  %3005 = vmatprep.subr.mxu0 0.0
  %3006 = vmatpush1.msra.mxu0 0.0
  %3007 = vmatprep.subr.mxu0 0.0
  %3008 = vmatpush1.msra.mxu0 0.0
  %3009 = vmatprep.subr.mxu0 0.0
  %3010 = vmatpush1.msra.mxu0 0.0
  %3011 = vmatprep.subr.mxu0 0.0
  %3012 = vmatpush1.msra.mxu0 0.0
  %3013 = vmatprep.subr.mxu0 0.0
  %3014 = vmatpush1.msra.mxu0 0.0
  %3015 = vmatprep.subr.mxu0 0.0
  %3016 = vmatpush1.msra.mxu0 0.0
  %3017 = vmatprep.subr.mxu0 0.0
  %3018 = vmatpush1.msra.mxu0 0.0
  %3019 = vmatprep.mubr.f32.mxu0 0.0
  %3020 = vmatmul.mubr.f32.gmra.mrb[0].mxu0 %v2953
  %v3021 = vpop.f32.mrb[0].mxu0
  %v3022 = vadd.f32 %v2949, %v3021
  %v3023 = vpop.f32.mrb[0].mxu0
  %3024 = vdwg.mxu0
  %v3026 = vlaneseq
  %v3027 = vshrl.u32 %v3026, 7
  %v3028 = vsub.s32 0, %v3027
  %v3029 = vrot.slane %v2800, %v3028
  %v3031 = vadd.f32 %v3022, %v3029
  %v3032 = vld [vmem:[%s1142] sm:$0xff]
  %v3033 = vld [vmem:[%s1142 + $0x8] sm:$0xff]
  %v3034 = vld [vmem:[%s1142 + $0x10] sm:$0xff]
  %v3035 = vld [vmem:[%s1142 + $0x18] sm:$0xff]
  %3036 = vmatprep.subr.mxu0 0.0
  %3037 = vmatpush1.msra.mxu0 %v2799
  %3038 = vmatprep.subr.mxu0 0.0
  %3039 = vmatpush1.msra.mxu0 0.0
  %3040 = vmatprep.subr.mxu0 0.0
  %3041 = vmatpush1.msra.mxu0 0.0
  %3042 = vmatprep.subr.mxu0 0.0
  %3043 = vmatpush1.msra.mxu0 0.0
  %3044 = vmatprep.subr.mxu0 0.0
  %3045 = vmatpush1.msra.mxu0 0.0
  %3046 = vmatprep.subr.mxu0 0.0
  %3047 = vmatpush1.msra.mxu0 0.0
  %3048 = vmatprep.subr.mxu0 0.0
  %3049 = vmatpush1.msra.mxu0 0.0
  %3050 = vmatprep.subr.mxu0 0.0
  %3051 = vmatpush1.msra.mxu0 0.0
  %3052 = vmatprep.subr.mxu0 0.0
  %3053 = vmatpush1.msra.mxu0 0.0
  %3054 = vmatprep.subr.mxu0 0.0
  %3055 = vmatpush1.msra.mxu0 0.0
  %3056 = vmatprep.subr.mxu0 0.0
  %3057 = vmatpush1.msra.mxu0 0.0
  %3058 = vmatprep.subr.mxu0 0.0
  %3059 = vmatpush1.msra.mxu0 0.0
  %3060 = vmatprep.subr.mxu0 0.0
  %3061 = vmatpush1.msra.mxu0 0.0
  %3062 = vmatprep.subr.mxu0 0.0
  %3063 = vmatpush1.msra.mxu0 0.0
  %3064 = vmatprep.subr.mxu0 0.0
  %3065 = vmatpush1.msra.mxu0 0.0
  %3066 = vmatprep.subr.mxu0 0.0
  %3067 = vmatpush1.msra.mxu0 0.0
  %3068 = vmatprep.subr.mxu0 0.0
  %3069 = vmatpush1.msra.mxu0 0.0
  %3070 = vmatprep.subr.mxu0 0.0
  %3071 = vmatpush1.msra.mxu0 0.0
  %3072 = vmatprep.subr.mxu0 0.0
  %3073 = vmatpush1.msra.mxu0 0.0
  %3074 = vmatprep.subr.mxu0 0.0
  %3075 = vmatpush1.msra.mxu0 0.0
  %3076 = vmatprep.subr.mxu0 0.0
  %3077 = vmatpush1.msra.mxu0 0.0
  %3078 = vmatprep.subr.mxu0 0.0
  %3079 = vmatpush1.msra.mxu0 0.0
  %3080 = vmatprep.subr.mxu0 0.0
  %3081 = vmatpush1.msra.mxu0 0.0
  %3082 = vmatprep.subr.mxu0 0.0
  %3083 = vmatpush1.msra.mxu0 0.0
  %3084 = vmatprep.subr.mxu0 0.0
  %3085 = vmatpush1.msra.mxu0 0.0
  %3086 = vmatprep.subr.mxu0 0.0
  %3087 = vmatpush1.msra.mxu0 0.0
  %3088 = vmatprep.subr.mxu0 0.0
  %3089 = vmatpush1.msra.mxu0 0.0
  %3090 = vmatprep.subr.mxu0 0.0
  %3091 = vmatpush1.msra.mxu0 0.0
  %3092 = vmatprep.subr.mxu0 0.0
  %3093 = vmatpush1.msra.mxu0 0.0
  %3094 = vmatprep.subr.mxu0 0.0
  %3095 = vmatpush1.msra.mxu0 0.0
  %3096 = vmatprep.subr.mxu0 0.0
  %3097 = vmatpush1.msra.mxu0 0.0
  %3098 = vmatprep.subr.mxu0 0.0
  %3099 = vmatpush1.msra.mxu0 0.0
  %3100 = vmatprep.mubr.f32.mxu0 0.0
  %3101 = vmatmul.mubr.f32.gmra.mrb[0].mxu0 %v285
  %v3102 = vpop.f32.mrb[0].mxu0
  %v3103 = vadd.f32 0.0, %v3102
  %v3104 = vpop.f32.mrb[0].mxu0
  %3105 = vdwg.mxu0
  %v3106 = vld [vmem:[%s7] sm:$0xff]
  %v3107 = vld [vmem:[%s7 + $0x8] sm:$0xff]
  %v3108 = vld [vmem:[%s7 + $0x10] sm:$0xff]
  %v3109 = vld [vmem:[%s7 + $0x18] sm:$0xff]
  %v3111 = vsel %vm529, %v3103, 0
  %3113 = vmatprep.subr.mxu0 0.0
  %3114 = vmatpush1.msra.mxu0 %v3106
  %3115 = vmatprep.subr.mxu0 0.0
  %3116 = vmatpush1.msra.mxu0 %v3107
  %3117 = vmatprep.subr.mxu0 0.0
  %3118 = vmatpush1.msra.mxu0 %v3108
  %3119 = vmatprep.subr.mxu0 0.0
  %3120 = vmatpush1.msra.mxu0 %v3109
  %3121 = vmatprep.subr.mxu0 0.0
  %3122 = vmatpush1.msra.mxu0 0.0
  %3123 = vmatprep.subr.mxu0 0.0
  %3124 = vmatpush1.msra.mxu0 0.0
  %3125 = vmatprep.subr.mxu0 0.0
  %3126 = vmatpush1.msra.mxu0 0.0
  %3127 = vmatprep.subr.mxu0 0.0
  %3128 = vmatpush1.msra.mxu0 0.0
  %3129 = vmatprep.subr.mxu0 0.0
  %3130 = vmatpush1.msra.mxu0 0.0
  %3131 = vmatprep.subr.mxu0 0.0
  %3132 = vmatpush1.msra.mxu0 0.0
  %3133 = vmatprep.subr.mxu0 0.0
  %3134 = vmatpush1.msra.mxu0 0.0
  %3135 = vmatprep.subr.mxu0 0.0
  %3136 = vmatpush1.msra.mxu0 0.0
  %3137 = vmatprep.subr.mxu0 0.0
  %3138 = vmatpush1.msra.mxu0 0.0
  %3139 = vmatprep.subr.mxu0 0.0
  %3140 = vmatpush1.msra.mxu0 0.0
  %3141 = vmatprep.subr.mxu0 0.0
  %3142 = vmatpush1.msra.mxu0 0.0
  %3143 = vmatprep.subr.mxu0 0.0
  %3144 = vmatpush1.msra.mxu0 0.0
  %3145 = vmatprep.subr.mxu0 0.0
  %3146 = vmatpush1.msra.mxu0 0.0
  %3147 = vmatprep.subr.mxu0 0.0
  %3148 = vmatpush1.msra.mxu0 0.0
  %3149 = vmatprep.subr.mxu0 0.0
  %3150 = vmatpush1.msra.mxu0 0.0
  %3151 = vmatprep.subr.mxu0 0.0
  %3152 = vmatpush1.msra.mxu0 0.0
  %3153 = vmatprep.subr.mxu0 0.0
  %3154 = vmatpush1.msra.mxu0 0.0
  %3155 = vmatprep.subr.mxu0 0.0
  %3156 = vmatpush1.msra.mxu0 0.0
  %3157 = vmatprep.subr.mxu0 0.0
  %3158 = vmatpush1.msra.mxu0 0.0
  %3159 = vmatprep.subr.mxu0 0.0
  %3160 = vmatpush1.msra.mxu0 0.0
  %3161 = vmatprep.subr.mxu0 0.0
  %3162 = vmatpush1.msra.mxu0 0.0
  %3163 = vmatprep.subr.mxu0 0.0
  %3164 = vmatpush1.msra.mxu0 0.0
  %3165 = vmatprep.subr.mxu0 0.0
  %3166 = vmatpush1.msra.mxu0 0.0
  %3167 = vmatprep.subr.mxu0 0.0
  %3168 = vmatpush1.msra.mxu0 0.0
  %3169 = vmatprep.subr.mxu0 0.0
  %3170 = vmatpush1.msra.mxu0 0.0
  %3171 = vmatprep.subr.mxu0 0.0
  %3172 = vmatpush1.msra.mxu0 0.0
  %3173 = vmatprep.subr.mxu0 0.0
  %3174 = vmatpush1.msra.mxu0 0.0
  %3175 = vmatprep.subr.mxu0 0.0
  %3176 = vmatpush1.msra.mxu0 0.0
  %3177 = vmatprep.mubr.f32.mxu0 0.0
  %3178 = vmatmul.mubr.f32.gmra.mrb[0].mxu0 %v3111
  %v3179 = vpop.f32.mrb[0].mxu0
  %v3180 = vadd.f32 0.0, %v3179
  %v3181 = vpop.f32.mrb[0].mxu0
  %3182 = vdwg.mxu0
  %3183 = vmatprep.subr.mxu0 0.0
  %3184 = vmatpush1.msra.mxu0 %v3032
  %3185 = vmatprep.subr.mxu0 0.0
  %3186 = vmatpush1.msra.mxu0 %v3033
  %3187 = vmatprep.subr.mxu0 0.0
  %3188 = vmatpush1.msra.mxu0 %v3034
  %3189 = vmatprep.subr.mxu0 0.0
  %3190 = vmatpush1.msra.mxu0 %v3035
  %3191 = vmatprep.subr.mxu0 0.0
  %3192 = vmatpush1.msra.mxu0 0.0
  %3193 = vmatprep.subr.mxu0 0.0
  %3194 = vmatpush1.msra.mxu0 0.0
  %3195 = vmatprep.subr.mxu0 0.0
  %3196 = vmatpush1.msra.mxu0 0.0
  %3197 = vmatprep.subr.mxu0 0.0
  %3198 = vmatpush1.msra.mxu0 0.0
  %3199 = vmatprep.subr.mxu0 0.0
  %3200 = vmatpush1.msra.mxu0 0.0
  %3201 = vmatprep.subr.mxu0 0.0
  %3202 = vmatpush1.msra.mxu0 0.0
  %3203 = vmatprep.subr.mxu0 0.0
  %3204 = vmatpush1.msra.mxu0 0.0
  %3205 = vmatprep.subr.mxu0 0.0
  %3206 = vmatpush1.msra.mxu0 0.0
  %3207 = vmatprep.subr.mxu0 0.0
  %3208 = vmatpush1.msra.mxu0 0.0
  %3209 = vmatprep.subr.mxu0 0.0
  %3210 = vmatpush1.msra.mxu0 0.0
  %3211 = vmatprep.subr.mxu0 0.0
  %3212 = vmatpush1.msra.mxu0 0.0
  %3213 = vmatprep.subr.mxu0 0.0
  %3214 = vmatpush1.msra.mxu0 0.0
  %3215 = vmatprep.subr.mxu0 0.0
  %3216 = vmatpush1.msra.mxu0 0.0
  %3217 = vmatprep.subr.mxu0 0.0
  %3218 = vmatpush1.msra.mxu0 0.0
  %3219 = vmatprep.subr.mxu0 0.0
  %3220 = vmatpush1.msra.mxu0 0.0
  %3221 = vmatprep.subr.mxu0 0.0
  %3222 = vmatpush1.msra.mxu0 0.0
  %3223 = vmatprep.subr.mxu0 0.0
  %3224 = vmatpush1.msra.mxu0 0.0
  %3225 = vmatprep.subr.mxu0 0.0
  %3226 = vmatpush1.msra.mxu0 0.0
  %3227 = vmatprep.subr.mxu0 0.0
  %3228 = vmatpush1.msra.mxu0 0.0
  %3229 = vmatprep.subr.mxu0 0.0
  %3230 = vmatpush1.msra.mxu0 0.0
  %3231 = vmatprep.subr.mxu0 0.0
  %3232 = vmatpush1.msra.mxu0 0.0
  %3233 = vmatprep.subr.mxu0 0.0
  %3234 = vmatpush1.msra.mxu0 0.0
  %3235 = vmatprep.subr.mxu0 0.0
  %3236 = vmatpush1.msra.mxu0 0.0
  %3237 = vmatprep.subr.mxu0 0.0
  %3238 = vmatpush1.msra.mxu0 0.0
  %3239 = vmatprep.subr.mxu0 0.0
  %3240 = vmatpush1.msra.mxu0 0.0
  %3241 = vmatprep.subr.mxu0 0.0
  %3242 = vmatpush1.msra.mxu0 0.0
  %3243 = vmatprep.subr.mxu0 0.0
  %3244 = vmatpush1.msra.mxu0 0.0
  %3245 = vmatprep.subr.mxu0 0.0
  %3246 = vmatpush1.msra.mxu0 0.0
  %3247 = vmatprep.mubr.f32.mxu0 0.0
  %3248 = vmatmul.mubr.f32.gmra.mrb[0].mxu0 %v2953
  %v3249 = vpop.f32.mrb[0].mxu0
  %v3250 = vadd.f32 %v3180, %v3249
  %v3251 = vpop.f32.mrb[0].mxu0
  %3252 = vdwg.mxu0
  %v3253 = vadd.f32 %v3250, %v3029
  %v3254 = vld [vmem:[%s10] sm:$0x1]
  %3255 = vmatprep.subr.mxu0 0.0
  %3256 = vmatpush1.msra.mxu0 %v3253
  %3257 = vmatprep.subr.mxu0 0.0
  %3258 = vmatpush1.msra.mxu0 0.0
  %3259 = vmatprep.subr.mxu0 0.0
  %3260 = vmatpush1.msra.mxu0 0.0
  %3261 = vmatprep.subr.mxu0 0.0
  %3262 = vmatpush1.msra.mxu0 0.0
  %3263 = vmatprep.subr.mxu0 0.0
  %3264 = vmatpush1.msra.mxu0 0.0
  %3265 = vmatprep.subr.mxu0 0.0
  %3266 = vmatpush1.msra.mxu0 0.0
  %3267 = vmatprep.subr.mxu0 0.0
  %3268 = vmatpush1.msra.mxu0 0.0
  %3269 = vmatprep.subr.mxu0 0.0
  %3270 = vmatpush1.msra.mxu0 0.0
  %3271 = vmatprep.subr.mxu0 0.0
  %3272 = vmatpush1.msra.mxu0 0.0
  %3273 = vmatprep.subr.mxu0 0.0
  %3274 = vmatpush1.msra.mxu0 0.0
  %3275 = vmatprep.subr.mxu0 0.0
  %3276 = vmatpush1.msra.mxu0 0.0
  %3277 = vmatprep.subr.mxu0 0.0
  %3278 = vmatpush1.msra.mxu0 0.0
  %3279 = vmatprep.subr.mxu0 0.0
  %3280 = vmatpush1.msra.mxu0 0.0
  %3281 = vmatprep.subr.mxu0 0.0
  %3282 = vmatpush1.msra.mxu0 0.0
  %3283 = vmatprep.subr.mxu0 0.0
  %3284 = vmatpush1.msra.mxu0 0.0
  %3285 = vmatprep.subr.mxu0 0.0
  %3286 = vmatpush1.msra.mxu0 0.0
  %3287 = vmatprep.subr.mxu0 0.0
  %3288 = vmatpush1.msra.mxu0 0.0
  %3289 = vmatprep.subr.mxu0 0.0
  %3290 = vmatpush1.msra.mxu0 0.0
  %3291 = vmatprep.subr.mxu0 0.0
  %3292 = vmatpush1.msra.mxu0 0.0
  %3293 = vmatprep.subr.mxu0 0.0
  %3294 = vmatpush1.msra.mxu0 0.0
  %3295 = vmatprep.subr.mxu0 0.0
  %3296 = vmatpush1.msra.mxu0 0.0
  %3297 = vmatprep.subr.mxu0 0.0
  %3298 = vmatpush1.msra.mxu0 0.0
  %3299 = vmatprep.subr.mxu0 0.0
  %3300 = vmatpush1.msra.mxu0 0.0
  %3301 = vmatprep.subr.mxu0 0.0
  %3302 = vmatpush1.msra.mxu0 0.0
  %3303 = vmatprep.subr.mxu0 0.0
  %3304 = vmatpush1.msra.mxu0 0.0
  %3305 = vmatprep.subr.mxu0 0.0
  %3306 = vmatpush1.msra.mxu0 0.0
  %3307 = vmatprep.subr.mxu0 0.0
  %3308 = vmatpush1.msra.mxu0 0.0
  %3309 = vmatprep.subr.mxu0 0.0
  %3310 = vmatpush1.msra.mxu0 0.0
  %3311 = vmatprep.subr.mxu0 0.0
  %3312 = vmatpush1.msra.mxu0 0.0
  %3313 = vmatprep.subr.mxu0 0.0
  %3314 = vmatpush1.msra.mxu0 0.0
  %3315 = vmatprep.subr.mxu0 0.0
  %3316 = vmatpush1.msra.mxu0 0.0
  %3317 = vmatprep.subr.mxu0 0.0
  %3318 = vmatpush1.msra.mxu0 0.0
  %3319 = vmatprep.mubr.f32.mxu0 0.0
  %3320 = vmatmul.mubr.f32.gmra.mrb[0].mxu0 %v65
  %v3321 = vpop.f32.mrb[0].mxu0
  %v3322 = vadd.f32 0.0, %v3321
  %v3323 = vpop.f32.mrb[0].mxu0
  %3324 = vdwg.mxu0
  %v3325 = vld [vmem:[%s9] sm:$0xff]
  %v3326 = vld [vmem:[%s9 + $0x8] sm:$0xff]
  %v3327 = vld [vmem:[%s1438] sm:$0xff]
  %v3328 = vld [vmem:[%s1438 + $0x8] sm:$0xff]
  %v3330 = vsel %vm137, %v3031, 0
  %3332 = vmatprep.subr.mxu0 0.0
  %3333 = vmatpush1.msra.mxu0 %v3327
  %3334 = vmatprep.subr.mxu0 0.0
  %3335 = vmatpush1.msra.mxu0 %v3328
  %3336 = vmatprep.subr.mxu0 0.0
  %3337 = vmatpush1.msra.mxu0 0.0
  %3338 = vmatprep.subr.mxu0 0.0
  %3339 = vmatpush1.msra.mxu0 0.0
  %3340 = vmatprep.subr.mxu0 0.0
  %3341 = vmatpush1.msra.mxu0 0.0
  %3342 = vmatprep.subr.mxu0 0.0
  %3343 = vmatpush1.msra.mxu0 0.0
  %3344 = vmatprep.subr.mxu0 0.0
  %3345 = vmatpush1.msra.mxu0 0.0
  %3346 = vmatprep.subr.mxu0 0.0
  %3347 = vmatpush1.msra.mxu0 0.0
  %3348 = vmatprep.subr.mxu0 0.0
  %3349 = vmatpush1.msra.mxu0 0.0
  %3350 = vmatprep.subr.mxu0 0.0
  %3351 = vmatpush1.msra.mxu0 0.0
  %3352 = vmatprep.subr.mxu0 0.0
  %3353 = vmatpush1.msra.mxu0 0.0
  %3354 = vmatprep.subr.mxu0 0.0
  %3355 = vmatpush1.msra.mxu0 0.0
  %3356 = vmatprep.subr.mxu0 0.0
  %3357 = vmatpush1.msra.mxu0 0.0
  %3358 = vmatprep.subr.mxu0 0.0
  %3359 = vmatpush1.msra.mxu0 0.0
  %3360 = vmatprep.subr.mxu0 0.0
  %3361 = vmatpush1.msra.mxu0 0.0
  %3362 = vmatprep.subr.mxu0 0.0
  %3363 = vmatpush1.msra.mxu0 0.0
  %3364 = vmatprep.subr.mxu0 0.0
  %3365 = vmatpush1.msra.mxu0 0.0
  %3366 = vmatprep.subr.mxu0 0.0
  %3367 = vmatpush1.msra.mxu0 0.0
  %3368 = vmatprep.subr.mxu0 0.0
  %3369 = vmatpush1.msra.mxu0 0.0
  %3370 = vmatprep.subr.mxu0 0.0
  %3371 = vmatpush1.msra.mxu0 0.0
  %3372 = vmatprep.subr.mxu0 0.0
  %3373 = vmatpush1.msra.mxu0 0.0
  %3374 = vmatprep.subr.mxu0 0.0
  %3375 = vmatpush1.msra.mxu0 0.0
  %3376 = vmatprep.subr.mxu0 0.0
  %3377 = vmatpush1.msra.mxu0 0.0
  %3378 = vmatprep.subr.mxu0 0.0
  %3379 = vmatpush1.msra.mxu0 0.0
  %3380 = vmatprep.subr.mxu0 0.0
  %3381 = vmatpush1.msra.mxu0 0.0
  %3382 = vmatprep.subr.mxu0 0.0
  %3383 = vmatpush1.msra.mxu0 0.0
  %3384 = vmatprep.subr.mxu0 0.0
  %3385 = vmatpush1.msra.mxu0 0.0
  %3386 = vmatprep.subr.mxu0 0.0
  %3387 = vmatpush1.msra.mxu0 0.0
  %3388 = vmatprep.subr.mxu0 0.0
  %3389 = vmatpush1.msra.mxu0 0.0
  %3390 = vmatprep.subr.mxu0 0.0
  %3391 = vmatpush1.msra.mxu0 0.0
  %3392 = vmatprep.subr.mxu0 0.0
  %3393 = vmatpush1.msra.mxu0 0.0
  %3394 = vmatprep.subr.mxu0 0.0
  %3395 = vmatpush1.msra.mxu0 0.0
  %3396 = vmatprep.mubr.f32.mxu0 0.0
  %3397 = vmatmul.mubr.f32.gmra.mrb[0].mxu0 %v3330
  %v3398 = vpop.f32.mrb[0].mxu0
  %v3399 = vadd.f32 0.0, %v3398
  %v3400 = vpop.f32.mrb[0].mxu0
  %3401 = vdwg.mxu0
  %v3403 = vsel %vm137, %v3322, 0
  %3405 = vmatprep.subr.mxu0 0.0
  %3406 = vmatpush1.msra.mxu0 %v3325
  %3407 = vmatprep.subr.mxu0 0.0
  %3408 = vmatpush1.msra.mxu0 %v3326
  %3409 = vmatprep.subr.mxu0 0.0
  %3410 = vmatpush1.msra.mxu0 0.0
  %3411 = vmatprep.subr.mxu0 0.0
  %3412 = vmatpush1.msra.mxu0 0.0
  %3413 = vmatprep.subr.mxu0 0.0
  %3414 = vmatpush1.msra.mxu0 0.0
  %3415 = vmatprep.subr.mxu0 0.0
  %3416 = vmatpush1.msra.mxu0 0.0
  %3417 = vmatprep.subr.mxu0 0.0
  %3418 = vmatpush1.msra.mxu0 0.0
  %3419 = vmatprep.subr.mxu0 0.0
  %3420 = vmatpush1.msra.mxu0 0.0
  %3421 = vmatprep.subr.mxu0 0.0
  %3422 = vmatpush1.msra.mxu0 0.0
  %3423 = vmatprep.subr.mxu0 0.0
  %3424 = vmatpush1.msra.mxu0 0.0
  %3425 = vmatprep.subr.mxu0 0.0
  %3426 = vmatpush1.msra.mxu0 0.0
  %3427 = vmatprep.subr.mxu0 0.0
  %3428 = vmatpush1.msra.mxu0 0.0
  %3429 = vmatprep.subr.mxu0 0.0
  %3430 = vmatpush1.msra.mxu0 0.0
  %3431 = vmatprep.subr.mxu0 0.0
  %3432 = vmatpush1.msra.mxu0 0.0
  %3433 = vmatprep.subr.mxu0 0.0
  %3434 = vmatpush1.msra.mxu0 0.0
  %3435 = vmatprep.subr.mxu0 0.0
  %3436 = vmatpush1.msra.mxu0 0.0
  %3437 = vmatprep.subr.mxu0 0.0
  %3438 = vmatpush1.msra.mxu0 0.0
  %3439 = vmatprep.subr.mxu0 0.0
  %3440 = vmatpush1.msra.mxu0 0.0
  %3441 = vmatprep.subr.mxu0 0.0
  %3442 = vmatpush1.msra.mxu0 0.0
  %3443 = vmatprep.subr.mxu0 0.0
  %3444 = vmatpush1.msra.mxu0 0.0
  %3445 = vmatprep.subr.mxu0 0.0
  %3446 = vmatpush1.msra.mxu0 0.0
  %3447 = vmatprep.subr.mxu0 0.0
  %3448 = vmatpush1.msra.mxu0 0.0
  %3449 = vmatprep.subr.mxu0 0.0
  %3450 = vmatpush1.msra.mxu0 0.0
  %3451 = vmatprep.subr.mxu0 0.0
  %3452 = vmatpush1.msra.mxu0 0.0
  %3453 = vmatprep.subr.mxu0 0.0
  %3454 = vmatpush1.msra.mxu0 0.0
  %3455 = vmatprep.subr.mxu0 0.0
  %3456 = vmatpush1.msra.mxu0 0.0
  %3457 = vmatprep.subr.mxu0 0.0
  %3458 = vmatpush1.msra.mxu0 0.0
  %3459 = vmatprep.subr.mxu0 0.0
  %3460 = vmatpush1.msra.mxu0 0.0
  %3461 = vmatprep.subr.mxu0 0.0
  %3462 = vmatpush1.msra.mxu0 0.0
  %3463 = vmatprep.subr.mxu0 0.0
  %3464 = vmatpush1.msra.mxu0 0.0
  %3465 = vmatprep.subr.mxu0 0.0
  %3466 = vmatpush1.msra.mxu0 0.0
  %3467 = vmatprep.subr.mxu0 0.0
  %3468 = vmatpush1.msra.mxu0 0.0
  %3469 = vmatprep.mubr.f32.mxu0 0.0
  %3470 = vmatmul.mubr.f32.gmra.mrb[0].mxu0 %v3403
  %v3471 = vpop.f32.mrb[0].mxu0
  %v3472 = vadd.f32 %v3399, %v3471
  %v3473 = vpop.f32.mrb[0].mxu0
  %3474 = vdwg.mxu0
  %v3475 = vld [vmem:[%s1587] sm:$0xff]
  %v3476 = vld [vmem:[%s1587 + $0x8] sm:$0xff]
  %v3478 = vsel %vm137, %v3253, 0
  %3480 = vmatprep.subr.mxu0 0.0
  %3481 = vmatpush1.msra.mxu0 %v3475
  %3482 = vmatprep.subr.mxu0 0.0
  %3483 = vmatpush1.msra.mxu0 %v3476
  %3484 = vmatprep.subr.mxu0 0.0
  %3485 = vmatpush1.msra.mxu0 0.0
  %3486 = vmatprep.subr.mxu0 0.0
  %3487 = vmatpush1.msra.mxu0 0.0
  %3488 = vmatprep.subr.mxu0 0.0
  %3489 = vmatpush1.msra.mxu0 0.0
  %3490 = vmatprep.subr.mxu0 0.0
  %3491 = vmatpush1.msra.mxu0 0.0
  %3492 = vmatprep.subr.mxu0 0.0
  %3493 = vmatpush1.msra.mxu0 0.0
  %3494 = vmatprep.subr.mxu0 0.0
  %3495 = vmatpush1.msra.mxu0 0.0
  %3496 = vmatprep.subr.mxu0 0.0
  %3497 = vmatpush1.msra.mxu0 0.0
  %3498 = vmatprep.subr.mxu0 0.0
  %3499 = vmatpush1.msra.mxu0 0.0
  %3500 = vmatprep.subr.mxu0 0.0
  %3501 = vmatpush1.msra.mxu0 0.0
  %3502 = vmatprep.subr.mxu0 0.0
  %3503 = vmatpush1.msra.mxu0 0.0
  %3504 = vmatprep.subr.mxu0 0.0
  %3505 = vmatpush1.msra.mxu0 0.0
  %3506 = vmatprep.subr.mxu0 0.0
  %3507 = vmatpush1.msra.mxu0 0.0
  %3508 = vmatprep.subr.mxu0 0.0
  %3509 = vmatpush1.msra.mxu0 0.0
  %3510 = vmatprep.subr.mxu0 0.0
  %3511 = vmatpush1.msra.mxu0 0.0
  %3512 = vmatprep.subr.mxu0 0.0
  %3513 = vmatpush1.msra.mxu0 0.0
  %3514 = vmatprep.subr.mxu0 0.0
  %3515 = vmatpush1.msra.mxu0 0.0
  %3516 = vmatprep.subr.mxu0 0.0
  %3517 = vmatpush1.msra.mxu0 0.0
  %3518 = vmatprep.subr.mxu0 0.0
  %3519 = vmatpush1.msra.mxu0 0.0
  %3520 = vmatprep.subr.mxu0 0.0
  %3521 = vmatpush1.msra.mxu0 0.0
  %3522 = vmatprep.subr.mxu0 0.0
  %3523 = vmatpush1.msra.mxu0 0.0
  %3524 = vmatprep.subr.mxu0 0.0
  %3525 = vmatpush1.msra.mxu0 0.0
  %3526 = vmatprep.subr.mxu0 0.0
  %3527 = vmatpush1.msra.mxu0 0.0
  %3528 = vmatprep.subr.mxu0 0.0
  %3529 = vmatpush1.msra.mxu0 0.0
  %3530 = vmatprep.subr.mxu0 0.0
  %3531 = vmatpush1.msra.mxu0 0.0
  %3532 = vmatprep.subr.mxu0 0.0
  %3533 = vmatpush1.msra.mxu0 0.0
  %3534 = vmatprep.subr.mxu0 0.0
  %3535 = vmatpush1.msra.mxu0 0.0
  %3536 = vmatprep.subr.mxu0 0.0
  %3537 = vmatpush1.msra.mxu0 0.0
  %3538 = vmatprep.subr.mxu0 0.0
  %3539 = vmatpush1.msra.mxu0 0.0
  %3540 = vmatprep.subr.mxu0 0.0
  %3541 = vmatpush1.msra.mxu0 0.0
  %3542 = vmatprep.subr.mxu0 0.0
  %3543 = vmatpush1.msra.mxu0 0.0
  %3544 = vmatprep.mubr.f32.mxu0 0.0
  %3545 = vmatmul.mubr.f32.gmra.mrb[0].mxu0 %v3478
  %v3546 = vpop.f32.mrb[0].mxu0
  %v3547 = vadd.f32 0.0, %v3546
  %v3548 = vpop.f32.mrb[0].mxu0
  %3549 = vdwg.mxu0
  %v3550 = vadd.f32 %v3472, %v3547
  %v3552 = vlaneseq
  %v3553 = vshrl.u32 %v3552, 7
  %v3554 = vsub.s32 0, %v3553
  %v3555 = vrot.slane %v3254, %v3554
  %v3557 = vadd.f32 %v3550, %v3555
  %3558 = vmatprep.subr.mxu0 0.0
  %3559 = vmatpush1.msra.mxu0 %v3327
  %3560 = vmatprep.subr.mxu0 0.0
  %3561 = vmatpush1.msra.mxu0 %v3328
  %3562 = vmatprep.subr.mxu0 0.0
  %3563 = vmatpush1.msra.mxu0 0.0
  %3564 = vmatprep.subr.mxu0 0.0
  %3565 = vmatpush1.msra.mxu0 0.0
  %3566 = vmatprep.subr.mxu0 0.0
  %3567 = vmatpush1.msra.mxu0 0.0
  %3568 = vmatprep.subr.mxu0 0.0
  %3569 = vmatpush1.msra.mxu0 0.0
  %3570 = vmatprep.subr.mxu0 0.0
  %3571 = vmatpush1.msra.mxu0 0.0
  %3572 = vmatprep.subr.mxu0 0.0
  %3573 = vmatpush1.msra.mxu0 0.0
  %3574 = vmatprep.subr.mxu0 0.0
  %3575 = vmatpush1.msra.mxu0 0.0
  %3576 = vmatprep.subr.mxu0 0.0
  %3577 = vmatpush1.msra.mxu0 0.0
  %3578 = vmatprep.subr.mxu0 0.0
  %3579 = vmatpush1.msra.mxu0 0.0
  %3580 = vmatprep.subr.mxu0 0.0
  %3581 = vmatpush1.msra.mxu0 0.0
  %3582 = vmatprep.subr.mxu0 0.0
  %3583 = vmatpush1.msra.mxu0 0.0
  %3584 = vmatprep.subr.mxu0 0.0
  %3585 = vmatpush1.msra.mxu0 0.0
  %3586 = vmatprep.subr.mxu0 0.0
  %3587 = vmatpush1.msra.mxu0 0.0
  %3588 = vmatprep.subr.mxu0 0.0
  %3589 = vmatpush1.msra.mxu0 0.0
  %3590 = vmatprep.subr.mxu0 0.0
  %3591 = vmatpush1.msra.mxu0 0.0
  %3592 = vmatprep.subr.mxu0 0.0
  %3593 = vmatpush1.msra.mxu0 0.0
  %3594 = vmatprep.subr.mxu0 0.0
  %3595 = vmatpush1.msra.mxu0 0.0
  %3596 = vmatprep.subr.mxu0 0.0
  %3597 = vmatpush1.msra.mxu0 0.0
  %3598 = vmatprep.subr.mxu0 0.0
  %3599 = vmatpush1.msra.mxu0 0.0
  %3600 = vmatprep.subr.mxu0 0.0
  %3601 = vmatpush1.msra.mxu0 0.0
  %3602 = vmatprep.subr.mxu0 0.0
  %3603 = vmatpush1.msra.mxu0 0.0
  %3604 = vmatprep.subr.mxu0 0.0
  %3605 = vmatpush1.msra.mxu0 0.0
  %3606 = vmatprep.subr.mxu0 0.0
  %3607 = vmatpush1.msra.mxu0 0.0
  %3608 = vmatprep.subr.mxu0 0.0
  %3609 = vmatpush1.msra.mxu0 0.0
  %3610 = vmatprep.subr.mxu0 0.0
  %3611 = vmatpush1.msra.mxu0 0.0
  %3612 = vmatprep.subr.mxu0 0.0
  %3613 = vmatpush1.msra.mxu0 0.0
  %3614 = vmatprep.subr.mxu0 0.0
  %3615 = vmatpush1.msra.mxu0 0.0
  %3616 = vmatprep.subr.mxu0 0.0
  %3617 = vmatpush1.msra.mxu0 0.0
  %3618 = vmatprep.subr.mxu0 0.0
  %3619 = vmatpush1.msra.mxu0 0.0
  %3620 = vmatprep.subr.mxu0 0.0
  %3621 = vmatpush1.msra.mxu0 0.0
  %3622 = vmatprep.mubr.f32.mxu0 0.0
  %3623 = vmatmul.mubr.f32.gmra.mrb[0].mxu0 %v3478
  %v3624 = vpop.f32.mrb[0].mxu0
  %v3625 = vadd.f32 0.0, %v3624
  %v3626 = vpop.f32.mrb[0].mxu0
  %3627 = vdwg.mxu0
  %3628 = vmatprep.subr.mxu0 0.0
  %3629 = vmatpush1.msra.mxu0 %v3325
  %3630 = vmatprep.subr.mxu0 0.0
  %3631 = vmatpush1.msra.mxu0 %v3326
  %3632 = vmatprep.subr.mxu0 0.0
  %3633 = vmatpush1.msra.mxu0 0.0
  %3634 = vmatprep.subr.mxu0 0.0
  %3635 = vmatpush1.msra.mxu0 0.0
  %3636 = vmatprep.subr.mxu0 0.0
  %3637 = vmatpush1.msra.mxu0 0.0
  %3638 = vmatprep.subr.mxu0 0.0
  %3639 = vmatpush1.msra.mxu0 0.0
  %3640 = vmatprep.subr.mxu0 0.0
  %3641 = vmatpush1.msra.mxu0 0.0
  %3642 = vmatprep.subr.mxu0 0.0
  %3643 = vmatpush1.msra.mxu0 0.0
  %3644 = vmatprep.subr.mxu0 0.0
  %3645 = vmatpush1.msra.mxu0 0.0
  %3646 = vmatprep.subr.mxu0 0.0
  %3647 = vmatpush1.msra.mxu0 0.0
  %3648 = vmatprep.subr.mxu0 0.0
  %3649 = vmatpush1.msra.mxu0 0.0
  %3650 = vmatprep.subr.mxu0 0.0
  %3651 = vmatpush1.msra.mxu0 0.0
  %3652 = vmatprep.subr.mxu0 0.0
  %3653 = vmatpush1.msra.mxu0 0.0
  %3654 = vmatprep.subr.mxu0 0.0
  %3655 = vmatpush1.msra.mxu0 0.0
  %3656 = vmatprep.subr.mxu0 0.0
  %3657 = vmatpush1.msra.mxu0 0.0
  %3658 = vmatprep.subr.mxu0 0.0
  %3659 = vmatpush1.msra.mxu0 0.0
  %3660 = vmatprep.subr.mxu0 0.0
  %3661 = vmatpush1.msra.mxu0 0.0
  %3662 = vmatprep.subr.mxu0 0.0
  %3663 = vmatpush1.msra.mxu0 0.0
  %3664 = vmatprep.subr.mxu0 0.0
  %3665 = vmatpush1.msra.mxu0 0.0
  %3666 = vmatprep.subr.mxu0 0.0
  %3667 = vmatpush1.msra.mxu0 0.0
  %3668 = vmatprep.subr.mxu0 0.0
  %3669 = vmatpush1.msra.mxu0 0.0
  %3670 = vmatprep.subr.mxu0 0.0
  %3671 = vmatpush1.msra.mxu0 0.0
  %3672 = vmatprep.subr.mxu0 0.0
  %3673 = vmatpush1.msra.mxu0 0.0
  %3674 = vmatprep.subr.mxu0 0.0
  %3675 = vmatpush1.msra.mxu0 0.0
  %3676 = vmatprep.subr.mxu0 0.0
  %3677 = vmatpush1.msra.mxu0 0.0
  %3678 = vmatprep.subr.mxu0 0.0
  %3679 = vmatpush1.msra.mxu0 0.0
  %3680 = vmatprep.subr.mxu0 0.0
  %3681 = vmatpush1.msra.mxu0 0.0
  %3682 = vmatprep.subr.mxu0 0.0
  %3683 = vmatpush1.msra.mxu0 0.0
  %3684 = vmatprep.subr.mxu0 0.0
  %3685 = vmatpush1.msra.mxu0 0.0
  %3686 = vmatprep.subr.mxu0 0.0
  %3687 = vmatpush1.msra.mxu0 0.0
  %3688 = vmatprep.subr.mxu0 0.0
  %3689 = vmatpush1.msra.mxu0 0.0
  %3690 = vmatprep.subr.mxu0 0.0
  %3691 = vmatpush1.msra.mxu0 0.0
  %3692 = vmatprep.mubr.f32.mxu0 0.0
  %3693 = vmatmul.mubr.f32.gmra.mrb[0].mxu0 %v3330
  %v3694 = vpop.f32.mrb[0].mxu0
  %v3695 = vadd.f32 %v3625, %v3694
  %v3696 = vpop.f32.mrb[0].mxu0
  %3697 = vdwg.mxu0
  %3698 = vmatprep.subr.mxu0 0.0
  %3699 = vmatpush1.msra.mxu0 %v3031
  %3700 = vmatprep.subr.mxu0 0.0
  %3701 = vmatpush1.msra.mxu0 0.0
  %3702 = vmatprep.subr.mxu0 0.0
  %3703 = vmatpush1.msra.mxu0 0.0
  %3704 = vmatprep.subr.mxu0 0.0
  %3705 = vmatpush1.msra.mxu0 0.0
  %3706 = vmatprep.subr.mxu0 0.0
  %3707 = vmatpush1.msra.mxu0 0.0
  %3708 = vmatprep.subr.mxu0 0.0
  %3709 = vmatpush1.msra.mxu0 0.0
  %3710 = vmatprep.subr.mxu0 0.0
  %3711 = vmatpush1.msra.mxu0 0.0
  %3712 = vmatprep.subr.mxu0 0.0
  %3713 = vmatpush1.msra.mxu0 0.0
  %3714 = vmatprep.subr.mxu0 0.0
  %3715 = vmatpush1.msra.mxu0 0.0
  %3716 = vmatprep.subr.mxu0 0.0
  %3717 = vmatpush1.msra.mxu0 0.0
  %3718 = vmatprep.subr.mxu0 0.0
  %3719 = vmatpush1.msra.mxu0 0.0
  %3720 = vmatprep.subr.mxu0 0.0
  %3721 = vmatpush1.msra.mxu0 0.0
  %3722 = vmatprep.subr.mxu0 0.0
  %3723 = vmatpush1.msra.mxu0 0.0
  %3724 = vmatprep.subr.mxu0 0.0
  %3725 = vmatpush1.msra.mxu0 0.0
  %3726 = vmatprep.subr.mxu0 0.0
  %3727 = vmatpush1.msra.mxu0 0.0
  %3728 = vmatprep.subr.mxu0 0.0
  %3729 = vmatpush1.msra.mxu0 0.0
  %3730 = vmatprep.subr.mxu0 0.0
  %3731 = vmatpush1.msra.mxu0 0.0
  %3732 = vmatprep.subr.mxu0 0.0
  %3733 = vmatpush1.msra.mxu0 0.0
  %3734 = vmatprep.subr.mxu0 0.0
  %3735 = vmatpush1.msra.mxu0 0.0
  %3736 = vmatprep.subr.mxu0 0.0
  %3737 = vmatpush1.msra.mxu0 0.0
  %3738 = vmatprep.subr.mxu0 0.0
  %3739 = vmatpush1.msra.mxu0 0.0
  %3740 = vmatprep.subr.mxu0 0.0
  %3741 = vmatpush1.msra.mxu0 0.0
  %3742 = vmatprep.subr.mxu0 0.0
  %3743 = vmatpush1.msra.mxu0 0.0
  %3744 = vmatprep.subr.mxu0 0.0
  %3745 = vmatpush1.msra.mxu0 0.0
  %3746 = vmatprep.subr.mxu0 0.0
  %3747 = vmatpush1.msra.mxu0 0.0
  %3748 = vmatprep.subr.mxu0 0.0
  %3749 = vmatpush1.msra.mxu0 0.0
  %3750 = vmatprep.subr.mxu0 0.0
  %3751 = vmatpush1.msra.mxu0 0.0
  %3752 = vmatprep.subr.mxu0 0.0
  %3753 = vmatpush1.msra.mxu0 0.0
  %3754 = vmatprep.subr.mxu0 0.0
  %3755 = vmatpush1.msra.mxu0 0.0
  %3756 = vmatprep.subr.mxu0 0.0
  %3757 = vmatpush1.msra.mxu0 0.0
  %3758 = vmatprep.subr.mxu0 0.0
  %3759 = vmatpush1.msra.mxu0 0.0
  %3760 = vmatprep.subr.mxu0 0.0
  %3761 = vmatpush1.msra.mxu0 0.0
  %3762 = vmatprep.mubr.f32.mxu0 0.0
  %3763 = vmatmul.mubr.f32.gmra.mrb[0].mxu0 %v285
  %v3764 = vpop.f32.mrb[0].mxu0
  %v3765 = vadd.f32 0.0, %v3764
  %v3766 = vpop.f32.mrb[0].mxu0
  %3767 = vdwg.mxu0
  %v3769 = vsel %vm137, %v3765, 0
  %3771 = vmatprep.subr.mxu0 0.0
  %3772 = vmatpush1.msra.mxu0 %v3475
  %3773 = vmatprep.subr.mxu0 0.0
  %3774 = vmatpush1.msra.mxu0 %v3476
  %3775 = vmatprep.subr.mxu0 0.0
  %3776 = vmatpush1.msra.mxu0 0.0
  %3777 = vmatprep.subr.mxu0 0.0
  %3778 = vmatpush1.msra.mxu0 0.0
  %3779 = vmatprep.subr.mxu0 0.0
  %3780 = vmatpush1.msra.mxu0 0.0
  %3781 = vmatprep.subr.mxu0 0.0
  %3782 = vmatpush1.msra.mxu0 0.0
  %3783 = vmatprep.subr.mxu0 0.0
  %3784 = vmatpush1.msra.mxu0 0.0
  %3785 = vmatprep.subr.mxu0 0.0
  %3786 = vmatpush1.msra.mxu0 0.0
  %3787 = vmatprep.subr.mxu0 0.0
  %3788 = vmatpush1.msra.mxu0 0.0
  %3789 = vmatprep.subr.mxu0 0.0
  %3790 = vmatpush1.msra.mxu0 0.0
  %3791 = vmatprep.subr.mxu0 0.0
  %3792 = vmatpush1.msra.mxu0 0.0
  %3793 = vmatprep.subr.mxu0 0.0
  %3794 = vmatpush1.msra.mxu0 0.0
  %3795 = vmatprep.subr.mxu0 0.0
  %3796 = vmatpush1.msra.mxu0 0.0
  %3797 = vmatprep.subr.mxu0 0.0
  %3798 = vmatpush1.msra.mxu0 0.0
  %3799 = vmatprep.subr.mxu0 0.0
  %3800 = vmatpush1.msra.mxu0 0.0
  %3801 = vmatprep.subr.mxu0 0.0
  %3802 = vmatpush1.msra.mxu0 0.0
  %3803 = vmatprep.subr.mxu0 0.0
  %3804 = vmatpush1.msra.mxu0 0.0
  %3805 = vmatprep.subr.mxu0 0.0
  %3806 = vmatpush1.msra.mxu0 0.0
  %3807 = vmatprep.subr.mxu0 0.0
  %3808 = vmatpush1.msra.mxu0 0.0
  %3809 = vmatprep.subr.mxu0 0.0
  %3810 = vmatpush1.msra.mxu0 0.0
  %3811 = vmatprep.subr.mxu0 0.0
  %3812 = vmatpush1.msra.mxu0 0.0
  %3813 = vmatprep.subr.mxu0 0.0
  %3814 = vmatpush1.msra.mxu0 0.0
  %3815 = vmatprep.subr.mxu0 0.0
  %3816 = vmatpush1.msra.mxu0 0.0
  %3817 = vmatprep.subr.mxu0 0.0
  %3818 = vmatpush1.msra.mxu0 0.0
  %3819 = vmatprep.subr.mxu0 0.0
  %3820 = vmatpush1.msra.mxu0 0.0
  %3821 = vmatprep.subr.mxu0 0.0
  %3822 = vmatpush1.msra.mxu0 0.0
  %3823 = vmatprep.subr.mxu0 0.0
  %3824 = vmatpush1.msra.mxu0 0.0
  %3825 = vmatprep.subr.mxu0 0.0
  %3826 = vmatpush1.msra.mxu0 0.0
  %3827 = vmatprep.subr.mxu0 0.0
  %3828 = vmatpush1.msra.mxu0 0.0
  %3829 = vmatprep.subr.mxu0 0.0
  %3830 = vmatpush1.msra.mxu0 0.0
  %3831 = vmatprep.subr.mxu0 0.0
  %3832 = vmatpush1.msra.mxu0 0.0
  %3833 = vmatprep.subr.mxu0 0.0
  %3834 = vmatpush1.msra.mxu0 0.0
  %3835 = vmatprep.mubr.f32.mxu0 0.0
  %3836 = vmatmul.mubr.f32.gmra.mrb[0].mxu0 %v3769
  %v3837 = vpop.f32.mrb[0].mxu0
  %v3838 = vadd.f32 0.0, %v3837
  %v3839 = vpop.f32.mrb[0].mxu0
  %3840 = vdwg.mxu0
  %v3841 = vadd.f32 %v3695, %v3838
  %v3842 = vadd.f32 %v3841, %v3555
  %s3843 = scalar_lea.vmem %s11, 8
  %3844 = vst.msk [vmem:[%s3843] sm:$0xff] %vm1956, %v3557
  %s3845 = scalar_lea.vmem %s12, 8
  %3846 = vst.msk [vmem:[%s3845] sm:$0xff] %vm1956, %v3842
  %s3847 = scalar_lea.vmem %s1, 48
  %v3848 = vld [vmem:[%s3847] sm:$0xff]
  %v3849 = vld [vmem:[%s3847 + $0x8] sm:$0xff]
  %s3850 = scalar_lea.vmem %s1, 64
  %v3851 = vld [vmem:[%s3850] sm:$0xff]
  %v3852 = vld [vmem:[%s3850 + $0x8] sm:$0xff]
  %s3853 = scalar_lea.vmem %s1, 80
  %v3854 = vld [vmem:[%s3853] sm:$0xff]
  %v3855 = vld [vmem:[%s3853 + $0x8] sm:$0xff]
  %s3856 = scalar_lea.vmem %s2, 1
  %v3857 = vld [vmem:[%s3856] sm:$0x1]
  %3858 = vmatprep.subr.mxu0 0.0
  %3859 = vmatpush1.msra.mxu0 %v3851
  %3860 = vmatprep.subr.mxu0 0.0
  %3861 = vmatpush1.msra.mxu0 %v3852
  %3862 = vmatprep.subr.mxu0 0.0
  %3863 = vmatpush1.msra.mxu0 0.0
  %3864 = vmatprep.subr.mxu0 0.0
  %3865 = vmatpush1.msra.mxu0 0.0
  %3866 = vmatprep.subr.mxu0 0.0
  %3867 = vmatpush1.msra.mxu0 0.0
  %3868 = vmatprep.subr.mxu0 0.0
  %3869 = vmatpush1.msra.mxu0 0.0
  %3870 = vmatprep.subr.mxu0 0.0
  %3871 = vmatpush1.msra.mxu0 0.0
  %3872 = vmatprep.subr.mxu0 0.0
  %3873 = vmatpush1.msra.mxu0 0.0
  %3874 = vmatprep.subr.mxu0 0.0
  %3875 = vmatpush1.msra.mxu0 0.0
  %3876 = vmatprep.subr.mxu0 0.0
  %3877 = vmatpush1.msra.mxu0 0.0
  %3878 = vmatprep.subr.mxu0 0.0
  %3879 = vmatpush1.msra.mxu0 0.0
  %3880 = vmatprep.subr.mxu0 0.0
  %3881 = vmatpush1.msra.mxu0 0.0
  %3882 = vmatprep.subr.mxu0 0.0
  %3883 = vmatpush1.msra.mxu0 0.0
  %3884 = vmatprep.subr.mxu0 0.0
  %3885 = vmatpush1.msra.mxu0 0.0
  %3886 = vmatprep.subr.mxu0 0.0
  %3887 = vmatpush1.msra.mxu0 0.0
  %3888 = vmatprep.subr.mxu0 0.0
  %3889 = vmatpush1.msra.mxu0 0.0
  %3890 = vmatprep.subr.mxu0 0.0
  %3891 = vmatpush1.msra.mxu0 0.0
  %3892 = vmatprep.subr.mxu0 0.0
  %3893 = vmatpush1.msra.mxu0 0.0
  %3894 = vmatprep.subr.mxu0 0.0
  %3895 = vmatpush1.msra.mxu0 0.0
  %3896 = vmatprep.subr.mxu0 0.0
  %3897 = vmatpush1.msra.mxu0 0.0
  %3898 = vmatprep.subr.mxu0 0.0
  %3899 = vmatpush1.msra.mxu0 0.0
  %3900 = vmatprep.subr.mxu0 0.0
  %3901 = vmatpush1.msra.mxu0 0.0
  %3902 = vmatprep.subr.mxu0 0.0
  %3903 = vmatpush1.msra.mxu0 0.0
  %3904 = vmatprep.subr.mxu0 0.0
  %3905 = vmatpush1.msra.mxu0 0.0
  %3906 = vmatprep.subr.mxu0 0.0
  %3907 = vmatpush1.msra.mxu0 0.0
  %3908 = vmatprep.subr.mxu0 0.0
  %3909 = vmatpush1.msra.mxu0 0.0
  %3910 = vmatprep.subr.mxu0 0.0
  %3911 = vmatpush1.msra.mxu0 0.0
  %3912 = vmatprep.subr.mxu0 0.0
  %3913 = vmatpush1.msra.mxu0 0.0
  %3914 = vmatprep.subr.mxu0 0.0
  %3915 = vmatpush1.msra.mxu0 0.0
  %3916 = vmatprep.subr.mxu0 0.0
  %3917 = vmatpush1.msra.mxu0 0.0
  %3918 = vmatprep.subr.mxu0 0.0
  %3919 = vmatpush1.msra.mxu0 0.0
  %3920 = vmatprep.subr.mxu0 0.0
  %3921 = vmatpush1.msra.mxu0 0.0
  %3922 = vmatprep.mubr.f32.mxu0 0.0
  %3923 = vmatmul.mubr.f32.gmra.mrb[0].mxu0 %v139
  %v3924 = vpop.f32.mrb[0].mxu0
  %v3925 = vadd.f32 0.0, %v3924
  %v3926 = vpop.f32.mrb[0].mxu0
  %3927 = vdwg.mxu0
  %3928 = vmatprep.subr.mxu0 0.0
  %3929 = vmatpush1.msra.mxu0 %v3848
  %3930 = vmatprep.subr.mxu0 0.0
  %3931 = vmatpush1.msra.mxu0 %v3849
  %3932 = vmatprep.subr.mxu0 0.0
  %3933 = vmatpush1.msra.mxu0 0.0
  %3934 = vmatprep.subr.mxu0 0.0
  %3935 = vmatpush1.msra.mxu0 0.0
  %3936 = vmatprep.subr.mxu0 0.0
  %3937 = vmatpush1.msra.mxu0 0.0
  %3938 = vmatprep.subr.mxu0 0.0
  %3939 = vmatpush1.msra.mxu0 0.0
  %3940 = vmatprep.subr.mxu0 0.0
  %3941 = vmatpush1.msra.mxu0 0.0
  %3942 = vmatprep.subr.mxu0 0.0
  %3943 = vmatpush1.msra.mxu0 0.0
  %3944 = vmatprep.subr.mxu0 0.0
  %3945 = vmatpush1.msra.mxu0 0.0
  %3946 = vmatprep.subr.mxu0 0.0
  %3947 = vmatpush1.msra.mxu0 0.0
  %3948 = vmatprep.subr.mxu0 0.0
  %3949 = vmatpush1.msra.mxu0 0.0
  %3950 = vmatprep.subr.mxu0 0.0
  %3951 = vmatpush1.msra.mxu0 0.0
  %3952 = vmatprep.subr.mxu0 0.0
  %3953 = vmatpush1.msra.mxu0 0.0
  %3954 = vmatprep.subr.mxu0 0.0
  %3955 = vmatpush1.msra.mxu0 0.0
  %3956 = vmatprep.subr.mxu0 0.0
  %3957 = vmatpush1.msra.mxu0 0.0
  %3958 = vmatprep.subr.mxu0 0.0
  %3959 = vmatpush1.msra.mxu0 0.0
  %3960 = vmatprep.subr.mxu0 0.0
  %3961 = vmatpush1.msra.mxu0 0.0
  %3962 = vmatprep.subr.mxu0 0.0
  %3963 = vmatpush1.msra.mxu0 0.0
  %3964 = vmatprep.subr.mxu0 0.0
  %3965 = vmatpush1.msra.mxu0 0.0
  %3966 = vmatprep.subr.mxu0 0.0
  %3967 = vmatpush1.msra.mxu0 0.0
  %3968 = vmatprep.subr.mxu0 0.0
  %3969 = vmatpush1.msra.mxu0 0.0
  %3970 = vmatprep.subr.mxu0 0.0
  %3971 = vmatpush1.msra.mxu0 0.0
  %3972 = vmatprep.subr.mxu0 0.0
  %3973 = vmatpush1.msra.mxu0 0.0
  %3974 = vmatprep.subr.mxu0 0.0
  %3975 = vmatpush1.msra.mxu0 0.0
  %3976 = vmatprep.subr.mxu0 0.0
  %3977 = vmatpush1.msra.mxu0 0.0
  %3978 = vmatprep.subr.mxu0 0.0
  %3979 = vmatpush1.msra.mxu0 0.0
  %3980 = vmatprep.subr.mxu0 0.0
  %3981 = vmatpush1.msra.mxu0 0.0
  %3982 = vmatprep.subr.mxu0 0.0
  %3983 = vmatpush1.msra.mxu0 0.0
  %3984 = vmatprep.subr.mxu0 0.0
  %3985 = vmatpush1.msra.mxu0 0.0
  %3986 = vmatprep.subr.mxu0 0.0
  %3987 = vmatpush1.msra.mxu0 0.0
  %3988 = vmatprep.subr.mxu0 0.0
  %3989 = vmatpush1.msra.mxu0 0.0
  %3990 = vmatprep.subr.mxu0 0.0
  %3991 = vmatpush1.msra.mxu0 0.0
  %3992 = vmatprep.mubr.f32.mxu0 0.0
  %3993 = vmatmul.mubr.f32.gmra.mrb[0].mxu0 %v212
  %v3994 = vpop.f32.mrb[0].mxu0
  %v3995 = vadd.f32 %v3925, %v3994
  %v3996 = vpop.f32.mrb[0].mxu0
  %3997 = vdwg.mxu0
  %3998 = vmatprep.subr.mxu0 0.0
  %3999 = vmatpush1.msra.mxu0 %v3854
  %4000 = vmatprep.subr.mxu0 0.0
  %4001 = vmatpush1.msra.mxu0 %v3855
  %4002 = vmatprep.subr.mxu0 0.0
  %4003 = vmatpush1.msra.mxu0 0.0
  %4004 = vmatprep.subr.mxu0 0.0
  %4005 = vmatpush1.msra.mxu0 0.0
  %4006 = vmatprep.subr.mxu0 0.0
  %4007 = vmatpush1.msra.mxu0 0.0
  %4008 = vmatprep.subr.mxu0 0.0
  %4009 = vmatpush1.msra.mxu0 0.0
  %4010 = vmatprep.subr.mxu0 0.0
  %4011 = vmatpush1.msra.mxu0 0.0
  %4012 = vmatprep.subr.mxu0 0.0
  %4013 = vmatpush1.msra.mxu0 0.0
  %4014 = vmatprep.subr.mxu0 0.0
  %4015 = vmatpush1.msra.mxu0 0.0
  %4016 = vmatprep.subr.mxu0 0.0
  %4017 = vmatpush1.msra.mxu0 0.0
  %4018 = vmatprep.subr.mxu0 0.0
  %4019 = vmatpush1.msra.mxu0 0.0
  %4020 = vmatprep.subr.mxu0 0.0
  %4021 = vmatpush1.msra.mxu0 0.0
  %4022 = vmatprep.subr.mxu0 0.0
  %4023 = vmatpush1.msra.mxu0 0.0
  %4024 = vmatprep.subr.mxu0 0.0
  %4025 = vmatpush1.msra.mxu0 0.0
  %4026 = vmatprep.subr.mxu0 0.0
  %4027 = vmatpush1.msra.mxu0 0.0
  %4028 = vmatprep.subr.mxu0 0.0
  %4029 = vmatpush1.msra.mxu0 0.0
  %4030 = vmatprep.subr.mxu0 0.0
  %4031 = vmatpush1.msra.mxu0 0.0
  %4032 = vmatprep.subr.mxu0 0.0
  %4033 = vmatpush1.msra.mxu0 0.0
  %4034 = vmatprep.subr.mxu0 0.0
  %4035 = vmatpush1.msra.mxu0 0.0
  %4036 = vmatprep.subr.mxu0 0.0
  %4037 = vmatpush1.msra.mxu0 0.0
  %4038 = vmatprep.subr.mxu0 0.0
  %4039 = vmatpush1.msra.mxu0 0.0
  %4040 = vmatprep.subr.mxu0 0.0
  %4041 = vmatpush1.msra.mxu0 0.0
  %4042 = vmatprep.subr.mxu0 0.0
  %4043 = vmatpush1.msra.mxu0 0.0
  %4044 = vmatprep.subr.mxu0 0.0
  %4045 = vmatpush1.msra.mxu0 0.0
  %4046 = vmatprep.subr.mxu0 0.0
  %4047 = vmatpush1.msra.mxu0 0.0
  %4048 = vmatprep.subr.mxu0 0.0
  %4049 = vmatpush1.msra.mxu0 0.0
  %4050 = vmatprep.subr.mxu0 0.0
  %4051 = vmatpush1.msra.mxu0 0.0
  %4052 = vmatprep.subr.mxu0 0.0
  %4053 = vmatpush1.msra.mxu0 0.0
  %4054 = vmatprep.subr.mxu0 0.0
  %4055 = vmatpush1.msra.mxu0 0.0
  %4056 = vmatprep.subr.mxu0 0.0
  %4057 = vmatpush1.msra.mxu0 0.0
  %4058 = vmatprep.subr.mxu0 0.0
  %4059 = vmatpush1.msra.mxu0 0.0
  %4060 = vmatprep.subr.mxu0 0.0
  %4061 = vmatpush1.msra.mxu0 0.0
  %4062 = vmatprep.mubr.f32.mxu0 0.0
  %4063 = vmatmul.mubr.f32.gmra.mrb[0].mxu0 %v358
  %v4064 = vpop.f32.mrb[0].mxu0
  %v4065 = vadd.f32 0.0, %v4064
  %v4066 = vpop.f32.mrb[0].mxu0
  %4067 = vdwg.mxu0
  %v4068 = vadd.f32 %v3995, %v4065
  %v4070 = vlaneseq
  %v4071 = vshrl.u32 %v4070, 7
  %v4072 = vsub.s32 0, %v4071
  %v4073 = vrot.slane %v3857, %v4072
  %v4075 = vadd.f32 %v4068, %v4073
  %s4076 = scalar_lea.vmem %s3, 96
  %v4077 = vld [vmem:[%s4076] sm:$0xff]
  %v4078 = vld [vmem:[%s4076 + $0x8] sm:$0xff]
  %v4079 = vld [vmem:[%s4076 + $0x10] sm:$0xff]
  %v4080 = vld [vmem:[%s4076 + $0x18] sm:$0xff]
  %s4081 = scalar_lea.vmem %s3, 128
  %v4082 = vld [vmem:[%s4081] sm:$0xff]
  %v4083 = vld [vmem:[%s4081 + $0x8] sm:$0xff]
  %v4084 = vld [vmem:[%s4081 + $0x10] sm:$0xff]
  %v4085 = vld [vmem:[%s4081 + $0x18] sm:$0xff]
  %s4086 = scalar_lea.vmem %s3, 160
  %v4087 = vld [vmem:[%s4086] sm:$0xff]
  %v4088 = vld [vmem:[%s4086 + $0x8] sm:$0xff]
  %v4089 = vld [vmem:[%s4086 + $0x10] sm:$0xff]
  %v4090 = vld [vmem:[%s4086 + $0x18] sm:$0xff]
  %s4091 = scalar_lea.vmem %s4, 1
  %v4092 = vld [vmem:[%s4091] sm:$0x1]
  %s4093 = scalar_lea.vmem %s5, 32
  %v4094 = vld [vmem:[%s4093] sm:$0xff]
  %v4095 = vld [vmem:[%s4093 + $0x8] sm:$0xff]
  %v4096 = vld [vmem:[%s4093 + $0x10] sm:$0xff]
  %v4097 = vld [vmem:[%s4093 + $0x18] sm:$0xff]
  %s4098 = scalar_lea.vmem %s6, 1
  %v4099 = vld [vmem:[%s4098] sm:$0x1]
  %v4100 = vmax.f32 %v4075, 0.0
  %4101 = vmatprep.subr.mxu0 0.0
  %4102 = vmatpush1.msra.mxu0 %v4100
  %4103 = vmatprep.subr.mxu0 0.0
  %4104 = vmatpush1.msra.mxu0 0.0
  %4105 = vmatprep.subr.mxu0 0.0
  %4106 = vmatpush1.msra.mxu0 0.0
  %4107 = vmatprep.subr.mxu0 0.0
  %4108 = vmatpush1.msra.mxu0 0.0
  %4109 = vmatprep.subr.mxu0 0.0
  %4110 = vmatpush1.msra.mxu0 0.0
  %4111 = vmatprep.subr.mxu0 0.0
  %4112 = vmatpush1.msra.mxu0 0.0
  %4113 = vmatprep.subr.mxu0 0.0
  %4114 = vmatpush1.msra.mxu0 0.0
  %4115 = vmatprep.subr.mxu0 0.0
  %4116 = vmatpush1.msra.mxu0 0.0
  %4117 = vmatprep.subr.mxu0 0.0
  %4118 = vmatpush1.msra.mxu0 0.0
  %4119 = vmatprep.subr.mxu0 0.0
  %4120 = vmatpush1.msra.mxu0 0.0
  %4121 = vmatprep.subr.mxu0 0.0
  %4122 = vmatpush1.msra.mxu0 0.0
  %4123 = vmatprep.subr.mxu0 0.0
  %4124 = vmatpush1.msra.mxu0 0.0
  %4125 = vmatprep.subr.mxu0 0.0
  %4126 = vmatpush1.msra.mxu0 0.0
  %4127 = vmatprep.subr.mxu0 0.0
  %4128 = vmatpush1.msra.mxu0 0.0
  %4129 = vmatprep.subr.mxu0 0.0
  %4130 = vmatpush1.msra.mxu0 0.0
  %4131 = vmatprep.subr.mxu0 0.0
  %4132 = vmatpush1.msra.mxu0 0.0
  %4133 = vmatprep.subr.mxu0 0.0
  %4134 = vmatpush1.msra.mxu0 0.0
  %4135 = vmatprep.subr.mxu0 0.0
  %4136 = vmatpush1.msra.mxu0 0.0
  %4137 = vmatprep.subr.mxu0 0.0
  %4138 = vmatpush1.msra.mxu0 0.0
  %4139 = vmatprep.subr.mxu0 0.0
  %4140 = vmatpush1.msra.mxu0 0.0
  %4141 = vmatprep.subr.mxu0 0.0
  %4142 = vmatpush1.msra.mxu0 0.0
  %4143 = vmatprep.subr.mxu0 0.0
  %4144 = vmatpush1.msra.mxu0 0.0
  %4145 = vmatprep.subr.mxu0 0.0
  %4146 = vmatpush1.msra.mxu0 0.0
  %4147 = vmatprep.subr.mxu0 0.0
  %4148 = vmatpush1.msra.mxu0 0.0
  %4149 = vmatprep.subr.mxu0 0.0
  %4150 = vmatpush1.msra.mxu0 0.0
  %4151 = vmatprep.subr.mxu0 0.0
  %4152 = vmatpush1.msra.mxu0 0.0
  %4153 = vmatprep.subr.mxu0 0.0
  %4154 = vmatpush1.msra.mxu0 0.0
  %4155 = vmatprep.subr.mxu0 0.0
  %4156 = vmatpush1.msra.mxu0 0.0
  %4157 = vmatprep.subr.mxu0 0.0
  %4158 = vmatpush1.msra.mxu0 0.0
  %4159 = vmatprep.subr.mxu0 0.0
  %4160 = vmatpush1.msra.mxu0 0.0
  %4161 = vmatprep.subr.mxu0 0.0
  %4162 = vmatpush1.msra.mxu0 0.0
  %4163 = vmatprep.subr.mxu0 0.0
  %4164 = vmatpush1.msra.mxu0 0.0
  %4165 = vmatprep.mubr.f32.mxu0 0.0
  %4166 = vmatmul.mubr.f32.gmra.mrb[0].mxu0 %v65
  %v4167 = vpop.f32.mrb[0].mxu0
  %v4168 = vadd.f32 0.0, %v4167
  %v4169 = vpop.f32.mrb[0].mxu0
  %4170 = vdwg.mxu0
  %v4172 = vsel %vm529, %v4100, 0
  %4174 = vmatprep.subr.mxu0 0.0
  %4175 = vmatpush1.msra.mxu0 %v4082
  %4176 = vmatprep.subr.mxu0 0.0
  %4177 = vmatpush1.msra.mxu0 %v4083
  %4178 = vmatprep.subr.mxu0 0.0
  %4179 = vmatpush1.msra.mxu0 %v4084
  %4180 = vmatprep.subr.mxu0 0.0
  %4181 = vmatpush1.msra.mxu0 %v4085
  %4182 = vmatprep.subr.mxu0 0.0
  %4183 = vmatpush1.msra.mxu0 0.0
  %4184 = vmatprep.subr.mxu0 0.0
  %4185 = vmatpush1.msra.mxu0 0.0
  %4186 = vmatprep.subr.mxu0 0.0
  %4187 = vmatpush1.msra.mxu0 0.0
  %4188 = vmatprep.subr.mxu0 0.0
  %4189 = vmatpush1.msra.mxu0 0.0
  %4190 = vmatprep.subr.mxu0 0.0
  %4191 = vmatpush1.msra.mxu0 0.0
  %4192 = vmatprep.subr.mxu0 0.0
  %4193 = vmatpush1.msra.mxu0 0.0
  %4194 = vmatprep.subr.mxu0 0.0
  %4195 = vmatpush1.msra.mxu0 0.0
  %4196 = vmatprep.subr.mxu0 0.0
  %4197 = vmatpush1.msra.mxu0 0.0
  %4198 = vmatprep.subr.mxu0 0.0
  %4199 = vmatpush1.msra.mxu0 0.0
  %4200 = vmatprep.subr.mxu0 0.0
  %4201 = vmatpush1.msra.mxu0 0.0
  %4202 = vmatprep.subr.mxu0 0.0
  %4203 = vmatpush1.msra.mxu0 0.0
  %4204 = vmatprep.subr.mxu0 0.0
  %4205 = vmatpush1.msra.mxu0 0.0
  %4206 = vmatprep.subr.mxu0 0.0
  %4207 = vmatpush1.msra.mxu0 0.0
  %4208 = vmatprep.subr.mxu0 0.0
  %4209 = vmatpush1.msra.mxu0 0.0
  %4210 = vmatprep.subr.mxu0 0.0
  %4211 = vmatpush1.msra.mxu0 0.0
  %4212 = vmatprep.subr.mxu0 0.0
  %4213 = vmatpush1.msra.mxu0 0.0
  %4214 = vmatprep.subr.mxu0 0.0
  %4215 = vmatpush1.msra.mxu0 0.0
  %4216 = vmatprep.subr.mxu0 0.0
  %4217 = vmatpush1.msra.mxu0 0.0
  %4218 = vmatprep.subr.mxu0 0.0
  %4219 = vmatpush1.msra.mxu0 0.0
  %4220 = vmatprep.subr.mxu0 0.0
  %4221 = vmatpush1.msra.mxu0 0.0
  %4222 = vmatprep.subr.mxu0 0.0
  %4223 = vmatpush1.msra.mxu0 0.0
  %4224 = vmatprep.subr.mxu0 0.0
  %4225 = vmatpush1.msra.mxu0 0.0
  %4226 = vmatprep.subr.mxu0 0.0
  %4227 = vmatpush1.msra.mxu0 0.0
  %4228 = vmatprep.subr.mxu0 0.0
  %4229 = vmatpush1.msra.mxu0 0.0
  %4230 = vmatprep.subr.mxu0 0.0
  %4231 = vmatpush1.msra.mxu0 0.0
  %4232 = vmatprep.subr.mxu0 0.0
  %4233 = vmatpush1.msra.mxu0 0.0
  %4234 = vmatprep.subr.mxu0 0.0
  %4235 = vmatpush1.msra.mxu0 0.0
  %4236 = vmatprep.subr.mxu0 0.0
  %4237 = vmatpush1.msra.mxu0 0.0
  %4238 = vmatprep.mubr.f32.mxu0 0.0
  %4239 = vmatmul.mubr.f32.gmra.mrb[0].mxu0 %v4172
  %v4240 = vpop.f32.mrb[0].mxu0
  %v4241 = vadd.f32 0.0, %v4240
  %v4242 = vpop.f32.mrb[0].mxu0
  %4243 = vdwg.mxu0
  %v4245 = vsel %vm529, %v4168, 0
  %4247 = vmatprep.subr.mxu0 0.0
  %4248 = vmatpush1.msra.mxu0 %v4077
  %4249 = vmatprep.subr.mxu0 0.0
  %4250 = vmatpush1.msra.mxu0 %v4078
  %4251 = vmatprep.subr.mxu0 0.0
  %4252 = vmatpush1.msra.mxu0 %v4079
  %4253 = vmatprep.subr.mxu0 0.0
  %4254 = vmatpush1.msra.mxu0 %v4080
  %4255 = vmatprep.subr.mxu0 0.0
  %4256 = vmatpush1.msra.mxu0 0.0
  %4257 = vmatprep.subr.mxu0 0.0
  %4258 = vmatpush1.msra.mxu0 0.0
  %4259 = vmatprep.subr.mxu0 0.0
  %4260 = vmatpush1.msra.mxu0 0.0
  %4261 = vmatprep.subr.mxu0 0.0
  %4262 = vmatpush1.msra.mxu0 0.0
  %4263 = vmatprep.subr.mxu0 0.0
  %4264 = vmatpush1.msra.mxu0 0.0
  %4265 = vmatprep.subr.mxu0 0.0
  %4266 = vmatpush1.msra.mxu0 0.0
  %4267 = vmatprep.subr.mxu0 0.0
  %4268 = vmatpush1.msra.mxu0 0.0
  %4269 = vmatprep.subr.mxu0 0.0
  %4270 = vmatpush1.msra.mxu0 0.0
  %4271 = vmatprep.subr.mxu0 0.0
  %4272 = vmatpush1.msra.mxu0 0.0
  %4273 = vmatprep.subr.mxu0 0.0
  %4274 = vmatpush1.msra.mxu0 0.0
  %4275 = vmatprep.subr.mxu0 0.0
  %4276 = vmatpush1.msra.mxu0 0.0
  %4277 = vmatprep.subr.mxu0 0.0
  %4278 = vmatpush1.msra.mxu0 0.0
  %4279 = vmatprep.subr.mxu0 0.0
  %4280 = vmatpush1.msra.mxu0 0.0
  %4281 = vmatprep.subr.mxu0 0.0
  %4282 = vmatpush1.msra.mxu0 0.0
  %4283 = vmatprep.subr.mxu0 0.0
  %4284 = vmatpush1.msra.mxu0 0.0
  %4285 = vmatprep.subr.mxu0 0.0
  %4286 = vmatpush1.msra.mxu0 0.0
  %4287 = vmatprep.subr.mxu0 0.0
  %4288 = vmatpush1.msra.mxu0 0.0
  %4289 = vmatprep.subr.mxu0 0.0
  %4290 = vmatpush1.msra.mxu0 0.0
  %4291 = vmatprep.subr.mxu0 0.0
  %4292 = vmatpush1.msra.mxu0 0.0
  %4293 = vmatprep.subr.mxu0 0.0
  %4294 = vmatpush1.msra.mxu0 0.0
  %4295 = vmatprep.subr.mxu0 0.0
  %4296 = vmatpush1.msra.mxu0 0.0
  %4297 = vmatprep.subr.mxu0 0.0
  %4298 = vmatpush1.msra.mxu0 0.0
  %4299 = vmatprep.subr.mxu0 0.0
  %4300 = vmatpush1.msra.mxu0 0.0
  %4301 = vmatprep.subr.mxu0 0.0
  %4302 = vmatpush1.msra.mxu0 0.0
  %4303 = vmatprep.subr.mxu0 0.0
  %4304 = vmatpush1.msra.mxu0 0.0
  %4305 = vmatprep.subr.mxu0 0.0
  %4306 = vmatpush1.msra.mxu0 0.0
  %4307 = vmatprep.subr.mxu0 0.0
  %4308 = vmatpush1.msra.mxu0 0.0
  %4309 = vmatprep.subr.mxu0 0.0
  %4310 = vmatpush1.msra.mxu0 0.0
  %4311 = vmatprep.mubr.f32.mxu0 0.0
  %4312 = vmatmul.mubr.f32.gmra.mrb[0].mxu0 %v4245
  %v4313 = vpop.f32.mrb[0].mxu0
  %v4314 = vadd.f32 %v4241, %v4313
  %v4315 = vpop.f32.mrb[0].mxu0
  %4316 = vdwg.mxu0
  %4317 = vmatprep.subr.mxu0 0.0
  %4318 = vmatpush1.msra.mxu0 %v4100
  %4319 = vmatprep.subr.mxu0 0.0
  %4320 = vmatpush1.msra.mxu0 0.0
  %4321 = vmatprep.subr.mxu0 0.0
  %4322 = vmatpush1.msra.mxu0 0.0
  %4323 = vmatprep.subr.mxu0 0.0
  %4324 = vmatpush1.msra.mxu0 0.0
  %4325 = vmatprep.subr.mxu0 0.0
  %4326 = vmatpush1.msra.mxu0 0.0
  %4327 = vmatprep.subr.mxu0 0.0
  %4328 = vmatpush1.msra.mxu0 0.0
  %4329 = vmatprep.subr.mxu0 0.0
  %4330 = vmatpush1.msra.mxu0 0.0
  %4331 = vmatprep.subr.mxu0 0.0
  %4332 = vmatpush1.msra.mxu0 0.0
  %4333 = vmatprep.subr.mxu0 0.0
  %4334 = vmatpush1.msra.mxu0 0.0
  %4335 = vmatprep.subr.mxu0 0.0
  %4336 = vmatpush1.msra.mxu0 0.0
  %4337 = vmatprep.subr.mxu0 0.0
  %4338 = vmatpush1.msra.mxu0 0.0
  %4339 = vmatprep.subr.mxu0 0.0
  %4340 = vmatpush1.msra.mxu0 0.0
  %4341 = vmatprep.subr.mxu0 0.0
  %4342 = vmatpush1.msra.mxu0 0.0
  %4343 = vmatprep.subr.mxu0 0.0
  %4344 = vmatpush1.msra.mxu0 0.0
  %4345 = vmatprep.subr.mxu0 0.0
  %4346 = vmatpush1.msra.mxu0 0.0
  %4347 = vmatprep.subr.mxu0 0.0
  %4348 = vmatpush1.msra.mxu0 0.0
  %4349 = vmatprep.subr.mxu0 0.0
  %4350 = vmatpush1.msra.mxu0 0.0
  %4351 = vmatprep.subr.mxu0 0.0
  %4352 = vmatpush1.msra.mxu0 0.0
  %4353 = vmatprep.subr.mxu0 0.0
  %4354 = vmatpush1.msra.mxu0 0.0
  %4355 = vmatprep.subr.mxu0 0.0
  %4356 = vmatpush1.msra.mxu0 0.0
  %4357 = vmatprep.subr.mxu0 0.0
  %4358 = vmatpush1.msra.mxu0 0.0
  %4359 = vmatprep.subr.mxu0 0.0
  %4360 = vmatpush1.msra.mxu0 0.0
  %4361 = vmatprep.subr.mxu0 0.0
  %4362 = vmatpush1.msra.mxu0 0.0
  %4363 = vmatprep.subr.mxu0 0.0
  %4364 = vmatpush1.msra.mxu0 0.0
  %4365 = vmatprep.subr.mxu0 0.0
  %4366 = vmatpush1.msra.mxu0 0.0
  %4367 = vmatprep.subr.mxu0 0.0
  %4368 = vmatpush1.msra.mxu0 0.0
  %4369 = vmatprep.subr.mxu0 0.0
  %4370 = vmatpush1.msra.mxu0 0.0
  %4371 = vmatprep.subr.mxu0 0.0
  %4372 = vmatpush1.msra.mxu0 0.0
  %4373 = vmatprep.subr.mxu0 0.0
  %4374 = vmatpush1.msra.mxu0 0.0
  %4375 = vmatprep.subr.mxu0 0.0
  %4376 = vmatpush1.msra.mxu0 0.0
  %4377 = vmatprep.subr.mxu0 0.0
  %4378 = vmatpush1.msra.mxu0 0.0
  %4379 = vmatprep.subr.mxu0 0.0
  %4380 = vmatpush1.msra.mxu0 0.0
  %4381 = vmatprep.mubr.f32.mxu0 0.0
  %4382 = vmatmul.mubr.f32.gmra.mrb[0].mxu0 %v285
  %v4383 = vpop.f32.mrb[0].mxu0
  %v4384 = vadd.f32 0.0, %v4383
  %v4385 = vpop.f32.mrb[0].mxu0
  %4386 = vdwg.mxu0
  %v4388 = vsel %vm529, %v4384, 0
  %4390 = vmatprep.subr.mxu0 0.0
  %4391 = vmatpush1.msra.mxu0 %v4087
  %4392 = vmatprep.subr.mxu0 0.0
  %4393 = vmatpush1.msra.mxu0 %v4088
  %4394 = vmatprep.subr.mxu0 0.0
  %4395 = vmatpush1.msra.mxu0 %v4089
  %4396 = vmatprep.subr.mxu0 0.0
  %4397 = vmatpush1.msra.mxu0 %v4090
  %4398 = vmatprep.subr.mxu0 0.0
  %4399 = vmatpush1.msra.mxu0 0.0
  %4400 = vmatprep.subr.mxu0 0.0
  %4401 = vmatpush1.msra.mxu0 0.0
  %4402 = vmatprep.subr.mxu0 0.0
  %4403 = vmatpush1.msra.mxu0 0.0
  %4404 = vmatprep.subr.mxu0 0.0
  %4405 = vmatpush1.msra.mxu0 0.0
  %4406 = vmatprep.subr.mxu0 0.0
  %4407 = vmatpush1.msra.mxu0 0.0
  %4408 = vmatprep.subr.mxu0 0.0
  %4409 = vmatpush1.msra.mxu0 0.0
  %4410 = vmatprep.subr.mxu0 0.0
  %4411 = vmatpush1.msra.mxu0 0.0
  %4412 = vmatprep.subr.mxu0 0.0
  %4413 = vmatpush1.msra.mxu0 0.0
  %4414 = vmatprep.subr.mxu0 0.0
  %4415 = vmatpush1.msra.mxu0 0.0
  %4416 = vmatprep.subr.mxu0 0.0
  %4417 = vmatpush1.msra.mxu0 0.0
  %4418 = vmatprep.subr.mxu0 0.0
  %4419 = vmatpush1.msra.mxu0 0.0
  %4420 = vmatprep.subr.mxu0 0.0
  %4421 = vmatpush1.msra.mxu0 0.0
  %4422 = vmatprep.subr.mxu0 0.0
  %4423 = vmatpush1.msra.mxu0 0.0
  %4424 = vmatprep.subr.mxu0 0.0
  %4425 = vmatpush1.msra.mxu0 0.0
  %4426 = vmatprep.subr.mxu0 0.0
  %4427 = vmatpush1.msra.mxu0 0.0
  %4428 = vmatprep.subr.mxu0 0.0
  %4429 = vmatpush1.msra.mxu0 0.0
  %4430 = vmatprep.subr.mxu0 0.0
  %4431 = vmatpush1.msra.mxu0 0.0
  %4432 = vmatprep.subr.mxu0 0.0
  %4433 = vmatpush1.msra.mxu0 0.0
  %4434 = vmatprep.subr.mxu0 0.0
  %4435 = vmatpush1.msra.mxu0 0.0
  %4436 = vmatprep.subr.mxu0 0.0
  %4437 = vmatpush1.msra.mxu0 0.0
  %4438 = vmatprep.subr.mxu0 0.0
  %4439 = vmatpush1.msra.mxu0 0.0
  %4440 = vmatprep.subr.mxu0 0.0
  %4441 = vmatpush1.msra.mxu0 0.0
  %4442 = vmatprep.subr.mxu0 0.0
  %4443 = vmatpush1.msra.mxu0 0.0
  %4444 = vmatprep.subr.mxu0 0.0
  %4445 = vmatpush1.msra.mxu0 0.0
  %4446 = vmatprep.subr.mxu0 0.0
  %4447 = vmatpush1.msra.mxu0 0.0
  %4448 = vmatprep.subr.mxu0 0.0
  %4449 = vmatpush1.msra.mxu0 0.0
  %4450 = vmatprep.subr.mxu0 0.0
  %4451 = vmatpush1.msra.mxu0 0.0
  %4452 = vmatprep.subr.mxu0 0.0
  %4453 = vmatpush1.msra.mxu0 0.0
  %4454 = vmatprep.mubr.f32.mxu0 0.0
  %4455 = vmatmul.mubr.f32.gmra.mrb[0].mxu0 %v4388
  %v4456 = vpop.f32.mrb[0].mxu0
  %v4457 = vadd.f32 0.0, %v4456
  %v4458 = vpop.f32.mrb[0].mxu0
  %4459 = vdwg.mxu0
  %v4460 = vadd.f32 %v4314, %v4457
  %v4462 = vlaneseq
  %v4463 = vshrl.u32 %v4462, 7
  %v4464 = vsub.s32 0, %v4463
  %v4465 = vrot.slane %v4092, %v4464
  %v4467 = vadd.f32 %v4460, %v4465
  %v4468 = vmax.f32 %v4467, 0.0
  %v4470 = vlaneseq
  %v4471 = vshrl.u32 %v4470, 7
  %v4472 = vsub.s32 0, %v4471
  %v4473 = vrot.slane %v4099, %v4472
  %v4476 = vsel %vm529, %v4468, 0
  %4478 = vmatprep.subr.mxu0 0.0
  %4479 = vmatpush1.msra.mxu0 %v4094
  %4480 = vmatprep.subr.mxu0 0.0
  %4481 = vmatpush1.msra.mxu0 %v4095
  %4482 = vmatprep.subr.mxu0 0.0
  %4483 = vmatpush1.msra.mxu0 %v4096
  %4484 = vmatprep.subr.mxu0 0.0
  %4485 = vmatpush1.msra.mxu0 %v4097
  %4486 = vmatprep.subr.mxu0 0.0
  %4487 = vmatpush1.msra.mxu0 0.0
  %4488 = vmatprep.subr.mxu0 0.0
  %4489 = vmatpush1.msra.mxu0 0.0
  %4490 = vmatprep.subr.mxu0 0.0
  %4491 = vmatpush1.msra.mxu0 0.0
  %4492 = vmatprep.subr.mxu0 0.0
  %4493 = vmatpush1.msra.mxu0 0.0
  %4494 = vmatprep.subr.mxu0 0.0
  %4495 = vmatpush1.msra.mxu0 0.0
  %4496 = vmatprep.subr.mxu0 0.0
  %4497 = vmatpush1.msra.mxu0 0.0
  %4498 = vmatprep.subr.mxu0 0.0
  %4499 = vmatpush1.msra.mxu0 0.0
  %4500 = vmatprep.subr.mxu0 0.0
  %4501 = vmatpush1.msra.mxu0 0.0
  %4502 = vmatprep.subr.mxu0 0.0
  %4503 = vmatpush1.msra.mxu0 0.0
  %4504 = vmatprep.subr.mxu0 0.0
  %4505 = vmatpush1.msra.mxu0 0.0
  %4506 = vmatprep.subr.mxu0 0.0
  %4507 = vmatpush1.msra.mxu0 0.0
  %4508 = vmatprep.subr.mxu0 0.0
  %4509 = vmatpush1.msra.mxu0 0.0
  %4510 = vmatprep.subr.mxu0 0.0
  %4511 = vmatpush1.msra.mxu0 0.0
  %4512 = vmatprep.subr.mxu0 0.0
  %4513 = vmatpush1.msra.mxu0 0.0
  %4514 = vmatprep.subr.mxu0 0.0
  %4515 = vmatpush1.msra.mxu0 0.0
  %4516 = vmatprep.subr.mxu0 0.0
  %4517 = vmatpush1.msra.mxu0 0.0
  %4518 = vmatprep.subr.mxu0 0.0
  %4519 = vmatpush1.msra.mxu0 0.0
  %4520 = vmatprep.subr.mxu0 0.0
  %4521 = vmatpush1.msra.mxu0 0.0
  %4522 = vmatprep.subr.mxu0 0.0
  %4523 = vmatpush1.msra.mxu0 0.0
  %4524 = vmatprep.subr.mxu0 0.0
  %4525 = vmatpush1.msra.mxu0 0.0
  %4526 = vmatprep.subr.mxu0 0.0
  %4527 = vmatpush1.msra.mxu0 0.0
  %4528 = vmatprep.subr.mxu0 0.0
  %4529 = vmatpush1.msra.mxu0 0.0
  %4530 = vmatprep.subr.mxu0 0.0
  %4531 = vmatpush1.msra.mxu0 0.0
  %4532 = vmatprep.subr.mxu0 0.0
  %4533 = vmatpush1.msra.mxu0 0.0
  %4534 = vmatprep.subr.mxu0 0.0
  %4535 = vmatpush1.msra.mxu0 0.0
  %4536 = vmatprep.subr.mxu0 0.0
  %4537 = vmatpush1.msra.mxu0 0.0
  %4538 = vmatprep.subr.mxu0 0.0
  %4539 = vmatpush1.msra.mxu0 0.0
  %4540 = vmatprep.subr.mxu0 0.0
  %4541 = vmatpush1.msra.mxu0 0.0
  %4542 = vmatprep.mubr.f32.mxu0 0.0
  %4543 = vmatmul.mubr.f32.gmra.mrb[0].mxu0 %v4476
  %v4544 = vpop.f32.mrb[0].mxu0
  %v4545 = vadd.f32 %v4473, %v4544
  %v4546 = vpop.f32.mrb[0].mxu0
  %4547 = vdwg.mxu0
  %v4548 = vadd.f32 %v4545, %v4075
  %s4549 = scalar_lea.vmem %s8, 1
  %v4550 = vld [vmem:[%s4549] sm:$0x1]
  %s4551 = scalar_lea.vmem %s7, 160
  %v4552 = vld [vmem:[%s4551] sm:$0xff]
  %v4553 = vld [vmem:[%s4551 + $0x8] sm:$0xff]
  %v4554 = vld [vmem:[%s4551 + $0x10] sm:$0xff]
  %v4555 = vld [vmem:[%s4551 + $0x18] sm:$0xff]
  %4556 = vmatprep.subr.mxu0 0.0
  %4557 = vmatpush1.msra.mxu0 %v4548
  %4558 = vmatprep.subr.mxu0 0.0
  %4559 = vmatpush1.msra.mxu0 0.0
  %4560 = vmatprep.subr.mxu0 0.0
  %4561 = vmatpush1.msra.mxu0 0.0
  %4562 = vmatprep.subr.mxu0 0.0
  %4563 = vmatpush1.msra.mxu0 0.0
  %4564 = vmatprep.subr.mxu0 0.0
  %4565 = vmatpush1.msra.mxu0 0.0
  %4566 = vmatprep.subr.mxu0 0.0
  %4567 = vmatpush1.msra.mxu0 0.0
  %4568 = vmatprep.subr.mxu0 0.0
  %4569 = vmatpush1.msra.mxu0 0.0
  %4570 = vmatprep.subr.mxu0 0.0
  %4571 = vmatpush1.msra.mxu0 0.0
  %4572 = vmatprep.subr.mxu0 0.0
  %4573 = vmatpush1.msra.mxu0 0.0
  %4574 = vmatprep.subr.mxu0 0.0
  %4575 = vmatpush1.msra.mxu0 0.0
  %4576 = vmatprep.subr.mxu0 0.0
  %4577 = vmatpush1.msra.mxu0 0.0
  %4578 = vmatprep.subr.mxu0 0.0
  %4579 = vmatpush1.msra.mxu0 0.0
  %4580 = vmatprep.subr.mxu0 0.0
  %4581 = vmatpush1.msra.mxu0 0.0
  %4582 = vmatprep.subr.mxu0 0.0
  %4583 = vmatpush1.msra.mxu0 0.0
  %4584 = vmatprep.subr.mxu0 0.0
  %4585 = vmatpush1.msra.mxu0 0.0
  %4586 = vmatprep.subr.mxu0 0.0
  %4587 = vmatpush1.msra.mxu0 0.0
  %4588 = vmatprep.subr.mxu0 0.0
  %4589 = vmatpush1.msra.mxu0 0.0
  %4590 = vmatprep.subr.mxu0 0.0
  %4591 = vmatpush1.msra.mxu0 0.0
  %4592 = vmatprep.subr.mxu0 0.0
  %4593 = vmatpush1.msra.mxu0 0.0
  %4594 = vmatprep.subr.mxu0 0.0
  %4595 = vmatpush1.msra.mxu0 0.0
  %4596 = vmatprep.subr.mxu0 0.0
  %4597 = vmatpush1.msra.mxu0 0.0
  %4598 = vmatprep.subr.mxu0 0.0
  %4599 = vmatpush1.msra.mxu0 0.0
  %4600 = vmatprep.subr.mxu0 0.0
  %4601 = vmatpush1.msra.mxu0 0.0
  %4602 = vmatprep.subr.mxu0 0.0
  %4603 = vmatpush1.msra.mxu0 0.0
  %4604 = vmatprep.subr.mxu0 0.0
  %4605 = vmatpush1.msra.mxu0 0.0
  %4606 = vmatprep.subr.mxu0 0.0
  %4607 = vmatpush1.msra.mxu0 0.0
  %4608 = vmatprep.subr.mxu0 0.0
  %4609 = vmatpush1.msra.mxu0 0.0
  %4610 = vmatprep.subr.mxu0 0.0
  %4611 = vmatpush1.msra.mxu0 0.0
  %4612 = vmatprep.subr.mxu0 0.0
  %4613 = vmatpush1.msra.mxu0 0.0
  %4614 = vmatprep.subr.mxu0 0.0
  %4615 = vmatpush1.msra.mxu0 0.0
  %4616 = vmatprep.subr.mxu0 0.0
  %4617 = vmatpush1.msra.mxu0 0.0
  %4618 = vmatprep.subr.mxu0 0.0
  %4619 = vmatpush1.msra.mxu0 0.0
  %4620 = vmatprep.mubr.f32.mxu0 0.0
  %4621 = vmatmul.mubr.f32.gmra.mrb[0].mxu0 %v65
  %v4622 = vpop.f32.mrb[0].mxu0
  %v4623 = vadd.f32 0.0, %v4622
  %v4624 = vpop.f32.mrb[0].mxu0
  %4625 = vdwg.mxu0
  %s4626 = scalar_lea.vmem %s7, 224
  %v4627 = vld [vmem:[%s4626] sm:$0xff]
  %v4628 = vld [vmem:[%s4626 + $0x8] sm:$0xff]
  %v4629 = vld [vmem:[%s4626 + $0x10] sm:$0xff]
  %v4630 = vld [vmem:[%s4626 + $0x18] sm:$0xff]
  %v4632 = vsel %vm529, %v4623, 0
  %4634 = vmatprep.subr.mxu0 0.0
  %4635 = vmatpush1.msra.mxu0 %v4627
  %4636 = vmatprep.subr.mxu0 0.0
  %4637 = vmatpush1.msra.mxu0 %v4628
  %4638 = vmatprep.subr.mxu0 0.0
  %4639 = vmatpush1.msra.mxu0 %v4629
  %4640 = vmatprep.subr.mxu0 0.0
  %4641 = vmatpush1.msra.mxu0 %v4630
  %4642 = vmatprep.subr.mxu0 0.0
  %4643 = vmatpush1.msra.mxu0 0.0
  %4644 = vmatprep.subr.mxu0 0.0
  %4645 = vmatpush1.msra.mxu0 0.0
  %4646 = vmatprep.subr.mxu0 0.0
  %4647 = vmatpush1.msra.mxu0 0.0
  %4648 = vmatprep.subr.mxu0 0.0
  %4649 = vmatpush1.msra.mxu0 0.0
  %4650 = vmatprep.subr.mxu0 0.0
  %4651 = vmatpush1.msra.mxu0 0.0
  %4652 = vmatprep.subr.mxu0 0.0
  %4653 = vmatpush1.msra.mxu0 0.0
  %4654 = vmatprep.subr.mxu0 0.0
  %4655 = vmatpush1.msra.mxu0 0.0
  %4656 = vmatprep.subr.mxu0 0.0
  %4657 = vmatpush1.msra.mxu0 0.0
  %4658 = vmatprep.subr.mxu0 0.0
  %4659 = vmatpush1.msra.mxu0 0.0
  %4660 = vmatprep.subr.mxu0 0.0
  %4661 = vmatpush1.msra.mxu0 0.0
  %4662 = vmatprep.subr.mxu0 0.0
  %4663 = vmatpush1.msra.mxu0 0.0
  %4664 = vmatprep.subr.mxu0 0.0
  %4665 = vmatpush1.msra.mxu0 0.0
  %4666 = vmatprep.subr.mxu0 0.0
  %4667 = vmatpush1.msra.mxu0 0.0
  %4668 = vmatprep.subr.mxu0 0.0
  %4669 = vmatpush1.msra.mxu0 0.0
  %4670 = vmatprep.subr.mxu0 0.0
  %4671 = vmatpush1.msra.mxu0 0.0
  %4672 = vmatprep.subr.mxu0 0.0
  %4673 = vmatpush1.msra.mxu0 0.0
  %4674 = vmatprep.subr.mxu0 0.0
  %4675 = vmatpush1.msra.mxu0 0.0
  %4676 = vmatprep.subr.mxu0 0.0
  %4677 = vmatpush1.msra.mxu0 0.0
  %4678 = vmatprep.subr.mxu0 0.0
  %4679 = vmatpush1.msra.mxu0 0.0
  %4680 = vmatprep.subr.mxu0 0.0
  %4681 = vmatpush1.msra.mxu0 0.0
  %4682 = vmatprep.subr.mxu0 0.0
  %4683 = vmatpush1.msra.mxu0 0.0
  %4684 = vmatprep.subr.mxu0 0.0
  %4685 = vmatpush1.msra.mxu0 0.0
  %4686 = vmatprep.subr.mxu0 0.0
  %4687 = vmatpush1.msra.mxu0 0.0
  %4688 = vmatprep.subr.mxu0 0.0
  %4689 = vmatpush1.msra.mxu0 0.0
  %4690 = vmatprep.subr.mxu0 0.0
  %4691 = vmatpush1.msra.mxu0 0.0
  %4692 = vmatprep.subr.mxu0 0.0
  %4693 = vmatpush1.msra.mxu0 0.0
  %4694 = vmatprep.subr.mxu0 0.0
  %4695 = vmatpush1.msra.mxu0 0.0
  %4696 = vmatprep.subr.mxu0 0.0
  %4697 = vmatpush1.msra.mxu0 0.0
  %4698 = vmatprep.mubr.f32.mxu0 0.0
  %4699 = vmatmul.mubr.f32.gmra.mrb[0].mxu0 %v4632
  %v4700 = vpop.f32.mrb[0].mxu0
  %v4701 = vadd.f32 0.0, %v4700
  %v4702 = vpop.f32.mrb[0].mxu0
  %4703 = vdwg.mxu0
  %v4705 = vsel %vm529, %v4548, 0
  %4707 = vmatprep.subr.mxu0 0.0
  %4708 = vmatpush1.msra.mxu0 %v4552
  %4709 = vmatprep.subr.mxu0 0.0
  %4710 = vmatpush1.msra.mxu0 %v4553
  %4711 = vmatprep.subr.mxu0 0.0
  %4712 = vmatpush1.msra.mxu0 %v4554
  %4713 = vmatprep.subr.mxu0 0.0
  %4714 = vmatpush1.msra.mxu0 %v4555
  %4715 = vmatprep.subr.mxu0 0.0
  %4716 = vmatpush1.msra.mxu0 0.0
  %4717 = vmatprep.subr.mxu0 0.0
  %4718 = vmatpush1.msra.mxu0 0.0
  %4719 = vmatprep.subr.mxu0 0.0
  %4720 = vmatpush1.msra.mxu0 0.0
  %4721 = vmatprep.subr.mxu0 0.0
  %4722 = vmatpush1.msra.mxu0 0.0
  %4723 = vmatprep.subr.mxu0 0.0
  %4724 = vmatpush1.msra.mxu0 0.0
  %4725 = vmatprep.subr.mxu0 0.0
  %4726 = vmatpush1.msra.mxu0 0.0
  %4727 = vmatprep.subr.mxu0 0.0
  %4728 = vmatpush1.msra.mxu0 0.0
  %4729 = vmatprep.subr.mxu0 0.0
  %4730 = vmatpush1.msra.mxu0 0.0
  %4731 = vmatprep.subr.mxu0 0.0
  %4732 = vmatpush1.msra.mxu0 0.0
  %4733 = vmatprep.subr.mxu0 0.0
  %4734 = vmatpush1.msra.mxu0 0.0
  %4735 = vmatprep.subr.mxu0 0.0
  %4736 = vmatpush1.msra.mxu0 0.0
  %4737 = vmatprep.subr.mxu0 0.0
  %4738 = vmatpush1.msra.mxu0 0.0
  %4739 = vmatprep.subr.mxu0 0.0
  %4740 = vmatpush1.msra.mxu0 0.0
  %4741 = vmatprep.subr.mxu0 0.0
  %4742 = vmatpush1.msra.mxu0 0.0
  %4743 = vmatprep.subr.mxu0 0.0
  %4744 = vmatpush1.msra.mxu0 0.0
  %4745 = vmatprep.subr.mxu0 0.0
  %4746 = vmatpush1.msra.mxu0 0.0
  %4747 = vmatprep.subr.mxu0 0.0
  %4748 = vmatpush1.msra.mxu0 0.0
  %4749 = vmatprep.subr.mxu0 0.0
  %4750 = vmatpush1.msra.mxu0 0.0
  %4751 = vmatprep.subr.mxu0 0.0
  %4752 = vmatpush1.msra.mxu0 0.0
  %4753 = vmatprep.subr.mxu0 0.0
  %4754 = vmatpush1.msra.mxu0 0.0
  %4755 = vmatprep.subr.mxu0 0.0
  %4756 = vmatpush1.msra.mxu0 0.0
  %4757 = vmatprep.subr.mxu0 0.0
  %4758 = vmatpush1.msra.mxu0 0.0
  %4759 = vmatprep.subr.mxu0 0.0
  %4760 = vmatpush1.msra.mxu0 0.0
  %4761 = vmatprep.subr.mxu0 0.0
  %4762 = vmatpush1.msra.mxu0 0.0
  %4763 = vmatprep.subr.mxu0 0.0
  %4764 = vmatpush1.msra.mxu0 0.0
  %4765 = vmatprep.subr.mxu0 0.0
  %4766 = vmatpush1.msra.mxu0 0.0
  %4767 = vmatprep.subr.mxu0 0.0
  %4768 = vmatpush1.msra.mxu0 0.0
  %4769 = vmatprep.subr.mxu0 0.0
  %4770 = vmatpush1.msra.mxu0 0.0
  %4771 = vmatprep.mubr.f32.mxu0 0.0
  %4772 = vmatmul.mubr.f32.gmra.mrb[0].mxu0 %v4705
  %v4773 = vpop.f32.mrb[0].mxu0
  %v4774 = vadd.f32 %v4701, %v4773
  %v4775 = vpop.f32.mrb[0].mxu0
  %4776 = vdwg.mxu0
  %v4778 = vlaneseq
  %v4779 = vshrl.u32 %v4778, 7
  %v4780 = vsub.s32 0, %v4779
  %v4781 = vrot.slane %v4550, %v4780
  %v4783 = vadd.f32 %v4774, %v4781
  %s4784 = scalar_lea.vmem %s7, 192
  %v4785 = vld [vmem:[%s4784] sm:$0xff]
  %v4786 = vld [vmem:[%s4784 + $0x8] sm:$0xff]
  %v4787 = vld [vmem:[%s4784 + $0x10] sm:$0xff]
  %v4788 = vld [vmem:[%s4784 + $0x18] sm:$0xff]
  %4789 = vmatprep.subr.mxu0 0.0
  %4790 = vmatpush1.msra.mxu0 %v4548
  %4791 = vmatprep.subr.mxu0 0.0
  %4792 = vmatpush1.msra.mxu0 0.0
  %4793 = vmatprep.subr.mxu0 0.0
  %4794 = vmatpush1.msra.mxu0 0.0
  %4795 = vmatprep.subr.mxu0 0.0
  %4796 = vmatpush1.msra.mxu0 0.0
  %4797 = vmatprep.subr.mxu0 0.0
  %4798 = vmatpush1.msra.mxu0 0.0
  %4799 = vmatprep.subr.mxu0 0.0
  %4800 = vmatpush1.msra.mxu0 0.0
  %4801 = vmatprep.subr.mxu0 0.0
  %4802 = vmatpush1.msra.mxu0 0.0
  %4803 = vmatprep.subr.mxu0 0.0
  %4804 = vmatpush1.msra.mxu0 0.0
  %4805 = vmatprep.subr.mxu0 0.0
  %4806 = vmatpush1.msra.mxu0 0.0
  %4807 = vmatprep.subr.mxu0 0.0
  %4808 = vmatpush1.msra.mxu0 0.0
  %4809 = vmatprep.subr.mxu0 0.0
  %4810 = vmatpush1.msra.mxu0 0.0
  %4811 = vmatprep.subr.mxu0 0.0
  %4812 = vmatpush1.msra.mxu0 0.0
  %4813 = vmatprep.subr.mxu0 0.0
  %4814 = vmatpush1.msra.mxu0 0.0
  %4815 = vmatprep.subr.mxu0 0.0
  %4816 = vmatpush1.msra.mxu0 0.0
  %4817 = vmatprep.subr.mxu0 0.0
  %4818 = vmatpush1.msra.mxu0 0.0
  %4819 = vmatprep.subr.mxu0 0.0
  %4820 = vmatpush1.msra.mxu0 0.0
  %4821 = vmatprep.subr.mxu0 0.0
  %4822 = vmatpush1.msra.mxu0 0.0
  %4823 = vmatprep.subr.mxu0 0.0
  %4824 = vmatpush1.msra.mxu0 0.0
  %4825 = vmatprep.subr.mxu0 0.0
  %4826 = vmatpush1.msra.mxu0 0.0
  %4827 = vmatprep.subr.mxu0 0.0
  %4828 = vmatpush1.msra.mxu0 0.0
  %4829 = vmatprep.subr.mxu0 0.0
  %4830 = vmatpush1.msra.mxu0 0.0
  %4831 = vmatprep.subr.mxu0 0.0
  %4832 = vmatpush1.msra.mxu0 0.0
  %4833 = vmatprep.subr.mxu0 0.0
  %4834 = vmatpush1.msra.mxu0 0.0
  %4835 = vmatprep.subr.mxu0 0.0
  %4836 = vmatpush1.msra.mxu0 0.0
  %4837 = vmatprep.subr.mxu0 0.0
  %4838 = vmatpush1.msra.mxu0 0.0
  %4839 = vmatprep.subr.mxu0 0.0
  %4840 = vmatpush1.msra.mxu0 0.0
  %4841 = vmatprep.subr.mxu0 0.0
  %4842 = vmatpush1.msra.mxu0 0.0
  %4843 = vmatprep.subr.mxu0 0.0
  %4844 = vmatpush1.msra.mxu0 0.0
  %4845 = vmatprep.subr.mxu0 0.0
  %4846 = vmatpush1.msra.mxu0 0.0
  %4847 = vmatprep.subr.mxu0 0.0
  %4848 = vmatpush1.msra.mxu0 0.0
  %4849 = vmatprep.subr.mxu0 0.0
  %4850 = vmatpush1.msra.mxu0 0.0
  %4851 = vmatprep.subr.mxu0 0.0
  %4852 = vmatpush1.msra.mxu0 0.0
  %4853 = vmatprep.mubr.f32.mxu0 0.0
  %4854 = vmatmul.mubr.f32.gmra.mrb[0].mxu0 %v285
  %v4855 = vpop.f32.mrb[0].mxu0
  %v4856 = vadd.f32 0.0, %v4855
  %v4857 = vpop.f32.mrb[0].mxu0
  %4858 = vdwg.mxu0
  %s4859 = scalar_lea.vmem %s7, 128
  %v4860 = vld [vmem:[%s4859] sm:$0xff]
  %v4861 = vld [vmem:[%s4859 + $0x8] sm:$0xff]
  %v4862 = vld [vmem:[%s4859 + $0x10] sm:$0xff]
  %v4863 = vld [vmem:[%s4859 + $0x18] sm:$0xff]
  %v4865 = vsel %vm529, %v4856, 0
  %4867 = vmatprep.subr.mxu0 0.0
  %4868 = vmatpush1.msra.mxu0 %v4860
  %4869 = vmatprep.subr.mxu0 0.0
  %4870 = vmatpush1.msra.mxu0 %v4861
  %4871 = vmatprep.subr.mxu0 0.0
  %4872 = vmatpush1.msra.mxu0 %v4862
  %4873 = vmatprep.subr.mxu0 0.0
  %4874 = vmatpush1.msra.mxu0 %v4863
  %4875 = vmatprep.subr.mxu0 0.0
  %4876 = vmatpush1.msra.mxu0 0.0
  %4877 = vmatprep.subr.mxu0 0.0
  %4878 = vmatpush1.msra.mxu0 0.0
  %4879 = vmatprep.subr.mxu0 0.0
  %4880 = vmatpush1.msra.mxu0 0.0
  %4881 = vmatprep.subr.mxu0 0.0
  %4882 = vmatpush1.msra.mxu0 0.0
  %4883 = vmatprep.subr.mxu0 0.0
  %4884 = vmatpush1.msra.mxu0 0.0
  %4885 = vmatprep.subr.mxu0 0.0
  %4886 = vmatpush1.msra.mxu0 0.0
  %4887 = vmatprep.subr.mxu0 0.0
  %4888 = vmatpush1.msra.mxu0 0.0
  %4889 = vmatprep.subr.mxu0 0.0
  %4890 = vmatpush1.msra.mxu0 0.0
  %4891 = vmatprep.subr.mxu0 0.0
  %4892 = vmatpush1.msra.mxu0 0.0
  %4893 = vmatprep.subr.mxu0 0.0
  %4894 = vmatpush1.msra.mxu0 0.0
  %4895 = vmatprep.subr.mxu0 0.0
  %4896 = vmatpush1.msra.mxu0 0.0
  %4897 = vmatprep.subr.mxu0 0.0
  %4898 = vmatpush1.msra.mxu0 0.0
  %4899 = vmatprep.subr.mxu0 0.0
  %4900 = vmatpush1.msra.mxu0 0.0
  %4901 = vmatprep.subr.mxu0 0.0
  %4902 = vmatpush1.msra.mxu0 0.0
  %4903 = vmatprep.subr.mxu0 0.0
  %4904 = vmatpush1.msra.mxu0 0.0
  %4905 = vmatprep.subr.mxu0 0.0
  %4906 = vmatpush1.msra.mxu0 0.0
  %4907 = vmatprep.subr.mxu0 0.0
  %4908 = vmatpush1.msra.mxu0 0.0
  %4909 = vmatprep.subr.mxu0 0.0
  %4910 = vmatpush1.msra.mxu0 0.0
  %4911 = vmatprep.subr.mxu0 0.0
  %4912 = vmatpush1.msra.mxu0 0.0
  %4913 = vmatprep.subr.mxu0 0.0
  %4914 = vmatpush1.msra.mxu0 0.0
  %4915 = vmatprep.subr.mxu0 0.0
  %4916 = vmatpush1.msra.mxu0 0.0
  %4917 = vmatprep.subr.mxu0 0.0
  %4918 = vmatpush1.msra.mxu0 0.0
  %4919 = vmatprep.subr.mxu0 0.0
  %4920 = vmatpush1.msra.mxu0 0.0
  %4921 = vmatprep.subr.mxu0 0.0
  %4922 = vmatpush1.msra.mxu0 0.0
  %4923 = vmatprep.subr.mxu0 0.0
  %4924 = vmatpush1.msra.mxu0 0.0
  %4925 = vmatprep.subr.mxu0 0.0
  %4926 = vmatpush1.msra.mxu0 0.0
  %4927 = vmatprep.subr.mxu0 0.0
  %4928 = vmatpush1.msra.mxu0 0.0
  %4929 = vmatprep.subr.mxu0 0.0
  %4930 = vmatpush1.msra.mxu0 0.0
  %4931 = vmatprep.mubr.f32.mxu0 0.0
  %4932 = vmatmul.mubr.f32.gmra.mrb[0].mxu0 %v4865
  %v4933 = vpop.f32.mrb[0].mxu0
  %v4934 = vadd.f32 0.0, %v4933
  %v4935 = vpop.f32.mrb[0].mxu0
  %4936 = vdwg.mxu0
  %4937 = vmatprep.subr.mxu0 0.0
  %4938 = vmatpush1.msra.mxu0 %v4785
  %4939 = vmatprep.subr.mxu0 0.0
  %4940 = vmatpush1.msra.mxu0 %v4786
  %4941 = vmatprep.subr.mxu0 0.0
  %4942 = vmatpush1.msra.mxu0 %v4787
  %4943 = vmatprep.subr.mxu0 0.0
  %4944 = vmatpush1.msra.mxu0 %v4788
  %4945 = vmatprep.subr.mxu0 0.0
  %4946 = vmatpush1.msra.mxu0 0.0
  %4947 = vmatprep.subr.mxu0 0.0
  %4948 = vmatpush1.msra.mxu0 0.0
  %4949 = vmatprep.subr.mxu0 0.0
  %4950 = vmatpush1.msra.mxu0 0.0
  %4951 = vmatprep.subr.mxu0 0.0
  %4952 = vmatpush1.msra.mxu0 0.0
  %4953 = vmatprep.subr.mxu0 0.0
  %4954 = vmatpush1.msra.mxu0 0.0
  %4955 = vmatprep.subr.mxu0 0.0
  %4956 = vmatpush1.msra.mxu0 0.0
  %4957 = vmatprep.subr.mxu0 0.0
  %4958 = vmatpush1.msra.mxu0 0.0
  %4959 = vmatprep.subr.mxu0 0.0
  %4960 = vmatpush1.msra.mxu0 0.0
  %4961 = vmatprep.subr.mxu0 0.0
  %4962 = vmatpush1.msra.mxu0 0.0
  %4963 = vmatprep.subr.mxu0 0.0
  %4964 = vmatpush1.msra.mxu0 0.0
  %4965 = vmatprep.subr.mxu0 0.0
  %4966 = vmatpush1.msra.mxu0 0.0
  %4967 = vmatprep.subr.mxu0 0.0
  %4968 = vmatpush1.msra.mxu0 0.0
  %4969 = vmatprep.subr.mxu0 0.0
  %4970 = vmatpush1.msra.mxu0 0.0
  %4971 = vmatprep.subr.mxu0 0.0
  %4972 = vmatpush1.msra.mxu0 0.0
  %4973 = vmatprep.subr.mxu0 0.0
  %4974 = vmatpush1.msra.mxu0 0.0
  %4975 = vmatprep.subr.mxu0 0.0
  %4976 = vmatpush1.msra.mxu0 0.0
  %4977 = vmatprep.subr.mxu0 0.0
  %4978 = vmatpush1.msra.mxu0 0.0
  %4979 = vmatprep.subr.mxu0 0.0
  %4980 = vmatpush1.msra.mxu0 0.0
  %4981 = vmatprep.subr.mxu0 0.0
  %4982 = vmatpush1.msra.mxu0 0.0
  %4983 = vmatprep.subr.mxu0 0.0
  %4984 = vmatpush1.msra.mxu0 0.0
  %4985 = vmatprep.subr.mxu0 0.0
  %4986 = vmatpush1.msra.mxu0 0.0
  %4987 = vmatprep.subr.mxu0 0.0
  %4988 = vmatpush1.msra.mxu0 0.0
  %4989 = vmatprep.subr.mxu0 0.0
  %4990 = vmatpush1.msra.mxu0 0.0
  %4991 = vmatprep.subr.mxu0 0.0
  %4992 = vmatpush1.msra.mxu0 0.0
  %4993 = vmatprep.subr.mxu0 0.0
  %4994 = vmatpush1.msra.mxu0 0.0
  %4995 = vmatprep.subr.mxu0 0.0
  %4996 = vmatpush1.msra.mxu0 0.0
  %4997 = vmatprep.subr.mxu0 0.0
  %4998 = vmatpush1.msra.mxu0 0.0
  %4999 = vmatprep.subr.mxu0 0.0
  %5000 = vmatpush1.msra.mxu0 0.0
  %5001 = vmatprep.mubr.f32.mxu0 0.0
  %5002 = vmatmul.mubr.f32.gmra.mrb[0].mxu0 %v4705
  %v5003 = vpop.f32.mrb[0].mxu0
  %v5004 = vadd.f32 %v4934, %v5003
  %v5005 = vpop.f32.mrb[0].mxu0
  %5006 = vdwg.mxu0
  %v5007 = vadd.f32 %v5004, %v4781
  %s5008 = scalar_lea.vmem %s10, 1
  %v5009 = vld [vmem:[%s5008] sm:$0x1]
  %5010 = vmatprep.subr.mxu0 0.0
  %5011 = vmatpush1.msra.mxu0 %v5007
  %5012 = vmatprep.subr.mxu0 0.0
  %5013 = vmatpush1.msra.mxu0 0.0
  %5014 = vmatprep.subr.mxu0 0.0
  %5015 = vmatpush1.msra.mxu0 0.0
  %5016 = vmatprep.subr.mxu0 0.0
  %5017 = vmatpush1.msra.mxu0 0.0
  %5018 = vmatprep.subr.mxu0 0.0
  %5019 = vmatpush1.msra.mxu0 0.0
  %5020 = vmatprep.subr.mxu0 0.0
  %5021 = vmatpush1.msra.mxu0 0.0
  %5022 = vmatprep.subr.mxu0 0.0
  %5023 = vmatpush1.msra.mxu0 0.0
  %5024 = vmatprep.subr.mxu0 0.0
  %5025 = vmatpush1.msra.mxu0 0.0
  %5026 = vmatprep.subr.mxu0 0.0
  %5027 = vmatpush1.msra.mxu0 0.0
  %5028 = vmatprep.subr.mxu0 0.0
  %5029 = vmatpush1.msra.mxu0 0.0
  %5030 = vmatprep.subr.mxu0 0.0
  %5031 = vmatpush1.msra.mxu0 0.0
  %5032 = vmatprep.subr.mxu0 0.0
  %5033 = vmatpush1.msra.mxu0 0.0
  %5034 = vmatprep.subr.mxu0 0.0
  %5035 = vmatpush1.msra.mxu0 0.0
  %5036 = vmatprep.subr.mxu0 0.0
  %5037 = vmatpush1.msra.mxu0 0.0
  %5038 = vmatprep.subr.mxu0 0.0
  %5039 = vmatpush1.msra.mxu0 0.0
  %5040 = vmatprep.subr.mxu0 0.0
  %5041 = vmatpush1.msra.mxu0 0.0
  %5042 = vmatprep.subr.mxu0 0.0
  %5043 = vmatpush1.msra.mxu0 0.0
  %5044 = vmatprep.subr.mxu0 0.0
  %5045 = vmatpush1.msra.mxu0 0.0
  %5046 = vmatprep.subr.mxu0 0.0
  %5047 = vmatpush1.msra.mxu0 0.0
  %5048 = vmatprep.subr.mxu0 0.0
  %5049 = vmatpush1.msra.mxu0 0.0
  %5050 = vmatprep.subr.mxu0 0.0
  %5051 = vmatpush1.msra.mxu0 0.0
  %5052 = vmatprep.subr.mxu0 0.0
  %5053 = vmatpush1.msra.mxu0 0.0
  %5054 = vmatprep.subr.mxu0 0.0
  %5055 = vmatpush1.msra.mxu0 0.0
  %5056 = vmatprep.subr.mxu0 0.0
  %5057 = vmatpush1.msra.mxu0 0.0
  %5058 = vmatprep.subr.mxu0 0.0
  %5059 = vmatpush1.msra.mxu0 0.0
  %5060 = vmatprep.subr.mxu0 0.0
  %5061 = vmatpush1.msra.mxu0 0.0
  %5062 = vmatprep.subr.mxu0 0.0
  %5063 = vmatpush1.msra.mxu0 0.0
  %5064 = vmatprep.subr.mxu0 0.0
  %5065 = vmatpush1.msra.mxu0 0.0
  %5066 = vmatprep.subr.mxu0 0.0
  %5067 = vmatpush1.msra.mxu0 0.0
  %5068 = vmatprep.subr.mxu0 0.0
  %5069 = vmatpush1.msra.mxu0 0.0
  %5070 = vmatprep.subr.mxu0 0.0
  %5071 = vmatpush1.msra.mxu0 0.0
  %5072 = vmatprep.subr.mxu0 0.0
  %5073 = vmatpush1.msra.mxu0 0.0
  %5074 = vmatprep.mubr.f32.mxu0 0.0
  %5075 = vmatmul.mubr.f32.gmra.mrb[0].mxu0 %v65
  %v5076 = vpop.f32.mrb[0].mxu0
  %v5077 = vadd.f32 0.0, %v5076
  %v5078 = vpop.f32.mrb[0].mxu0
  %5079 = vdwg.mxu0
  %s5080 = scalar_lea.vmem %s9, 48
  %v5081 = vld [vmem:[%s5080] sm:$0xff]
  %v5082 = vld [vmem:[%s5080 + $0x8] sm:$0xff]
  %s5083 = scalar_lea.vmem %s9, 64
  %v5084 = vld [vmem:[%s5083] sm:$0xff]
  %v5085 = vld [vmem:[%s5083 + $0x8] sm:$0xff]
  %v5087 = vsel %vm137, %v4783, 0
  %5089 = vmatprep.subr.mxu0 0.0
  %5090 = vmatpush1.msra.mxu0 %v5084
  %5091 = vmatprep.subr.mxu0 0.0
  %5092 = vmatpush1.msra.mxu0 %v5085
  %5093 = vmatprep.subr.mxu0 0.0
  %5094 = vmatpush1.msra.mxu0 0.0
  %5095 = vmatprep.subr.mxu0 0.0
  %5096 = vmatpush1.msra.mxu0 0.0
  %5097 = vmatprep.subr.mxu0 0.0
  %5098 = vmatpush1.msra.mxu0 0.0
  %5099 = vmatprep.subr.mxu0 0.0
  %5100 = vmatpush1.msra.mxu0 0.0
  %5101 = vmatprep.subr.mxu0 0.0
  %5102 = vmatpush1.msra.mxu0 0.0
  %5103 = vmatprep.subr.mxu0 0.0
  %5104 = vmatpush1.msra.mxu0 0.0
  %5105 = vmatprep.subr.mxu0 0.0
  %5106 = vmatpush1.msra.mxu0 0.0
  %5107 = vmatprep.subr.mxu0 0.0
  %5108 = vmatpush1.msra.mxu0 0.0
  %5109 = vmatprep.subr.mxu0 0.0
  %5110 = vmatpush1.msra.mxu0 0.0
  %5111 = vmatprep.subr.mxu0 0.0
  %5112 = vmatpush1.msra.mxu0 0.0
  %5113 = vmatprep.subr.mxu0 0.0
  %5114 = vmatpush1.msra.mxu0 0.0
  %5115 = vmatprep.subr.mxu0 0.0
  %5116 = vmatpush1.msra.mxu0 0.0
  %5117 = vmatprep.subr.mxu0 0.0
  %5118 = vmatpush1.msra.mxu0 0.0
  %5119 = vmatprep.subr.mxu0 0.0
  %5120 = vmatpush1.msra.mxu0 0.0
  %5121 = vmatprep.subr.mxu0 0.0
  %5122 = vmatpush1.msra.mxu0 0.0
  %5123 = vmatprep.subr.mxu0 0.0
  %5124 = vmatpush1.msra.mxu0 0.0
  %5125 = vmatprep.subr.mxu0 0.0
  %5126 = vmatpush1.msra.mxu0 0.0
  %5127 = vmatprep.subr.mxu0 0.0
  %5128 = vmatpush1.msra.mxu0 0.0
  %5129 = vmatprep.subr.mxu0 0.0
  %5130 = vmatpush1.msra.mxu0 0.0
  %5131 = vmatprep.subr.mxu0 0.0
  %5132 = vmatpush1.msra.mxu0 0.0
  %5133 = vmatprep.subr.mxu0 0.0
  %5134 = vmatpush1.msra.mxu0 0.0
  %5135 = vmatprep.subr.mxu0 0.0
  %5136 = vmatpush1.msra.mxu0 0.0
  %5137 = vmatprep.subr.mxu0 0.0
  %5138 = vmatpush1.msra.mxu0 0.0
  %5139 = vmatprep.subr.mxu0 0.0
  %5140 = vmatpush1.msra.mxu0 0.0
  %5141 = vmatprep.subr.mxu0 0.0
  %5142 = vmatpush1.msra.mxu0 0.0
  %5143 = vmatprep.subr.mxu0 0.0
  %5144 = vmatpush1.msra.mxu0 0.0
  %5145 = vmatprep.subr.mxu0 0.0
  %5146 = vmatpush1.msra.mxu0 0.0
  %5147 = vmatprep.subr.mxu0 0.0
  %5148 = vmatpush1.msra.mxu0 0.0
  %5149 = vmatprep.subr.mxu0 0.0
  %5150 = vmatpush1.msra.mxu0 0.0
  %5151 = vmatprep.subr.mxu0 0.0
  %5152 = vmatpush1.msra.mxu0 0.0
  %5153 = vmatprep.mubr.f32.mxu0 0.0
  %5154 = vmatmul.mubr.f32.gmra.mrb[0].mxu0 %v5087
  %v5155 = vpop.f32.mrb[0].mxu0
  %v5156 = vadd.f32 0.0, %v5155
  %v5157 = vpop.f32.mrb[0].mxu0
  %5158 = vdwg.mxu0
  %v5160 = vsel %vm137, %v5077, 0
  %5162 = vmatprep.subr.mxu0 0.0
  %5163 = vmatpush1.msra.mxu0 %v5081
  %5164 = vmatprep.subr.mxu0 0.0
  %5165 = vmatpush1.msra.mxu0 %v5082
  %5166 = vmatprep.subr.mxu0 0.0
  %5167 = vmatpush1.msra.mxu0 0.0
  %5168 = vmatprep.subr.mxu0 0.0
  %5169 = vmatpush1.msra.mxu0 0.0
  %5170 = vmatprep.subr.mxu0 0.0
  %5171 = vmatpush1.msra.mxu0 0.0
  %5172 = vmatprep.subr.mxu0 0.0
  %5173 = vmatpush1.msra.mxu0 0.0
  %5174 = vmatprep.subr.mxu0 0.0
  %5175 = vmatpush1.msra.mxu0 0.0
  %5176 = vmatprep.subr.mxu0 0.0
  %5177 = vmatpush1.msra.mxu0 0.0
  %5178 = vmatprep.subr.mxu0 0.0
  %5179 = vmatpush1.msra.mxu0 0.0
  %5180 = vmatprep.subr.mxu0 0.0
  %5181 = vmatpush1.msra.mxu0 0.0
  %5182 = vmatprep.subr.mxu0 0.0
  %5183 = vmatpush1.msra.mxu0 0.0
  %5184 = vmatprep.subr.mxu0 0.0
  %5185 = vmatpush1.msra.mxu0 0.0
  %5186 = vmatprep.subr.mxu0 0.0
  %5187 = vmatpush1.msra.mxu0 0.0
  %5188 = vmatprep.subr.mxu0 0.0
  %5189 = vmatpush1.msra.mxu0 0.0
  %5190 = vmatprep.subr.mxu0 0.0
  %5191 = vmatpush1.msra.mxu0 0.0
  %5192 = vmatprep.subr.mxu0 0.0
  %5193 = vmatpush1.msra.mxu0 0.0
  %5194 = vmatprep.subr.mxu0 0.0
  %5195 = vmatpush1.msra.mxu0 0.0
  %5196 = vmatprep.subr.mxu0 0.0
  %5197 = vmatpush1.msra.mxu0 0.0
  %5198 = vmatprep.subr.mxu0 0.0
  %5199 = vmatpush1.msra.mxu0 0.0
  %5200 = vmatprep.subr.mxu0 0.0
  %5201 = vmatpush1.msra.mxu0 0.0
  %5202 = vmatprep.subr.mxu0 0.0
  %5203 = vmatpush1.msra.mxu0 0.0
  %5204 = vmatprep.subr.mxu0 0.0
  %5205 = vmatpush1.msra.mxu0 0.0
  %5206 = vmatprep.subr.mxu0 0.0
  %5207 = vmatpush1.msra.mxu0 0.0
  %5208 = vmatprep.subr.mxu0 0.0
  %5209 = vmatpush1.msra.mxu0 0.0
  %5210 = vmatprep.subr.mxu0 0.0
  %5211 = vmatpush1.msra.mxu0 0.0
  %5212 = vmatprep.subr.mxu0 0.0
  %5213 = vmatpush1.msra.mxu0 0.0
  %5214 = vmatprep.subr.mxu0 0.0
  %5215 = vmatpush1.msra.mxu0 0.0
  %5216 = vmatprep.subr.mxu0 0.0
  %5217 = vmatpush1.msra.mxu0 0.0
  %5218 = vmatprep.subr.mxu0 0.0
  %5219 = vmatpush1.msra.mxu0 0.0
  %5220 = vmatprep.subr.mxu0 0.0
  %5221 = vmatpush1.msra.mxu0 0.0
  %5222 = vmatprep.subr.mxu0 0.0
  %5223 = vmatpush1.msra.mxu0 0.0
  %5224 = vmatprep.subr.mxu0 0.0
  %5225 = vmatpush1.msra.mxu0 0.0
  %5226 = vmatprep.mubr.f32.mxu0 0.0
  %5227 = vmatmul.mubr.f32.gmra.mrb[0].mxu0 %v5160
  %v5228 = vpop.f32.mrb[0].mxu0
  %v5229 = vadd.f32 %v5156, %v5228
  %v5230 = vpop.f32.mrb[0].mxu0
  %5231 = vdwg.mxu0
  %s5232 = scalar_lea.vmem %s9, 80
  %v5233 = vld [vmem:[%s5232] sm:$0xff]
  %v5234 = vld [vmem:[%s5232 + $0x8] sm:$0xff]
  %v5236 = vsel %vm137, %v5007, 0
  %5238 = vmatprep.subr.mxu0 0.0
  %5239 = vmatpush1.msra.mxu0 %v5233
  %5240 = vmatprep.subr.mxu0 0.0
  %5241 = vmatpush1.msra.mxu0 %v5234
  %5242 = vmatprep.subr.mxu0 0.0
  %5243 = vmatpush1.msra.mxu0 0.0
  %5244 = vmatprep.subr.mxu0 0.0
  %5245 = vmatpush1.msra.mxu0 0.0
  %5246 = vmatprep.subr.mxu0 0.0
  %5247 = vmatpush1.msra.mxu0 0.0
  %5248 = vmatprep.subr.mxu0 0.0
  %5249 = vmatpush1.msra.mxu0 0.0
  %5250 = vmatprep.subr.mxu0 0.0
  %5251 = vmatpush1.msra.mxu0 0.0
  %5252 = vmatprep.subr.mxu0 0.0
  %5253 = vmatpush1.msra.mxu0 0.0
  %5254 = vmatprep.subr.mxu0 0.0
  %5255 = vmatpush1.msra.mxu0 0.0
  %5256 = vmatprep.subr.mxu0 0.0
  %5257 = vmatpush1.msra.mxu0 0.0
  %5258 = vmatprep.subr.mxu0 0.0
  %5259 = vmatpush1.msra.mxu0 0.0
  %5260 = vmatprep.subr.mxu0 0.0
  %5261 = vmatpush1.msra.mxu0 0.0
  %5262 = vmatprep.subr.mxu0 0.0
  %5263 = vmatpush1.msra.mxu0 0.0
  %5264 = vmatprep.subr.mxu0 0.0
  %5265 = vmatpush1.msra.mxu0 0.0
  %5266 = vmatprep.subr.mxu0 0.0
  %5267 = vmatpush1.msra.mxu0 0.0
  %5268 = vmatprep.subr.mxu0 0.0
  %5269 = vmatpush1.msra.mxu0 0.0
  %5270 = vmatprep.subr.mxu0 0.0
  %5271 = vmatpush1.msra.mxu0 0.0
  %5272 = vmatprep.subr.mxu0 0.0
  %5273 = vmatpush1.msra.mxu0 0.0
  %5274 = vmatprep.subr.mxu0 0.0
  %5275 = vmatpush1.msra.mxu0 0.0
  %5276 = vmatprep.subr.mxu0 0.0
  %5277 = vmatpush1.msra.mxu0 0.0
  %5278 = vmatprep.subr.mxu0 0.0
  %5279 = vmatpush1.msra.mxu0 0.0
  %5280 = vmatprep.subr.mxu0 0.0
  %5281 = vmatpush1.msra.mxu0 0.0
  %5282 = vmatprep.subr.mxu0 0.0
  %5283 = vmatpush1.msra.mxu0 0.0
  %5284 = vmatprep.subr.mxu0 0.0
  %5285 = vmatpush1.msra.mxu0 0.0
  %5286 = vmatprep.subr.mxu0 0.0
  %5287 = vmatpush1.msra.mxu0 0.0
  %5288 = vmatprep.subr.mxu0 0.0
  %5289 = vmatpush1.msra.mxu0 0.0
  %5290 = vmatprep.subr.mxu0 0.0
  %5291 = vmatpush1.msra.mxu0 0.0
  %5292 = vmatprep.subr.mxu0 0.0
  %5293 = vmatpush1.msra.mxu0 0.0
  %5294 = vmatprep.subr.mxu0 0.0
  %5295 = vmatpush1.msra.mxu0 0.0
  %5296 = vmatprep.subr.mxu0 0.0
  %5297 = vmatpush1.msra.mxu0 0.0
  %5298 = vmatprep.subr.mxu0 0.0
  %5299 = vmatpush1.msra.mxu0 0.0
  %5300 = vmatprep.subr.mxu0 0.0
  %5301 = vmatpush1.msra.mxu0 0.0
  %5302 = vmatprep.mubr.f32.mxu0 0.0
  %5303 = vmatmul.mubr.f32.gmra.mrb[0].mxu0 %v5236
  %v5304 = vpop.f32.mrb[0].mxu0
  %v5305 = vadd.f32 0.0, %v5304
  %v5306 = vpop.f32.mrb[0].mxu0
  %5307 = vdwg.mxu0
  %v5308 = vadd.f32 %v5229, %v5305
  %v5310 = vlaneseq
  %v5311 = vshrl.u32 %v5310, 7
  %v5312 = vsub.s32 0, %v5311
  %v5313 = vrot.slane %v5009, %v5312
  %v5315 = vadd.f32 %v5308, %v5313
  %5316 = vmatprep.subr.mxu0 0.0
  %5317 = vmatpush1.msra.mxu0 %v5084
  %5318 = vmatprep.subr.mxu0 0.0
  %5319 = vmatpush1.msra.mxu0 %v5085
  %5320 = vmatprep.subr.mxu0 0.0
  %5321 = vmatpush1.msra.mxu0 0.0
  %5322 = vmatprep.subr.mxu0 0.0
  %5323 = vmatpush1.msra.mxu0 0.0
  %5324 = vmatprep.subr.mxu0 0.0
  %5325 = vmatpush1.msra.mxu0 0.0
  %5326 = vmatprep.subr.mxu0 0.0
  %5327 = vmatpush1.msra.mxu0 0.0
  %5328 = vmatprep.subr.mxu0 0.0
  %5329 = vmatpush1.msra.mxu0 0.0
  %5330 = vmatprep.subr.mxu0 0.0
  %5331 = vmatpush1.msra.mxu0 0.0
  %5332 = vmatprep.subr.mxu0 0.0
  %5333 = vmatpush1.msra.mxu0 0.0
  %5334 = vmatprep.subr.mxu0 0.0
  %5335 = vmatpush1.msra.mxu0 0.0
  %5336 = vmatprep.subr.mxu0 0.0
  %5337 = vmatpush1.msra.mxu0 0.0
  %5338 = vmatprep.subr.mxu0 0.0
  %5339 = vmatpush1.msra.mxu0 0.0
  %5340 = vmatprep.subr.mxu0 0.0
  %5341 = vmatpush1.msra.mxu0 0.0
  %5342 = vmatprep.subr.mxu0 0.0
  %5343 = vmatpush1.msra.mxu0 0.0
  %5344 = vmatprep.subr.mxu0 0.0
  %5345 = vmatpush1.msra.mxu0 0.0
  %5346 = vmatprep.subr.mxu0 0.0
  %5347 = vmatpush1.msra.mxu0 0.0
  %5348 = vmatprep.subr.mxu0 0.0
  %5349 = vmatpush1.msra.mxu0 0.0
  %5350 = vmatprep.subr.mxu0 0.0
  %5351 = vmatpush1.msra.mxu0 0.0
  %5352 = vmatprep.subr.mxu0 0.0
  %5353 = vmatpush1.msra.mxu0 0.0
  %5354 = vmatprep.subr.mxu0 0.0
  %5355 = vmatpush1.msra.mxu0 0.0
  %5356 = vmatprep.subr.mxu0 0.0
  %5357 = vmatpush1.msra.mxu0 0.0
  %5358 = vmatprep.subr.mxu0 0.0
  %5359 = vmatpush1.msra.mxu0 0.0
  %5360 = vmatprep.subr.mxu0 0.0
  %5361 = vmatpush1.msra.mxu0 0.0
  %5362 = vmatprep.subr.mxu0 0.0
  %5363 = vmatpush1.msra.mxu0 0.0
  %5364 = vmatprep.subr.mxu0 0.0
  %5365 = vmatpush1.msra.mxu0 0.0
  %5366 = vmatprep.subr.mxu0 0.0
  %5367 = vmatpush1.msra.mxu0 0.0
  %5368 = vmatprep.subr.mxu0 0.0
  %5369 = vmatpush1.msra.mxu0 0.0
  %5370 = vmatprep.subr.mxu0 0.0
  %5371 = vmatpush1.msra.mxu0 0.0
  %5372 = vmatprep.subr.mxu0 0.0
  %5373 = vmatpush1.msra.mxu0 0.0
  %5374 = vmatprep.subr.mxu0 0.0
  %5375 = vmatpush1.msra.mxu0 0.0
  %5376 = vmatprep.subr.mxu0 0.0
  %5377 = vmatpush1.msra.mxu0 0.0
  %5378 = vmatprep.subr.mxu0 0.0
  %5379 = vmatpush1.msra.mxu0 0.0
  %5380 = vmatprep.mubr.f32.mxu0 0.0
  %5381 = vmatmul.mubr.f32.gmra.mrb[0].mxu0 %v5236
  %v5382 = vpop.f32.mrb[0].mxu0
  %v5383 = vadd.f32 0.0, %v5382
  %v5384 = vpop.f32.mrb[0].mxu0
  %5385 = vdwg.mxu0
  %5386 = vmatprep.subr.mxu0 0.0
  %5387 = vmatpush1.msra.mxu0 %v5081
  %5388 = vmatprep.subr.mxu0 0.0
  %5389 = vmatpush1.msra.mxu0 %v5082
  %5390 = vmatprep.subr.mxu0 0.0
  %5391 = vmatpush1.msra.mxu0 0.0
  %5392 = vmatprep.subr.mxu0 0.0
  %5393 = vmatpush1.msra.mxu0 0.0
  %5394 = vmatprep.subr.mxu0 0.0
  %5395 = vmatpush1.msra.mxu0 0.0
  %5396 = vmatprep.subr.mxu0 0.0
  %5397 = vmatpush1.msra.mxu0 0.0
  %5398 = vmatprep.subr.mxu0 0.0
  %5399 = vmatpush1.msra.mxu0 0.0
  %5400 = vmatprep.subr.mxu0 0.0
  %5401 = vmatpush1.msra.mxu0 0.0
  %5402 = vmatprep.subr.mxu0 0.0
  %5403 = vmatpush1.msra.mxu0 0.0
  %5404 = vmatprep.subr.mxu0 0.0
  %5405 = vmatpush1.msra.mxu0 0.0
  %5406 = vmatprep.subr.mxu0 0.0
  %5407 = vmatpush1.msra.mxu0 0.0
  %5408 = vmatprep.subr.mxu0 0.0
  %5409 = vmatpush1.msra.mxu0 0.0
  %5410 = vmatprep.subr.mxu0 0.0
  %5411 = vmatpush1.msra.mxu0 0.0
  %5412 = vmatprep.subr.mxu0 0.0
  %5413 = vmatpush1.msra.mxu0 0.0
  %5414 = vmatprep.subr.mxu0 0.0
  %5415 = vmatpush1.msra.mxu0 0.0
  %5416 = vmatprep.subr.mxu0 0.0
  %5417 = vmatpush1.msra.mxu0 0.0
  %5418 = vmatprep.subr.mxu0 0.0
  %5419 = vmatpush1.msra.mxu0 0.0
  %5420 = vmatprep.subr.mxu0 0.0
  %5421 = vmatpush1.msra.mxu0 0.0
  %5422 = vmatprep.subr.mxu0 0.0
  %5423 = vmatpush1.msra.mxu0 0.0
  %5424 = vmatprep.subr.mxu0 0.0
  %5425 = vmatpush1.msra.mxu0 0.0
  %5426 = vmatprep.subr.mxu0 0.0
  %5427 = vmatpush1.msra.mxu0 0.0
  %5428 = vmatprep.subr.mxu0 0.0
  %5429 = vmatpush1.msra.mxu0 0.0
  %5430 = vmatprep.subr.mxu0 0.0
  %5431 = vmatpush1.msra.mxu0 0.0
  %5432 = vmatprep.subr.mxu0 0.0
  %5433 = vmatpush1.msra.mxu0 0.0
  %5434 = vmatprep.subr.mxu0 0.0
  %5435 = vmatpush1.msra.mxu0 0.0
  %5436 = vmatprep.subr.mxu0 0.0
  %5437 = vmatpush1.msra.mxu0 0.0
  %5438 = vmatprep.subr.mxu0 0.0
  %5439 = vmatpush1.msra.mxu0 0.0
  %5440 = vmatprep.subr.mxu0 0.0
  %5441 = vmatpush1.msra.mxu0 0.0
  %5442 = vmatprep.subr.mxu0 0.0
  %5443 = vmatpush1.msra.mxu0 0.0
  %5444 = vmatprep.subr.mxu0 0.0
  %5445 = vmatpush1.msra.mxu0 0.0
  %5446 = vmatprep.subr.mxu0 0.0
  %5447 = vmatpush1.msra.mxu0 0.0
  %5448 = vmatprep.subr.mxu0 0.0
  %5449 = vmatpush1.msra.mxu0 0.0
  %5450 = vmatprep.mubr.f32.mxu0 0.0
  %5451 = vmatmul.mubr.f32.gmra.mrb[0].mxu0 %v5087
  %v5452 = vpop.f32.mrb[0].mxu0
  %v5453 = vadd.f32 %v5383, %v5452
  %v5454 = vpop.f32.mrb[0].mxu0
  %5455 = vdwg.mxu0
  %5456 = vmatprep.subr.mxu0 0.0
  %5457 = vmatpush1.msra.mxu0 %v4783
  %5458 = vmatprep.subr.mxu0 0.0
  %5459 = vmatpush1.msra.mxu0 0.0
  %5460 = vmatprep.subr.mxu0 0.0
  %5461 = vmatpush1.msra.mxu0 0.0
  %5462 = vmatprep.subr.mxu0 0.0
  %5463 = vmatpush1.msra.mxu0 0.0
  %5464 = vmatprep.subr.mxu0 0.0
  %5465 = vmatpush1.msra.mxu0 0.0
  %5466 = vmatprep.subr.mxu0 0.0
  %5467 = vmatpush1.msra.mxu0 0.0
  %5468 = vmatprep.subr.mxu0 0.0
  %5469 = vmatpush1.msra.mxu0 0.0
  %5470 = vmatprep.subr.mxu0 0.0
  %5471 = vmatpush1.msra.mxu0 0.0
  %5472 = vmatprep.subr.mxu0 0.0
  %5473 = vmatpush1.msra.mxu0 0.0
  %5474 = vmatprep.subr.mxu0 0.0
  %5475 = vmatpush1.msra.mxu0 0.0
  %5476 = vmatprep.subr.mxu0 0.0
  %5477 = vmatpush1.msra.mxu0 0.0
  %5478 = vmatprep.subr.mxu0 0.0
  %5479 = vmatpush1.msra.mxu0 0.0
  %5480 = vmatprep.subr.mxu0 0.0
  %5481 = vmatpush1.msra.mxu0 0.0
  %5482 = vmatprep.subr.mxu0 0.0
  %5483 = vmatpush1.msra.mxu0 0.0
  %5484 = vmatprep.subr.mxu0 0.0
  %5485 = vmatpush1.msra.mxu0 0.0
  %5486 = vmatprep.subr.mxu0 0.0
  %5487 = vmatpush1.msra.mxu0 0.0
  %5488 = vmatprep.subr.mxu0 0.0
  %5489 = vmatpush1.msra.mxu0 0.0
  %5490 = vmatprep.subr.mxu0 0.0
  %5491 = vmatpush1.msra.mxu0 0.0
  %5492 = vmatprep.subr.mxu0 0.0
  %5493 = vmatpush1.msra.mxu0 0.0
  %5494 = vmatprep.subr.mxu0 0.0
  %5495 = vmatpush1.msra.mxu0 0.0
  %5496 = vmatprep.subr.mxu0 0.0
  %5497 = vmatpush1.msra.mxu0 0.0
  %5498 = vmatprep.subr.mxu0 0.0
  %5499 = vmatpush1.msra.mxu0 0.0
  %5500 = vmatprep.subr.mxu0 0.0
  %5501 = vmatpush1.msra.mxu0 0.0
  %5502 = vmatprep.subr.mxu0 0.0
  %5503 = vmatpush1.msra.mxu0 0.0
  %5504 = vmatprep.subr.mxu0 0.0
  %5505 = vmatpush1.msra.mxu0 0.0
  %5506 = vmatprep.subr.mxu0 0.0
  %5507 = vmatpush1.msra.mxu0 0.0
  %5508 = vmatprep.subr.mxu0 0.0
  %5509 = vmatpush1.msra.mxu0 0.0
  %5510 = vmatprep.subr.mxu0 0.0
  %5511 = vmatpush1.msra.mxu0 0.0
  %5512 = vmatprep.subr.mxu0 0.0
  %5513 = vmatpush1.msra.mxu0 0.0
  %5514 = vmatprep.subr.mxu0 0.0
  %5515 = vmatpush1.msra.mxu0 0.0
  %5516 = vmatprep.subr.mxu0 0.0
  %5517 = vmatpush1.msra.mxu0 0.0
  %5518 = vmatprep.subr.mxu0 0.0
  %5519 = vmatpush1.msra.mxu0 0.0
  %5520 = vmatprep.mubr.f32.mxu0 0.0
  %5521 = vmatmul.mubr.f32.gmra.mrb[0].mxu0 %v285
  %v5522 = vpop.f32.mrb[0].mxu0
  %v5523 = vadd.f32 0.0, %v5522
  %v5524 = vpop.f32.mrb[0].mxu0
  %5525 = vdwg.mxu0
  %v5527 = vsel %vm137, %v5523, 0
  %5529 = vmatprep.subr.mxu0 0.0
  %5530 = vmatpush1.msra.mxu0 %v5233
  %5531 = vmatprep.subr.mxu0 0.0
  %5532 = vmatpush1.msra.mxu0 %v5234
  %5533 = vmatprep.subr.mxu0 0.0
  %5534 = vmatpush1.msra.mxu0 0.0
  %5535 = vmatprep.subr.mxu0 0.0
  %5536 = vmatpush1.msra.mxu0 0.0
  %5537 = vmatprep.subr.mxu0 0.0
  %5538 = vmatpush1.msra.mxu0 0.0
  %5539 = vmatprep.subr.mxu0 0.0
  %5540 = vmatpush1.msra.mxu0 0.0
  %5541 = vmatprep.subr.mxu0 0.0
  %5542 = vmatpush1.msra.mxu0 0.0
  %5543 = vmatprep.subr.mxu0 0.0
  %5544 = vmatpush1.msra.mxu0 0.0
  %5545 = vmatprep.subr.mxu0 0.0
  %5546 = vmatpush1.msra.mxu0 0.0
  %5547 = vmatprep.subr.mxu0 0.0
  %5548 = vmatpush1.msra.mxu0 0.0
  %5549 = vmatprep.subr.mxu0 0.0
  %5550 = vmatpush1.msra.mxu0 0.0
  %5551 = vmatprep.subr.mxu0 0.0
  %5552 = vmatpush1.msra.mxu0 0.0
  %5553 = vmatprep.subr.mxu0 0.0
  %5554 = vmatpush1.msra.mxu0 0.0
  %5555 = vmatprep.subr.mxu0 0.0
  %5556 = vmatpush1.msra.mxu0 0.0
  %5557 = vmatprep.subr.mxu0 0.0
  %5558 = vmatpush1.msra.mxu0 0.0
  %5559 = vmatprep.subr.mxu0 0.0
  %5560 = vmatpush1.msra.mxu0 0.0
  %5561 = vmatprep.subr.mxu0 0.0
  %5562 = vmatpush1.msra.mxu0 0.0
  %5563 = vmatprep.subr.mxu0 0.0
  %5564 = vmatpush1.msra.mxu0 0.0
  %5565 = vmatprep.subr.mxu0 0.0
  %5566 = vmatpush1.msra.mxu0 0.0
  %5567 = vmatprep.subr.mxu0 0.0
  %5568 = vmatpush1.msra.mxu0 0.0
  %5569 = vmatprep.subr.mxu0 0.0
  %5570 = vmatpush1.msra.mxu0 0.0
  %5571 = vmatprep.subr.mxu0 0.0
  %5572 = vmatpush1.msra.mxu0 0.0
  %5573 = vmatprep.subr.mxu0 0.0
  %5574 = vmatpush1.msra.mxu0 0.0
  %5575 = vmatprep.subr.mxu0 0.0
  %5576 = vmatpush1.msra.mxu0 0.0
  %5577 = vmatprep.subr.mxu0 0.0
  %5578 = vmatpush1.msra.mxu0 0.0
  %5579 = vmatprep.subr.mxu0 0.0
  %5580 = vmatpush1.msra.mxu0 0.0
  %5581 = vmatprep.subr.mxu0 0.0
  %5582 = vmatpush1.msra.mxu0 0.0
  %5583 = vmatprep.subr.mxu0 0.0
  %5584 = vmatpush1.msra.mxu0 0.0
  %5585 = vmatprep.subr.mxu0 0.0
  %5586 = vmatpush1.msra.mxu0 0.0
  %5587 = vmatprep.subr.mxu0 0.0
  %5588 = vmatpush1.msra.mxu0 0.0
  %5589 = vmatprep.subr.mxu0 0.0
  %5590 = vmatpush1.msra.mxu0 0.0
  %5591 = vmatprep.subr.mxu0 0.0
  %5592 = vmatpush1.msra.mxu0 0.0
  %5593 = vmatprep.mubr.f32.mxu0 0.0
  %5594 = vmatmul.mubr.f32.gmra.mrb[0].mxu0 %v5527
  %v5595 = vpop.f32.mrb[0].mxu0
  %v5596 = vadd.f32 0.0, %v5595
  %v5597 = vpop.f32.mrb[0].mxu0
  %5598 = vdwg.mxu0
  %v5599 = vadd.f32 %v5453, %v5596
  %v5600 = vadd.f32 %v5599, %v5313
  %s5601 = scalar_lea.vmem %s11, 16
  %5602 = vst.msk [vmem:[%s5601] sm:$0xff] %vm1956, %v5315
  %s5603 = scalar_lea.vmem %s12, 16
  %5604 = vst.msk [vmem:[%s5603] sm:$0xff] %vm1956, %v5600
  %v5605 = vld [vmem:[%s3847] sm:$0xff]
  %v5606 = vld [vmem:[%s3847 + $0x8] sm:$0xff]
  %v5607 = vld [vmem:[%s3850] sm:$0xff]
  %v5608 = vld [vmem:[%s3850 + $0x8] sm:$0xff]
  %v5609 = vld [vmem:[%s3853] sm:$0xff]
  %v5610 = vld [vmem:[%s3853 + $0x8] sm:$0xff]
  %v5611 = vld [vmem:[%s3856] sm:$0x1]
  %5612 = vmatprep.subr.mxu0 0.0
  %5613 = vmatpush1.msra.mxu0 %v5607
  %5614 = vmatprep.subr.mxu0 0.0
  %5615 = vmatpush1.msra.mxu0 %v5608
  %5616 = vmatprep.subr.mxu0 0.0
  %5617 = vmatpush1.msra.mxu0 0.0
  %5618 = vmatprep.subr.mxu0 0.0
  %5619 = vmatpush1.msra.mxu0 0.0
  %5620 = vmatprep.subr.mxu0 0.0
  %5621 = vmatpush1.msra.mxu0 0.0
  %5622 = vmatprep.subr.mxu0 0.0
  %5623 = vmatpush1.msra.mxu0 0.0
  %5624 = vmatprep.subr.mxu0 0.0
  %5625 = vmatpush1.msra.mxu0 0.0
  %5626 = vmatprep.subr.mxu0 0.0
  %5627 = vmatpush1.msra.mxu0 0.0
  %5628 = vmatprep.subr.mxu0 0.0
  %5629 = vmatpush1.msra.mxu0 0.0
  %5630 = vmatprep.subr.mxu0 0.0
  %5631 = vmatpush1.msra.mxu0 0.0
  %5632 = vmatprep.subr.mxu0 0.0
  %5633 = vmatpush1.msra.mxu0 0.0
  %5634 = vmatprep.subr.mxu0 0.0
  %5635 = vmatpush1.msra.mxu0 0.0
  %5636 = vmatprep.subr.mxu0 0.0
  %5637 = vmatpush1.msra.mxu0 0.0
  %5638 = vmatprep.subr.mxu0 0.0
  %5639 = vmatpush1.msra.mxu0 0.0
  %5640 = vmatprep.subr.mxu0 0.0
  %5641 = vmatpush1.msra.mxu0 0.0
  %5642 = vmatprep.subr.mxu0 0.0
  %5643 = vmatpush1.msra.mxu0 0.0
  %5644 = vmatprep.subr.mxu0 0.0
  %5645 = vmatpush1.msra.mxu0 0.0
  %5646 = vmatprep.subr.mxu0 0.0
  %5647 = vmatpush1.msra.mxu0 0.0
  %5648 = vmatprep.subr.mxu0 0.0
  %5649 = vmatpush1.msra.mxu0 0.0
  %5650 = vmatprep.subr.mxu0 0.0
  %5651 = vmatpush1.msra.mxu0 0.0
  %5652 = vmatprep.subr.mxu0 0.0
  %5653 = vmatpush1.msra.mxu0 0.0
  %5654 = vmatprep.subr.mxu0 0.0
  %5655 = vmatpush1.msra.mxu0 0.0
  %5656 = vmatprep.subr.mxu0 0.0
  %5657 = vmatpush1.msra.mxu0 0.0
  %5658 = vmatprep.subr.mxu0 0.0
  %5659 = vmatpush1.msra.mxu0 0.0
  %5660 = vmatprep.subr.mxu0 0.0
  %5661 = vmatpush1.msra.mxu0 0.0
  %5662 = vmatprep.subr.mxu0 0.0
  %5663 = vmatpush1.msra.mxu0 0.0
  %5664 = vmatprep.subr.mxu0 0.0
  %5665 = vmatpush1.msra.mxu0 0.0
  %5666 = vmatprep.subr.mxu0 0.0
  %5667 = vmatpush1.msra.mxu0 0.0
  %5668 = vmatprep.subr.mxu0 0.0
  %5669 = vmatpush1.msra.mxu0 0.0
  %5670 = vmatprep.subr.mxu0 0.0
  %5671 = vmatpush1.msra.mxu0 0.0
  %5672 = vmatprep.subr.mxu0 0.0
  %5673 = vmatpush1.msra.mxu0 0.0
  %5674 = vmatprep.subr.mxu0 0.0
  %5675 = vmatpush1.msra.mxu0 0.0
  %5676 = vmatprep.mubr.f32.mxu0 0.0
  %5677 = vmatmul.mubr.f32.gmra.mrb[0].mxu0 %v2037
  %v5678 = vpop.f32.mrb[0].mxu0
  %v5679 = vadd.f32 0.0, %v5678
  %v5680 = vpop.f32.mrb[0].mxu0
  %5681 = vdwg.mxu0
  %5682 = vmatprep.subr.mxu0 0.0
  %5683 = vmatpush1.msra.mxu0 %v5605
  %5684 = vmatprep.subr.mxu0 0.0
  %5685 = vmatpush1.msra.mxu0 %v5606
  %5686 = vmatprep.subr.mxu0 0.0
  %5687 = vmatpush1.msra.mxu0 0.0
  %5688 = vmatprep.subr.mxu0 0.0
  %5689 = vmatpush1.msra.mxu0 0.0
  %5690 = vmatprep.subr.mxu0 0.0
  %5691 = vmatpush1.msra.mxu0 0.0
  %5692 = vmatprep.subr.mxu0 0.0
  %5693 = vmatpush1.msra.mxu0 0.0
  %5694 = vmatprep.subr.mxu0 0.0
  %5695 = vmatpush1.msra.mxu0 0.0
  %5696 = vmatprep.subr.mxu0 0.0
  %5697 = vmatpush1.msra.mxu0 0.0
  %5698 = vmatprep.subr.mxu0 0.0
  %5699 = vmatpush1.msra.mxu0 0.0
  %5700 = vmatprep.subr.mxu0 0.0
  %5701 = vmatpush1.msra.mxu0 0.0
  %5702 = vmatprep.subr.mxu0 0.0
  %5703 = vmatpush1.msra.mxu0 0.0
  %5704 = vmatprep.subr.mxu0 0.0
  %5705 = vmatpush1.msra.mxu0 0.0
  %5706 = vmatprep.subr.mxu0 0.0
  %5707 = vmatpush1.msra.mxu0 0.0
  %5708 = vmatprep.subr.mxu0 0.0
  %5709 = vmatpush1.msra.mxu0 0.0
  %5710 = vmatprep.subr.mxu0 0.0
  %5711 = vmatpush1.msra.mxu0 0.0
  %5712 = vmatprep.subr.mxu0 0.0
  %5713 = vmatpush1.msra.mxu0 0.0
  %5714 = vmatprep.subr.mxu0 0.0
  %5715 = vmatpush1.msra.mxu0 0.0
  %5716 = vmatprep.subr.mxu0 0.0
  %5717 = vmatpush1.msra.mxu0 0.0
  %5718 = vmatprep.subr.mxu0 0.0
  %5719 = vmatpush1.msra.mxu0 0.0
  %5720 = vmatprep.subr.mxu0 0.0
  %5721 = vmatpush1.msra.mxu0 0.0
  %5722 = vmatprep.subr.mxu0 0.0
  %5723 = vmatpush1.msra.mxu0 0.0
  %5724 = vmatprep.subr.mxu0 0.0
  %5725 = vmatpush1.msra.mxu0 0.0
  %5726 = vmatprep.subr.mxu0 0.0
  %5727 = vmatpush1.msra.mxu0 0.0
  %5728 = vmatprep.subr.mxu0 0.0
  %5729 = vmatpush1.msra.mxu0 0.0
  %5730 = vmatprep.subr.mxu0 0.0
  %5731 = vmatpush1.msra.mxu0 0.0
  %5732 = vmatprep.subr.mxu0 0.0
  %5733 = vmatpush1.msra.mxu0 0.0
  %5734 = vmatprep.subr.mxu0 0.0
  %5735 = vmatpush1.msra.mxu0 0.0
  %5736 = vmatprep.subr.mxu0 0.0
  %5737 = vmatpush1.msra.mxu0 0.0
  %5738 = vmatprep.subr.mxu0 0.0
  %5739 = vmatpush1.msra.mxu0 0.0
  %5740 = vmatprep.subr.mxu0 0.0
  %5741 = vmatpush1.msra.mxu0 0.0
  %5742 = vmatprep.subr.mxu0 0.0
  %5743 = vmatpush1.msra.mxu0 0.0
  %5744 = vmatprep.subr.mxu0 0.0
  %5745 = vmatpush1.msra.mxu0 0.0
  %5746 = vmatprep.mubr.f32.mxu0 0.0
  %5747 = vmatmul.mubr.f32.gmra.mrb[0].mxu0 %v2110
  %v5748 = vpop.f32.mrb[0].mxu0
  %v5749 = vadd.f32 %v5679, %v5748
  %v5750 = vpop.f32.mrb[0].mxu0
  %5751 = vdwg.mxu0
  %5752 = vmatprep.subr.mxu0 0.0
  %5753 = vmatpush1.msra.mxu0 %v5609
  %5754 = vmatprep.subr.mxu0 0.0
  %5755 = vmatpush1.msra.mxu0 %v5610
  %5756 = vmatprep.subr.mxu0 0.0
  %5757 = vmatpush1.msra.mxu0 0.0
  %5758 = vmatprep.subr.mxu0 0.0
  %5759 = vmatpush1.msra.mxu0 0.0
  %5760 = vmatprep.subr.mxu0 0.0
  %5761 = vmatpush1.msra.mxu0 0.0
  %5762 = vmatprep.subr.mxu0 0.0
  %5763 = vmatpush1.msra.mxu0 0.0
  %5764 = vmatprep.subr.mxu0 0.0
  %5765 = vmatpush1.msra.mxu0 0.0
  %5766 = vmatprep.subr.mxu0 0.0
  %5767 = vmatpush1.msra.mxu0 0.0
  %5768 = vmatprep.subr.mxu0 0.0
  %5769 = vmatpush1.msra.mxu0 0.0
  %5770 = vmatprep.subr.mxu0 0.0
  %5771 = vmatpush1.msra.mxu0 0.0
  %5772 = vmatprep.subr.mxu0 0.0
  %5773 = vmatpush1.msra.mxu0 0.0
  %5774 = vmatprep.subr.mxu0 0.0
  %5775 = vmatpush1.msra.mxu0 0.0
  %5776 = vmatprep.subr.mxu0 0.0
  %5777 = vmatpush1.msra.mxu0 0.0
  %5778 = vmatprep.subr.mxu0 0.0
  %5779 = vmatpush1.msra.mxu0 0.0
  %5780 = vmatprep.subr.mxu0 0.0
  %5781 = vmatpush1.msra.mxu0 0.0
  %5782 = vmatprep.subr.mxu0 0.0
  %5783 = vmatpush1.msra.mxu0 0.0
  %5784 = vmatprep.subr.mxu0 0.0
  %5785 = vmatpush1.msra.mxu0 0.0
  %5786 = vmatprep.subr.mxu0 0.0
  %5787 = vmatpush1.msra.mxu0 0.0
  %5788 = vmatprep.subr.mxu0 0.0
  %5789 = vmatpush1.msra.mxu0 0.0
  %5790 = vmatprep.subr.mxu0 0.0
  %5791 = vmatpush1.msra.mxu0 0.0
  %5792 = vmatprep.subr.mxu0 0.0
  %5793 = vmatpush1.msra.mxu0 0.0
  %5794 = vmatprep.subr.mxu0 0.0
  %5795 = vmatpush1.msra.mxu0 0.0
  %5796 = vmatprep.subr.mxu0 0.0
  %5797 = vmatpush1.msra.mxu0 0.0
  %5798 = vmatprep.subr.mxu0 0.0
  %5799 = vmatpush1.msra.mxu0 0.0
  %5800 = vmatprep.subr.mxu0 0.0
  %5801 = vmatpush1.msra.mxu0 0.0
  %5802 = vmatprep.subr.mxu0 0.0
  %5803 = vmatpush1.msra.mxu0 0.0
  %5804 = vmatprep.subr.mxu0 0.0
  %5805 = vmatpush1.msra.mxu0 0.0
  %5806 = vmatprep.subr.mxu0 0.0
  %5807 = vmatpush1.msra.mxu0 0.0
  %5808 = vmatprep.subr.mxu0 0.0
  %5809 = vmatpush1.msra.mxu0 0.0
  %5810 = vmatprep.subr.mxu0 0.0
  %5811 = vmatpush1.msra.mxu0 0.0
  %5812 = vmatprep.subr.mxu0 0.0
  %5813 = vmatpush1.msra.mxu0 0.0
  %5814 = vmatprep.subr.mxu0 0.0
  %5815 = vmatpush1.msra.mxu0 0.0
  %5816 = vmatprep.mubr.f32.mxu0 0.0
  %5817 = vmatmul.mubr.f32.gmra.mrb[0].mxu0 %v2253
  %v5818 = vpop.f32.mrb[0].mxu0
  %v5819 = vadd.f32 0.0, %v5818
  %v5820 = vpop.f32.mrb[0].mxu0
  %5821 = vdwg.mxu0
  %v5822 = vadd.f32 %v5749, %v5819
  %v5824 = vlaneseq
  %v5825 = vshrl.u32 %v5824, 7
  %v5826 = vsub.s32 0, %v5825
  %v5827 = vrot.slane %v5611, %v5826
  %v5829 = vadd.f32 %v5822, %v5827
  %v5830 = vld [vmem:[%s4076] sm:$0xff]
  %v5831 = vld [vmem:[%s4076 + $0x8] sm:$0xff]
  %v5832 = vld [vmem:[%s4076 + $0x10] sm:$0xff]
  %v5833 = vld [vmem:[%s4076 + $0x18] sm:$0xff]
  %v5834 = vld [vmem:[%s4081] sm:$0xff]
  %v5835 = vld [vmem:[%s4081 + $0x8] sm:$0xff]
  %v5836 = vld [vmem:[%s4081 + $0x10] sm:$0xff]
  %v5837 = vld [vmem:[%s4081 + $0x18] sm:$0xff]
  %v5838 = vld [vmem:[%s4086] sm:$0xff]
  %v5839 = vld [vmem:[%s4086 + $0x8] sm:$0xff]
  %v5840 = vld [vmem:[%s4086 + $0x10] sm:$0xff]
  %v5841 = vld [vmem:[%s4086 + $0x18] sm:$0xff]
  %v5842 = vld [vmem:[%s4091] sm:$0x1]
  %v5843 = vld [vmem:[%s4093] sm:$0xff]
  %v5844 = vld [vmem:[%s4093 + $0x8] sm:$0xff]
  %v5845 = vld [vmem:[%s4093 + $0x10] sm:$0xff]
  %v5846 = vld [vmem:[%s4093 + $0x18] sm:$0xff]
  %v5847 = vld [vmem:[%s4098] sm:$0x1]
  %v5848 = vmax.f32 %v5829, 0.0
  %5849 = vmatprep.subr.mxu0 0.0
  %5850 = vmatpush1.msra.mxu0 %v5848
  %5851 = vmatprep.subr.mxu0 0.0
  %5852 = vmatpush1.msra.mxu0 0.0
  %5853 = vmatprep.subr.mxu0 0.0
  %5854 = vmatpush1.msra.mxu0 0.0
  %5855 = vmatprep.subr.mxu0 0.0
  %5856 = vmatpush1.msra.mxu0 0.0
  %5857 = vmatprep.subr.mxu0 0.0
  %5858 = vmatpush1.msra.mxu0 0.0
  %5859 = vmatprep.subr.mxu0 0.0
  %5860 = vmatpush1.msra.mxu0 0.0
  %5861 = vmatprep.subr.mxu0 0.0
  %5862 = vmatpush1.msra.mxu0 0.0
  %5863 = vmatprep.subr.mxu0 0.0
  %5864 = vmatpush1.msra.mxu0 0.0
  %5865 = vmatprep.subr.mxu0 0.0
  %5866 = vmatpush1.msra.mxu0 0.0
  %5867 = vmatprep.subr.mxu0 0.0
  %5868 = vmatpush1.msra.mxu0 0.0
  %5869 = vmatprep.subr.mxu0 0.0
  %5870 = vmatpush1.msra.mxu0 0.0
  %5871 = vmatprep.subr.mxu0 0.0
  %5872 = vmatpush1.msra.mxu0 0.0
  %5873 = vmatprep.subr.mxu0 0.0
  %5874 = vmatpush1.msra.mxu0 0.0
  %5875 = vmatprep.subr.mxu0 0.0
  %5876 = vmatpush1.msra.mxu0 0.0
  %5877 = vmatprep.subr.mxu0 0.0
  %5878 = vmatpush1.msra.mxu0 0.0
  %5879 = vmatprep.subr.mxu0 0.0
  %5880 = vmatpush1.msra.mxu0 0.0
  %5881 = vmatprep.subr.mxu0 0.0
  %5882 = vmatpush1.msra.mxu0 0.0
  %5883 = vmatprep.subr.mxu0 0.0
  %5884 = vmatpush1.msra.mxu0 0.0
  %5885 = vmatprep.subr.mxu0 0.0
  %5886 = vmatpush1.msra.mxu0 0.0
  %5887 = vmatprep.subr.mxu0 0.0
  %5888 = vmatpush1.msra.mxu0 0.0
  %5889 = vmatprep.subr.mxu0 0.0
  %5890 = vmatpush1.msra.mxu0 0.0
  %5891 = vmatprep.subr.mxu0 0.0
  %5892 = vmatpush1.msra.mxu0 0.0
  %5893 = vmatprep.subr.mxu0 0.0
  %5894 = vmatpush1.msra.mxu0 0.0
  %5895 = vmatprep.subr.mxu0 0.0
  %5896 = vmatpush1.msra.mxu0 0.0
  %5897 = vmatprep.subr.mxu0 0.0
  %5898 = vmatpush1.msra.mxu0 0.0
  %5899 = vmatprep.subr.mxu0 0.0
  %5900 = vmatpush1.msra.mxu0 0.0
  %5901 = vmatprep.subr.mxu0 0.0
  %5902 = vmatpush1.msra.mxu0 0.0
  %5903 = vmatprep.subr.mxu0 0.0
  %5904 = vmatpush1.msra.mxu0 0.0
  %5905 = vmatprep.subr.mxu0 0.0
  %5906 = vmatpush1.msra.mxu0 0.0
  %5907 = vmatprep.subr.mxu0 0.0
  %5908 = vmatpush1.msra.mxu0 0.0
  %5909 = vmatprep.subr.mxu0 0.0
  %5910 = vmatpush1.msra.mxu0 0.0
  %5911 = vmatprep.subr.mxu0 0.0
  %5912 = vmatpush1.msra.mxu0 0.0
  %5913 = vmatprep.mubr.f32.mxu0 0.0
  %5914 = vmatmul.mubr.f32.gmra.mrb[0].mxu0 %v65
  %v5915 = vpop.f32.mrb[0].mxu0
  %v5916 = vadd.f32 0.0, %v5915
  %v5917 = vpop.f32.mrb[0].mxu0
  %5918 = vdwg.mxu0
  %v5920 = vsel %vm529, %v5848, 0
  %5922 = vmatprep.subr.mxu0 0.0
  %5923 = vmatpush1.msra.mxu0 %v5834
  %5924 = vmatprep.subr.mxu0 0.0
  %5925 = vmatpush1.msra.mxu0 %v5835
  %5926 = vmatprep.subr.mxu0 0.0
  %5927 = vmatpush1.msra.mxu0 %v5836
  %5928 = vmatprep.subr.mxu0 0.0
  %5929 = vmatpush1.msra.mxu0 %v5837
  %5930 = vmatprep.subr.mxu0 0.0
  %5931 = vmatpush1.msra.mxu0 0.0
  %5932 = vmatprep.subr.mxu0 0.0
  %5933 = vmatpush1.msra.mxu0 0.0
  %5934 = vmatprep.subr.mxu0 0.0
  %5935 = vmatpush1.msra.mxu0 0.0
  %5936 = vmatprep.subr.mxu0 0.0
  %5937 = vmatpush1.msra.mxu0 0.0
  %5938 = vmatprep.subr.mxu0 0.0
  %5939 = vmatpush1.msra.mxu0 0.0
  %5940 = vmatprep.subr.mxu0 0.0
  %5941 = vmatpush1.msra.mxu0 0.0
  %5942 = vmatprep.subr.mxu0 0.0
  %5943 = vmatpush1.msra.mxu0 0.0
  %5944 = vmatprep.subr.mxu0 0.0
  %5945 = vmatpush1.msra.mxu0 0.0
  %5946 = vmatprep.subr.mxu0 0.0
  %5947 = vmatpush1.msra.mxu0 0.0
  %5948 = vmatprep.subr.mxu0 0.0
  %5949 = vmatpush1.msra.mxu0 0.0
  %5950 = vmatprep.subr.mxu0 0.0
  %5951 = vmatpush1.msra.mxu0 0.0
  %5952 = vmatprep.subr.mxu0 0.0
  %5953 = vmatpush1.msra.mxu0 0.0
  %5954 = vmatprep.subr.mxu0 0.0
  %5955 = vmatpush1.msra.mxu0 0.0
  %5956 = vmatprep.subr.mxu0 0.0
  %5957 = vmatpush1.msra.mxu0 0.0
  %5958 = vmatprep.subr.mxu0 0.0
  %5959 = vmatpush1.msra.mxu0 0.0
  %5960 = vmatprep.subr.mxu0 0.0
  %5961 = vmatpush1.msra.mxu0 0.0
  %5962 = vmatprep.subr.mxu0 0.0
  %5963 = vmatpush1.msra.mxu0 0.0
  %5964 = vmatprep.subr.mxu0 0.0
  %5965 = vmatpush1.msra.mxu0 0.0
  %5966 = vmatprep.subr.mxu0 0.0
  %5967 = vmatpush1.msra.mxu0 0.0
  %5968 = vmatprep.subr.mxu0 0.0
  %5969 = vmatpush1.msra.mxu0 0.0
  %5970 = vmatprep.subr.mxu0 0.0
  %5971 = vmatpush1.msra.mxu0 0.0
  %5972 = vmatprep.subr.mxu0 0.0
  %5973 = vmatpush1.msra.mxu0 0.0
  %5974 = vmatprep.subr.mxu0 0.0
  %5975 = vmatpush1.msra.mxu0 0.0
  %5976 = vmatprep.subr.mxu0 0.0
  %5977 = vmatpush1.msra.mxu0 0.0
  %5978 = vmatprep.subr.mxu0 0.0
  %5979 = vmatpush1.msra.mxu0 0.0
  %5980 = vmatprep.subr.mxu0 0.0
  %5981 = vmatpush1.msra.mxu0 0.0
  %5982 = vmatprep.subr.mxu0 0.0
  %5983 = vmatpush1.msra.mxu0 0.0
  %5984 = vmatprep.subr.mxu0 0.0
  %5985 = vmatpush1.msra.mxu0 0.0
  %5986 = vmatprep.mubr.f32.mxu0 0.0
  %5987 = vmatmul.mubr.f32.gmra.mrb[0].mxu0 %v5920
  %v5988 = vpop.f32.mrb[0].mxu0
  %v5989 = vadd.f32 0.0, %v5988
  %v5990 = vpop.f32.mrb[0].mxu0
  %5991 = vdwg.mxu0
  %v5993 = vsel %vm529, %v5916, 0
  %5995 = vmatprep.subr.mxu0 0.0
  %5996 = vmatpush1.msra.mxu0 %v5830
  %5997 = vmatprep.subr.mxu0 0.0
  %5998 = vmatpush1.msra.mxu0 %v5831
  %5999 = vmatprep.subr.mxu0 0.0
  %6000 = vmatpush1.msra.mxu0 %v5832
  %6001 = vmatprep.subr.mxu0 0.0
  %6002 = vmatpush1.msra.mxu0 %v5833
  %6003 = vmatprep.subr.mxu0 0.0
  %6004 = vmatpush1.msra.mxu0 0.0
  %6005 = vmatprep.subr.mxu0 0.0
  %6006 = vmatpush1.msra.mxu0 0.0
  %6007 = vmatprep.subr.mxu0 0.0
  %6008 = vmatpush1.msra.mxu0 0.0
  %6009 = vmatprep.subr.mxu0 0.0
  %6010 = vmatpush1.msra.mxu0 0.0
  %6011 = vmatprep.subr.mxu0 0.0
  %6012 = vmatpush1.msra.mxu0 0.0
  %6013 = vmatprep.subr.mxu0 0.0
  %6014 = vmatpush1.msra.mxu0 0.0
  %6015 = vmatprep.subr.mxu0 0.0
  %6016 = vmatpush1.msra.mxu0 0.0
  %6017 = vmatprep.subr.mxu0 0.0
  %6018 = vmatpush1.msra.mxu0 0.0
  %6019 = vmatprep.subr.mxu0 0.0
  %6020 = vmatpush1.msra.mxu0 0.0
  %6021 = vmatprep.subr.mxu0 0.0
  %6022 = vmatpush1.msra.mxu0 0.0
  %6023 = vmatprep.subr.mxu0 0.0
  %6024 = vmatpush1.msra.mxu0 0.0
  %6025 = vmatprep.subr.mxu0 0.0
  %6026 = vmatpush1.msra.mxu0 0.0
  %6027 = vmatprep.subr.mxu0 0.0
  %6028 = vmatpush1.msra.mxu0 0.0
  %6029 = vmatprep.subr.mxu0 0.0
  %6030 = vmatpush1.msra.mxu0 0.0
  %6031 = vmatprep.subr.mxu0 0.0
  %6032 = vmatpush1.msra.mxu0 0.0
  %6033 = vmatprep.subr.mxu0 0.0
  %6034 = vmatpush1.msra.mxu0 0.0
  %6035 = vmatprep.subr.mxu0 0.0
  %6036 = vmatpush1.msra.mxu0 0.0
  %6037 = vmatprep.subr.mxu0 0.0
  %6038 = vmatpush1.msra.mxu0 0.0
  %6039 = vmatprep.subr.mxu0 0.0
  %6040 = vmatpush1.msra.mxu0 0.0
  %6041 = vmatprep.subr.mxu0 0.0
  %6042 = vmatpush1.msra.mxu0 0.0
  %6043 = vmatprep.subr.mxu0 0.0
  %6044 = vmatpush1.msra.mxu0 0.0
  %6045 = vmatprep.subr.mxu0 0.0
  %6046 = vmatpush1.msra.mxu0 0.0
  %6047 = vmatprep.subr.mxu0 0.0
  %6048 = vmatpush1.msra.mxu0 0.0
  %6049 = vmatprep.subr.mxu0 0.0
  %6050 = vmatpush1.msra.mxu0 0.0
  %6051 = vmatprep.subr.mxu0 0.0
  %6052 = vmatpush1.msra.mxu0 0.0
  %6053 = vmatprep.subr.mxu0 0.0
  %6054 = vmatpush1.msra.mxu0 0.0
  %6055 = vmatprep.subr.mxu0 0.0
  %6056 = vmatpush1.msra.mxu0 0.0
  %6057 = vmatprep.subr.mxu0 0.0
  %6058 = vmatpush1.msra.mxu0 0.0
  %6059 = vmatprep.mubr.f32.mxu0 0.0
  %6060 = vmatmul.mubr.f32.gmra.mrb[0].mxu0 %v5993
  %v6061 = vpop.f32.mrb[0].mxu0
  %v6062 = vadd.f32 %v5989, %v6061
  %v6063 = vpop.f32.mrb[0].mxu0
  %6064 = vdwg.mxu0
  %6065 = vmatprep.subr.mxu0 0.0
  %6066 = vmatpush1.msra.mxu0 %v5848
  %6067 = vmatprep.subr.mxu0 0.0
  %6068 = vmatpush1.msra.mxu0 0.0
  %6069 = vmatprep.subr.mxu0 0.0
  %6070 = vmatpush1.msra.mxu0 0.0
  %6071 = vmatprep.subr.mxu0 0.0
  %6072 = vmatpush1.msra.mxu0 0.0
  %6073 = vmatprep.subr.mxu0 0.0
  %6074 = vmatpush1.msra.mxu0 0.0
  %6075 = vmatprep.subr.mxu0 0.0
  %6076 = vmatpush1.msra.mxu0 0.0
  %6077 = vmatprep.subr.mxu0 0.0
  %6078 = vmatpush1.msra.mxu0 0.0
  %6079 = vmatprep.subr.mxu0 0.0
  %6080 = vmatpush1.msra.mxu0 0.0
  %6081 = vmatprep.subr.mxu0 0.0
  %6082 = vmatpush1.msra.mxu0 0.0
  %6083 = vmatprep.subr.mxu0 0.0
  %6084 = vmatpush1.msra.mxu0 0.0
  %6085 = vmatprep.subr.mxu0 0.0
  %6086 = vmatpush1.msra.mxu0 0.0
  %6087 = vmatprep.subr.mxu0 0.0
  %6088 = vmatpush1.msra.mxu0 0.0
  %6089 = vmatprep.subr.mxu0 0.0
  %6090 = vmatpush1.msra.mxu0 0.0
  %6091 = vmatprep.subr.mxu0 0.0
  %6092 = vmatpush1.msra.mxu0 0.0
  %6093 = vmatprep.subr.mxu0 0.0
  %6094 = vmatpush1.msra.mxu0 0.0
  %6095 = vmatprep.subr.mxu0 0.0
  %6096 = vmatpush1.msra.mxu0 0.0
  %6097 = vmatprep.subr.mxu0 0.0
  %6098 = vmatpush1.msra.mxu0 0.0
  %6099 = vmatprep.subr.mxu0 0.0
  %6100 = vmatpush1.msra.mxu0 0.0
  %6101 = vmatprep.subr.mxu0 0.0
  %6102 = vmatpush1.msra.mxu0 0.0
  %6103 = vmatprep.subr.mxu0 0.0
  %6104 = vmatpush1.msra.mxu0 0.0
  %6105 = vmatprep.subr.mxu0 0.0
  %6106 = vmatpush1.msra.mxu0 0.0
  %6107 = vmatprep.subr.mxu0 0.0
  %6108 = vmatpush1.msra.mxu0 0.0
  %6109 = vmatprep.subr.mxu0 0.0
  %6110 = vmatpush1.msra.mxu0 0.0
  %6111 = vmatprep.subr.mxu0 0.0
  %6112 = vmatpush1.msra.mxu0 0.0
  %6113 = vmatprep.subr.mxu0 0.0
  %6114 = vmatpush1.msra.mxu0 0.0
  %6115 = vmatprep.subr.mxu0 0.0
  %6116 = vmatpush1.msra.mxu0 0.0
  %6117 = vmatprep.subr.mxu0 0.0
  %6118 = vmatpush1.msra.mxu0 0.0
  %6119 = vmatprep.subr.mxu0 0.0
  %6120 = vmatpush1.msra.mxu0 0.0
  %6121 = vmatprep.subr.mxu0 0.0
  %6122 = vmatpush1.msra.mxu0 0.0
  %6123 = vmatprep.subr.mxu0 0.0
  %6124 = vmatpush1.msra.mxu0 0.0
  %6125 = vmatprep.subr.mxu0 0.0
  %6126 = vmatpush1.msra.mxu0 0.0
  %6127 = vmatprep.subr.mxu0 0.0
  %6128 = vmatpush1.msra.mxu0 0.0
  %6129 = vmatprep.mubr.f32.mxu0 0.0
  %6130 = vmatmul.mubr.f32.gmra.mrb[0].mxu0 %v285
  %v6131 = vpop.f32.mrb[0].mxu0
  %v6132 = vadd.f32 0.0, %v6131
  %v6133 = vpop.f32.mrb[0].mxu0
  %6134 = vdwg.mxu0
  %v6136 = vsel %vm529, %v6132, 0
  %6138 = vmatprep.subr.mxu0 0.0
  %6139 = vmatpush1.msra.mxu0 %v5838
  %6140 = vmatprep.subr.mxu0 0.0
  %6141 = vmatpush1.msra.mxu0 %v5839
  %6142 = vmatprep.subr.mxu0 0.0
  %6143 = vmatpush1.msra.mxu0 %v5840
  %6144 = vmatprep.subr.mxu0 0.0
  %6145 = vmatpush1.msra.mxu0 %v5841
  %6146 = vmatprep.subr.mxu0 0.0
  %6147 = vmatpush1.msra.mxu0 0.0
  %6148 = vmatprep.subr.mxu0 0.0
  %6149 = vmatpush1.msra.mxu0 0.0
  %6150 = vmatprep.subr.mxu0 0.0
  %6151 = vmatpush1.msra.mxu0 0.0
  %6152 = vmatprep.subr.mxu0 0.0
  %6153 = vmatpush1.msra.mxu0 0.0
  %6154 = vmatprep.subr.mxu0 0.0
  %6155 = vmatpush1.msra.mxu0 0.0
  %6156 = vmatprep.subr.mxu0 0.0
  %6157 = vmatpush1.msra.mxu0 0.0
  %6158 = vmatprep.subr.mxu0 0.0
  %6159 = vmatpush1.msra.mxu0 0.0
  %6160 = vmatprep.subr.mxu0 0.0
  %6161 = vmatpush1.msra.mxu0 0.0
  %6162 = vmatprep.subr.mxu0 0.0
  %6163 = vmatpush1.msra.mxu0 0.0
  %6164 = vmatprep.subr.mxu0 0.0
  %6165 = vmatpush1.msra.mxu0 0.0
  %6166 = vmatprep.subr.mxu0 0.0
  %6167 = vmatpush1.msra.mxu0 0.0
  %6168 = vmatprep.subr.mxu0 0.0
  %6169 = vmatpush1.msra.mxu0 0.0
  %6170 = vmatprep.subr.mxu0 0.0
  %6171 = vmatpush1.msra.mxu0 0.0
  %6172 = vmatprep.subr.mxu0 0.0
  %6173 = vmatpush1.msra.mxu0 0.0
  %6174 = vmatprep.subr.mxu0 0.0
  %6175 = vmatpush1.msra.mxu0 0.0
  %6176 = vmatprep.subr.mxu0 0.0
  %6177 = vmatpush1.msra.mxu0 0.0
  %6178 = vmatprep.subr.mxu0 0.0
  %6179 = vmatpush1.msra.mxu0 0.0
  %6180 = vmatprep.subr.mxu0 0.0
  %6181 = vmatpush1.msra.mxu0 0.0
  %6182 = vmatprep.subr.mxu0 0.0
  %6183 = vmatpush1.msra.mxu0 0.0
  %6184 = vmatprep.subr.mxu0 0.0
  %6185 = vmatpush1.msra.mxu0 0.0
  %6186 = vmatprep.subr.mxu0 0.0
  %6187 = vmatpush1.msra.mxu0 0.0
  %6188 = vmatprep.subr.mxu0 0.0
  %6189 = vmatpush1.msra.mxu0 0.0
  %6190 = vmatprep.subr.mxu0 0.0
  %6191 = vmatpush1.msra.mxu0 0.0
  %6192 = vmatprep.subr.mxu0 0.0
  %6193 = vmatpush1.msra.mxu0 0.0
  %6194 = vmatprep.subr.mxu0 0.0
  %6195 = vmatpush1.msra.mxu0 0.0
  %6196 = vmatprep.subr.mxu0 0.0
  %6197 = vmatpush1.msra.mxu0 0.0
  %6198 = vmatprep.subr.mxu0 0.0
  %6199 = vmatpush1.msra.mxu0 0.0
  %6200 = vmatprep.subr.mxu0 0.0
  %6201 = vmatpush1.msra.mxu0 0.0
  %6202 = vmatprep.mubr.f32.mxu0 0.0
  %6203 = vmatmul.mubr.f32.gmra.mrb[0].mxu0 %v6136
  %v6204 = vpop.f32.mrb[0].mxu0
  %v6205 = vadd.f32 0.0, %v6204
  %v6206 = vpop.f32.mrb[0].mxu0
  %6207 = vdwg.mxu0
  %v6208 = vadd.f32 %v6062, %v6205
  %v6210 = vlaneseq
  %v6211 = vshrl.u32 %v6210, 7
  %v6212 = vsub.s32 0, %v6211
  %v6213 = vrot.slane %v5842, %v6212
  %v6215 = vadd.f32 %v6208, %v6213
  %v6216 = vmax.f32 %v6215, 0.0
  %v6218 = vlaneseq
  %v6219 = vshrl.u32 %v6218, 7
  %v6220 = vsub.s32 0, %v6219
  %v6221 = vrot.slane %v5847, %v6220
  %v6224 = vsel %vm529, %v6216, 0
  %6226 = vmatprep.subr.mxu0 0.0
  %6227 = vmatpush1.msra.mxu0 %v5843
  %6228 = vmatprep.subr.mxu0 0.0
  %6229 = vmatpush1.msra.mxu0 %v5844
  %6230 = vmatprep.subr.mxu0 0.0
  %6231 = vmatpush1.msra.mxu0 %v5845
  %6232 = vmatprep.subr.mxu0 0.0
  %6233 = vmatpush1.msra.mxu0 %v5846
  %6234 = vmatprep.subr.mxu0 0.0
  %6235 = vmatpush1.msra.mxu0 0.0
  %6236 = vmatprep.subr.mxu0 0.0
  %6237 = vmatpush1.msra.mxu0 0.0
  %6238 = vmatprep.subr.mxu0 0.0
  %6239 = vmatpush1.msra.mxu0 0.0
  %6240 = vmatprep.subr.mxu0 0.0
  %6241 = vmatpush1.msra.mxu0 0.0
  %6242 = vmatprep.subr.mxu0 0.0
  %6243 = vmatpush1.msra.mxu0 0.0
  %6244 = vmatprep.subr.mxu0 0.0
  %6245 = vmatpush1.msra.mxu0 0.0
  %6246 = vmatprep.subr.mxu0 0.0
  %6247 = vmatpush1.msra.mxu0 0.0
  %6248 = vmatprep.subr.mxu0 0.0
  %6249 = vmatpush1.msra.mxu0 0.0
  %6250 = vmatprep.subr.mxu0 0.0
  %6251 = vmatpush1.msra.mxu0 0.0
  %6252 = vmatprep.subr.mxu0 0.0
  %6253 = vmatpush1.msra.mxu0 0.0
  %6254 = vmatprep.subr.mxu0 0.0
  %6255 = vmatpush1.msra.mxu0 0.0
  %6256 = vmatprep.subr.mxu0 0.0
  %6257 = vmatpush1.msra.mxu0 0.0
  %6258 = vmatprep.subr.mxu0 0.0
  %6259 = vmatpush1.msra.mxu0 0.0
  %6260 = vmatprep.subr.mxu0 0.0
  %6261 = vmatpush1.msra.mxu0 0.0
  %6262 = vmatprep.subr.mxu0 0.0
  %6263 = vmatpush1.msra.mxu0 0.0
  %6264 = vmatprep.subr.mxu0 0.0
  %6265 = vmatpush1.msra.mxu0 0.0
  %6266 = vmatprep.subr.mxu0 0.0
  %6267 = vmatpush1.msra.mxu0 0.0
  %6268 = vmatprep.subr.mxu0 0.0
  %6269 = vmatpush1.msra.mxu0 0.0
  %6270 = vmatprep.subr.mxu0 0.0
  %6271 = vmatpush1.msra.mxu0 0.0
  %6272 = vmatprep.subr.mxu0 0.0
  %6273 = vmatpush1.msra.mxu0 0.0
  %6274 = vmatprep.subr.mxu0 0.0
  %6275 = vmatpush1.msra.mxu0 0.0
  %6276 = vmatprep.subr.mxu0 0.0
  %6277 = vmatpush1.msra.mxu0 0.0
  %6278 = vmatprep.subr.mxu0 0.0
  %6279 = vmatpush1.msra.mxu0 0.0
  %6280 = vmatprep.subr.mxu0 0.0
  %6281 = vmatpush1.msra.mxu0 0.0
  %6282 = vmatprep.subr.mxu0 0.0
  %6283 = vmatpush1.msra.mxu0 0.0
  %6284 = vmatprep.subr.mxu0 0.0
  %6285 = vmatpush1.msra.mxu0 0.0
  %6286 = vmatprep.subr.mxu0 0.0
  %6287 = vmatpush1.msra.mxu0 0.0
  %6288 = vmatprep.subr.mxu0 0.0
  %6289 = vmatpush1.msra.mxu0 0.0
  %6290 = vmatprep.mubr.f32.mxu0 0.0
  %6291 = vmatmul.mubr.f32.gmra.mrb[0].mxu0 %v6224
  %v6292 = vpop.f32.mrb[0].mxu0
  %v6293 = vadd.f32 %v6221, %v6292
  %v6294 = vpop.f32.mrb[0].mxu0
  %6295 = vdwg.mxu0
  %v6296 = vadd.f32 %v6293, %v5829
  %v6297 = vld [vmem:[%s4549] sm:$0x1]
  %v6298 = vld [vmem:[%s4551] sm:$0xff]
  %v6299 = vld [vmem:[%s4551 + $0x8] sm:$0xff]
  %v6300 = vld [vmem:[%s4551 + $0x10] sm:$0xff]
  %v6301 = vld [vmem:[%s4551 + $0x18] sm:$0xff]
  %6302 = vmatprep.subr.mxu0 0.0
  %6303 = vmatpush1.msra.mxu0 %v6296
  %6304 = vmatprep.subr.mxu0 0.0
  %6305 = vmatpush1.msra.mxu0 0.0
  %6306 = vmatprep.subr.mxu0 0.0
  %6307 = vmatpush1.msra.mxu0 0.0
  %6308 = vmatprep.subr.mxu0 0.0
  %6309 = vmatpush1.msra.mxu0 0.0
  %6310 = vmatprep.subr.mxu0 0.0
  %6311 = vmatpush1.msra.mxu0 0.0
  %6312 = vmatprep.subr.mxu0 0.0
  %6313 = vmatpush1.msra.mxu0 0.0
  %6314 = vmatprep.subr.mxu0 0.0
  %6315 = vmatpush1.msra.mxu0 0.0
  %6316 = vmatprep.subr.mxu0 0.0
  %6317 = vmatpush1.msra.mxu0 0.0
  %6318 = vmatprep.subr.mxu0 0.0
  %6319 = vmatpush1.msra.mxu0 0.0
  %6320 = vmatprep.subr.mxu0 0.0
  %6321 = vmatpush1.msra.mxu0 0.0
  %6322 = vmatprep.subr.mxu0 0.0
  %6323 = vmatpush1.msra.mxu0 0.0
  %6324 = vmatprep.subr.mxu0 0.0
  %6325 = vmatpush1.msra.mxu0 0.0
  %6326 = vmatprep.subr.mxu0 0.0
  %6327 = vmatpush1.msra.mxu0 0.0
  %6328 = vmatprep.subr.mxu0 0.0
  %6329 = vmatpush1.msra.mxu0 0.0
  %6330 = vmatprep.subr.mxu0 0.0
  %6331 = vmatpush1.msra.mxu0 0.0
  %6332 = vmatprep.subr.mxu0 0.0
  %6333 = vmatpush1.msra.mxu0 0.0
  %6334 = vmatprep.subr.mxu0 0.0
  %6335 = vmatpush1.msra.mxu0 0.0
  %6336 = vmatprep.subr.mxu0 0.0
  %6337 = vmatpush1.msra.mxu0 0.0
  %6338 = vmatprep.subr.mxu0 0.0
  %6339 = vmatpush1.msra.mxu0 0.0
  %6340 = vmatprep.subr.mxu0 0.0
  %6341 = vmatpush1.msra.mxu0 0.0
  %6342 = vmatprep.subr.mxu0 0.0
  %6343 = vmatpush1.msra.mxu0 0.0
  %6344 = vmatprep.subr.mxu0 0.0
  %6345 = vmatpush1.msra.mxu0 0.0
  %6346 = vmatprep.subr.mxu0 0.0
  %6347 = vmatpush1.msra.mxu0 0.0
  %6348 = vmatprep.subr.mxu0 0.0
  %6349 = vmatpush1.msra.mxu0 0.0
  %6350 = vmatprep.subr.mxu0 0.0
  %6351 = vmatpush1.msra.mxu0 0.0
  %6352 = vmatprep.subr.mxu0 0.0
  %6353 = vmatpush1.msra.mxu0 0.0
  %6354 = vmatprep.subr.mxu0 0.0
  %6355 = vmatpush1.msra.mxu0 0.0
  %6356 = vmatprep.subr.mxu0 0.0
  %6357 = vmatpush1.msra.mxu0 0.0
  %6358 = vmatprep.subr.mxu0 0.0
  %6359 = vmatpush1.msra.mxu0 0.0
  %6360 = vmatprep.subr.mxu0 0.0
  %6361 = vmatpush1.msra.mxu0 0.0
  %6362 = vmatprep.subr.mxu0 0.0
  %6363 = vmatpush1.msra.mxu0 0.0
  %6364 = vmatprep.subr.mxu0 0.0
  %6365 = vmatpush1.msra.mxu0 0.0
  %6366 = vmatprep.mubr.f32.mxu0 0.0
  %6367 = vmatmul.mubr.f32.gmra.mrb[0].mxu0 %v65
  %v6368 = vpop.f32.mrb[0].mxu0
  %v6369 = vadd.f32 0.0, %v6368
  %v6370 = vpop.f32.mrb[0].mxu0
  %6371 = vdwg.mxu0
  %v6372 = vld [vmem:[%s4626] sm:$0xff]
  %v6373 = vld [vmem:[%s4626 + $0x8] sm:$0xff]
  %v6374 = vld [vmem:[%s4626 + $0x10] sm:$0xff]
  %v6375 = vld [vmem:[%s4626 + $0x18] sm:$0xff]
  %v6377 = vsel %vm529, %v6369, 0
  %6379 = vmatprep.subr.mxu0 0.0
  %6380 = vmatpush1.msra.mxu0 %v6372
  %6381 = vmatprep.subr.mxu0 0.0
  %6382 = vmatpush1.msra.mxu0 %v6373
  %6383 = vmatprep.subr.mxu0 0.0
  %6384 = vmatpush1.msra.mxu0 %v6374
  %6385 = vmatprep.subr.mxu0 0.0
  %6386 = vmatpush1.msra.mxu0 %v6375
  %6387 = vmatprep.subr.mxu0 0.0
  %6388 = vmatpush1.msra.mxu0 0.0
  %6389 = vmatprep.subr.mxu0 0.0
  %6390 = vmatpush1.msra.mxu0 0.0
  %6391 = vmatprep.subr.mxu0 0.0
  %6392 = vmatpush1.msra.mxu0 0.0
  %6393 = vmatprep.subr.mxu0 0.0
  %6394 = vmatpush1.msra.mxu0 0.0
  %6395 = vmatprep.subr.mxu0 0.0
  %6396 = vmatpush1.msra.mxu0 0.0
  %6397 = vmatprep.subr.mxu0 0.0
  %6398 = vmatpush1.msra.mxu0 0.0
  %6399 = vmatprep.subr.mxu0 0.0
  %6400 = vmatpush1.msra.mxu0 0.0
  %6401 = vmatprep.subr.mxu0 0.0
  %6402 = vmatpush1.msra.mxu0 0.0
  %6403 = vmatprep.subr.mxu0 0.0
  %6404 = vmatpush1.msra.mxu0 0.0
  %6405 = vmatprep.subr.mxu0 0.0
  %6406 = vmatpush1.msra.mxu0 0.0
  %6407 = vmatprep.subr.mxu0 0.0
  %6408 = vmatpush1.msra.mxu0 0.0
  %6409 = vmatprep.subr.mxu0 0.0
  %6410 = vmatpush1.msra.mxu0 0.0
  %6411 = vmatprep.subr.mxu0 0.0
  %6412 = vmatpush1.msra.mxu0 0.0
  %6413 = vmatprep.subr.mxu0 0.0
  %6414 = vmatpush1.msra.mxu0 0.0
  %6415 = vmatprep.subr.mxu0 0.0
  %6416 = vmatpush1.msra.mxu0 0.0
  %6417 = vmatprep.subr.mxu0 0.0
  %6418 = vmatpush1.msra.mxu0 0.0
  %6419 = vmatprep.subr.mxu0 0.0
  %6420 = vmatpush1.msra.mxu0 0.0
  %6421 = vmatprep.subr.mxu0 0.0
  %6422 = vmatpush1.msra.mxu0 0.0
  %6423 = vmatprep.subr.mxu0 0.0
  %6424 = vmatpush1.msra.mxu0 0.0
  %6425 = vmatprep.subr.mxu0 0.0
  %6426 = vmatpush1.msra.mxu0 0.0
  %6427 = vmatprep.subr.mxu0 0.0
  %6428 = vmatpush1.msra.mxu0 0.0
  %6429 = vmatprep.subr.mxu0 0.0
  %6430 = vmatpush1.msra.mxu0 0.0
  %6431 = vmatprep.subr.mxu0 0.0
  %6432 = vmatpush1.msra.mxu0 0.0
  %6433 = vmatprep.subr.mxu0 0.0
  %6434 = vmatpush1.msra.mxu0 0.0
  %6435 = vmatprep.subr.mxu0 0.0
  %6436 = vmatpush1.msra.mxu0 0.0
  %6437 = vmatprep.subr.mxu0 0.0
  %6438 = vmatpush1.msra.mxu0 0.0
  %6439 = vmatprep.subr.mxu0 0.0
  %6440 = vmatpush1.msra.mxu0 0.0
  %6441 = vmatprep.subr.mxu0 0.0
  %6442 = vmatpush1.msra.mxu0 0.0
  %6443 = vmatprep.mubr.f32.mxu0 0.0
  %6444 = vmatmul.mubr.f32.gmra.mrb[0].mxu0 %v6377
  %v6445 = vpop.f32.mrb[0].mxu0
  %v6446 = vadd.f32 0.0, %v6445
  %v6447 = vpop.f32.mrb[0].mxu0
  %6448 = vdwg.mxu0
  %v6450 = vsel %vm529, %v6296, 0
  %6452 = vmatprep.subr.mxu0 0.0
  %6453 = vmatpush1.msra.mxu0 %v6298
  %6454 = vmatprep.subr.mxu0 0.0
  %6455 = vmatpush1.msra.mxu0 %v6299
  %6456 = vmatprep.subr.mxu0 0.0
  %6457 = vmatpush1.msra.mxu0 %v6300
  %6458 = vmatprep.subr.mxu0 0.0
  %6459 = vmatpush1.msra.mxu0 %v6301
  %6460 = vmatprep.subr.mxu0 0.0
  %6461 = vmatpush1.msra.mxu0 0.0
  %6462 = vmatprep.subr.mxu0 0.0
  %6463 = vmatpush1.msra.mxu0 0.0
  %6464 = vmatprep.subr.mxu0 0.0
  %6465 = vmatpush1.msra.mxu0 0.0
  %6466 = vmatprep.subr.mxu0 0.0
  %6467 = vmatpush1.msra.mxu0 0.0
  %6468 = vmatprep.subr.mxu0 0.0
  %6469 = vmatpush1.msra.mxu0 0.0
  %6470 = vmatprep.subr.mxu0 0.0
  %6471 = vmatpush1.msra.mxu0 0.0
  %6472 = vmatprep.subr.mxu0 0.0
  %6473 = vmatpush1.msra.mxu0 0.0
  %6474 = vmatprep.subr.mxu0 0.0
  %6475 = vmatpush1.msra.mxu0 0.0
  %6476 = vmatprep.subr.mxu0 0.0
  %6477 = vmatpush1.msra.mxu0 0.0
  %6478 = vmatprep.subr.mxu0 0.0
  %6479 = vmatpush1.msra.mxu0 0.0
  %6480 = vmatprep.subr.mxu0 0.0
  %6481 = vmatpush1.msra.mxu0 0.0
  %6482 = vmatprep.subr.mxu0 0.0
  %6483 = vmatpush1.msra.mxu0 0.0
  %6484 = vmatprep.subr.mxu0 0.0
  %6485 = vmatpush1.msra.mxu0 0.0
  %6486 = vmatprep.subr.mxu0 0.0
  %6487 = vmatpush1.msra.mxu0 0.0
  %6488 = vmatprep.subr.mxu0 0.0
  %6489 = vmatpush1.msra.mxu0 0.0
  %6490 = vmatprep.subr.mxu0 0.0
  %6491 = vmatpush1.msra.mxu0 0.0
  %6492 = vmatprep.subr.mxu0 0.0
  %6493 = vmatpush1.msra.mxu0 0.0
  %6494 = vmatprep.subr.mxu0 0.0
  %6495 = vmatpush1.msra.mxu0 0.0
  %6496 = vmatprep.subr.mxu0 0.0
  %6497 = vmatpush1.msra.mxu0 0.0
  %6498 = vmatprep.subr.mxu0 0.0
  %6499 = vmatpush1.msra.mxu0 0.0
  %6500 = vmatprep.subr.mxu0 0.0
  %6501 = vmatpush1.msra.mxu0 0.0
  %6502 = vmatprep.subr.mxu0 0.0
  %6503 = vmatpush1.msra.mxu0 0.0
  %6504 = vmatprep.subr.mxu0 0.0
  %6505 = vmatpush1.msra.mxu0 0.0
  %6506 = vmatprep.subr.mxu0 0.0
  %6507 = vmatpush1.msra.mxu0 0.0
  %6508 = vmatprep.subr.mxu0 0.0
  %6509 = vmatpush1.msra.mxu0 0.0
  %6510 = vmatprep.subr.mxu0 0.0
  %6511 = vmatpush1.msra.mxu0 0.0
  %6512 = vmatprep.subr.mxu0 0.0
  %6513 = vmatpush1.msra.mxu0 0.0
  %6514 = vmatprep.subr.mxu0 0.0
  %6515 = vmatpush1.msra.mxu0 0.0
  %6516 = vmatprep.mubr.f32.mxu0 0.0
  %6517 = vmatmul.mubr.f32.gmra.mrb[0].mxu0 %v6450
  %v6518 = vpop.f32.mrb[0].mxu0
  %v6519 = vadd.f32 %v6446, %v6518
  %v6520 = vpop.f32.mrb[0].mxu0
  %6521 = vdwg.mxu0
  %v6523 = vlaneseq
  %v6524 = vshrl.u32 %v6523, 7
  %v6525 = vsub.s32 0, %v6524
  %v6526 = vrot.slane %v6297, %v6525
  %v6528 = vadd.f32 %v6519, %v6526
  %v6529 = vld [vmem:[%s4784] sm:$0xff]
  %v6530 = vld [vmem:[%s4784 + $0x8] sm:$0xff]
  %v6531 = vld [vmem:[%s4784 + $0x10] sm:$0xff]
  %v6532 = vld [vmem:[%s4784 + $0x18] sm:$0xff]
  %6533 = vmatprep.subr.mxu0 0.0
  %6534 = vmatpush1.msra.mxu0 %v6296
  %6535 = vmatprep.subr.mxu0 0.0
  %6536 = vmatpush1.msra.mxu0 0.0
  %6537 = vmatprep.subr.mxu0 0.0
  %6538 = vmatpush1.msra.mxu0 0.0
  %6539 = vmatprep.subr.mxu0 0.0
  %6540 = vmatpush1.msra.mxu0 0.0
  %6541 = vmatprep.subr.mxu0 0.0
  %6542 = vmatpush1.msra.mxu0 0.0
  %6543 = vmatprep.subr.mxu0 0.0
  %6544 = vmatpush1.msra.mxu0 0.0
  %6545 = vmatprep.subr.mxu0 0.0
  %6546 = vmatpush1.msra.mxu0 0.0
  %6547 = vmatprep.subr.mxu0 0.0
  %6548 = vmatpush1.msra.mxu0 0.0
  %6549 = vmatprep.subr.mxu0 0.0
  %6550 = vmatpush1.msra.mxu0 0.0
  %6551 = vmatprep.subr.mxu0 0.0
  %6552 = vmatpush1.msra.mxu0 0.0
  %6553 = vmatprep.subr.mxu0 0.0
  %6554 = vmatpush1.msra.mxu0 0.0
  %6555 = vmatprep.subr.mxu0 0.0
  %6556 = vmatpush1.msra.mxu0 0.0
  %6557 = vmatprep.subr.mxu0 0.0
  %6558 = vmatpush1.msra.mxu0 0.0
  %6559 = vmatprep.subr.mxu0 0.0
  %6560 = vmatpush1.msra.mxu0 0.0
  %6561 = vmatprep.subr.mxu0 0.0
  %6562 = vmatpush1.msra.mxu0 0.0
  %6563 = vmatprep.subr.mxu0 0.0
  %6564 = vmatpush1.msra.mxu0 0.0
  %6565 = vmatprep.subr.mxu0 0.0
  %6566 = vmatpush1.msra.mxu0 0.0
  %6567 = vmatprep.subr.mxu0 0.0
  %6568 = vmatpush1.msra.mxu0 0.0
  %6569 = vmatprep.subr.mxu0 0.0
  %6570 = vmatpush1.msra.mxu0 0.0
  %6571 = vmatprep.subr.mxu0 0.0
  %6572 = vmatpush1.msra.mxu0 0.0
  %6573 = vmatprep.subr.mxu0 0.0
  %6574 = vmatpush1.msra.mxu0 0.0
  %6575 = vmatprep.subr.mxu0 0.0
  %6576 = vmatpush1.msra.mxu0 0.0
  %6577 = vmatprep.subr.mxu0 0.0
  %6578 = vmatpush1.msra.mxu0 0.0
  %6579 = vmatprep.subr.mxu0 0.0
  %6580 = vmatpush1.msra.mxu0 0.0
  %6581 = vmatprep.subr.mxu0 0.0
  %6582 = vmatpush1.msra.mxu0 0.0
  %6583 = vmatprep.subr.mxu0 0.0
  %6584 = vmatpush1.msra.mxu0 0.0
  %6585 = vmatprep.subr.mxu0 0.0
  %6586 = vmatpush1.msra.mxu0 0.0
  %6587 = vmatprep.subr.mxu0 0.0
  %6588 = vmatpush1.msra.mxu0 0.0
  %6589 = vmatprep.subr.mxu0 0.0
  %6590 = vmatpush1.msra.mxu0 0.0
  %6591 = vmatprep.subr.mxu0 0.0
  %6592 = vmatpush1.msra.mxu0 0.0
  %6593 = vmatprep.subr.mxu0 0.0
  %6594 = vmatpush1.msra.mxu0 0.0
  %6595 = vmatprep.subr.mxu0 0.0
  %6596 = vmatpush1.msra.mxu0 0.0
  %6597 = vmatprep.mubr.f32.mxu0 0.0
  %6598 = vmatmul.mubr.f32.gmra.mrb[0].mxu0 %v285
  %v6599 = vpop.f32.mrb[0].mxu0
  %v6600 = vadd.f32 0.0, %v6599
  %v6601 = vpop.f32.mrb[0].mxu0
  %6602 = vdwg.mxu0
  %v6603 = vld [vmem:[%s4859] sm:$0xff]
  %v6604 = vld [vmem:[%s4859 + $0x8] sm:$0xff]
  %v6605 = vld [vmem:[%s4859 + $0x10] sm:$0xff]
  %v6606 = vld [vmem:[%s4859 + $0x18] sm:$0xff]
  %v6608 = vsel %vm529, %v6600, 0
  %6610 = vmatprep.subr.mxu0 0.0
  %6611 = vmatpush1.msra.mxu0 %v6603
  %6612 = vmatprep.subr.mxu0 0.0
  %6613 = vmatpush1.msra.mxu0 %v6604
  %6614 = vmatprep.subr.mxu0 0.0
  %6615 = vmatpush1.msra.mxu0 %v6605
  %6616 = vmatprep.subr.mxu0 0.0
  %6617 = vmatpush1.msra.mxu0 %v6606
  %6618 = vmatprep.subr.mxu0 0.0
  %6619 = vmatpush1.msra.mxu0 0.0
  %6620 = vmatprep.subr.mxu0 0.0
  %6621 = vmatpush1.msra.mxu0 0.0
  %6622 = vmatprep.subr.mxu0 0.0
  %6623 = vmatpush1.msra.mxu0 0.0
  %6624 = vmatprep.subr.mxu0 0.0
  %6625 = vmatpush1.msra.mxu0 0.0
  %6626 = vmatprep.subr.mxu0 0.0
  %6627 = vmatpush1.msra.mxu0 0.0
  %6628 = vmatprep.subr.mxu0 0.0
  %6629 = vmatpush1.msra.mxu0 0.0
  %6630 = vmatprep.subr.mxu0 0.0
  %6631 = vmatpush1.msra.mxu0 0.0
  %6632 = vmatprep.subr.mxu0 0.0
  %6633 = vmatpush1.msra.mxu0 0.0
  %6634 = vmatprep.subr.mxu0 0.0
  %6635 = vmatpush1.msra.mxu0 0.0
  %6636 = vmatprep.subr.mxu0 0.0
  %6637 = vmatpush1.msra.mxu0 0.0
  %6638 = vmatprep.subr.mxu0 0.0
  %6639 = vmatpush1.msra.mxu0 0.0
  %6640 = vmatprep.subr.mxu0 0.0
  %6641 = vmatpush1.msra.mxu0 0.0
  %6642 = vmatprep.subr.mxu0 0.0
  %6643 = vmatpush1.msra.mxu0 0.0
  %6644 = vmatprep.subr.mxu0 0.0
  %6645 = vmatpush1.msra.mxu0 0.0
  %6646 = vmatprep.subr.mxu0 0.0
  %6647 = vmatpush1.msra.mxu0 0.0
  %6648 = vmatprep.subr.mxu0 0.0
  %6649 = vmatpush1.msra.mxu0 0.0
  %6650 = vmatprep.subr.mxu0 0.0
  %6651 = vmatpush1.msra.mxu0 0.0
  %6652 = vmatprep.subr.mxu0 0.0
  %6653 = vmatpush1.msra.mxu0 0.0
  %6654 = vmatprep.subr.mxu0 0.0
  %6655 = vmatpush1.msra.mxu0 0.0
  %6656 = vmatprep.subr.mxu0 0.0
  %6657 = vmatpush1.msra.mxu0 0.0
  %6658 = vmatprep.subr.mxu0 0.0
  %6659 = vmatpush1.msra.mxu0 0.0
  %6660 = vmatprep.subr.mxu0 0.0
  %6661 = vmatpush1.msra.mxu0 0.0
  %6662 = vmatprep.subr.mxu0 0.0
  %6663 = vmatpush1.msra.mxu0 0.0
  %6664 = vmatprep.subr.mxu0 0.0
  %6665 = vmatpush1.msra.mxu0 0.0
  %6666 = vmatprep.subr.mxu0 0.0
  %6667 = vmatpush1.msra.mxu0 0.0
  %6668 = vmatprep.subr.mxu0 0.0
  %6669 = vmatpush1.msra.mxu0 0.0
  %6670 = vmatprep.subr.mxu0 0.0
  %6671 = vmatpush1.msra.mxu0 0.0
  %6672 = vmatprep.subr.mxu0 0.0
  %6673 = vmatpush1.msra.mxu0 0.0
  %6674 = vmatprep.mubr.f32.mxu0 0.0
  %6675 = vmatmul.mubr.f32.gmra.mrb[0].mxu0 %v6608
  %v6676 = vpop.f32.mrb[0].mxu0
  %v6677 = vadd.f32 0.0, %v6676
  %v6678 = vpop.f32.mrb[0].mxu0
  %6679 = vdwg.mxu0
  %6680 = vmatprep.subr.mxu0 0.0
  %6681 = vmatpush1.msra.mxu0 %v6529
  %6682 = vmatprep.subr.mxu0 0.0
  %6683 = vmatpush1.msra.mxu0 %v6530
  %6684 = vmatprep.subr.mxu0 0.0
  %6685 = vmatpush1.msra.mxu0 %v6531
  %6686 = vmatprep.subr.mxu0 0.0
  %6687 = vmatpush1.msra.mxu0 %v6532
  %6688 = vmatprep.subr.mxu0 0.0
  %6689 = vmatpush1.msra.mxu0 0.0
  %6690 = vmatprep.subr.mxu0 0.0
  %6691 = vmatpush1.msra.mxu0 0.0
  %6692 = vmatprep.subr.mxu0 0.0
  %6693 = vmatpush1.msra.mxu0 0.0
  %6694 = vmatprep.subr.mxu0 0.0
  %6695 = vmatpush1.msra.mxu0 0.0
  %6696 = vmatprep.subr.mxu0 0.0
  %6697 = vmatpush1.msra.mxu0 0.0
  %6698 = vmatprep.subr.mxu0 0.0
  %6699 = vmatpush1.msra.mxu0 0.0
  %6700 = vmatprep.subr.mxu0 0.0
  %6701 = vmatpush1.msra.mxu0 0.0
  %6702 = vmatprep.subr.mxu0 0.0
  %6703 = vmatpush1.msra.mxu0 0.0
  %6704 = vmatprep.subr.mxu0 0.0
  %6705 = vmatpush1.msra.mxu0 0.0
  %6706 = vmatprep.subr.mxu0 0.0
  %6707 = vmatpush1.msra.mxu0 0.0
  %6708 = vmatprep.subr.mxu0 0.0
  %6709 = vmatpush1.msra.mxu0 0.0
  %6710 = vmatprep.subr.mxu0 0.0
  %6711 = vmatpush1.msra.mxu0 0.0
  %6712 = vmatprep.subr.mxu0 0.0
  %6713 = vmatpush1.msra.mxu0 0.0
  %6714 = vmatprep.subr.mxu0 0.0
  %6715 = vmatpush1.msra.mxu0 0.0
  %6716 = vmatprep.subr.mxu0 0.0
  %6717 = vmatpush1.msra.mxu0 0.0
  %6718 = vmatprep.subr.mxu0 0.0
  %6719 = vmatpush1.msra.mxu0 0.0
  %6720 = vmatprep.subr.mxu0 0.0
  %6721 = vmatpush1.msra.mxu0 0.0
  %6722 = vmatprep.subr.mxu0 0.0
  %6723 = vmatpush1.msra.mxu0 0.0
  %6724 = vmatprep.subr.mxu0 0.0
  %6725 = vmatpush1.msra.mxu0 0.0
  %6726 = vmatprep.subr.mxu0 0.0
  %6727 = vmatpush1.msra.mxu0 0.0
  %6728 = vmatprep.subr.mxu0 0.0
  %6729 = vmatpush1.msra.mxu0 0.0
  %6730 = vmatprep.subr.mxu0 0.0
  %6731 = vmatpush1.msra.mxu0 0.0
  %6732 = vmatprep.subr.mxu0 0.0
  %6733 = vmatpush1.msra.mxu0 0.0
  %6734 = vmatprep.subr.mxu0 0.0
  %6735 = vmatpush1.msra.mxu0 0.0
  %6736 = vmatprep.subr.mxu0 0.0
  %6737 = vmatpush1.msra.mxu0 0.0
  %6738 = vmatprep.subr.mxu0 0.0
  %6739 = vmatpush1.msra.mxu0 0.0
  %6740 = vmatprep.subr.mxu0 0.0
  %6741 = vmatpush1.msra.mxu0 0.0
  %6742 = vmatprep.subr.mxu0 0.0
  %6743 = vmatpush1.msra.mxu0 0.0
  %6744 = vmatprep.mubr.f32.mxu0 0.0
  %6745 = vmatmul.mubr.f32.gmra.mrb[0].mxu0 %v6450
  %v6746 = vpop.f32.mrb[0].mxu0
  %v6747 = vadd.f32 %v6677, %v6746
  %v6748 = vpop.f32.mrb[0].mxu0
  %6749 = vdwg.mxu0
  %v6750 = vadd.f32 %v6747, %v6526
  %v6751 = vld [vmem:[%s5008] sm:$0x1]
  %6752 = vmatprep.subr.mxu0 0.0
  %6753 = vmatpush1.msra.mxu0 %v6750
  %6754 = vmatprep.subr.mxu0 0.0
  %6755 = vmatpush1.msra.mxu0 0.0
  %6756 = vmatprep.subr.mxu0 0.0
  %6757 = vmatpush1.msra.mxu0 0.0
  %6758 = vmatprep.subr.mxu0 0.0
  %6759 = vmatpush1.msra.mxu0 0.0
  %6760 = vmatprep.subr.mxu0 0.0
  %6761 = vmatpush1.msra.mxu0 0.0
  %6762 = vmatprep.subr.mxu0 0.0
  %6763 = vmatpush1.msra.mxu0 0.0
  %6764 = vmatprep.subr.mxu0 0.0
  %6765 = vmatpush1.msra.mxu0 0.0
  %6766 = vmatprep.subr.mxu0 0.0
  %6767 = vmatpush1.msra.mxu0 0.0
  %6768 = vmatprep.subr.mxu0 0.0
  %6769 = vmatpush1.msra.mxu0 0.0
  %6770 = vmatprep.subr.mxu0 0.0
  %6771 = vmatpush1.msra.mxu0 0.0
  %6772 = vmatprep.subr.mxu0 0.0
  %6773 = vmatpush1.msra.mxu0 0.0
  %6774 = vmatprep.subr.mxu0 0.0
  %6775 = vmatpush1.msra.mxu0 0.0
  %6776 = vmatprep.subr.mxu0 0.0
  %6777 = vmatpush1.msra.mxu0 0.0
  %6778 = vmatprep.subr.mxu0 0.0
  %6779 = vmatpush1.msra.mxu0 0.0
  %6780 = vmatprep.subr.mxu0 0.0
  %6781 = vmatpush1.msra.mxu0 0.0
  %6782 = vmatprep.subr.mxu0 0.0
  %6783 = vmatpush1.msra.mxu0 0.0
  %6784 = vmatprep.subr.mxu0 0.0
  %6785 = vmatpush1.msra.mxu0 0.0
  %6786 = vmatprep.subr.mxu0 0.0
  %6787 = vmatpush1.msra.mxu0 0.0
  %6788 = vmatprep.subr.mxu0 0.0
  %6789 = vmatpush1.msra.mxu0 0.0
  %6790 = vmatprep.subr.mxu0 0.0
  %6791 = vmatpush1.msra.mxu0 0.0
  %6792 = vmatprep.subr.mxu0 0.0
  %6793 = vmatpush1.msra.mxu0 0.0
  %6794 = vmatprep.subr.mxu0 0.0
  %6795 = vmatpush1.msra.mxu0 0.0
  %6796 = vmatprep.subr.mxu0 0.0
  %6797 = vmatpush1.msra.mxu0 0.0
  %6798 = vmatprep.subr.mxu0 0.0
  %6799 = vmatpush1.msra.mxu0 0.0
  %6800 = vmatprep.subr.mxu0 0.0
  %6801 = vmatpush1.msra.mxu0 0.0
  %6802 = vmatprep.subr.mxu0 0.0
  %6803 = vmatpush1.msra.mxu0 0.0
  %6804 = vmatprep.subr.mxu0 0.0
  %6805 = vmatpush1.msra.mxu0 0.0
  %6806 = vmatprep.subr.mxu0 0.0
  %6807 = vmatpush1.msra.mxu0 0.0
  %6808 = vmatprep.subr.mxu0 0.0
  %6809 = vmatpush1.msra.mxu0 0.0
  %6810 = vmatprep.subr.mxu0 0.0
  %6811 = vmatpush1.msra.mxu0 0.0
  %6812 = vmatprep.subr.mxu0 0.0
  %6813 = vmatpush1.msra.mxu0 0.0
  %6814 = vmatprep.subr.mxu0 0.0
  %6815 = vmatpush1.msra.mxu0 0.0
  %6816 = vmatprep.mubr.f32.mxu0 0.0
  %6817 = vmatmul.mubr.f32.gmra.mrb[0].mxu0 %v65
  %v6818 = vpop.f32.mrb[0].mxu0
  %v6819 = vadd.f32 0.0, %v6818
  %v6820 = vpop.f32.mrb[0].mxu0
  %6821 = vdwg.mxu0
  %v6822 = vld [vmem:[%s5080] sm:$0xff]
  %v6823 = vld [vmem:[%s5080 + $0x8] sm:$0xff]
  %v6824 = vld [vmem:[%s5083] sm:$0xff]
  %v6825 = vld [vmem:[%s5083 + $0x8] sm:$0xff]
  %v6827 = vsel %vm137, %v6528, 0
  %6829 = vmatprep.subr.mxu0 0.0
  %6830 = vmatpush1.msra.mxu0 %v6824
  %6831 = vmatprep.subr.mxu0 0.0
  %6832 = vmatpush1.msra.mxu0 %v6825
  %6833 = vmatprep.subr.mxu0 0.0
  %6834 = vmatpush1.msra.mxu0 0.0
  %6835 = vmatprep.subr.mxu0 0.0
  %6836 = vmatpush1.msra.mxu0 0.0
  %6837 = vmatprep.subr.mxu0 0.0
  %6838 = vmatpush1.msra.mxu0 0.0
  %6839 = vmatprep.subr.mxu0 0.0
  %6840 = vmatpush1.msra.mxu0 0.0
  %6841 = vmatprep.subr.mxu0 0.0
  %6842 = vmatpush1.msra.mxu0 0.0
  %6843 = vmatprep.subr.mxu0 0.0
  %6844 = vmatpush1.msra.mxu0 0.0
  %6845 = vmatprep.subr.mxu0 0.0
  %6846 = vmatpush1.msra.mxu0 0.0
  %6847 = vmatprep.subr.mxu0 0.0
  %6848 = vmatpush1.msra.mxu0 0.0
  %6849 = vmatprep.subr.mxu0 0.0
  %6850 = vmatpush1.msra.mxu0 0.0
  %6851 = vmatprep.subr.mxu0 0.0
  %6852 = vmatpush1.msra.mxu0 0.0
  %6853 = vmatprep.subr.mxu0 0.0
  %6854 = vmatpush1.msra.mxu0 0.0
  %6855 = vmatprep.subr.mxu0 0.0
  %6856 = vmatpush1.msra.mxu0 0.0
  %6857 = vmatprep.subr.mxu0 0.0
  %6858 = vmatpush1.msra.mxu0 0.0
  %6859 = vmatprep.subr.mxu0 0.0
  %6860 = vmatpush1.msra.mxu0 0.0
  %6861 = vmatprep.subr.mxu0 0.0
  %6862 = vmatpush1.msra.mxu0 0.0
  %6863 = vmatprep.subr.mxu0 0.0
  %6864 = vmatpush1.msra.mxu0 0.0
  %6865 = vmatprep.subr.mxu0 0.0
  %6866 = vmatpush1.msra.mxu0 0.0
  %6867 = vmatprep.subr.mxu0 0.0
  %6868 = vmatpush1.msra.mxu0 0.0
  %6869 = vmatprep.subr.mxu0 0.0
  %6870 = vmatpush1.msra.mxu0 0.0
  %6871 = vmatprep.subr.mxu0 0.0
  %6872 = vmatpush1.msra.mxu0 0.0
  %6873 = vmatprep.subr.mxu0 0.0
  %6874 = vmatpush1.msra.mxu0 0.0
  %6875 = vmatprep.subr.mxu0 0.0
  %6876 = vmatpush1.msra.mxu0 0.0
  %6877 = vmatprep.subr.mxu0 0.0
  %6878 = vmatpush1.msra.mxu0 0.0
  %6879 = vmatprep.subr.mxu0 0.0
  %6880 = vmatpush1.msra.mxu0 0.0
  %6881 = vmatprep.subr.mxu0 0.0
  %6882 = vmatpush1.msra.mxu0 0.0
  %6883 = vmatprep.subr.mxu0 0.0
  %6884 = vmatpush1.msra.mxu0 0.0
  %6885 = vmatprep.subr.mxu0 0.0
  %6886 = vmatpush1.msra.mxu0 0.0
  %6887 = vmatprep.subr.mxu0 0.0
  %6888 = vmatpush1.msra.mxu0 0.0
  %6889 = vmatprep.subr.mxu0 0.0
  %6890 = vmatpush1.msra.mxu0 0.0
  %6891 = vmatprep.subr.mxu0 0.0
  %6892 = vmatpush1.msra.mxu0 0.0
  %6893 = vmatprep.mubr.f32.mxu0 0.0
  %6894 = vmatmul.mubr.f32.gmra.mrb[0].mxu0 %v6827
  %v6895 = vpop.f32.mrb[0].mxu0
  %v6896 = vadd.f32 0.0, %v6895
  %v6897 = vpop.f32.mrb[0].mxu0
  %6898 = vdwg.mxu0
  %v6900 = vsel %vm137, %v6819, 0
  %6902 = vmatprep.subr.mxu0 0.0
  %6903 = vmatpush1.msra.mxu0 %v6822
  %6904 = vmatprep.subr.mxu0 0.0
  %6905 = vmatpush1.msra.mxu0 %v6823
  %6906 = vmatprep.subr.mxu0 0.0
  %6907 = vmatpush1.msra.mxu0 0.0
  %6908 = vmatprep.subr.mxu0 0.0
  %6909 = vmatpush1.msra.mxu0 0.0
  %6910 = vmatprep.subr.mxu0 0.0
  %6911 = vmatpush1.msra.mxu0 0.0
  %6912 = vmatprep.subr.mxu0 0.0
  %6913 = vmatpush1.msra.mxu0 0.0
  %6914 = vmatprep.subr.mxu0 0.0
  %6915 = vmatpush1.msra.mxu0 0.0
  %6916 = vmatprep.subr.mxu0 0.0
  %6917 = vmatpush1.msra.mxu0 0.0
  %6918 = vmatprep.subr.mxu0 0.0
  %6919 = vmatpush1.msra.mxu0 0.0
  %6920 = vmatprep.subr.mxu0 0.0
  %6921 = vmatpush1.msra.mxu0 0.0
  %6922 = vmatprep.subr.mxu0 0.0
  %6923 = vmatpush1.msra.mxu0 0.0
  %6924 = vmatprep.subr.mxu0 0.0
  %6925 = vmatpush1.msra.mxu0 0.0
  %6926 = vmatprep.subr.mxu0 0.0
  %6927 = vmatpush1.msra.mxu0 0.0
  %6928 = vmatprep.subr.mxu0 0.0
  %6929 = vmatpush1.msra.mxu0 0.0
  %6930 = vmatprep.subr.mxu0 0.0
  %6931 = vmatpush1.msra.mxu0 0.0
  %6932 = vmatprep.subr.mxu0 0.0
  %6933 = vmatpush1.msra.mxu0 0.0
  %6934 = vmatprep.subr.mxu0 0.0
  %6935 = vmatpush1.msra.mxu0 0.0
  %6936 = vmatprep.subr.mxu0 0.0
  %6937 = vmatpush1.msra.mxu0 0.0
  %6938 = vmatprep.subr.mxu0 0.0
  %6939 = vmatpush1.msra.mxu0 0.0
  %6940 = vmatprep.subr.mxu0 0.0
  %6941 = vmatpush1.msra.mxu0 0.0
  %6942 = vmatprep.subr.mxu0 0.0
  %6943 = vmatpush1.msra.mxu0 0.0
  %6944 = vmatprep.subr.mxu0 0.0
  %6945 = vmatpush1.msra.mxu0 0.0
  %6946 = vmatprep.subr.mxu0 0.0
  %6947 = vmatpush1.msra.mxu0 0.0
  %6948 = vmatprep.subr.mxu0 0.0
  %6949 = vmatpush1.msra.mxu0 0.0
  %6950 = vmatprep.subr.mxu0 0.0
  %6951 = vmatpush1.msra.mxu0 0.0
  %6952 = vmatprep.subr.mxu0 0.0
  %6953 = vmatpush1.msra.mxu0 0.0
  %6954 = vmatprep.subr.mxu0 0.0
  %6955 = vmatpush1.msra.mxu0 0.0
  %6956 = vmatprep.subr.mxu0 0.0
  %6957 = vmatpush1.msra.mxu0 0.0
  %6958 = vmatprep.subr.mxu0 0.0
  %6959 = vmatpush1.msra.mxu0 0.0
  %6960 = vmatprep.subr.mxu0 0.0
  %6961 = vmatpush1.msra.mxu0 0.0
  %6962 = vmatprep.subr.mxu0 0.0
  %6963 = vmatpush1.msra.mxu0 0.0
  %6964 = vmatprep.subr.mxu0 0.0
  %6965 = vmatpush1.msra.mxu0 0.0
  %6966 = vmatprep.mubr.f32.mxu0 0.0
  %6967 = vmatmul.mubr.f32.gmra.mrb[0].mxu0 %v6900
  %v6968 = vpop.f32.mrb[0].mxu0
  %v6969 = vadd.f32 %v6896, %v6968
  %v6970 = vpop.f32.mrb[0].mxu0
  %6971 = vdwg.mxu0
  %v6972 = vld [vmem:[%s5232] sm:$0xff]
  %v6973 = vld [vmem:[%s5232 + $0x8] sm:$0xff]
  %v6975 = vsel %vm137, %v6750, 0
  %6977 = vmatprep.subr.mxu0 0.0
  %6978 = vmatpush1.msra.mxu0 %v6972
  %6979 = vmatprep.subr.mxu0 0.0
  %6980 = vmatpush1.msra.mxu0 %v6973
  %6981 = vmatprep.subr.mxu0 0.0
  %6982 = vmatpush1.msra.mxu0 0.0
  %6983 = vmatprep.subr.mxu0 0.0
  %6984 = vmatpush1.msra.mxu0 0.0
  %6985 = vmatprep.subr.mxu0 0.0
  %6986 = vmatpush1.msra.mxu0 0.0
  %6987 = vmatprep.subr.mxu0 0.0
  %6988 = vmatpush1.msra.mxu0 0.0
  %6989 = vmatprep.subr.mxu0 0.0
  %6990 = vmatpush1.msra.mxu0 0.0
  %6991 = vmatprep.subr.mxu0 0.0
  %6992 = vmatpush1.msra.mxu0 0.0
  %6993 = vmatprep.subr.mxu0 0.0
  %6994 = vmatpush1.msra.mxu0 0.0
  %6995 = vmatprep.subr.mxu0 0.0
  %6996 = vmatpush1.msra.mxu0 0.0
  %6997 = vmatprep.subr.mxu0 0.0
  %6998 = vmatpush1.msra.mxu0 0.0
  %6999 = vmatprep.subr.mxu0 0.0
  %7000 = vmatpush1.msra.mxu0 0.0
  %7001 = vmatprep.subr.mxu0 0.0
  %7002 = vmatpush1.msra.mxu0 0.0
  %7003 = vmatprep.subr.mxu0 0.0
  %7004 = vmatpush1.msra.mxu0 0.0
  %7005 = vmatprep.subr.mxu0 0.0
  %7006 = vmatpush1.msra.mxu0 0.0
  %7007 = vmatprep.subr.mxu0 0.0
  %7008 = vmatpush1.msra.mxu0 0.0
  %7009 = vmatprep.subr.mxu0 0.0
  %7010 = vmatpush1.msra.mxu0 0.0
  %7011 = vmatprep.subr.mxu0 0.0
  %7012 = vmatpush1.msra.mxu0 0.0
  %7013 = vmatprep.subr.mxu0 0.0
  %7014 = vmatpush1.msra.mxu0 0.0
  %7015 = vmatprep.subr.mxu0 0.0
  %7016 = vmatpush1.msra.mxu0 0.0
  %7017 = vmatprep.subr.mxu0 0.0
  %7018 = vmatpush1.msra.mxu0 0.0
  %7019 = vmatprep.subr.mxu0 0.0
  %7020 = vmatpush1.msra.mxu0 0.0
  %7021 = vmatprep.subr.mxu0 0.0
  %7022 = vmatpush1.msra.mxu0 0.0
  %7023 = vmatprep.subr.mxu0 0.0
  %7024 = vmatpush1.msra.mxu0 0.0
  %7025 = vmatprep.subr.mxu0 0.0
  %7026 = vmatpush1.msra.mxu0 0.0
  %7027 = vmatprep.subr.mxu0 0.0
  %7028 = vmatpush1.msra.mxu0 0.0
  %7029 = vmatprep.subr.mxu0 0.0
  %7030 = vmatpush1.msra.mxu0 0.0
  %7031 = vmatprep.subr.mxu0 0.0
  %7032 = vmatpush1.msra.mxu0 0.0
  %7033 = vmatprep.subr.mxu0 0.0
  %7034 = vmatpush1.msra.mxu0 0.0
  %7035 = vmatprep.subr.mxu0 0.0
  %7036 = vmatpush1.msra.mxu0 0.0
  %7037 = vmatprep.subr.mxu0 0.0
  %7038 = vmatpush1.msra.mxu0 0.0
  %7039 = vmatprep.subr.mxu0 0.0
  %7040 = vmatpush1.msra.mxu0 0.0
  %7041 = vmatprep.mubr.f32.mxu0 0.0
  %7042 = vmatmul.mubr.f32.gmra.mrb[0].mxu0 %v6975
  %v7043 = vpop.f32.mrb[0].mxu0
  %v7044 = vadd.f32 0.0, %v7043
  %v7045 = vpop.f32.mrb[0].mxu0
  %7046 = vdwg.mxu0
  %v7047 = vadd.f32 %v6969, %v7044
  %v7049 = vlaneseq
  %v7050 = vshrl.u32 %v7049, 7
  %v7051 = vsub.s32 0, %v7050
  %v7052 = vrot.slane %v6751, %v7051
  %v7054 = vadd.f32 %v7047, %v7052
  %7055 = vmatprep.subr.mxu0 0.0
  %7056 = vmatpush1.msra.mxu0 %v6824
  %7057 = vmatprep.subr.mxu0 0.0
  %7058 = vmatpush1.msra.mxu0 %v6825
  %7059 = vmatprep.subr.mxu0 0.0
  %7060 = vmatpush1.msra.mxu0 0.0
  %7061 = vmatprep.subr.mxu0 0.0
  %7062 = vmatpush1.msra.mxu0 0.0
  %7063 = vmatprep.subr.mxu0 0.0
  %7064 = vmatpush1.msra.mxu0 0.0
  %7065 = vmatprep.subr.mxu0 0.0
  %7066 = vmatpush1.msra.mxu0 0.0
  %7067 = vmatprep.subr.mxu0 0.0
  %7068 = vmatpush1.msra.mxu0 0.0
  %7069 = vmatprep.subr.mxu0 0.0
  %7070 = vmatpush1.msra.mxu0 0.0
  %7071 = vmatprep.subr.mxu0 0.0
  %7072 = vmatpush1.msra.mxu0 0.0
  %7073 = vmatprep.subr.mxu0 0.0
  %7074 = vmatpush1.msra.mxu0 0.0
  %7075 = vmatprep.subr.mxu0 0.0
  %7076 = vmatpush1.msra.mxu0 0.0
  %7077 = vmatprep.subr.mxu0 0.0
  %7078 = vmatpush1.msra.mxu0 0.0
  %7079 = vmatprep.subr.mxu0 0.0
  %7080 = vmatpush1.msra.mxu0 0.0
  %7081 = vmatprep.subr.mxu0 0.0
  %7082 = vmatpush1.msra.mxu0 0.0
  %7083 = vmatprep.subr.mxu0 0.0
  %7084 = vmatpush1.msra.mxu0 0.0
  %7085 = vmatprep.subr.mxu0 0.0
  %7086 = vmatpush1.msra.mxu0 0.0
  %7087 = vmatprep.subr.mxu0 0.0
  %7088 = vmatpush1.msra.mxu0 0.0
  %7089 = vmatprep.subr.mxu0 0.0
  %7090 = vmatpush1.msra.mxu0 0.0
  %7091 = vmatprep.subr.mxu0 0.0
  %7092 = vmatpush1.msra.mxu0 0.0
  %7093 = vmatprep.subr.mxu0 0.0
  %7094 = vmatpush1.msra.mxu0 0.0
  %7095 = vmatprep.subr.mxu0 0.0
  %7096 = vmatpush1.msra.mxu0 0.0
  %7097 = vmatprep.subr.mxu0 0.0
  %7098 = vmatpush1.msra.mxu0 0.0
  %7099 = vmatprep.subr.mxu0 0.0
  %7100 = vmatpush1.msra.mxu0 0.0
  %7101 = vmatprep.subr.mxu0 0.0
  %7102 = vmatpush1.msra.mxu0 0.0
  %7103 = vmatprep.subr.mxu0 0.0
  %7104 = vmatpush1.msra.mxu0 0.0
  %7105 = vmatprep.subr.mxu0 0.0
  %7106 = vmatpush1.msra.mxu0 0.0
  %7107 = vmatprep.subr.mxu0 0.0
  %7108 = vmatpush1.msra.mxu0 0.0
  %7109 = vmatprep.subr.mxu0 0.0
  %7110 = vmatpush1.msra.mxu0 0.0
  %7111 = vmatprep.subr.mxu0 0.0
  %7112 = vmatpush1.msra.mxu0 0.0
  %7113 = vmatprep.subr.mxu0 0.0
  %7114 = vmatpush1.msra.mxu0 0.0
  %7115 = vmatprep.subr.mxu0 0.0
  %7116 = vmatpush1.msra.mxu0 0.0
  %7117 = vmatprep.subr.mxu0 0.0
  %7118 = vmatpush1.msra.mxu0 0.0
  %7119 = vmatprep.mubr.f32.mxu0 0.0
  %7120 = vmatmul.mubr.f32.gmra.mrb[0].mxu0 %v6975
  %v7121 = vpop.f32.mrb[0].mxu0
  %v7122 = vadd.f32 0.0, %v7121
  %v7123 = vpop.f32.mrb[0].mxu0
  %7124 = vdwg.mxu0
  %7125 = vmatprep.subr.mxu0 0.0
  %7126 = vmatpush1.msra.mxu0 %v6822
  %7127 = vmatprep.subr.mxu0 0.0
  %7128 = vmatpush1.msra.mxu0 %v6823
  %7129 = vmatprep.subr.mxu0 0.0
  %7130 = vmatpush1.msra.mxu0 0.0
  %7131 = vmatprep.subr.mxu0 0.0
  %7132 = vmatpush1.msra.mxu0 0.0
  %7133 = vmatprep.subr.mxu0 0.0
  %7134 = vmatpush1.msra.mxu0 0.0
  %7135 = vmatprep.subr.mxu0 0.0
  %7136 = vmatpush1.msra.mxu0 0.0
  %7137 = vmatprep.subr.mxu0 0.0
  %7138 = vmatpush1.msra.mxu0 0.0
  %7139 = vmatprep.subr.mxu0 0.0
  %7140 = vmatpush1.msra.mxu0 0.0
  %7141 = vmatprep.subr.mxu0 0.0
  %7142 = vmatpush1.msra.mxu0 0.0
  %7143 = vmatprep.subr.mxu0 0.0
  %7144 = vmatpush1.msra.mxu0 0.0
  %7145 = vmatprep.subr.mxu0 0.0
  %7146 = vmatpush1.msra.mxu0 0.0
  %7147 = vmatprep.subr.mxu0 0.0
  %7148 = vmatpush1.msra.mxu0 0.0
  %7149 = vmatprep.subr.mxu0 0.0
  %7150 = vmatpush1.msra.mxu0 0.0
  %7151 = vmatprep.subr.mxu0 0.0
  %7152 = vmatpush1.msra.mxu0 0.0
  %7153 = vmatprep.subr.mxu0 0.0
  %7154 = vmatpush1.msra.mxu0 0.0
  %7155 = vmatprep.subr.mxu0 0.0
  %7156 = vmatpush1.msra.mxu0 0.0
  %7157 = vmatprep.subr.mxu0 0.0
  %7158 = vmatpush1.msra.mxu0 0.0
  %7159 = vmatprep.subr.mxu0 0.0
  %7160 = vmatpush1.msra.mxu0 0.0
  %7161 = vmatprep.subr.mxu0 0.0
  %7162 = vmatpush1.msra.mxu0 0.0
  %7163 = vmatprep.subr.mxu0 0.0
  %7164 = vmatpush1.msra.mxu0 0.0
  %7165 = vmatprep.subr.mxu0 0.0
  %7166 = vmatpush1.msra.mxu0 0.0
  %7167 = vmatprep.subr.mxu0 0.0
  %7168 = vmatpush1.msra.mxu0 0.0
  %7169 = vmatprep.subr.mxu0 0.0
  %7170 = vmatpush1.msra.mxu0 0.0
  %7171 = vmatprep.subr.mxu0 0.0
  %7172 = vmatpush1.msra.mxu0 0.0
  %7173 = vmatprep.subr.mxu0 0.0
  %7174 = vmatpush1.msra.mxu0 0.0
  %7175 = vmatprep.subr.mxu0 0.0
  %7176 = vmatpush1.msra.mxu0 0.0
  %7177 = vmatprep.subr.mxu0 0.0
  %7178 = vmatpush1.msra.mxu0 0.0
  %7179 = vmatprep.subr.mxu0 0.0
  %7180 = vmatpush1.msra.mxu0 0.0
  %7181 = vmatprep.subr.mxu0 0.0
  %7182 = vmatpush1.msra.mxu0 0.0
  %7183 = vmatprep.subr.mxu0 0.0
  %7184 = vmatpush1.msra.mxu0 0.0
  %7185 = vmatprep.subr.mxu0 0.0
  %7186 = vmatpush1.msra.mxu0 0.0
  %7187 = vmatprep.subr.mxu0 0.0
  %7188 = vmatpush1.msra.mxu0 0.0
  %7189 = vmatprep.mubr.f32.mxu0 0.0
  %7190 = vmatmul.mubr.f32.gmra.mrb[0].mxu0 %v6827
  %v7191 = vpop.f32.mrb[0].mxu0
  %v7192 = vadd.f32 %v7122, %v7191
  %v7193 = vpop.f32.mrb[0].mxu0
  %7194 = vdwg.mxu0
  %7195 = vmatprep.subr.mxu0 0.0
  %7196 = vmatpush1.msra.mxu0 %v6528
  %7197 = vmatprep.subr.mxu0 0.0
  %7198 = vmatpush1.msra.mxu0 0.0
  %7199 = vmatprep.subr.mxu0 0.0
  %7200 = vmatpush1.msra.mxu0 0.0
  %7201 = vmatprep.subr.mxu0 0.0
  %7202 = vmatpush1.msra.mxu0 0.0
  %7203 = vmatprep.subr.mxu0 0.0
  %7204 = vmatpush1.msra.mxu0 0.0
  %7205 = vmatprep.subr.mxu0 0.0
  %7206 = vmatpush1.msra.mxu0 0.0
  %7207 = vmatprep.subr.mxu0 0.0
  %7208 = vmatpush1.msra.mxu0 0.0
  %7209 = vmatprep.subr.mxu0 0.0
  %7210 = vmatpush1.msra.mxu0 0.0
  %7211 = vmatprep.subr.mxu0 0.0
  %7212 = vmatpush1.msra.mxu0 0.0
  %7213 = vmatprep.subr.mxu0 0.0
  %7214 = vmatpush1.msra.mxu0 0.0
  %7215 = vmatprep.subr.mxu0 0.0
  %7216 = vmatpush1.msra.mxu0 0.0
  %7217 = vmatprep.subr.mxu0 0.0
  %7218 = vmatpush1.msra.mxu0 0.0
  %7219 = vmatprep.subr.mxu0 0.0
  %7220 = vmatpush1.msra.mxu0 0.0
  %7221 = vmatprep.subr.mxu0 0.0
  %7222 = vmatpush1.msra.mxu0 0.0
  %7223 = vmatprep.subr.mxu0 0.0
  %7224 = vmatpush1.msra.mxu0 0.0
  %7225 = vmatprep.subr.mxu0 0.0
  %7226 = vmatpush1.msra.mxu0 0.0
  %7227 = vmatprep.subr.mxu0 0.0
  %7228 = vmatpush1.msra.mxu0 0.0
  %7229 = vmatprep.subr.mxu0 0.0
  %7230 = vmatpush1.msra.mxu0 0.0
  %7231 = vmatprep.subr.mxu0 0.0
  %7232 = vmatpush1.msra.mxu0 0.0
  %7233 = vmatprep.subr.mxu0 0.0
  %7234 = vmatpush1.msra.mxu0 0.0
  %7235 = vmatprep.subr.mxu0 0.0
  %7236 = vmatpush1.msra.mxu0 0.0
  %7237 = vmatprep.subr.mxu0 0.0
  %7238 = vmatpush1.msra.mxu0 0.0
  %7239 = vmatprep.subr.mxu0 0.0
  %7240 = vmatpush1.msra.mxu0 0.0
  %7241 = vmatprep.subr.mxu0 0.0
  %7242 = vmatpush1.msra.mxu0 0.0
  %7243 = vmatprep.subr.mxu0 0.0
  %7244 = vmatpush1.msra.mxu0 0.0
  %7245 = vmatprep.subr.mxu0 0.0
  %7246 = vmatpush1.msra.mxu0 0.0
  %7247 = vmatprep.subr.mxu0 0.0
  %7248 = vmatpush1.msra.mxu0 0.0
  %7249 = vmatprep.subr.mxu0 0.0
  %7250 = vmatpush1.msra.mxu0 0.0
  %7251 = vmatprep.subr.mxu0 0.0
  %7252 = vmatpush1.msra.mxu0 0.0
  %7253 = vmatprep.subr.mxu0 0.0
  %7254 = vmatpush1.msra.mxu0 0.0
  %7255 = vmatprep.subr.mxu0 0.0
  %7256 = vmatpush1.msra.mxu0 0.0
  %7257 = vmatprep.subr.mxu0 0.0
  %7258 = vmatpush1.msra.mxu0 0.0
  %7259 = vmatprep.mubr.f32.mxu0 0.0
  %7260 = vmatmul.mubr.f32.gmra.mrb[0].mxu0 %v285
  %v7261 = vpop.f32.mrb[0].mxu0
  %v7262 = vadd.f32 0.0, %v7261
  %v7263 = vpop.f32.mrb[0].mxu0
  %7264 = vdwg.mxu0
  %v7266 = vsel %vm137, %v7262, 0
  %7268 = vmatprep.subr.mxu0 0.0
  %7269 = vmatpush1.msra.mxu0 %v6972
  %7270 = vmatprep.subr.mxu0 0.0
  %7271 = vmatpush1.msra.mxu0 %v6973
  %7272 = vmatprep.subr.mxu0 0.0
  %7273 = vmatpush1.msra.mxu0 0.0
  %7274 = vmatprep.subr.mxu0 0.0
  %7275 = vmatpush1.msra.mxu0 0.0
  %7276 = vmatprep.subr.mxu0 0.0
  %7277 = vmatpush1.msra.mxu0 0.0
  %7278 = vmatprep.subr.mxu0 0.0
  %7279 = vmatpush1.msra.mxu0 0.0
  %7280 = vmatprep.subr.mxu0 0.0
  %7281 = vmatpush1.msra.mxu0 0.0
  %7282 = vmatprep.subr.mxu0 0.0
  %7283 = vmatpush1.msra.mxu0 0.0
  %7284 = vmatprep.subr.mxu0 0.0
  %7285 = vmatpush1.msra.mxu0 0.0
  %7286 = vmatprep.subr.mxu0 0.0
  %7287 = vmatpush1.msra.mxu0 0.0
  %7288 = vmatprep.subr.mxu0 0.0
  %7289 = vmatpush1.msra.mxu0 0.0
  %7290 = vmatprep.subr.mxu0 0.0
  %7291 = vmatpush1.msra.mxu0 0.0
  %7292 = vmatprep.subr.mxu0 0.0
  %7293 = vmatpush1.msra.mxu0 0.0
  %7294 = vmatprep.subr.mxu0 0.0
  %7295 = vmatpush1.msra.mxu0 0.0
  %7296 = vmatprep.subr.mxu0 0.0
  %7297 = vmatpush1.msra.mxu0 0.0
  %7298 = vmatprep.subr.mxu0 0.0
  %7299 = vmatpush1.msra.mxu0 0.0
  %7300 = vmatprep.subr.mxu0 0.0
  %7301 = vmatpush1.msra.mxu0 0.0
  %7302 = vmatprep.subr.mxu0 0.0
  %7303 = vmatpush1.msra.mxu0 0.0
  %7304 = vmatprep.subr.mxu0 0.0
  %7305 = vmatpush1.msra.mxu0 0.0
  %7306 = vmatprep.subr.mxu0 0.0
  %7307 = vmatpush1.msra.mxu0 0.0
  %7308 = vmatprep.subr.mxu0 0.0
  %7309 = vmatpush1.msra.mxu0 0.0
  %7310 = vmatprep.subr.mxu0 0.0
  %7311 = vmatpush1.msra.mxu0 0.0
  %7312 = vmatprep.subr.mxu0 0.0
  %7313 = vmatpush1.msra.mxu0 0.0
  %7314 = vmatprep.subr.mxu0 0.0
  %7315 = vmatpush1.msra.mxu0 0.0
  %7316 = vmatprep.subr.mxu0 0.0
  %7317 = vmatpush1.msra.mxu0 0.0
  %7318 = vmatprep.subr.mxu0 0.0
  %7319 = vmatpush1.msra.mxu0 0.0
  %7320 = vmatprep.subr.mxu0 0.0
  %7321 = vmatpush1.msra.mxu0 0.0
  %7322 = vmatprep.subr.mxu0 0.0
  %7323 = vmatpush1.msra.mxu0 0.0
  %7324 = vmatprep.subr.mxu0 0.0
  %7325 = vmatpush1.msra.mxu0 0.0
  %7326 = vmatprep.subr.mxu0 0.0
  %7327 = vmatpush1.msra.mxu0 0.0
  %7328 = vmatprep.subr.mxu0 0.0
  %7329 = vmatpush1.msra.mxu0 0.0
  %7330 = vmatprep.subr.mxu0 0.0
  %7331 = vmatpush1.msra.mxu0 0.0
  %7332 = vmatprep.mubr.f32.mxu0 0.0
  %7333 = vmatmul.mubr.f32.gmra.mrb[0].mxu0 %v7266
  %v7334 = vpop.f32.mrb[0].mxu0
  %v7335 = vadd.f32 0.0, %v7334
  %v7336 = vpop.f32.mrb[0].mxu0
  %7337 = vdwg.mxu0
  %v7338 = vadd.f32 %v7192, %v7335
  %v7339 = vadd.f32 %v7338, %v7052
  %s7340 = scalar_lea.vmem %s11, 24
  %7341 = vst.msk [vmem:[%s7340] sm:$0xff] %vm1956, %v7054
  %s7342 = scalar_lea.vmem %s12, 24
  %7343 = vst.msk [vmem:[%s7342] sm:$0xff] %vm1956, %v7339
  // Predicated region
  $region46: #{_lambda_.4} parent=0 // pred_check
    _
  $region47: #{_lambda_.4} parent=0 // pred_check_branch
    %7345 = sbr.rel (0) target = $region49
  $region48: #{_lambda_.4} parent=0 // pred_region
    _
  $region49: #{_lambda_.4} parent=0 // pred_fallthru
    _
  // Predicated region
  $region50: #{_lambda_.4} parent=0 // pred_check
    _
  $region51: #{_lambda_.4} parent=0 // pred_check_branch
    %7347 = sbr.rel (0) target = $region53
  $region52: #{_lambda_.4} parent=0 // pred_region
    _
  $region53: #{_lambda_.4} parent=0 // pred_fallthru
    _
  // Predicated region
  $region54: #{_lambda_.4} parent=0 // pred_check
    _
  $region55: #{_lambda_.4} parent=0 // pred_check_branch
    %7349 = sbr.rel (0) target = $region57
  $region56: #{_lambda_.4} parent=0 // pred_region
    _
  $region57: #{_lambda_.4} parent=0 // pred_fallthru
    _
  // Predicated region
  $region58: #{_lambda_.4} parent=0 // pred_check
    _
  $region59: #{_lambda_.4} parent=0 // pred_check_branch
    %7351 = sbr.rel (0) target = $region61
  $region60: #{_lambda_.4} parent=0 // pred_region
    _
  $region61: #{_lambda_.4} parent=0 // pred_fallthru
    _

</llo_original>
